<compile_context>
chip_gen: v5e
topology: v5e:2x2
jax: 0.10.0
libtpu: 0.0.40
codegen_flags: <defaults>
</compile_context>

<pallas_src>
import functools

import jax
import jax.numpy as jnp
from jax.experimental import pallas as pl
from jax.experimental.pallas import tpu as pltpu

NUM_OUTPUT = 10   # "num_output" constructor arg
CPAD = 128        # lane-dense channel padding


def _vmem_spec():
    return pl.BlockSpec(memory_space=pltpu.MemorySpace.VMEM)


# ------------------------- fused forward kernel -------------------------

def _simplenet_kernel(num_output,
                      x_ref, w1_ref, b1_ref, w2_ref, b2_ref,
                      wf1_hbm, bf1_ref, wf2_hbm, bf2_ref,
                      o_ref,
                      wf1_ref, wf2_ref, dma_sem, p1_ref, p2_ref):
    # ---- kick off the big fc-weight DMAs first: they overlap the conv stage ----
    wf1_cp = pltpu.make_async_copy(wf1_hbm, wf1_ref, dma_sem.at[0])
    wf2_cp = pltpu.make_async_copy(wf2_hbm, wf2_ref, dma_sem.at[1])
    wf1_cp.start()
    wf2_cp.start()

    nb, lin, _ = x_ref.shape            # (N, 100, 40)
    k1 = w1_ref.shape[0]                # 10
    k2 = w2_ref.shape[0]                # 8
    l1 = lin - k1 + 1                   # 91
    lm1 = l1 - 2                        # 89
    lp1 = l1 // 3                       # 30
    l2 = lp1 - k2 + 1                   # 23
    lm2 = l2 - 2                        # 21
    lp2 = l2 // 3                       # 7
    cpad = o_ref.shape[1]               # 128

    b1 = b1_ref[...]                    # (1, 128) f32
    b2 = b2_ref[...]                    # (1, 128) f32

    # In-kernel stride-3 selection matrices (0/1, bf16): S[l, t] = (t == 3*l).
    s1 = jnp.where(
        jax.lax.broadcasted_iota(jnp.int32, (lp1, lm1), 1)
        == 3 * jax.lax.broadcasted_iota(jnp.int32, (lp1, lm1), 0),
        1.0, 0.0).astype(jnp.bfloat16)                          # (30, 89)
    s2 = jnp.where(
        jax.lax.broadcasted_iota(jnp.int32, (lp2, lm2), 1)
        == 3 * jax.lax.broadcasted_iota(jnp.int32, (lp2, lm2), 0),
        1.0, 0.0).astype(jnp.bfloat16)                          # (7, 21)

    # ---- conv / pool stage, per sample (tiny static batch -> unrolled) ----
    for n in range(nb):
        # conv1 (40 -> 96, k=10): k shifted ref-slice matmuls, f32 accumulation.
        acc = jnp.dot(x_ref[n, 0:l1, :].astype(jnp.bfloat16), w1_ref[0],
                      preferred_element_type=jnp.float32) + b1
        for j in range(1, k1):
            acc = acc + jnp.dot(x_ref[n, j:j + l1, :].astype(jnp.bfloat16),
                                w1_ref[j],
                                preferred_element_type=jnp.float32)
        h = jnp.maximum(acc, 0.0)                               # (91, 128)

        # pool1 (k=3, s=3): windowed max, then stride-3 selection matmul.
        m = jnp.maximum(jnp.maximum(h[0:lm1, :], h[1:lm1 + 1, :]),
                        h[2:lm1 + 2, :])                        # (89, 128)
        p1_ref[...] = jnp.dot(s1, m.astype(jnp.bfloat16),
                              preferred_element_type=jnp.float32)   # (30, 128)

        # conv2 (96 -> 96, k=8): shifted slices come from the staged ref.
        acc = jnp.dot(p1_ref[0:l2, :].astype(jnp.bfloat16), w2_ref[0],
                      preferred_element_type=jnp.float32) + b2
        for j in range(1, k2):
            acc = acc + jnp.dot(p1_ref[j:j + l2, :].astype(jnp.bfloat16),
                                w2_ref[j],
                                preferred_element_type=jnp.float32)
        g = jnp.maximum(acc, 0.0)                               # (23, 128)

        # pool2
        m2 = jnp.maximum(jnp.maximum(g[0:lm2, :], g[1:lm2 + 1, :]),
                         g[2:lm2 + 2, :])                       # (21, 128)
        p2_ref[n] = jnp.dot(s2, m2.astype(jnp.bfloat16),
                            preferred_element_type=jnp.float32)     # (7, 128)

    # fc weights must have landed now — wait right before first use.
    wf1_cp.wait()
    wf2_cp.wait()

    bf1 = bf1_ref[...]                  # (1, 1024) f32
    bf2 = bf2_ref[...]                  # (1, 128)  f32
    p2_all = p2_ref[...]                # (nb, 7, 128) f32

    # ---- fc1 + ReLU, batched over the whole batch (M = nb) ----
    acc = jnp.dot(p2_all[:, 0, :].astype(jnp.bfloat16), wf1_ref[0],
                  preferred_element_type=jnp.float32) + bf1
    for l in range(1, lp2):
        acc = acc + jnp.dot(p2_all[:, l, :].astype(jnp.bfloat16), wf1_ref[l],
                            preferred_element_type=jnp.float32)
    f = jnp.maximum(acc, 0.0)                                   # (nb, 1024)

    # ---- fc2 + ReLU (output padded to 128 lanes) ----
    y = jnp.maximum(jnp.dot(f.astype(jnp.bfloat16), wf2_ref[...],
                            preferred_element_type=jnp.float32) + bf2,
                    0.0)                                        # (nb, 128)

    # ---- log_softmax over the first num_output lanes; one lane-dense store ----
    col = jax.lax.broadcasted_iota(jnp.int32, (nb, cpad), 1)
    ym = jnp.where(col < num_output, y, -jnp.inf)
    mx = jnp.max(ym, axis=1, keepdims=True)
    s = ym - mx
    lse = jnp.log(jnp.sum(jnp.exp(s), axis=1, keepdims=True))
    o_ref[...] = s - lse


def simplenet_forward(x, kp, num_output=NUM_OUTPUT):
    n, _, lin = x.shape
    k1 = kp["w1"].shape[0]
    k2 = kp["w2"].shape[0]
    l1 = lin - k1 + 1
    lp1 = l1 // 3
    l2 = lp1 - k2 + 1
    lp2 = l2 // 3

    x_nlc = jnp.transpose(x, (0, 2, 1)).astype(jnp.float32)   # (N, L, Cin)
    out = pl.pallas_call(
        functools.partial(_simplenet_kernel, num_output),
        out_shape=jax.ShapeDtypeStruct((n, CPAD), jnp.float32),
        in_specs=[
            _vmem_spec(),                         # x
            _vmem_spec(),                         # w1
            _vmem_spec(),                         # b1
            _vmem_spec(),                         # w2
            _vmem_spec(),                         # b2
            pl.BlockSpec(memory_space=pl.ANY),    # wf1 (manual DMA, overlapped)
            _vmem_spec(),                         # bf1
            pl.BlockSpec(memory_space=pl.ANY),    # wf2 (manual DMA, overlapped)
            _vmem_spec(),                         # bf2
        ],
        out_specs=_vmem_spec(),
        scratch_shapes=[
            pltpu.VMEM(kp["wf1"].shape, jnp.bfloat16),   # fc1 weights landing buffer
            pltpu.VMEM(kp["wf2"].shape, jnp.bfloat16),   # fc2 weights landing buffer
            pltpu.SemaphoreType.DMA((2,)),
            pltpu.VMEM((lp1, CPAD), jnp.float32),        # staged p1 (conv2 windows)
            pltpu.VMEM((n, lp2, CPAD), jnp.float32),     # staged p2 (batched FC input)
        ],
        compiler_params=pltpu.CompilerParams(vmem_limit_bytes=32 * 1024 * 1024),
    )(x_nlc, kp["w1"], kp["b1"], kp["w2"], kp["b2"],
      kp["wf1"], kp["bf1"], kp["wf2"], kp["bf2"])
    return out[:, :num_output]


# ------------------------- parameter preparation (once, at init) -------------------------

def prepare_params(params, num_output=NUM_OUTPUT):
    pad_c = CPAD - 96
    # conv1_w (96,40,10) -> (10, 40, 128): w1[j, c, o] = conv1_w[o, c, j]
    w1 = jnp.pad(jnp.transpose(params["conv1_w"], (2, 1, 0)),
                 ((0, 0), (0, 0), (0, pad_c))).astype(jnp.bfloat16)
    b1 = jnp.pad(params["conv1_b"], (0, pad_c)).reshape(1, CPAD).astype(jnp.float32)
    # conv2_w (96,96,8) -> (8, 128, 128)
    w2 = jnp.pad(jnp.transpose(params["conv2_w"], (2, 1, 0)),
                 ((0, 0), (0, pad_c), (0, pad_c))).astype(jnp.bfloat16)
    b2 = jnp.pad(params["conv2_b"], (0, pad_c)).reshape(1, CPAD).astype(jnp.float32)
    # fc1_w (1024, 672) with torch flatten index c*7+l  ->  (7, 128, 1024)
    hid = params["fc1_w"].shape[0]
    wf1 = jnp.transpose(params["fc1_w"].reshape(hid, 96, 7), (2, 1, 0))
    wf1 = jnp.pad(wf1, ((0, 0), (0, pad_c), (0, 0))).astype(jnp.bfloat16)
    bf1 = params["fc1_b"].reshape(1, hid).astype(jnp.float32)
    # fc2_w (num_output, 1024) -> (1024, 128)
    wf2 = jnp.pad(params["fc2_w"].T,
                  ((0, 0), (0, CPAD - num_output))).astype(jnp.bfloat16)
    bf2 = jnp.pad(params["fc2_b"],
                  (0, CPAD - num_output)).reshape(1, CPAD).astype(jnp.float32)
    return {"w1": w1, "b1": b1, "w2": w2, "b2": b2,
            "wf1": wf1, "bf1": bf1, "wf2": wf2, "bf2": bf2}


def init_params(key, num_output):
    ks = jax.random.split(key, 8)

    def u(k, shape, fan_in):
        bound = 1.0 / (float(fan_in) ** 0.5)
        return jax.random.uniform(k, shape, jnp.float32, -bound, bound)

    return {
        "conv1_w": u(ks[0], (96, 40, 10), 40 * 10),
        "conv1_b": u(ks[1], (96,), 40 * 10),
        "conv2_w": u(ks[2], (96, 96, 8), 96 * 8),
        "conv2_b": u(ks[3], (96,), 96 * 8),
        "fc1_w": u(ks[4], (1024, 672), 672),
        "fc1_b": u(ks[5], (1024,), 672),
        "fc2_w": u(ks[6], (num_output, 1024), 1024),
        "fc2_b": u(ks[7], (num_output,), 1024),
    }


# ------------------------- pure-JAX reference (for checking) -------------------------

def reference_forward(x, params):
    def conv1d(h, w, b):
        out = jax.lax.conv_general_dilated(
            h, w, window_strides=(1,), padding="VALID",
            dimension_numbers=("NCH", "OIH", "NCH"))
        return out + b[None, :, None]

    def pool3(h):
        return jax.lax.reduce_window(h, -jnp.inf, jax.lax.max,
                                     (1, 1, 3), (1, 1, 3), "VALID")

    h = pool3(jax.nn.relu(conv1d(x, params["conv1_w"], params["conv1_b"])))
    h = pool3(jax.nn.relu(conv1d(h, params["conv2_w"], params["conv2_b"])))
    h = h.reshape(h.shape[0], -1)
    h = jax.nn.relu(h @ params["fc1_w"].T + params["fc1_b"])
    h = jax.nn.relu(h @ params["fc2_w"].T + params["fc2_b"])
    return jax.nn.log_softmax(h, axis=1)


if __name__ == "__main__":
    key = jax.random.PRNGKey(0)
    k_params, k_x = jax.random.split(key)
    params = init_params(k_params, NUM_OUTPUT)
    kparams = prepare_params(params, NUM_OUTPUT)

    # Input length 100 -> conv1:91 -> pool1:30 -> conv2:23 -> pool2:7 -> 96*7=672 (matches fc1)
    x = jax.random.normal(k_x, (2, 40, 100), jnp.float32)

    out = jax.block_until_ready(jax.jit(simplenet_forward)(x, kparams))

    assert out.shape == (2, NUM_OUTPUT), out.shape
    assert bool(jnp.all(jnp.isfinite(out)))
    assert bool(jnp.allclose(jnp.sum(jnp.exp(out), axis=1), 1.0, atol=1e-4))

    ref = reference_forward(x, params)
    # Weights are stored in bf16 (f32 accumulation), so tolerance is slightly looser.
    assert bool(jnp.allclose(out, ref, atol=2e-2, rtol=2e-2)), \
        float(jnp.max(jnp.abs(out - ref)))
    print("KERNEL_OK")
</pallas_src>

<mosaic_0001>
module attributes {stable_mosaic.version = 11 : i64} {
  func.func @_simplenet_kernel(%arg0: memref<2x100x40xf32, #tpu.memory_space<vmem>>, %arg1: memref<10x40x128xbf16, #tpu.memory_space<vmem>>, %arg2: memref<1x128xf32, #tpu.memory_space<vmem>>, %arg3: memref<8x128x128xbf16, #tpu.memory_space<vmem>>, %arg4: memref<1x128xf32, #tpu.memory_space<vmem>>, %arg5: memref<7x128x1024xbf16, #tpu.memory_space<any>>, %arg6: memref<1x1024xf32, #tpu.memory_space<vmem>>, %arg7: memref<1024x128xbf16, #tpu.memory_space<any>>, %arg8: memref<1x128xf32, #tpu.memory_space<vmem>>, %arg9: memref<2x128xf32, #tpu.memory_space<vmem>>, %arg10: memref<7x128x1024xbf16, #tpu.memory_space<vmem>>, %arg11: memref<1024x128xbf16, #tpu.memory_space<vmem>>, %arg12: memref<2x!tpu.dma_semaphore, #tpu.memory_space<semaphore_mem>>, %arg13: memref<30x128xf32, #tpu.memory_space<vmem>>, %arg14: memref<2x7x128xf32, #tpu.memory_space<vmem>>) attributes {dimension_semantics = [], scalar_prefetch = 0 : i64, scratch_operands = 5 : i64, tpu.core_type = #tpu.core_type<tc>} {
    %c0_i32 = arith.constant 0 : i32
    %0 = tpu.memref_slice %arg12[%c0_i32] : memref<2x!tpu.dma_semaphore, #tpu.memory_space<semaphore_mem>> -> memref<1x!tpu.dma_semaphore, #tpu.memory_space<semaphore_mem>>
    %1 = tpu.memref_squeeze %0 : memref<1x!tpu.dma_semaphore, #tpu.memory_space<semaphore_mem>> -> memref<!tpu.dma_semaphore, #tpu.memory_space<semaphore_mem>>
    tpu.enqueue_dma source(%arg5 : memref<7x128x1024xbf16, #tpu.memory_space<any>>) target(%arg10 : memref<7x128x1024xbf16, #tpu.memory_space<vmem>>) target_semaphore(%1 : memref<!tpu.dma_semaphore, #tpu.memory_space<semaphore_mem>>)
    %c1_i32 = arith.constant 1 : i32
    %2 = tpu.memref_slice %arg12[%c1_i32] : memref<2x!tpu.dma_semaphore, #tpu.memory_space<semaphore_mem>> -> memref<1x!tpu.dma_semaphore, #tpu.memory_space<semaphore_mem>>
    %3 = tpu.memref_squeeze %2 : memref<1x!tpu.dma_semaphore, #tpu.memory_space<semaphore_mem>> -> memref<!tpu.dma_semaphore, #tpu.memory_space<semaphore_mem>>
    tpu.enqueue_dma source(%arg7 : memref<1024x128xbf16, #tpu.memory_space<any>>) target(%arg11 : memref<1024x128xbf16, #tpu.memory_space<vmem>>) target_semaphore(%3 : memref<!tpu.dma_semaphore, #tpu.memory_space<semaphore_mem>>)
    %c0 = arith.constant 0 : index
    %c0_0 = arith.constant 0 : index
    %4 = vector.load %arg2[%c0, %c0_0] : memref<1x128xf32, #tpu.memory_space<vmem>>, vector<1x128xf32>
    %c0_1 = arith.constant 0 : index
    %c0_2 = arith.constant 0 : index
    %5 = vector.load %arg4[%c0_1, %c0_2] : memref<1x128xf32, #tpu.memory_space<vmem>>, vector<1x128xf32>
    %6 = tpu.iota {dimensions = array<i32: 1>} : vector<30x89xi32>
    %7 = tpu.iota {dimensions = array<i32: 0>} : vector<30x89xi32>
    %c3_i32 = arith.constant 3 : i32
    %8 = vector.broadcast %c3_i32 : i32 to vector<30x89xi32>
    %9 = arith.muli %8, %7 : vector<30x89xi32>
    %10 = arith.cmpi eq, %6, %9 : vector<30x89xi32>
    %cst = arith.constant 1.000000e+00 : f32
    %cst_3 = arith.constant 0.000000e+00 : f32
    %11 = vector.broadcast %cst : f32 to vector<30x89xf32>
    %12 = vector.broadcast %cst_3 : f32 to vector<30x89xf32>
    %13 = arith.select %10, %11, %12 : vector<30x89xi1>, vector<30x89xf32>
    %14 = arith.truncf %13 : vector<30x89xf32> to vector<30x89xbf16>
    %15 = tpu.iota {dimensions = array<i32: 1>} : vector<7x21xi32>
    %16 = tpu.iota {dimensions = array<i32: 0>} : vector<7x21xi32>
    %c3_i32_4 = arith.constant 3 : i32
    %17 = vector.broadcast %c3_i32_4 : i32 to vector<7x21xi32>
    %18 = arith.muli %17, %16 : vector<7x21xi32>
    %19 = arith.cmpi eq, %15, %18 : vector<7x21xi32>
    %cst_5 = arith.constant 1.000000e+00 : f32
    %cst_6 = arith.constant 0.000000e+00 : f32
    %20 = vector.broadcast %cst_5 : f32 to vector<7x21xf32>
    %21 = vector.broadcast %cst_6 : f32 to vector<7x21xf32>
    %22 = arith.select %19, %20, %21 : vector<7x21xi1>, vector<7x21xf32>
    %23 = arith.truncf %22 : vector<7x21xf32> to vector<7x21xbf16>
    %c0_7 = arith.constant 0 : index
    %c0_8 = arith.constant 0 : index
    %c0_9 = arith.constant 0 : index
    %24 = vector.load %arg0[%c0_7, %c0_8, %c0_9] : memref<2x100x40xf32, #tpu.memory_space<vmem>>, vector<1x91x40xf32>
    %25 = vector.shape_cast %24 : vector<1x91x40xf32> to vector<91x40xf32>
    %26 = arith.truncf %25 : vector<91x40xf32> to vector<91x40xbf16>
    %c0_10 = arith.constant 0 : index
    %c0_11 = arith.constant 0 : index
    %c0_12 = arith.constant 0 : index
    %27 = vector.load %arg1[%c0_10, %c0_11, %c0_12] : memref<10x40x128xbf16, #tpu.memory_space<vmem>>, vector<1x40x128xbf16>
    %28 = vector.shape_cast %27 : vector<1x40x128xbf16> to vector<40x128xbf16>
    %cst_13 = arith.constant dense<0.000000e+00> : vector<91x128xf32>
    %29 = tpu.matmul %26, %28, %cst_13 {dimension_numbers = #tpu.dot_dimension_numbers<[1], [0], [0], [1], [0, 0, 1, 1], [], []>} : vector<91x40xbf16>, vector<40x128xbf16>, vector<91x128xf32> -> vector<91x128xf32>
    %30 = vector.broadcast %4 : vector<1x128xf32> to vector<91x128xf32>
    %31 = arith.addf %29, %30 : vector<91x128xf32>
    %c0_14 = arith.constant 0 : index
    %c1 = arith.constant 1 : index
    %c0_15 = arith.constant 0 : index
    %32 = vector.load %arg0[%c0_14, %c1, %c0_15] : memref<2x100x40xf32, #tpu.memory_space<vmem>>, vector<1x91x40xf32>
    %33 = vector.shape_cast %32 : vector<1x91x40xf32> to vector<91x40xf32>
    %34 = arith.truncf %33 : vector<91x40xf32> to vector<91x40xbf16>
    %c1_16 = arith.constant 1 : index
    %c0_17 = arith.constant 0 : index
    %c0_18 = arith.constant 0 : index
    %35 = vector.load %arg1[%c1_16, %c0_17, %c0_18] : memref<10x40x128xbf16, #tpu.memory_space<vmem>>, vector<1x40x128xbf16>
    %36 = vector.shape_cast %35 : vector<1x40x128xbf16> to vector<40x128xbf16>
    %cst_19 = arith.constant dense<0.000000e+00> : vector<91x128xf32>
    %37 = tpu.matmul %34, %36, %cst_19 {dimension_numbers = #tpu.dot_dimension_numbers<[1], [0], [0], [1], [0, 0, 1, 1], [], []>} : vector<91x40xbf16>, vector<40x128xbf16>, vector<91x128xf32> -> vector<91x128xf32>
    %38 = arith.addf %31, %37 : vector<91x128xf32>
    %c0_20 = arith.constant 0 : index
    %c2 = arith.constant 2 : index
    %c0_21 = arith.constant 0 : index
    %39 = vector.load %arg0[%c0_20, %c2, %c0_21] : memref<2x100x40xf32, #tpu.memory_space<vmem>>, vector<1x91x40xf32>
    %40 = vector.shape_cast %39 : vector<1x91x40xf32> to vector<91x40xf32>
    %41 = arith.truncf %40 : vector<91x40xf32> to vector<91x40xbf16>
    %c2_22 = arith.constant 2 : index
    %c0_23 = arith.constant 0 : index
    %c0_24 = arith.constant 0 : index
    %42 = vector.load %arg1[%c2_22, %c0_23, %c0_24] : memref<10x40x128xbf16, #tpu.memory_space<vmem>>, vector<1x40x128xbf16>
    %43 = vector.shape_cast %42 : vector<1x40x128xbf16> to vector<40x128xbf16>
    %cst_25 = arith.constant dense<0.000000e+00> : vector<91x128xf32>
    %44 = tpu.matmul %41, %43, %cst_25 {dimension_numbers = #tpu.dot_dimension_numbers<[1], [0], [0], [1], [0, 0, 1, 1], [], []>} : vector<91x40xbf16>, vector<40x128xbf16>, vector<91x128xf32> -> vector<91x128xf32>
    %45 = arith.addf %38, %44 : vector<91x128xf32>
    %c0_26 = arith.constant 0 : index
    %c3 = arith.constant 3 : index
    %c0_27 = arith.constant 0 : index
    %46 = vector.load %arg0[%c0_26, %c3, %c0_27] : memref<2x100x40xf32, #tpu.memory_space<vmem>>, vector<1x91x40xf32>
    %47 = vector.shape_cast %46 : vector<1x91x40xf32> to vector<91x40xf32>
    %48 = arith.truncf %47 : vector<91x40xf32> to vector<91x40xbf16>
    %c3_28 = arith.constant 3 : index
    %c0_29 = arith.constant 0 : index
    %c0_30 = arith.constant 0 : index
    %49 = vector.load %arg1[%c3_28, %c0_29, %c0_30] : memref<10x40x128xbf16, #tpu.memory_space<vmem>>, vector<1x40x128xbf16>
    %50 = vector.shape_cast %49 : vector<1x40x128xbf16> to vector<40x128xbf16>
    %cst_31 = arith.constant dense<0.000000e+00> : vector<91x128xf32>
    %51 = tpu.matmul %48, %50, %cst_31 {dimension_numbers = #tpu.dot_dimension_numbers<[1], [0], [0], [1], [0, 0, 1, 1], [], []>} : vector<91x40xbf16>, vector<40x128xbf16>, vector<91x128xf32> -> vector<91x128xf32>
    %52 = arith.addf %45, %51 : vector<91x128xf32>
    %c0_32 = arith.constant 0 : index
    %c4 = arith.constant 4 : index
    %c0_33 = arith.constant 0 : index
    %53 = vector.load %arg0[%c0_32, %c4, %c0_33] : memref<2x100x40xf32, #tpu.memory_space<vmem>>, vector<1x91x40xf32>
    %54 = vector.shape_cast %53 : vector<1x91x40xf32> to vector<91x40xf32>
    %55 = arith.truncf %54 : vector<91x40xf32> to vector<91x40xbf16>
    %c4_34 = arith.constant 4 : index
    %c0_35 = arith.constant 0 : index
    %c0_36 = arith.constant 0 : index
    %56 = vector.load %arg1[%c4_34, %c0_35, %c0_36] : memref<10x40x128xbf16, #tpu.memory_space<vmem>>, vector<1x40x128xbf16>
    %57 = vector.shape_cast %56 : vector<1x40x128xbf16> to vector<40x128xbf16>
    %cst_37 = arith.constant dense<0.000000e+00> : vector<91x128xf32>
    %58 = tpu.matmul %55, %57, %cst_37 {dimension_numbers = #tpu.dot_dimension_numbers<[1], [0], [0], [1], [0, 0, 1, 1], [], []>} : vector<91x40xbf16>, vector<40x128xbf16>, vector<91x128xf32> -> vector<91x128xf32>
    %59 = arith.addf %52, %58 : vector<91x128xf32>
    %c0_38 = arith.constant 0 : index
    %c5 = arith.constant 5 : index
    %c0_39 = arith.constant 0 : index
    %60 = vector.load %arg0[%c0_38, %c5, %c0_39] : memref<2x100x40xf32, #tpu.memory_space<vmem>>, vector<1x91x40xf32>
    %61 = vector.shape_cast %60 : vector<1x91x40xf32> to vector<91x40xf32>
    %62 = arith.truncf %61 : vector<91x40xf32> to vector<91x40xbf16>
    %c5_40 = arith.constant 5 : index
    %c0_41 = arith.constant 0 : index
    %c0_42 = arith.constant 0 : index
    %63 = vector.load %arg1[%c5_40, %c0_41, %c0_42] : memref<10x40x128xbf16, #tpu.memory_space<vmem>>, vector<1x40x128xbf16>
    %64 = vector.shape_cast %63 : vector<1x40x128xbf16> to vector<40x128xbf16>
    %cst_43 = arith.constant dense<0.000000e+00> : vector<91x128xf32>
    %65 = tpu.matmul %62, %64, %cst_43 {dimension_numbers = #tpu.dot_dimension_numbers<[1], [0], [0], [1], [0, 0, 1, 1], [], []>} : vector<91x40xbf16>, vector<40x128xbf16>, vector<91x128xf32> -> vector<91x128xf32>
    %66 = arith.addf %59, %65 : vector<91x128xf32>
    %c0_44 = arith.constant 0 : index
    %c6 = arith.constant 6 : index
    %c0_45 = arith.constant 0 : index
    %67 = vector.load %arg0[%c0_44, %c6, %c0_45] : memref<2x100x40xf32, #tpu.memory_space<vmem>>, vector<1x91x40xf32>
    %68 = vector.shape_cast %67 : vector<1x91x40xf32> to vector<91x40xf32>
    %69 = arith.truncf %68 : vector<91x40xf32> to vector<91x40xbf16>
    %c6_46 = arith.constant 6 : index
    %c0_47 = arith.constant 0 : index
    %c0_48 = arith.constant 0 : index
    %70 = vector.load %arg1[%c6_46, %c0_47, %c0_48] : memref<10x40x128xbf16, #tpu.memory_space<vmem>>, vector<1x40x128xbf16>
    %71 = vector.shape_cast %70 : vector<1x40x128xbf16> to vector<40x128xbf16>
    %cst_49 = arith.constant dense<0.000000e+00> : vector<91x128xf32>
    %72 = tpu.matmul %69, %71, %cst_49 {dimension_numbers = #tpu.dot_dimension_numbers<[1], [0], [0], [1], [0, 0, 1, 1], [], []>} : vector<91x40xbf16>, vector<40x128xbf16>, vector<91x128xf32> -> vector<91x128xf32>
    %73 = arith.addf %66, %72 : vector<91x128xf32>
    %c0_50 = arith.constant 0 : index
    %c7 = arith.constant 7 : index
    %c0_51 = arith.constant 0 : index
    %74 = vector.load %arg0[%c0_50, %c7, %c0_51] : memref<2x100x40xf32, #tpu.memory_space<vmem>>, vector<1x91x40xf32>
    %75 = vector.shape_cast %74 : vector<1x91x40xf32> to vector<91x40xf32>
    %76 = arith.truncf %75 : vector<91x40xf32> to vector<91x40xbf16>
    %c7_52 = arith.constant 7 : index
    %c0_53 = arith.constant 0 : index
    %c0_54 = arith.constant 0 : index
    %77 = vector.load %arg1[%c7_52, %c0_53, %c0_54] : memref<10x40x128xbf16, #tpu.memory_space<vmem>>, vector<1x40x128xbf16>
    %78 = vector.shape_cast %77 : vector<1x40x128xbf16> to vector<40x128xbf16>
    %cst_55 = arith.constant dense<0.000000e+00> : vector<91x128xf32>
    %79 = tpu.matmul %76, %78, %cst_55 {dimension_numbers = #tpu.dot_dimension_numbers<[1], [0], [0], [1], [0, 0, 1, 1], [], []>} : vector<91x40xbf16>, vector<40x128xbf16>, vector<91x128xf32> -> vector<91x128xf32>
    %80 = arith.addf %73, %79 : vector<91x128xf32>
    %c0_56 = arith.constant 0 : index
    %c8 = arith.constant 8 : index
    %c0_57 = arith.constant 0 : index
    %81 = vector.load %arg0[%c0_56, %c8, %c0_57] : memref<2x100x40xf32, #tpu.memory_space<vmem>>, vector<1x91x40xf32>
    %82 = vector.shape_cast %81 : vector<1x91x40xf32> to vector<91x40xf32>
    %83 = arith.truncf %82 : vector<91x40xf32> to vector<91x40xbf16>
    %c8_58 = arith.constant 8 : index
    %c0_59 = arith.constant 0 : index
    %c0_60 = arith.constant 0 : index
    %84 = vector.load %arg1[%c8_58, %c0_59, %c0_60] : memref<10x40x128xbf16, #tpu.memory_space<vmem>>, vector<1x40x128xbf16>
    %85 = vector.shape_cast %84 : vector<1x40x128xbf16> to vector<40x128xbf16>
    %cst_61 = arith.constant dense<0.000000e+00> : vector<91x128xf32>
    %86 = tpu.matmul %83, %85, %cst_61 {dimension_numbers = #tpu.dot_dimension_numbers<[1], [0], [0], [1], [0, 0, 1, 1], [], []>} : vector<91x40xbf16>, vector<40x128xbf16>, vector<91x128xf32> -> vector<91x128xf32>
    %87 = arith.addf %80, %86 : vector<91x128xf32>
    %c0_62 = arith.constant 0 : index
    %c9 = arith.constant 9 : index
    %c0_63 = arith.constant 0 : index
    %88 = vector.load %arg0[%c0_62, %c9, %c0_63] : memref<2x100x40xf32, #tpu.memory_space<vmem>>, vector<1x91x40xf32>
    %89 = vector.shape_cast %88 : vector<1x91x40xf32> to vector<91x40xf32>
    %90 = arith.truncf %89 : vector<91x40xf32> to vector<91x40xbf16>
    %c9_64 = arith.constant 9 : index
    %c0_65 = arith.constant 0 : index
    %c0_66 = arith.constant 0 : index
    %91 = vector.load %arg1[%c9_64, %c0_65, %c0_66] : memref<10x40x128xbf16, #tpu.memory_space<vmem>>, vector<1x40x128xbf16>
    %92 = vector.shape_cast %91 : vector<1x40x128xbf16> to vector<40x128xbf16>
    %cst_67 = arith.constant dense<0.000000e+00> : vector<91x128xf32>
    %93 = tpu.matmul %90, %92, %cst_67 {dimension_numbers = #tpu.dot_dimension_numbers<[1], [0], [0], [1], [0, 0, 1, 1], [], []>} : vector<91x40xbf16>, vector<40x128xbf16>, vector<91x128xf32> -> vector<91x128xf32>
    %94 = arith.addf %87, %93 : vector<91x128xf32>
    %cst_68 = arith.constant 0.000000e+00 : f32
    %95 = vector.broadcast %cst_68 : f32 to vector<91x128xf32>
    %96 = arith.maximumf %94, %95 : vector<91x128xf32>
    %97 = vector.extract_strided_slice %96 {offsets = [0, 0], sizes = [89, 128], strides = [1, 1]} : vector<91x128xf32> to vector<89x128xf32>
    %98 = vector.extract_strided_slice %96 {offsets = [1, 0], sizes = [89, 128], strides = [1, 1]} : vector<91x128xf32> to vector<89x128xf32>
    %99 = arith.maximumf %97, %98 : vector<89x128xf32>
    %100 = vector.extract_strided_slice %96 {offsets = [2, 0], sizes = [89, 128], strides = [1, 1]} : vector<91x128xf32> to vector<89x128xf32>
    %101 = arith.maximumf %99, %100 : vector<89x128xf32>
    %102 = arith.truncf %101 : vector<89x128xf32> to vector<89x128xbf16>
    %cst_69 = arith.constant dense<0.000000e+00> : vector<30x128xf32>
    %103 = tpu.matmul %14, %102, %cst_69 {dimension_numbers = #tpu.dot_dimension_numbers<[1], [0], [0], [1], [0, 0, 1, 1], [], []>} : vector<30x89xbf16>, vector<89x128xbf16>, vector<30x128xf32> -> vector<30x128xf32>
    %c0_70 = arith.constant 0 : index
    %c0_71 = arith.constant 0 : index
    %104 = vector.load %arg13[%c0_70, %c0_71] : memref<30x128xf32, #tpu.memory_space<vmem>>, vector<30x128xf32>
    tpu.vector_store %arg13[%c0_70, %c0_71], %103 {strides = array<i32>} : memref<30x128xf32, #tpu.memory_space<vmem>>, vector<30x128xf32>,
    %c0_72 = arith.constant 0 : index
    %c0_73 = arith.constant 0 : index
    %105 = vector.load %arg13[%c0_72, %c0_73] : memref<30x128xf32, #tpu.memory_space<vmem>>, vector<23x128xf32>
    %106 = arith.truncf %105 : vector<23x128xf32> to vector<23x128xbf16>
    %c0_74 = arith.constant 0 : index
    %c0_75 = arith.constant 0 : index
    %c0_76 = arith.constant 0 : index
    %107 = vector.load %arg3[%c0_74, %c0_75, %c0_76] : memref<8x128x128xbf16, #tpu.memory_space<vmem>>, vector<1x128x128xbf16>
    %108 = vector.shape_cast %107 : vector<1x128x128xbf16> to vector<128x128xbf16>
    %cst_77 = arith.constant dense<0.000000e+00> : vector<23x128xf32>
    %109 = tpu.matmul %106, %108, %cst_77 {dimension_numbers = #tpu.dot_dimension_numbers<[1], [0], [0], [1], [0, 0, 1, 1], [], []>} : vector<23x128xbf16>, vector<128x128xbf16>, vector<23x128xf32> -> vector<23x128xf32>
    %110 = vector.broadcast %5 : vector<1x128xf32> to vector<23x128xf32>
    %111 = arith.addf %109, %110 : vector<23x128xf32>
    %c1_78 = arith.constant 1 : index
    %c0_79 = arith.constant 0 : index
    %112 = vector.load %arg13[%c1_78, %c0_79] : memref<30x128xf32, #tpu.memory_space<vmem>>, vector<23x128xf32>
    %113 = arith.truncf %112 : vector<23x128xf32> to vector<23x128xbf16>
    %c1_80 = arith.constant 1 : index
    %c0_81 = arith.constant 0 : index
    %c0_82 = arith.constant 0 : index
    %114 = vector.load %arg3[%c1_80, %c0_81, %c0_82] : memref<8x128x128xbf16, #tpu.memory_space<vmem>>, vector<1x128x128xbf16>
    %115 = vector.shape_cast %114 : vector<1x128x128xbf16> to vector<128x128xbf16>
    %cst_83 = arith.constant dense<0.000000e+00> : vector<23x128xf32>
    %116 = tpu.matmul %113, %115, %cst_83 {dimension_numbers = #tpu.dot_dimension_numbers<[1], [0], [0], [1], [0, 0, 1, 1], [], []>} : vector<23x128xbf16>, vector<128x128xbf16>, vector<23x128xf32> -> vector<23x128xf32>
    %117 = arith.addf %111, %116 : vector<23x128xf32>
    %c2_84 = arith.constant 2 : index
    %c0_85 = arith.constant 0 : index
    %118 = vector.load %arg13[%c2_84, %c0_85] : memref<30x128xf32, #tpu.memory_space<vmem>>, vector<23x128xf32>
    %119 = arith.truncf %118 : vector<23x128xf32> to vector<23x128xbf16>
    %c2_86 = arith.constant 2 : index
    %c0_87 = arith.constant 0 : index
    %c0_88 = arith.constant 0 : index
    %120 = vector.load %arg3[%c2_86, %c0_87, %c0_88] : memref<8x128x128xbf16, #tpu.memory_space<vmem>>, vector<1x128x128xbf16>
    %121 = vector.shape_cast %120 : vector<1x128x128xbf16> to vector<128x128xbf16>
    %cst_89 = arith.constant dense<0.000000e+00> : vector<23x128xf32>
    %122 = tpu.matmul %119, %121, %cst_89 {dimension_numbers = #tpu.dot_dimension_numbers<[1], [0], [0], [1], [0, 0, 1, 1], [], []>} : vector<23x128xbf16>, vector<128x128xbf16>, vector<23x128xf32> -> vector<23x128xf32>
    %123 = arith.addf %117, %122 : vector<23x128xf32>
    %c3_90 = arith.constant 3 : index
    %c0_91 = arith.constant 0 : index
    %124 = vector.load %arg13[%c3_90, %c0_91] : memref<30x128xf32, #tpu.memory_space<vmem>>, vector<23x128xf32>
    %125 = arith.truncf %124 : vector<23x128xf32> to vector<23x128xbf16>
    %c3_92 = arith.constant 3 : index
    %c0_93 = arith.constant 0 : index
    %c0_94 = arith.constant 0 : index
    %126 = vector.load %arg3[%c3_92, %c0_93, %c0_94] : memref<8x128x128xbf16, #tpu.memory_space<vmem>>, vector<1x128x128xbf16>
    %127 = vector.shape_cast %126 : vector<1x128x128xbf16> to vector<128x128xbf16>
    %cst_95 = arith.constant dense<0.000000e+00> : vector<23x128xf32>
    %128 = tpu.matmul %125, %127, %cst_95 {dimension_numbers = #tpu.dot_dimension_numbers<[1], [0], [0], [1], [0, 0, 1, 1], [], []>} : vector<23x128xbf16>, vector<128x128xbf16>, vector<23x128xf32> -> vector<23x128xf32>
    %129 = arith.addf %123, %128 : vector<23x128xf32>
    %c4_96 = arith.constant 4 : index
    %c0_97 = arith.constant 0 : index
    %130 = vector.load %arg13[%c4_96, %c0_97] : memref<30x128xf32, #tpu.memory_space<vmem>>, vector<23x128xf32>
    %131 = arith.truncf %130 : vector<23x128xf32> to vector<23x128xbf16>
    %c4_98 = arith.constant 4 : index
    %c0_99 = arith.constant 0 : index
    %c0_100 = arith.constant 0 : index
    %132 = vector.load %arg3[%c4_98, %c0_99, %c0_100] : memref<8x128x128xbf16, #tpu.memory_space<vmem>>, vector<1x128x128xbf16>
    %133 = vector.shape_cast %132 : vector<1x128x128xbf16> to vector<128x128xbf16>
    %cst_101 = arith.constant dense<0.000000e+00> : vector<23x128xf32>
    %134 = tpu.matmul %131, %133, %cst_101 {dimension_numbers = #tpu.dot_dimension_numbers<[1], [0], [0], [1], [0, 0, 1, 1], [], []>} : vector<23x128xbf16>, vector<128x128xbf16>, vector<23x128xf32> -> vector<23x128xf32>
    %135 = arith.addf %129, %134 : vector<23x128xf32>
    %c5_102 = arith.constant 5 : index
    %c0_103 = arith.constant 0 : index
    %136 = vector.load %arg13[%c5_102, %c0_103] : memref<30x128xf32, #tpu.memory_space<vmem>>, vector<23x128xf32>
    %137 = arith.truncf %136 : vector<23x128xf32> to vector<23x128xbf16>
    %c5_104 = arith.constant 5 : index
    %c0_105 = arith.constant 0 : index
    %c0_106 = arith.constant 0 : index
    %138 = vector.load %arg3[%c5_104, %c0_105, %c0_106] : memref<8x128x128xbf16, #tpu.memory_space<vmem>>, vector<1x128x128xbf16>
    %139 = vector.shape_cast %138 : vector<1x128x128xbf16> to vector<128x128xbf16>
    %cst_107 = arith.constant dense<0.000000e+00> : vector<23x128xf32>
    %140 = tpu.matmul %137, %139, %cst_107 {dimension_numbers = #tpu.dot_dimension_numbers<[1], [0], [0], [1], [0, 0, 1, 1], [], []>} : vector<23x128xbf16>, vector<128x128xbf16>, vector<23x128xf32> -> vector<23x128xf32>
    %141 = arith.addf %135, %140 : vector<23x128xf32>
    %c6_108 = arith.constant 6 : index
    %c0_109 = arith.constant 0 : index
    %142 = vector.load %arg13[%c6_108, %c0_109] : memref<30x128xf32, #tpu.memory_space<vmem>>, vector<23x128xf32>
    %143 = arith.truncf %142 : vector<23x128xf32> to vector<23x128xbf16>
    %c6_110 = arith.constant 6 : index
    %c0_111 = arith.constant 0 : index
    %c0_112 = arith.constant 0 : index
    %144 = vector.load %arg3[%c6_110, %c0_111, %c0_112] : memref<8x128x128xbf16, #tpu.memory_space<vmem>>, vector<1x128x128xbf16>
    %145 = vector.shape_cast %144 : vector<1x128x128xbf16> to vector<128x128xbf16>
    %cst_113 = arith.constant dense<0.000000e+00> : vector<23x128xf32>
    %146 = tpu.matmul %143, %145, %cst_113 {dimension_numbers = #tpu.dot_dimension_numbers<[1], [0], [0], [1], [0, 0, 1, 1], [], []>} : vector<23x128xbf16>, vector<128x128xbf16>, vector<23x128xf32> -> vector<23x128xf32>
    %147 = arith.addf %141, %146 : vector<23x128xf32>
    %c7_114 = arith.constant 7 : index
    %c0_115 = arith.constant 0 : index
    %148 = vector.load %arg13[%c7_114, %c0_115] : memref<30x128xf32, #tpu.memory_space<vmem>>, vector<23x128xf32>
    %149 = arith.truncf %148 : vector<23x128xf32> to vector<23x128xbf16>
    %c7_116 = arith.constant 7 : index
    %c0_117 = arith.constant 0 : index
    %c0_118 = arith.constant 0 : index
    %150 = vector.load %arg3[%c7_116, %c0_117, %c0_118] : memref<8x128x128xbf16, #tpu.memory_space<vmem>>, vector<1x128x128xbf16>
    %151 = vector.shape_cast %150 : vector<1x128x128xbf16> to vector<128x128xbf16>
    %cst_119 = arith.constant dense<0.000000e+00> : vector<23x128xf32>
    %152 = tpu.matmul %149, %151, %cst_119 {dimension_numbers = #tpu.dot_dimension_numbers<[1], [0], [0], [1], [0, 0, 1, 1], [], []>} : vector<23x128xbf16>, vector<128x128xbf16>, vector<23x128xf32> -> vector<23x128xf32>
    %153 = arith.addf %147, %152 : vector<23x128xf32>
    %cst_120 = arith.constant 0.000000e+00 : f32
    %154 = vector.broadcast %cst_120 : f32 to vector<23x128xf32>
    %155 = arith.maximumf %153, %154 : vector<23x128xf32>
    %156 = vector.extract_strided_slice %155 {offsets = [0, 0], sizes = [21, 128], strides = [1, 1]} : vector<23x128xf32> to vector<21x128xf32>
    %157 = vector.extract_strided_slice %155 {offsets = [1, 0], sizes = [21, 128], strides = [1, 1]} : vector<23x128xf32> to vector<21x128xf32>
    %158 = arith.maximumf %156, %157 : vector<21x128xf32>
    %159 = vector.extract_strided_slice %155 {offsets = [2, 0], sizes = [21, 128], strides = [1, 1]} : vector<23x128xf32> to vector<21x128xf32>
    %160 = arith.maximumf %158, %159 : vector<21x128xf32>
    %161 = arith.truncf %160 : vector<21x128xf32> to vector<21x128xbf16>
    %cst_121 = arith.constant dense<0.000000e+00> : vector<7x128xf32>
    %162 = tpu.matmul %23, %161, %cst_121 {dimension_numbers = #tpu.dot_dimension_numbers<[1], [0], [0], [1], [0, 0, 1, 1], [], []>} : vector<7x21xbf16>, vector<21x128xbf16>, vector<7x128xf32> -> vector<7x128xf32>
    %c0_122 = arith.constant 0 : index
    %c0_123 = arith.constant 0 : index
    %c0_124 = arith.constant 0 : index
    %163 = vector.load %arg14[%c0_122, %c0_123, %c0_124] : memref<2x7x128xf32, #tpu.memory_space<vmem>>, vector<1x7x128xf32>
    %164 = vector.shape_cast %163 : vector<1x7x128xf32> to vector<7x128xf32>
    %165 = vector.shape_cast %162 : vector<7x128xf32> to vector<1x7x128xf32>
    tpu.vector_store %arg14[%c0_122, %c0_123, %c0_124], %165 {strides = array<i32>} : memref<2x7x128xf32, #tpu.memory_space<vmem>>, vector<1x7x128xf32>,
    %c1_125 = arith.constant 1 : index
    %c0_126 = arith.constant 0 : index
    %c0_127 = arith.constant 0 : index
    %166 = vector.load %arg0[%c1_125, %c0_126, %c0_127] : memref<2x100x40xf32, #tpu.memory_space<vmem>>, vector<1x91x40xf32>
    %167 = vector.shape_cast %166 : vector<1x91x40xf32> to vector<91x40xf32>
    %168 = arith.truncf %167 : vector<91x40xf32> to vector<91x40xbf16>
    %c0_128 = arith.constant 0 : index
    %c0_129 = arith.constant 0 : index
    %c0_130 = arith.constant 0 : index
    %169 = vector.load %arg1[%c0_128, %c0_129, %c0_130] : memref<10x40x128xbf16, #tpu.memory_space<vmem>>, vector<1x40x128xbf16>
    %170 = vector.shape_cast %169 : vector<1x40x128xbf16> to vector<40x128xbf16>
    %cst_131 = arith.constant dense<0.000000e+00> : vector<91x128xf32>
    %171 = tpu.matmul %168, %170, %cst_131 {dimension_numbers = #tpu.dot_dimension_numbers<[1], [0], [0], [1], [0, 0, 1, 1], [], []>} : vector<91x40xbf16>, vector<40x128xbf16>, vector<91x128xf32> -> vector<91x128xf32>
    %172 = vector.broadcast %4 : vector<1x128xf32> to vector<91x128xf32>
    %173 = arith.addf %171, %172 : vector<91x128xf32>
    %c1_132 = arith.constant 1 : index
    %c1_133 = arith.constant 1 : index
    %c0_134 = arith.constant 0 : index
    %174 = vector.load %arg0[%c1_132, %c1_133, %c0_134] : memref<2x100x40xf32, #tpu.memory_space<vmem>>, vector<1x91x40xf32>
    %175 = vector.shape_cast %174 : vector<1x91x40xf32> to vector<91x40xf32>
    %176 = arith.truncf %175 : vector<91x40xf32> to vector<91x40xbf16>
    %c1_135 = arith.constant 1 : index
    %c0_136 = arith.constant 0 : index
    %c0_137 = arith.constant 0 : index
    %177 = vector.load %arg1[%c1_135, %c0_136, %c0_137] : memref<10x40x128xbf16, #tpu.memory_space<vmem>>, vector<1x40x128xbf16>
    %178 = vector.shape_cast %177 : vector<1x40x128xbf16> to vector<40x128xbf16>
    %cst_138 = arith.constant dense<0.000000e+00> : vector<91x128xf32>
    %179 = tpu.matmul %176, %178, %cst_138 {dimension_numbers = #tpu.dot_dimension_numbers<[1], [0], [0], [1], [0, 0, 1, 1], [], []>} : vector<91x40xbf16>, vector<40x128xbf16>, vector<91x128xf32> -> vector<91x128xf32>
    %180 = arith.addf %173, %179 : vector<91x128xf32>
    %c1_139 = arith.constant 1 : index
    %c2_140 = arith.constant 2 : index
    %c0_141 = arith.constant 0 : index
    %181 = vector.load %arg0[%c1_139, %c2_140, %c0_141] : memref<2x100x40xf32, #tpu.memory_space<vmem>>, vector<1x91x40xf32>
    %182 = vector.shape_cast %181 : vector<1x91x40xf32> to vector<91x40xf32>
    %183 = arith.truncf %182 : vector<91x40xf32> to vector<91x40xbf16>
    %c2_142 = arith.constant 2 : index
    %c0_143 = arith.constant 0 : index
    %c0_144 = arith.constant 0 : index
    %184 = vector.load %arg1[%c2_142, %c0_143, %c0_144] : memref<10x40x128xbf16, #tpu.memory_space<vmem>>, vector<1x40x128xbf16>
    %185 = vector.shape_cast %184 : vector<1x40x128xbf16> to vector<40x128xbf16>
    %cst_145 = arith.constant dense<0.000000e+00> : vector<91x128xf32>
    %186 = tpu.matmul %183, %185, %cst_145 {dimension_numbers = #tpu.dot_dimension_numbers<[1], [0], [0], [1], [0, 0, 1, 1], [], []>} : vector<91x40xbf16>, vector<40x128xbf16>, vector<91x128xf32> -> vector<91x128xf32>
    %187 = arith.addf %180, %186 : vector<91x128xf32>
    %c1_146 = arith.constant 1 : index
    %c3_147 = arith.constant 3 : index
    %c0_148 = arith.constant 0 : index
    %188 = vector.load %arg0[%c1_146, %c3_147, %c0_148] : memref<2x100x40xf32, #tpu.memory_space<vmem>>, vector<1x91x40xf32>
    %189 = vector.shape_cast %188 : vector<1x91x40xf32> to vector<91x40xf32>
    %190 = arith.truncf %189 : vector<91x40xf32> to vector<91x40xbf16>
    %c3_149 = arith.constant 3 : index
    %c0_150 = arith.constant 0 : index
    %c0_151 = arith.constant 0 : index
    %191 = vector.load %arg1[%c3_149, %c0_150, %c0_151] : memref<10x40x128xbf16, #tpu.memory_space<vmem>>, vector<1x40x128xbf16>
    %192 = vector.shape_cast %191 : vector<1x40x128xbf16> to vector<40x128xbf16>
    %cst_152 = arith.constant dense<0.000000e+00> : vector<91x128xf32>
    %193 = tpu.matmul %190, %192, %cst_152 {dimension_numbers = #tpu.dot_dimension_numbers<[1], [0], [0], [1], [0, 0, 1, 1], [], []>} : vector<91x40xbf16>, vector<40x128xbf16>, vector<91x128xf32> -> vector<91x128xf32>
    %194 = arith.addf %187, %193 : vector<91x128xf32>
    %c1_153 = arith.constant 1 : index
    %c4_154 = arith.constant 4 : index
    %c0_155 = arith.constant 0 : index
    %195 = vector.load %arg0[%c1_153, %c4_154, %c0_155] : memref<2x100x40xf32, #tpu.memory_space<vmem>>, vector<1x91x40xf32>
    %196 = vector.shape_cast %195 : vector<1x91x40xf32> to vector<91x40xf32>
    %197 = arith.truncf %196 : vector<91x40xf32> to vector<91x40xbf16>
    %c4_156 = arith.constant 4 : index
    %c0_157 = arith.constant 0 : index
    %c0_158 = arith.constant 0 : index
    %198 = vector.load %arg1[%c4_156, %c0_157, %c0_158] : memref<10x40x128xbf16, #tpu.memory_space<vmem>>, vector<1x40x128xbf16>
    %199 = vector.shape_cast %198 : vector<1x40x128xbf16> to vector<40x128xbf16>
    %cst_159 = arith.constant dense<0.000000e+00> : vector<91x128xf32>
    %200 = tpu.matmul %197, %199, %cst_159 {dimension_numbers = #tpu.dot_dimension_numbers<[1], [0], [0], [1], [0, 0, 1, 1], [], []>} : vector<91x40xbf16>, vector<40x128xbf16>, vector<91x128xf32> -> vector<91x128xf32>
    %201 = arith.addf %194, %200 : vector<91x128xf32>
    %c1_160 = arith.constant 1 : index
    %c5_161 = arith.constant 5 : index
    %c0_162 = arith.constant 0 : index
    %202 = vector.load %arg0[%c1_160, %c5_161, %c0_162] : memref<2x100x40xf32, #tpu.memory_space<vmem>>, vector<1x91x40xf32>
    %203 = vector.shape_cast %202 : vector<1x91x40xf32> to vector<91x40xf32>
    %204 = arith.truncf %203 : vector<91x40xf32> to vector<91x40xbf16>
    %c5_163 = arith.constant 5 : index
    %c0_164 = arith.constant 0 : index
    %c0_165 = arith.constant 0 : index
    %205 = vector.load %arg1[%c5_163, %c0_164, %c0_165] : memref<10x40x128xbf16, #tpu.memory_space<vmem>>, vector<1x40x128xbf16>
    %206 = vector.shape_cast %205 : vector<1x40x128xbf16> to vector<40x128xbf16>
    %cst_166 = arith.constant dense<0.000000e+00> : vector<91x128xf32>
    %207 = tpu.matmul %204, %206, %cst_166 {dimension_numbers = #tpu.dot_dimension_numbers<[1], [0], [0], [1], [0, 0, 1, 1], [], []>} : vector<91x40xbf16>, vector<40x128xbf16>, vector<91x128xf32> -> vector<91x128xf32>
    %208 = arith.addf %201, %207 : vector<91x128xf32>
    %c1_167 = arith.constant 1 : index
    %c6_168 = arith.constant 6 : index
    %c0_169 = arith.constant 0 : index
    %209 = vector.load %arg0[%c1_167, %c6_168, %c0_169] : memref<2x100x40xf32, #tpu.memory_space<vmem>>, vector<1x91x40xf32>
    %210 = vector.shape_cast %209 : vector<1x91x40xf32> to vector<91x40xf32>
    %211 = arith.truncf %210 : vector<91x40xf32> to vector<91x40xbf16>
    %c6_170 = arith.constant 6 : index
    %c0_171 = arith.constant 0 : index
    %c0_172 = arith.constant 0 : index
    %212 = vector.load %arg1[%c6_170, %c0_171, %c0_172] : memref<10x40x128xbf16, #tpu.memory_space<vmem>>, vector<1x40x128xbf16>
    %213 = vector.shape_cast %212 : vector<1x40x128xbf16> to vector<40x128xbf16>
    %cst_173 = arith.constant dense<0.000000e+00> : vector<91x128xf32>
    %214 = tpu.matmul %211, %213, %cst_173 {dimension_numbers = #tpu.dot_dimension_numbers<[1], [0], [0], [1], [0, 0, 1, 1], [], []>} : vector<91x40xbf16>, vector<40x128xbf16>, vector<91x128xf32> -> vector<91x128xf32>
    %215 = arith.addf %208, %214 : vector<91x128xf32>
    %c1_174 = arith.constant 1 : index
    %c7_175 = arith.constant 7 : index
    %c0_176 = arith.constant 0 : index
    %216 = vector.load %arg0[%c1_174, %c7_175, %c0_176] : memref<2x100x40xf32, #tpu.memory_space<vmem>>, vector<1x91x40xf32>
    %217 = vector.shape_cast %216 : vector<1x91x40xf32> to vector<91x40xf32>
    %218 = arith.truncf %217 : vector<91x40xf32> to vector<91x40xbf16>
    %c7_177 = arith.constant 7 : index
    %c0_178 = arith.constant 0 : index
    %c0_179 = arith.constant 0 : index
    %219 = vector.load %arg1[%c7_177, %c0_178, %c0_179] : memref<10x40x128xbf16, #tpu.memory_space<vmem>>, vector<1x40x128xbf16>
    %220 = vector.shape_cast %219 : vector<1x40x128xbf16> to vector<40x128xbf16>
    %cst_180 = arith.constant dense<0.000000e+00> : vector<91x128xf32>
    %221 = tpu.matmul %218, %220, %cst_180 {dimension_numbers = #tpu.dot_dimension_numbers<[1], [0], [0], [1], [0, 0, 1, 1], [], []>} : vector<91x40xbf16>, vector<40x128xbf16>, vector<91x128xf32> -> vector<91x128xf32>
    %222 = arith.addf %215, %221 : vector<91x128xf32>
    %c1_181 = arith.constant 1 : index
    %c8_182 = arith.constant 8 : index
    %c0_183 = arith.constant 0 : index
    %223 = vector.load %arg0[%c1_181, %c8_182, %c0_183] : memref<2x100x40xf32, #tpu.memory_space<vmem>>, vector<1x91x40xf32>
    %224 = vector.shape_cast %223 : vector<1x91x40xf32> to vector<91x40xf32>
    %225 = arith.truncf %224 : vector<91x40xf32> to vector<91x40xbf16>
    %c8_184 = arith.constant 8 : index
    %c0_185 = arith.constant 0 : index
    %c0_186 = arith.constant 0 : index
    %226 = vector.load %arg1[%c8_184, %c0_185, %c0_186] : memref<10x40x128xbf16, #tpu.memory_space<vmem>>, vector<1x40x128xbf16>
    %227 = vector.shape_cast %226 : vector<1x40x128xbf16> to vector<40x128xbf16>
    %cst_187 = arith.constant dense<0.000000e+00> : vector<91x128xf32>
    %228 = tpu.matmul %225, %227, %cst_187 {dimension_numbers = #tpu.dot_dimension_numbers<[1], [0], [0], [1], [0, 0, 1, 1], [], []>} : vector<91x40xbf16>, vector<40x128xbf16>, vector<91x128xf32> -> vector<91x128xf32>
    %229 = arith.addf %222, %228 : vector<91x128xf32>
    %c1_188 = arith.constant 1 : index
    %c9_189 = arith.constant 9 : index
    %c0_190 = arith.constant 0 : index
    %230 = vector.load %arg0[%c1_188, %c9_189, %c0_190] : memref<2x100x40xf32, #tpu.memory_space<vmem>>, vector<1x91x40xf32>
    %231 = vector.shape_cast %230 : vector<1x91x40xf32> to vector<91x40xf32>
    %232 = arith.truncf %231 : vector<91x40xf32> to vector<91x40xbf16>
    %c9_191 = arith.constant 9 : index
    %c0_192 = arith.constant 0 : index
    %c0_193 = arith.constant 0 : index
    %233 = vector.load %arg1[%c9_191, %c0_192, %c0_193] : memref<10x40x128xbf16, #tpu.memory_space<vmem>>, vector<1x40x128xbf16>
    %234 = vector.shape_cast %233 : vector<1x40x128xbf16> to vector<40x128xbf16>
    %cst_194 = arith.constant dense<0.000000e+00> : vector<91x128xf32>
    %235 = tpu.matmul %232, %234, %cst_194 {dimension_numbers = #tpu.dot_dimension_numbers<[1], [0], [0], [1], [0, 0, 1, 1], [], []>} : vector<91x40xbf16>, vector<40x128xbf16>, vector<91x128xf32> -> vector<91x128xf32>
    %236 = arith.addf %229, %235 : vector<91x128xf32>
    %cst_195 = arith.constant 0.000000e+00 : f32
    %237 = vector.broadcast %cst_195 : f32 to vector<91x128xf32>
    %238 = arith.maximumf %236, %237 : vector<91x128xf32>
    %239 = vector.extract_strided_slice %238 {offsets = [0, 0], sizes = [89, 128], strides = [1, 1]} : vector<91x128xf32> to vector<89x128xf32>
    %240 = vector.extract_strided_slice %238 {offsets = [1, 0], sizes = [89, 128], strides = [1, 1]} : vector<91x128xf32> to vector<89x128xf32>
    %241 = arith.maximumf %239, %240 : vector<89x128xf32>
    %242 = vector.extract_strided_slice %238 {offsets = [2, 0], sizes = [89, 128], strides = [1, 1]} : vector<91x128xf32> to vector<89x128xf32>
    %243 = arith.maximumf %241, %242 : vector<89x128xf32>
    %244 = arith.truncf %243 : vector<89x128xf32> to vector<89x128xbf16>
    %cst_196 = arith.constant dense<0.000000e+00> : vector<30x128xf32>
    %245 = tpu.matmul %14, %244, %cst_196 {dimension_numbers = #tpu.dot_dimension_numbers<[1], [0], [0], [1], [0, 0, 1, 1], [], []>} : vector<30x89xbf16>, vector<89x128xbf16>, vector<30x128xf32> -> vector<30x128xf32>
    %c0_197 = arith.constant 0 : index
    %c0_198 = arith.constant 0 : index
    %246 = vector.load %arg13[%c0_197, %c0_198] : memref<30x128xf32, #tpu.memory_space<vmem>>, vector<30x128xf32>
    tpu.vector_store %arg13[%c0_197, %c0_198], %245 {strides = array<i32>} : memref<30x128xf32, #tpu.memory_space<vmem>>, vector<30x128xf32>,
    %c0_199 = arith.constant 0 : index
    %c0_200 = arith.constant 0 : index
    %247 = vector.load %arg13[%c0_199, %c0_200] : memref<30x128xf32, #tpu.memory_space<vmem>>, vector<23x128xf32>
    %248 = arith.truncf %247 : vector<23x128xf32> to vector<23x128xbf16>
    %c0_201 = arith.constant 0 : index
    %c0_202 = arith.constant 0 : index
    %c0_203 = arith.constant 0 : index
    %249 = vector.load %arg3[%c0_201, %c0_202, %c0_203] : memref<8x128x128xbf16, #tpu.memory_space<vmem>>, vector<1x128x128xbf16>
    %250 = vector.shape_cast %249 : vector<1x128x128xbf16> to vector<128x128xbf16>
    %cst_204 = arith.constant dense<0.000000e+00> : vector<23x128xf32>
    %251 = tpu.matmul %248, %250, %cst_204 {dimension_numbers = #tpu.dot_dimension_numbers<[1], [0], [0], [1], [0, 0, 1, 1], [], []>} : vector<23x128xbf16>, vector<128x128xbf16>, vector<23x128xf32> -> vector<23x128xf32>
    %252 = vector.broadcast %5 : vector<1x128xf32> to vector<23x128xf32>
    %253 = arith.addf %251, %252 : vector<23x128xf32>
    %c1_205 = arith.constant 1 : index
    %c0_206 = arith.constant 0 : index
    %254 = vector.load %arg13[%c1_205, %c0_206] : memref<30x128xf32, #tpu.memory_space<vmem>>, vector<23x128xf32>
    %255 = arith.truncf %254 : vector<23x128xf32> to vector<23x128xbf16>
    %c1_207 = arith.constant 1 : index
    %c0_208 = arith.constant 0 : index
    %c0_209 = arith.constant 0 : index
    %256 = vector.load %arg3[%c1_207, %c0_208, %c0_209] : memref<8x128x128xbf16, #tpu.memory_space<vmem>>, vector<1x128x128xbf16>
    %257 = vector.shape_cast %256 : vector<1x128x128xbf16> to vector<128x128xbf16>
    %cst_210 = arith.constant dense<0.000000e+00> : vector<23x128xf32>
    %258 = tpu.matmul %255, %257, %cst_210 {dimension_numbers = #tpu.dot_dimension_numbers<[1], [0], [0], [1], [0, 0, 1, 1], [], []>} : vector<23x128xbf16>, vector<128x128xbf16>, vector<23x128xf32> -> vector<23x128xf32>
    %259 = arith.addf %253, %258 : vector<23x128xf32>
    %c2_211 = arith.constant 2 : index
    %c0_212 = arith.constant 0 : index
    %260 = vector.load %arg13[%c2_211, %c0_212] : memref<30x128xf32, #tpu.memory_space<vmem>>, vector<23x128xf32>
    %261 = arith.truncf %260 : vector<23x128xf32> to vector<23x128xbf16>
    %c2_213 = arith.constant 2 : index
    %c0_214 = arith.constant 0 : index
    %c0_215 = arith.constant 0 : index
    %262 = vector.load %arg3[%c2_213, %c0_214, %c0_215] : memref<8x128x128xbf16, #tpu.memory_space<vmem>>, vector<1x128x128xbf16>
    %263 = vector.shape_cast %262 : vector<1x128x128xbf16> to vector<128x128xbf16>
    %cst_216 = arith.constant dense<0.000000e+00> : vector<23x128xf32>
    %264 = tpu.matmul %261, %263, %cst_216 {dimension_numbers = #tpu.dot_dimension_numbers<[1], [0], [0], [1], [0, 0, 1, 1], [], []>} : vector<23x128xbf16>, vector<128x128xbf16>, vector<23x128xf32> -> vector<23x128xf32>
    %265 = arith.addf %259, %264 : vector<23x128xf32>
    %c3_217 = arith.constant 3 : index
    %c0_218 = arith.constant 0 : index
    %266 = vector.load %arg13[%c3_217, %c0_218] : memref<30x128xf32, #tpu.memory_space<vmem>>, vector<23x128xf32>
    %267 = arith.truncf %266 : vector<23x128xf32> to vector<23x128xbf16>
    %c3_219 = arith.constant 3 : index
    %c0_220 = arith.constant 0 : index
    %c0_221 = arith.constant 0 : index
    %268 = vector.load %arg3[%c3_219, %c0_220, %c0_221] : memref<8x128x128xbf16, #tpu.memory_space<vmem>>, vector<1x128x128xbf16>
    %269 = vector.shape_cast %268 : vector<1x128x128xbf16> to vector<128x128xbf16>
    %cst_222 = arith.constant dense<0.000000e+00> : vector<23x128xf32>
    %270 = tpu.matmul %267, %269, %cst_222 {dimension_numbers = #tpu.dot_dimension_numbers<[1], [0], [0], [1], [0, 0, 1, 1], [], []>} : vector<23x128xbf16>, vector<128x128xbf16>, vector<23x128xf32> -> vector<23x128xf32>
    %271 = arith.addf %265, %270 : vector<23x128xf32>
    %c4_223 = arith.constant 4 : index
    %c0_224 = arith.constant 0 : index
    %272 = vector.load %arg13[%c4_223, %c0_224] : memref<30x128xf32, #tpu.memory_space<vmem>>, vector<23x128xf32>
    %273 = arith.truncf %272 : vector<23x128xf32> to vector<23x128xbf16>
    %c4_225 = arith.constant 4 : index
    %c0_226 = arith.constant 0 : index
    %c0_227 = arith.constant 0 : index
    %274 = vector.load %arg3[%c4_225, %c0_226, %c0_227] : memref<8x128x128xbf16, #tpu.memory_space<vmem>>, vector<1x128x128xbf16>
    %275 = vector.shape_cast %274 : vector<1x128x128xbf16> to vector<128x128xbf16>
    %cst_228 = arith.constant dense<0.000000e+00> : vector<23x128xf32>
    %276 = tpu.matmul %273, %275, %cst_228 {dimension_numbers = #tpu.dot_dimension_numbers<[1], [0], [0], [1], [0, 0, 1, 1], [], []>} : vector<23x128xbf16>, vector<128x128xbf16>, vector<23x128xf32> -> vector<23x128xf32>
    %277 = arith.addf %271, %276 : vector<23x128xf32>
    %c5_229 = arith.constant 5 : index
    %c0_230 = arith.constant 0 : index
    %278 = vector.load %arg13[%c5_229, %c0_230] : memref<30x128xf32, #tpu.memory_space<vmem>>, vector<23x128xf32>
    %279 = arith.truncf %278 : vector<23x128xf32> to vector<23x128xbf16>
    %c5_231 = arith.constant 5 : index
    %c0_232 = arith.constant 0 : index
    %c0_233 = arith.constant 0 : index
    %280 = vector.load %arg3[%c5_231, %c0_232, %c0_233] : memref<8x128x128xbf16, #tpu.memory_space<vmem>>, vector<1x128x128xbf16>
    %281 = vector.shape_cast %280 : vector<1x128x128xbf16> to vector<128x128xbf16>
    %cst_234 = arith.constant dense<0.000000e+00> : vector<23x128xf32>
    %282 = tpu.matmul %279, %281, %cst_234 {dimension_numbers = #tpu.dot_dimension_numbers<[1], [0], [0], [1], [0, 0, 1, 1], [], []>} : vector<23x128xbf16>, vector<128x128xbf16>, vector<23x128xf32> -> vector<23x128xf32>
    %283 = arith.addf %277, %282 : vector<23x128xf32>
    %c6_235 = arith.constant 6 : index
    %c0_236 = arith.constant 0 : index
    %284 = vector.load %arg13[%c6_235, %c0_236] : memref<30x128xf32, #tpu.memory_space<vmem>>, vector<23x128xf32>
    %285 = arith.truncf %284 : vector<23x128xf32> to vector<23x128xbf16>
    %c6_237 = arith.constant 6 : index
    %c0_238 = arith.constant 0 : index
    %c0_239 = arith.constant 0 : index
    %286 = vector.load %arg3[%c6_237, %c0_238, %c0_239] : memref<8x128x128xbf16, #tpu.memory_space<vmem>>, vector<1x128x128xbf16>
    %287 = vector.shape_cast %286 : vector<1x128x128xbf16> to vector<128x128xbf16>
    %cst_240 = arith.constant dense<0.000000e+00> : vector<23x128xf32>
    %288 = tpu.matmul %285, %287, %cst_240 {dimension_numbers = #tpu.dot_dimension_numbers<[1], [0], [0], [1], [0, 0, 1, 1], [], []>} : vector<23x128xbf16>, vector<128x128xbf16>, vector<23x128xf32> -> vector<23x128xf32>
    %289 = arith.addf %283, %288 : vector<23x128xf32>
    %c7_241 = arith.constant 7 : index
    %c0_242 = arith.constant 0 : index
    %290 = vector.load %arg13[%c7_241, %c0_242] : memref<30x128xf32, #tpu.memory_space<vmem>>, vector<23x128xf32>
    %291 = arith.truncf %290 : vector<23x128xf32> to vector<23x128xbf16>
    %c7_243 = arith.constant 7 : index
    %c0_244 = arith.constant 0 : index
    %c0_245 = arith.constant 0 : index
    %292 = vector.load %arg3[%c7_243, %c0_244, %c0_245] : memref<8x128x128xbf16, #tpu.memory_space<vmem>>, vector<1x128x128xbf16>
    %293 = vector.shape_cast %292 : vector<1x128x128xbf16> to vector<128x128xbf16>
    %cst_246 = arith.constant dense<0.000000e+00> : vector<23x128xf32>
    %294 = tpu.matmul %291, %293, %cst_246 {dimension_numbers = #tpu.dot_dimension_numbers<[1], [0], [0], [1], [0, 0, 1, 1], [], []>} : vector<23x128xbf16>, vector<128x128xbf16>, vector<23x128xf32> -> vector<23x128xf32>
    %295 = arith.addf %289, %294 : vector<23x128xf32>
    %cst_247 = arith.constant 0.000000e+00 : f32
    %296 = vector.broadcast %cst_247 : f32 to vector<23x128xf32>
    %297 = arith.maximumf %295, %296 : vector<23x128xf32>
    %298 = vector.extract_strided_slice %297 {offsets = [0, 0], sizes = [21, 128], strides = [1, 1]} : vector<23x128xf32> to vector<21x128xf32>
    %299 = vector.extract_strided_slice %297 {offsets = [1, 0], sizes = [21, 128], strides = [1, 1]} : vector<23x128xf32> to vector<21x128xf32>
    %300 = arith.maximumf %298, %299 : vector<21x128xf32>
    %301 = vector.extract_strided_slice %297 {offsets = [2, 0], sizes = [21, 128], strides = [1, 1]} : vector<23x128xf32> to vector<21x128xf32>
    %302 = arith.maximumf %300, %301 : vector<21x128xf32>
    %303 = arith.truncf %302 : vector<21x128xf32> to vector<21x128xbf16>
    %cst_248 = arith.constant dense<0.000000e+00> : vector<7x128xf32>
    %304 = tpu.matmul %23, %303, %cst_248 {dimension_numbers = #tpu.dot_dimension_numbers<[1], [0], [0], [1], [0, 0, 1, 1], [], []>} : vector<7x21xbf16>, vector<21x128xbf16>, vector<7x128xf32> -> vector<7x128xf32>
    %c1_249 = arith.constant 1 : index
    %c0_250 = arith.constant 0 : index
    %c0_251 = arith.constant 0 : index
    %305 = vector.load %arg14[%c1_249, %c0_250, %c0_251] : memref<2x7x128xf32, #tpu.memory_space<vmem>>, vector<1x7x128xf32>
    %306 = vector.shape_cast %305 : vector<1x7x128xf32> to vector<7x128xf32>
    %307 = vector.shape_cast %304 : vector<7x128xf32> to vector<1x7x128xf32>
    tpu.vector_store %arg14[%c1_249, %c0_250, %c0_251], %307 {strides = array<i32>} : memref<2x7x128xf32, #tpu.memory_space<vmem>>, vector<1x7x128xf32>,
    %c0_i32_252 = arith.constant 0 : i32
    %308 = tpu.memref_slice %arg12[%c0_i32_252] : memref<2x!tpu.dma_semaphore, #tpu.memory_space<semaphore_mem>> -> memref<1x!tpu.dma_semaphore, #tpu.memory_space<semaphore_mem>>
    %309 = tpu.memref_squeeze %308 : memref<1x!tpu.dma_semaphore, #tpu.memory_space<semaphore_mem>> -> memref<!tpu.dma_semaphore, #tpu.memory_space<semaphore_mem>>
    tpu.wait_dma2 semaphore(%309 : memref<!tpu.dma_semaphore, #tpu.memory_space<semaphore_mem>>) src(%arg5 : memref<7x128x1024xbf16, #tpu.memory_space<any>>) dst(%arg10 : memref<7x128x1024xbf16, #tpu.memory_space<vmem>>)
    %c1_i32_253 = arith.constant 1 : i32
    %310 = tpu.memref_slice %arg12[%c1_i32_253] : memref<2x!tpu.dma_semaphore, #tpu.memory_space<semaphore_mem>> -> memref<1x!tpu.dma_semaphore, #tpu.memory_space<semaphore_mem>>
    %311 = tpu.memref_squeeze %310 : memref<1x!tpu.dma_semaphore, #tpu.memory_space<semaphore_mem>> -> memref<!tpu.dma_semaphore, #tpu.memory_space<semaphore_mem>>
    tpu.wait_dma2 semaphore(%311 : memref<!tpu.dma_semaphore, #tpu.memory_space<semaphore_mem>>) src(%arg7 : memref<1024x128xbf16, #tpu.memory_space<any>>) dst(%arg11 : memref<1024x128xbf16, #tpu.memory_space<vmem>>)
    %c0_254 = arith.constant 0 : index
    %c0_255 = arith.constant 0 : index
    %312 = vector.load %arg6[%c0_254, %c0_255] : memref<1x1024xf32, #tpu.memory_space<vmem>>, vector<1x1024xf32>
    %c0_256 = arith.constant 0 : index
    %c0_257 = arith.constant 0 : index
    %313 = vector.load %arg8[%c0_256, %c0_257] : memref<1x128xf32, #tpu.memory_space<vmem>>, vector<1x128xf32>
    %c0_258 = arith.constant 0 : index
    %c0_259 = arith.constant 0 : index
    %c0_260 = arith.constant 0 : index
    %314 = vector.load %arg14[%c0_258, %c0_259, %c0_260] : memref<2x7x128xf32, #tpu.memory_space<vmem>>, vector<2x7x128xf32>
    %315 = vector.extract_strided_slice %314 {offsets = [0, 0, 0], sizes = [2, 1, 128], strides = [1, 1, 1]} : vector<2x7x128xf32> to vector<2x1x128xf32>
    %316 = vector.shape_cast %315 : vector<2x1x128xf32> to vector<2x128xf32>
    %317 = arith.truncf %316 : vector<2x128xf32> to vector<2x128xbf16>
    %c0_261 = arith.constant 0 : index
    %c0_262 = arith.constant 0 : index
    %c0_263 = arith.constant 0 : index
    %318 = vector.load %arg10[%c0_261, %c0_262, %c0_263] : memref<7x128x1024xbf16, #tpu.memory_space<vmem>>, vector<1x128x1024xbf16>
    %319 = vector.shape_cast %318 : vector<1x128x1024xbf16> to vector<128x1024xbf16>
    %cst_264 = arith.constant dense<0.000000e+00> : vector<2x1024xf32>
    %320 = tpu.matmul %317, %319, %cst_264 {dimension_numbers = #tpu.dot_dimension_numbers<[1], [0], [0], [1], [0, 0, 1, 1], [], []>} : vector<2x128xbf16>, vector<128x1024xbf16>, vector<2x1024xf32> -> vector<2x1024xf32>
    %321 = vector.broadcast %312 : vector<1x1024xf32> to vector<2x1024xf32>
    %322 = arith.addf %320, %321 : vector<2x1024xf32>
    %323 = vector.extract_strided_slice %314 {offsets = [0, 1, 0], sizes = [2, 1, 128], strides = [1, 1, 1]} : vector<2x7x128xf32> to vector<2x1x128xf32>
    %324 = vector.shape_cast %323 : vector<2x1x128xf32> to vector<2x128xf32>
    %325 = arith.truncf %324 : vector<2x128xf32> to vector<2x128xbf16>
    %c1_265 = arith.constant 1 : index
    %c0_266 = arith.constant 0 : index
    %c0_267 = arith.constant 0 : index
    %326 = vector.load %arg10[%c1_265, %c0_266, %c0_267] : memref<7x128x1024xbf16, #tpu.memory_space<vmem>>, vector<1x128x1024xbf16>
    %327 = vector.shape_cast %326 : vector<1x128x1024xbf16> to vector<128x1024xbf16>
    %cst_268 = arith.constant dense<0.000000e+00> : vector<2x1024xf32>
    %328 = tpu.matmul %325, %327, %cst_268 {dimension_numbers = #tpu.dot_dimension_numbers<[1], [0], [0], [1], [0, 0, 1, 1], [], []>} : vector<2x128xbf16>, vector<128x1024xbf16>, vector<2x1024xf32> -> vector<2x1024xf32>
    %329 = arith.addf %322, %328 : vector<2x1024xf32>
    %330 = vector.extract_strided_slice %314 {offsets = [0, 2, 0], sizes = [2, 1, 128], strides = [1, 1, 1]} : vector<2x7x128xf32> to vector<2x1x128xf32>
    %331 = vector.shape_cast %330 : vector<2x1x128xf32> to vector<2x128xf32>
    %332 = arith.truncf %331 : vector<2x128xf32> to vector<2x128xbf16>
    %c2_269 = arith.constant 2 : index
    %c0_270 = arith.constant 0 : index
    %c0_271 = arith.constant 0 : index
    %333 = vector.load %arg10[%c2_269, %c0_270, %c0_271] : memref<7x128x1024xbf16, #tpu.memory_space<vmem>>, vector<1x128x1024xbf16>
    %334 = vector.shape_cast %333 : vector<1x128x1024xbf16> to vector<128x1024xbf16>
    %cst_272 = arith.constant dense<0.000000e+00> : vector<2x1024xf32>
    %335 = tpu.matmul %332, %334, %cst_272 {dimension_numbers = #tpu.dot_dimension_numbers<[1], [0], [0], [1], [0, 0, 1, 1], [], []>} : vector<2x128xbf16>, vector<128x1024xbf16>, vector<2x1024xf32> -> vector<2x1024xf32>
    %336 = arith.addf %329, %335 : vector<2x1024xf32>
    %337 = vector.extract_strided_slice %314 {offsets = [0, 3, 0], sizes = [2, 1, 128], strides = [1, 1, 1]} : vector<2x7x128xf32> to vector<2x1x128xf32>
    %338 = vector.shape_cast %337 : vector<2x1x128xf32> to vector<2x128xf32>
    %339 = arith.truncf %338 : vector<2x128xf32> to vector<2x128xbf16>
    %c3_273 = arith.constant 3 : index
    %c0_274 = arith.constant 0 : index
    %c0_275 = arith.constant 0 : index
    %340 = vector.load %arg10[%c3_273, %c0_274, %c0_275] : memref<7x128x1024xbf16, #tpu.memory_space<vmem>>, vector<1x128x1024xbf16>
    %341 = vector.shape_cast %340 : vector<1x128x1024xbf16> to vector<128x1024xbf16>
    %cst_276 = arith.constant dense<0.000000e+00> : vector<2x1024xf32>
    %342 = tpu.matmul %339, %341, %cst_276 {dimension_numbers = #tpu.dot_dimension_numbers<[1], [0], [0], [1], [0, 0, 1, 1], [], []>} : vector<2x128xbf16>, vector<128x1024xbf16>, vector<2x1024xf32> -> vector<2x1024xf32>
    %343 = arith.addf %336, %342 : vector<2x1024xf32>
    %344 = vector.extract_strided_slice %314 {offsets = [0, 4, 0], sizes = [2, 1, 128], strides = [1, 1, 1]} : vector<2x7x128xf32> to vector<2x1x128xf32>
    %345 = vector.shape_cast %344 : vector<2x1x128xf32> to vector<2x128xf32>
    %346 = arith.truncf %345 : vector<2x128xf32> to vector<2x128xbf16>
    %c4_277 = arith.constant 4 : index
    %c0_278 = arith.constant 0 : index
    %c0_279 = arith.constant 0 : index
    %347 = vector.load %arg10[%c4_277, %c0_278, %c0_279] : memref<7x128x1024xbf16, #tpu.memory_space<vmem>>, vector<1x128x1024xbf16>
    %348 = vector.shape_cast %347 : vector<1x128x1024xbf16> to vector<128x1024xbf16>
    %cst_280 = arith.constant dense<0.000000e+00> : vector<2x1024xf32>
    %349 = tpu.matmul %346, %348, %cst_280 {dimension_numbers = #tpu.dot_dimension_numbers<[1], [0], [0], [1], [0, 0, 1, 1], [], []>} : vector<2x128xbf16>, vector<128x1024xbf16>, vector<2x1024xf32> -> vector<2x1024xf32>
    %350 = arith.addf %343, %349 : vector<2x1024xf32>
    %351 = vector.extract_strided_slice %314 {offsets = [0, 5, 0], sizes = [2, 1, 128], strides = [1, 1, 1]} : vector<2x7x128xf32> to vector<2x1x128xf32>
    %352 = vector.shape_cast %351 : vector<2x1x128xf32> to vector<2x128xf32>
    %353 = arith.truncf %352 : vector<2x128xf32> to vector<2x128xbf16>
    %c5_281 = arith.constant 5 : index
    %c0_282 = arith.constant 0 : index
    %c0_283 = arith.constant 0 : index
    %354 = vector.load %arg10[%c5_281, %c0_282, %c0_283] : memref<7x128x1024xbf16, #tpu.memory_space<vmem>>, vector<1x128x1024xbf16>
    %355 = vector.shape_cast %354 : vector<1x128x1024xbf16> to vector<128x1024xbf16>
    %cst_284 = arith.constant dense<0.000000e+00> : vector<2x1024xf32>
    %356 = tpu.matmul %353, %355, %cst_284 {dimension_numbers = #tpu.dot_dimension_numbers<[1], [0], [0], [1], [0, 0, 1, 1], [], []>} : vector<2x128xbf16>, vector<128x1024xbf16>, vector<2x1024xf32> -> vector<2x1024xf32>
    %357 = arith.addf %350, %356 : vector<2x1024xf32>
    %358 = vector.extract_strided_slice %314 {offsets = [0, 6, 0], sizes = [2, 1, 128], strides = [1, 1, 1]} : vector<2x7x128xf32> to vector<2x1x128xf32>
    %359 = vector.shape_cast %358 : vector<2x1x128xf32> to vector<2x128xf32>
    %360 = arith.truncf %359 : vector<2x128xf32> to vector<2x128xbf16>
    %c6_285 = arith.constant 6 : index
    %c0_286 = arith.constant 0 : index
    %c0_287 = arith.constant 0 : index
    %361 = vector.load %arg10[%c6_285, %c0_286, %c0_287] : memref<7x128x1024xbf16, #tpu.memory_space<vmem>>, vector<1x128x1024xbf16>
    %362 = vector.shape_cast %361 : vector<1x128x1024xbf16> to vector<128x1024xbf16>
    %cst_288 = arith.constant dense<0.000000e+00> : vector<2x1024xf32>
    %363 = tpu.matmul %360, %362, %cst_288 {dimension_numbers = #tpu.dot_dimension_numbers<[1], [0], [0], [1], [0, 0, 1, 1], [], []>} : vector<2x128xbf16>, vector<128x1024xbf16>, vector<2x1024xf32> -> vector<2x1024xf32>
    %364 = arith.addf %357, %363 : vector<2x1024xf32>
    %cst_289 = arith.constant 0.000000e+00 : f32
    %365 = vector.broadcast %cst_289 : f32 to vector<2x1024xf32>
    %366 = arith.maximumf %364, %365 : vector<2x1024xf32>
    %367 = arith.truncf %366 : vector<2x1024xf32> to vector<2x1024xbf16>
    %c0_290 = arith.constant 0 : index
    %c0_291 = arith.constant 0 : index
    %368 = vector.load %arg11[%c0_290, %c0_291] : memref<1024x128xbf16, #tpu.memory_space<vmem>>, vector<1024x128xbf16>
    %cst_292 = arith.constant dense<0.000000e+00> : vector<2x128xf32>
    %369 = tpu.matmul %367, %368, %cst_292 {dimension_numbers = #tpu.dot_dimension_numbers<[1], [0], [0], [1], [0, 0, 1, 1], [], []>} : vector<2x1024xbf16>, vector<1024x128xbf16>, vector<2x128xf32> -> vector<2x128xf32>
    %370 = vector.broadcast %313 : vector<1x128xf32> to vector<2x128xf32>
    %371 = arith.addf %369, %370 : vector<2x128xf32>
    %cst_293 = arith.constant 0.000000e+00 : f32
    %372 = vector.broadcast %cst_293 : f32 to vector<2x128xf32>
    %373 = arith.maximumf %371, %372 : vector<2x128xf32>
    %374 = tpu.iota {dimensions = array<i32: 1>} : vector<2x128xi32>
    %c10_i32 = arith.constant 10 : i32
    %375 = vector.broadcast %c10_i32 : i32 to vector<2x128xi32>
    %376 = arith.cmpi slt, %374, %375 : vector<2x128xi32>
    %cst_294 = arith.constant 0xFF800000 : f32
    %377 = vector.broadcast %cst_294 : f32 to vector<2x128xf32>
    %378 = arith.select %376, %373, %377 : vector<2x128xi1>, vector<2x128xf32>
    %cst_295 = arith.constant dense<0xFF800000> : vector<2xf32>
    %379 = vector.multi_reduction <maximumf>, %378, %cst_295 [1] : vector<2x128xf32> to vector<2xf32>
    %380 = vector.shape_cast %379 : vector<2xf32> to vector<2x1xf32>
    %381 = vector.broadcast %380 : vector<2x1xf32> to vector<2x128xf32>
    %382 = arith.subf %378, %381 : vector<2x128xf32>
    %383 = math.exp %382 : vector<2x128xf32>
    %cst_296 = arith.constant dense<0.000000e+00> : vector<2xf32>
    %384 = vector.multi_reduction <add>, %383, %cst_296 [1] : vector<2x128xf32> to vector<2xf32>
    %385 = vector.shape_cast %384 : vector<2xf32> to vector<2x1xf32>
    %386 = math.log %385 : vector<2x1xf32>
    %387 = vector.broadcast %386 : vector<2x1xf32> to vector<2x128xf32>
    %388 = arith.subf %382, %387 : vector<2x128xf32>
    %c0_297 = arith.constant 0 : index
    %c0_298 = arith.constant 0 : index
    %389 = vector.load %arg9[%c0_297, %c0_298] : memref<2x128xf32, #tpu.memory_space<vmem>>, vector<2x128xf32>
    tpu.vector_store %arg9[%c0_297, %c0_298], %388 {strides = array<i32>} : memref<2x128xf32, #tpu.memory_space<vmem>>, vector<2x128xf32>,
    return
  }
}

</mosaic_0001>

<llo_original>
// kernel: simplenet_forward.1
$region0: #{simplenet_forward.1}
  #allocation0 [shape = 'u32[]', space=smem, size = 0x4, offset = 0x4, fixed_abs, tag = 'smem constant byte address 0x4 - core index']
  #allocation1 [shape = 'u32[72,128]{1,0:T(1,128)}', space=vmem, size = 0x9000, scoped, tag = 'internal scratch']
  #allocation2 [shape = 'bf16[7,128,1024]{2,1,0:T(8,128)(2,1)}', space=vmem, size = 0x1c0000, scoped, tag = 'scratch operand']
  #allocation3 [shape = 'bf16[1024,128]{1,0:T(8,128)(2,1)}', space=vmem, size = 0x40000, scoped, tag = 'scratch operand']
  #allocation4 [shape = 's32[2]{0}', space=sflag, size = 0x8, scoped, tag = 'scratch operand']
  #allocation5 [shape = 'f32[30,128]{1,0:T(8,128)}', space=vmem, size = 0x4000, scoped, tag = 'scratch operand']
  #allocation6 [shape = 'f32[2,7,128]{2,1,0:T(8,128)}', space=vmem, size = 0x2000, scoped, tag = 'scratch operand']
  #allocation19 [shape = 's32[]', space=sflag, size = 0x4, offset = 0, fixed_abs, tag = 'sflag constant byte address 0x0 - dummy sync flag']
  #allocation20 [shape = 's32[]', space=sflag, size = 0x4, offset = 0, fixed_abs, tag = 'sflag constant byte address 0x0 - dummy sync flag']
  #allocation21 [shape = 'u32[]', space=smem, size = 0x4, offset = 0x44, fixed_abs, tag = 'smem constant byte address 0x44 - assertion arg 0']
  #allocation22 [shape = 'u32[]', space=smem, size = 0x4, offset = 0x48, fixed_abs, tag = 'smem constant byte address 0x48 - assertion arg 1']
  #allocation23 [shape = 's32[]', space=sflag, size = 0x4, offset = 0, fixed_abs, tag = 'sflag constant byte address 0x0 - dummy sync flag']
  #allocation24 [shape = 's32[]', space=sflag, size = 0x4, offset = 0, fixed_abs, tag = 'sflag constant byte address 0x0 - dummy sync flag']
  %s0 = inlined_call_operand.vmem [shape: f32[2,100,40], index: 0, kind: input, shape index: {}]
  %s1 = inlined_call_operand.hbm [shape: bf16[10,40,128], index: 1, kind: input, shape index: {}]
  %s2 = inlined_call_operand.hbm [shape: f32[1,128], index: 2, kind: input, shape index: {}]
  %s3 = inlined_call_operand.hbm [shape: bf16[8,128,128], index: 3, kind: input, shape index: {}]
  %s4 = inlined_call_operand.hbm [shape: f32[1,128], index: 4, kind: input, shape index: {}]
  %s5 = inlined_call_operand.hbm [shape: bf16[7,128,1024], index: 5, kind: input, shape index: {}]
  %s6 = inlined_call_operand.hbm [shape: f32[1,1024], index: 6, kind: input, shape index: {}]
  %s7 = inlined_call_operand.hbm [shape: bf16[1024,128], index: 7, kind: input, shape index: {}]
  %s8 = inlined_call_operand.hbm [shape: f32[1,128], index: 8, kind: input, shape index: {}]
  %s9 = inlined_call_operand.hbm [shape: f32[2,128], index: 9, kind: output, shape index: {}]
  %s10 = sld [smem:[#allocation0]]
  $region70: #{simplenet_forward.1} parent=0
    _
  %s12 = ssub.s32 1, %s10
  %s13 = scalar_select 0, %s12, %s10
  $region1: #{simplenet_forward.1} parent=0
    #allocation7 [shape = 'u8[102400]{0}', space=vmem, size = 0x19000, scoped, tag = 'input window, operand 1, single buffered']
    #allocation8 [shape = 's32[1]{0}', space=sflag, size = 0x4, scoped, tag = 'scoped memory for simplenet_forward.1']
    #allocation9 [shape = 's32[1]{0}', space=sflag, size = 0x4, scoped, tag = 'scoped memory for simplenet_forward.1']
    #allocation10 [shape = 'u8[512]{0}', space=vmem, size = 0x400, scoped, tag = 'input window, operand 2, single buffered']
    #allocation11 [shape = 's32[1]{0}', space=sflag, size = 0x4, scoped, tag = 'scoped memory for simplenet_forward.1']
    #allocation12 [shape = 'u8[262144]{0}', space=vmem, size = 0x40000, scoped, tag = 'input window, operand 3, single buffered']
    #allocation13 [shape = 'u8[512]{0}', space=vmem, size = 0x400, scoped, tag = 'input window, operand 4, single buffered']
    #allocation14 [shape = 's32[1]{0}', space=sflag, size = 0x4, scoped, tag = 'scoped memory for simplenet_forward.1']
    #allocation15 [shape = 'u8[4096]{0}', space=vmem, size = 0x1000, scoped, tag = 'input window, operand 6, single buffered']
    #allocation16 [shape = 'u8[512]{0}', space=vmem, size = 0x400, scoped, tag = 'input window, operand 8, single buffered']
    #allocation17 [shape = 's32[1]{0}', space=sflag, size = 0x4, scoped, tag = 'scoped memory for simplenet_forward.1']
    #allocation18 [shape = 'u8[1024]{0}', space=vmem, size = 0x400, scoped, tag = 'output window, operand 0, single buffered']
    %14 = vsyncpa [#allocation8], 0
    %15 = vsyncpa [#allocation11], 0
    %16 = vsyncpa [#allocation14], 0
    %17 = vsyncpa [#allocation17], 0
    %18 = vsyncpa [#allocation9], 0
    // Predicated region
    $region2: #{simplenet_forward.1} parent=1 // pred_check
      _
    $region3: #{simplenet_forward.1} parent=1 // pred_check_branch
      %20 = sbr.rel (0) target = $region5
    $region4: #{simplenet_forward.1} parent=1 // pred_region
      _
    $region5: #{simplenet_forward.1} parent=1 // pred_fallthru
      _
    // Predicated region
    $region6: #{simplenet_forward.1} parent=1 // pred_check
      _
    $region7: #{simplenet_forward.1} parent=1 // pred_check_branch
      %22 = sbr.rel (0) target = $region9
    $region8: #{simplenet_forward.1} parent=1 // pred_region
      %24 = vsyncadd [#allocation8], 0
      %s25 = sshll.u32 %s1, 4
      %s26 = int_to_ptr.hbm [resolvable:$true] %s25
      %s27 = sshll.u32 [#allocation7], 4
      %s28 = int_to_ptr.vmem [resolvable:$true] %s27
      %33 = dma.hbm_to_vmem [thread:$0]  %s26, 3200, %s28, [#allocation8], 64, 64, 4
    $region9: #{simplenet_forward.1} parent=1 // pred_fallthru
      _
    // Predicated region
    $region10: #{simplenet_forward.1} parent=1 // pred_check
      _
    $region11: #{simplenet_forward.1} parent=1 // pred_check_branch
      %35 = sbr.rel (0) target = $region13
    $region12: #{simplenet_forward.1} parent=1 // pred_region
      %37 = vsyncadd [#allocation11], 0
      %s39 = sshll.u32 %s2, 4
      %s40 = int_to_ptr.hbm [resolvable:$true] %s39
      %s41 = sshll.u32 [#allocation10], 4
      %s42 = int_to_ptr.vmem [resolvable:$true] %s41
      %44 = dma.hbm_to_vmem [thread:$0]  %s40, 16, %s42, [#allocation11]
    $region13: #{simplenet_forward.1} parent=1 // pred_fallthru
      _
    // Predicated region
    $region14: #{simplenet_forward.1} parent=1 // pred_check
      _
    $region15: #{simplenet_forward.1} parent=1 // pred_check_branch
      %46 = sbr.rel (0) target = $region17
    $region16: #{simplenet_forward.1} parent=1 // pred_region
      %48 = vsyncadd [#allocation11], 0
      %s49 = sshll.u32 %s3, 4
      %s50 = int_to_ptr.hbm [resolvable:$true] %s49
      %s51 = sshll.u32 [#allocation12], 4
      %s52 = int_to_ptr.vmem [resolvable:$true] %s51
      %57 = dma.hbm_to_vmem [thread:$0]  %s50, 8192, %s52, [#allocation11], 64, 64, 4
    $region17: #{simplenet_forward.1} parent=1 // pred_fallthru
      _
    // Predicated region
    $region18: #{simplenet_forward.1} parent=1 // pred_check
      _
    $region19: #{simplenet_forward.1} parent=1 // pred_check_branch
      %59 = sbr.rel (0) target = $region21
    $region20: #{simplenet_forward.1} parent=1 // pred_region
      %61 = vsyncadd [#allocation14], 0
      %s63 = sshll.u32 %s4, 4
      %s64 = int_to_ptr.hbm [resolvable:$true] %s63
      %s65 = sshll.u32 [#allocation13], 4
      %s66 = int_to_ptr.vmem [resolvable:$true] %s65
      %68 = dma.hbm_to_vmem [thread:$0]  %s64, 16, %s66, [#allocation14]
    $region21: #{simplenet_forward.1} parent=1 // pred_fallthru
      _
    // Predicated region
    $region22: #{simplenet_forward.1} parent=1 // pred_check
      _
    $region23: #{simplenet_forward.1} parent=1 // pred_check_branch
      %70 = sbr.rel (0) target = $region25
    $region24: #{simplenet_forward.1} parent=1 // pred_region
      %72 = vsyncadd [#allocation14], 0
      %s74 = sshll.u32 %s6, 4
      %s75 = int_to_ptr.hbm [resolvable:$true] %s74
      %s76 = sshll.u32 [#allocation15], 4
      %s77 = int_to_ptr.vmem [resolvable:$true] %s76
      %79 = dma.hbm_to_vmem [thread:$0]  %s75, 128, %s77, [#allocation14]
    $region25: #{simplenet_forward.1} parent=1 // pred_fallthru
      _
    // Predicated region
    $region26: #{simplenet_forward.1} parent=1 // pred_check
      _
    $region27: #{simplenet_forward.1} parent=1 // pred_check_branch
      %81 = sbr.rel (0) target = $region29
    $region28: #{simplenet_forward.1} parent=1 // pred_region
      %83 = vsyncadd [#allocation17], 0
      %s85 = sshll.u32 %s8, 4
      %s86 = int_to_ptr.hbm [resolvable:$true] %s85
      %s87 = sshll.u32 [#allocation16], 4
      %s88 = int_to_ptr.vmem [resolvable:$true] %s87
      %90 = dma.hbm_to_vmem [thread:$0]  %s86, 16, %s88, [#allocation17]
    $region29: #{simplenet_forward.1} parent=1 // pred_fallthru
      _
    // Predicated region
    $region30: #{simplenet_forward.1} parent=1 // pred_check
      _
    $region31: #{simplenet_forward.1} parent=1 // pred_check_branch
      %92 = sbr.rel (0) target = $region33
    $region32: #{simplenet_forward.1} parent=1 // pred_region
      %94 = dma.done [#allocation8], 3200
    $region33: #{simplenet_forward.1} parent=1 // pred_fallthru
      _
    // Predicated region
    $region34: #{simplenet_forward.1} parent=1 // pred_check
      _
    $region35: #{simplenet_forward.1} parent=1 // pred_check_branch
      %96 = sbr.rel (0) target = $region37
    $region36: #{simplenet_forward.1} parent=1 // pred_region
      %98 = dma.done [#allocation11], 16
    $region37: #{simplenet_forward.1} parent=1 // pred_fallthru
      _
    // Predicated region
    $region38: #{simplenet_forward.1} parent=1 // pred_check
      _
    $region39: #{simplenet_forward.1} parent=1 // pred_check_branch
      %100 = sbr.rel (0) target = $region41
    $region40: #{simplenet_forward.1} parent=1 // pred_region
      %102 = dma.done [#allocation11], 8192
    $region41: #{simplenet_forward.1} parent=1 // pred_fallthru
      _
    // Predicated region
    $region42: #{simplenet_forward.1} parent=1 // pred_check
      _
    $region43: #{simplenet_forward.1} parent=1 // pred_check_branch
      %104 = sbr.rel (0) target = $region45
    $region44: #{simplenet_forward.1} parent=1 // pred_region
      %106 = dma.done [#allocation14], 16
    $region45: #{simplenet_forward.1} parent=1 // pred_fallthru
      _
    // Predicated region
    $region46: #{simplenet_forward.1} parent=1 // pred_check
      _
    $region47: #{simplenet_forward.1} parent=1 // pred_check_branch
      %108 = sbr.rel (0) target = $region49
    $region48: #{simplenet_forward.1} parent=1 // pred_region
      %110 = dma.done [#allocation14], 128
    $region49: #{simplenet_forward.1} parent=1 // pred_fallthru
      _
    // Predicated region
    $region50: #{simplenet_forward.1} parent=1 // pred_check
      _
    $region51: #{simplenet_forward.1} parent=1 // pred_check_branch
      %112 = sbr.rel (0) target = $region53
    $region52: #{simplenet_forward.1} parent=1 // pred_region
      %114 = dma.done [#allocation17], 16
    $region53: #{simplenet_forward.1} parent=1 // pred_fallthru
      _
    // Predicated region
    $region54: #{simplenet_forward.1} parent=1 // pred_check
      _
    $region55: #{simplenet_forward.1} parent=1 // pred_check_branch
      %117 = sbr.rel target = $region57
    $region56: #{simplenet_forward.1} parent=1 // pred_region
      %118 = sst [smem:[#allocation21]] [#allocation20]
      %119 = sst [smem:[#allocation22]] [#allocation19]
    $region57: #{simplenet_forward.1} parent=1 // pred_fallthru
      _
    %121 = shalt.err (0)
    %s123 = sshll.u32 %s5, 4
    %s124 = int_to_ptr.hbm [resolvable:$true] %s123
    %s125 = sshll.u32 [#allocation2], 4
    %s126 = int_to_ptr.vmem [resolvable:$true] %s125
    %128 = dma.hbm_to_vmem [thread:$0]  %s124, 57344, %s126, [#allocation4]
    %s129 = scalar_lea.sflag [#allocation4], 1
    // Predicated region
    $region58: #{simplenet_forward.1} parent=1 // pred_check
      _
    $region59: #{simplenet_forward.1} parent=1 // pred_check_branch
      %131 = sbr.rel target = $region61
    $region60: #{simplenet_forward.1} parent=1 // pred_region
      %132 = sst [smem:[#allocation21]] [#allocation24]
      %133 = sst [smem:[#allocation22]] [#allocation23]
    $region61: #{simplenet_forward.1} parent=1 // pred_fallthru
      _
    %135 = shalt.err (0)
    %s137 = sshll.u32 %s7, 4
    %s138 = int_to_ptr.hbm [resolvable:$true] %s137
    %s139 = sshll.u32 [#allocation3], 4
    %s140 = int_to_ptr.vmem [resolvable:$true] %s139
    %142 = dma.hbm_to_vmem [thread:$0]  %s138, 8192, %s140, %s129
    %v143 = vld [vmem:[#allocation10] sm:$0x1]
    %v144 = vld [vmem:[#allocation13] sm:$0x1]
    %v145 = vlaneseq
    %v146 = vand.u32 %v145, 127
    %v147 = vlaneseq
    %v148 = vshrl.u32 %v147, 7
    %v149 = vadd.s32 %v148, 8
    %v150 = vadd.s32 %v148, 16
    %v151 = vadd.s32 %v148, 24
    %v152 = vmul.u32 %v148, 3
    %v153 = vmul.u32 %v149, 3
    %v154 = vmul.u32 %v150, 3
    %v155 = vmul.u32 %v151, 3
    %vm156 = vcmp.eq.s32.totalorder %v146, %v152
    %vm157 = vcmp.eq.s32.totalorder %v146, %v153
    %vm158 = vcmp.eq.s32.totalorder %v146, %v154
    %vm159 = vcmp.eq.s32.totalorder %v146, %v155
    %v160 = vsel %vm156, 1.0, 0.0
    %v161 = vsel %vm157, 1.0, 0.0
    %v162 = vsel %vm158, 1.0, 0.0
    %v163 = vsel %vm159, 1.0, 0.0
    %v164 = vpack.c.bf16 %v161, %v160
    %v165 = vpack.c.bf16 %v163, %v162
    %v166 = vpack.c.bf16 %v160, %v160
    %v167 = vld [vmem:[%s0] sm:$0xff]
    %v168 = vld [vmem:[%s0 + $0x8] sm:$0xff]
    %v169 = vld [vmem:[%s0 + $0x10] sm:$0xff]
    %v170 = vld [vmem:[%s0 + $0x18] sm:$0xff]
    %v171 = vld [vmem:[%s0 + $0x20] sm:$0xff]
    %v172 = vld [vmem:[%s0 + $0x28] sm:$0xff]
    %v173 = vld [vmem:[%s0 + $0x30] sm:$0xff]
    %v174 = vld [vmem:[%s0 + $0x38] sm:$0xff]
    %v175 = vld [vmem:[%s0 + $0x40] sm:$0xff]
    %v176 = vld [vmem:[%s0 + $0x48] sm:$0xff]
    %v177 = vld [vmem:[%s0 + $0x50] sm:$0xff]
    %v178 = vld [vmem:[%s0 + $0x58] sm:$0x7]
    %v179 = vpack.c.bf16 %v168, %v167
    %v180 = vpack.c.bf16 %v170, %v169
    %v181 = vpack.c.bf16 %v172, %v171
    %v182 = vpack.c.bf16 %v174, %v173
    %v183 = vpack.c.bf16 %v176, %v175
    %v184 = vpack.c.bf16 %v178, %v177
    %v185 = vld [vmem:[#allocation7] sm:$0xf]
    %v186 = vld [vmem:[#allocation7 + $0x4] sm:$0xf]
    %v187 = vld [vmem:[#allocation7 + $0x8] sm:$0xf]
    %v188 = vld [vmem:[#allocation7 + $0xc] sm:$0xf]
    %v189 = vld [vmem:[#allocation7 + $0x10] sm:$0xf]
    %v191 = vperm.slane %v143, 0
    %v198 = vunpack.c.l.b16 %v185
    %v199 = vunpack.c.l.b16 %v186
    %v200 = vunpack.c.l.b16 %v187
    %v201 = vunpack.c.l.b16 %v188
    %v202 = vunpack.c.l.b16 %v189
    %v203 = vpack.c.b16 %v199, %v198
    %v204 = vpack.c.b16 %v201, %v200
    %v205 = vpack.c.b16 %v202, %v202
    %vm208 = vcmask 326656
    %v210 = vsel %vm208, %v179, 0
    %v213 = vsel %vm208, %v180, 0
    %v216 = vsel %vm208, %v181, 0
    %v219 = vsel %vm208, %v182, 0
    %v222 = vsel %vm208, %v183, 0
    %v225 = vsel %vm208, %v184, 0
    %vm227 = vcmask 1043456
    %v229 = vsel %vm227, %v205, 0
    %231 = vmatpush.bf16.msra.mxu0 0
    %232 = vmatpush.bf16.msra.mxu0 0
    %233 = vmatpush.bf16.msra.mxu0 0
    %234 = vmatpush.bf16.msra.mxu0 0
    %235 = vmatpush.bf16.msra.mxu0 0
    %236 = vmatpush.bf16.msra.mxu0 %v229
    %237 = vmatpush.bf16.msra.mxu0 %v204
    %238 = vmatpush.bf16.msra.mxu0 %v203
    %239 = vmatmul.bf16.gmra.mxu0 %v210
    %v240 = vpop.f32.mrf.mxu0
    %v241 = vadd.f32 %v191, %v240
    %v242 = vpop.f32.mrf.mxu0
    %v243 = vadd.f32 %v191, %v242
    %244 = vmatmul.bf16.gmra.mxu0 %v213
    %v245 = vpop.f32.mrf.mxu0
    %v246 = vadd.f32 %v191, %v245
    %v247 = vpop.f32.mrf.mxu0
    %v248 = vadd.f32 %v191, %v247
    %249 = vmatmul.bf16.gmra.mxu0 %v216
    %v250 = vpop.f32.mrf.mxu0
    %v251 = vadd.f32 %v191, %v250
    %v252 = vpop.f32.mrf.mxu0
    %v253 = vadd.f32 %v191, %v252
    %254 = vmatmul.bf16.gmra.mxu0 %v219
    %v255 = vpop.f32.mrf.mxu0
    %v256 = vadd.f32 %v191, %v255
    %v257 = vpop.f32.mrf.mxu0
    %v258 = vadd.f32 %v191, %v257
    %259 = vmatmul.bf16.gmra.mxu0 %v222
    %v260 = vpop.f32.mrf.mxu0
    %v261 = vadd.f32 %v191, %v260
    %v262 = vpop.f32.mrf.mxu0
    %v263 = vadd.f32 %v191, %v262
    %264 = vmatmul.bf16.gmra.mxu0 %v225
    %v265 = vpop.f32.mrf.mxu0
    %v266 = vadd.f32 %v191, %v265
    %v267 = vpop.f32.mrf.mxu0
    %v268 = vadd.f32 %v191, %v267
    %269 = vdwg.mxu0
    %v270 = vld [vmem:[%s0 + $0x1] sm:$0xff]
    %v271 = vld [vmem:[%s0 + $0x9] sm:$0xff]
    %v272 = vld [vmem:[%s0 + $0x11] sm:$0xff]
    %v273 = vld [vmem:[%s0 + $0x19] sm:$0xff]
    %v274 = vld [vmem:[%s0 + $0x21] sm:$0xff]
    %v275 = vld [vmem:[%s0 + $0x29] sm:$0xff]
    %v276 = vld [vmem:[%s0 + $0x31] sm:$0xff]
    %v277 = vld [vmem:[%s0 + $0x39] sm:$0xff]
    %v278 = vld [vmem:[%s0 + $0x41] sm:$0xff]
    %v279 = vld [vmem:[%s0 + $0x49] sm:$0xff]
    %v280 = vld [vmem:[%s0 + $0x51] sm:$0xff]
    %v281 = vld [vmem:[%s0 + $0x59] sm:$0x7]
    %v282 = vpack.c.bf16 %v271, %v270
    %v283 = vpack.c.bf16 %v273, %v272
    %v284 = vpack.c.bf16 %v275, %v274
    %v285 = vpack.c.bf16 %v277, %v276
    %v286 = vpack.c.bf16 %v279, %v278
    %v287 = vpack.c.bf16 %v281, %v280
    %s288 = scalar_lea.vmem [#allocation7], 20
    %v289 = vld [vmem:[%s288] sm:$0xf]
    %v290 = vld [vmem:[%s288 + $0x4] sm:$0xf]
    %v291 = vld [vmem:[%s288 + $0x8] sm:$0xf]
    %v292 = vld [vmem:[%s288 + $0xc] sm:$0xf]
    %v293 = vld [vmem:[%s288 + $0x10] sm:$0xf]
    %v299 = vunpack.c.l.b16 %v289
    %v300 = vunpack.c.l.b16 %v290
    %v301 = vunpack.c.l.b16 %v291
    %v302 = vunpack.c.l.b16 %v292
    %v303 = vunpack.c.l.b16 %v293
    %v304 = vpack.c.b16 %v300, %v299
    %v305 = vpack.c.b16 %v302, %v301
    %v306 = vpack.c.b16 %v303, %v303
    %v310 = vsel %vm208, %v282, 0
    %v313 = vsel %vm208, %v283, 0
    %v316 = vsel %vm208, %v284, 0
    %v319 = vsel %vm208, %v285, 0
    %v322 = vsel %vm208, %v286, 0
    %v325 = vsel %vm208, %v287, 0
    %v328 = vsel %vm227, %v306, 0
    %330 = vmatpush.bf16.msra.mxu0 0
    %331 = vmatpush.bf16.msra.mxu0 0
    %332 = vmatpush.bf16.msra.mxu0 0
    %333 = vmatpush.bf16.msra.mxu0 0
    %334 = vmatpush.bf16.msra.mxu0 0
    %335 = vmatpush.bf16.msra.mxu0 %v328
    %336 = vmatpush.bf16.msra.mxu0 %v305
    %337 = vmatpush.bf16.msra.mxu0 %v304
    %338 = vmatmul.bf16.gmra.mxu0 %v310
    %v339 = vpop.f32.mrf.mxu0
    %v340 = vadd.f32 0.0, %v339
    %v341 = vpop.f32.mrf.mxu0
    %v342 = vadd.f32 0.0, %v341
    %343 = vmatmul.bf16.gmra.mxu0 %v313
    %v344 = vpop.f32.mrf.mxu0
    %v345 = vadd.f32 0.0, %v344
    %v346 = vpop.f32.mrf.mxu0
    %v347 = vadd.f32 0.0, %v346
    %348 = vmatmul.bf16.gmra.mxu0 %v316
    %v349 = vpop.f32.mrf.mxu0
    %v350 = vadd.f32 0.0, %v349
    %v351 = vpop.f32.mrf.mxu0
    %v352 = vadd.f32 0.0, %v351
    %353 = vmatmul.bf16.gmra.mxu0 %v319
    %v354 = vpop.f32.mrf.mxu0
    %v355 = vadd.f32 0.0, %v354
    %v356 = vpop.f32.mrf.mxu0
    %v357 = vadd.f32 0.0, %v356
    %358 = vmatmul.bf16.gmra.mxu0 %v322
    %v359 = vpop.f32.mrf.mxu0
    %v360 = vadd.f32 0.0, %v359
    %v361 = vpop.f32.mrf.mxu0
    %v362 = vadd.f32 0.0, %v361
    %363 = vmatmul.bf16.gmra.mxu0 %v325
    %v364 = vpop.f32.mrf.mxu0
    %v365 = vadd.f32 0.0, %v364
    %v366 = vpop.f32.mrf.mxu0
    %v367 = vadd.f32 0.0, %v366
    %368 = vdwg.mxu0
    %v369 = vadd.f32 %v241, %v340
    %v370 = vadd.f32 %v243, %v342
    %v371 = vadd.f32 %v246, %v345
    %v372 = vadd.f32 %v248, %v347
    %v373 = vadd.f32 %v251, %v350
    %v374 = vadd.f32 %v253, %v352
    %v375 = vadd.f32 %v256, %v355
    %v376 = vadd.f32 %v258, %v357
    %v377 = vadd.f32 %v261, %v360
    %v378 = vadd.f32 %v263, %v362
    %v379 = vadd.f32 %v266, %v365
    %v380 = vadd.f32 %v268, %v367
    %v381 = vld [vmem:[%s0 + $0x2] sm:$0xff]
    %v382 = vld [vmem:[%s0 + $0xa] sm:$0xff]
    %v383 = vld [vmem:[%s0 + $0x12] sm:$0xff]
    %v384 = vld [vmem:[%s0 + $0x1a] sm:$0xff]
    %v385 = vld [vmem:[%s0 + $0x22] sm:$0xff]
    %v386 = vld [vmem:[%s0 + $0x2a] sm:$0xff]
    %v387 = vld [vmem:[%s0 + $0x32] sm:$0xff]
    %v388 = vld [vmem:[%s0 + $0x3a] sm:$0xff]
    %v389 = vld [vmem:[%s0 + $0x42] sm:$0xff]
    %v390 = vld [vmem:[%s0 + $0x4a] sm:$0xff]
    %v391 = vld [vmem:[%s0 + $0x52] sm:$0xff]
    %v392 = vld [vmem:[%s0 + $0x5a] sm:$0x7]
    %v393 = vpack.c.bf16 %v382, %v381
    %v394 = vpack.c.bf16 %v384, %v383
    %v395 = vpack.c.bf16 %v386, %v385
    %v396 = vpack.c.bf16 %v388, %v387
    %v397 = vpack.c.bf16 %v390, %v389
    %v398 = vpack.c.bf16 %v392, %v391
    %s399 = scalar_lea.vmem [#allocation7], 40
    %v400 = vld [vmem:[%s399] sm:$0xf]
    %v401 = vld [vmem:[%s399 + $0x4] sm:$0xf]
    %v402 = vld [vmem:[%s399 + $0x8] sm:$0xf]
    %v403 = vld [vmem:[%s399 + $0xc] sm:$0xf]
    %v404 = vld [vmem:[%s399 + $0x10] sm:$0xf]
    %v410 = vunpack.c.l.b16 %v400
    %v411 = vunpack.c.l.b16 %v401
    %v412 = vunpack.c.l.b16 %v402
    %v413 = vunpack.c.l.b16 %v403
    %v414 = vunpack.c.l.b16 %v404
    %v415 = vpack.c.b16 %v411, %v410
    %v416 = vpack.c.b16 %v413, %v412
    %v417 = vpack.c.b16 %v414, %v414
    %v421 = vsel %vm208, %v393, 0
    %v424 = vsel %vm208, %v394, 0
    %v427 = vsel %vm208, %v395, 0
    %v430 = vsel %vm208, %v396, 0
    %v433 = vsel %vm208, %v397, 0
    %v436 = vsel %vm208, %v398, 0
    %v439 = vsel %vm227, %v417, 0
    %441 = vmatpush.bf16.msra.mxu0 0
    %442 = vmatpush.bf16.msra.mxu0 0
    %443 = vmatpush.bf16.msra.mxu0 0
    %444 = vmatpush.bf16.msra.mxu0 0
    %445 = vmatpush.bf16.msra.mxu0 0
    %446 = vmatpush.bf16.msra.mxu0 %v439
    %447 = vmatpush.bf16.msra.mxu0 %v416
    %448 = vmatpush.bf16.msra.mxu0 %v415
    %449 = vmatmul.bf16.gmra.mxu0 %v421
    %v450 = vpop.f32.mrf.mxu0
    %v451 = vadd.f32 0.0, %v450
    %v452 = vpop.f32.mrf.mxu0
    %v453 = vadd.f32 0.0, %v452
    %454 = vmatmul.bf16.gmra.mxu0 %v424
    %v455 = vpop.f32.mrf.mxu0
    %v456 = vadd.f32 0.0, %v455
    %v457 = vpop.f32.mrf.mxu0
    %v458 = vadd.f32 0.0, %v457
    %459 = vmatmul.bf16.gmra.mxu0 %v427
    %v460 = vpop.f32.mrf.mxu0
    %v461 = vadd.f32 0.0, %v460
    %v462 = vpop.f32.mrf.mxu0
    %v463 = vadd.f32 0.0, %v462
    %464 = vmatmul.bf16.gmra.mxu0 %v430
    %v465 = vpop.f32.mrf.mxu0
    %v466 = vadd.f32 0.0, %v465
    %v467 = vpop.f32.mrf.mxu0
    %v468 = vadd.f32 0.0, %v467
    %469 = vmatmul.bf16.gmra.mxu0 %v433
    %v470 = vpop.f32.mrf.mxu0
    %v471 = vadd.f32 0.0, %v470
    %v472 = vpop.f32.mrf.mxu0
    %v473 = vadd.f32 0.0, %v472
    %474 = vmatmul.bf16.gmra.mxu0 %v436
    %v475 = vpop.f32.mrf.mxu0
    %v476 = vadd.f32 0.0, %v475
    %v477 = vpop.f32.mrf.mxu0
    %v478 = vadd.f32 0.0, %v477
    %479 = vdwg.mxu0
    %v480 = vadd.f32 %v369, %v451
    %v481 = vadd.f32 %v370, %v453
    %v482 = vadd.f32 %v371, %v456
    %v483 = vadd.f32 %v372, %v458
    %v484 = vadd.f32 %v373, %v461
    %v485 = vadd.f32 %v374, %v463
    %v486 = vadd.f32 %v375, %v466
    %v487 = vadd.f32 %v376, %v468
    %v488 = vadd.f32 %v377, %v471
    %v489 = vadd.f32 %v378, %v473
    %v490 = vadd.f32 %v379, %v476
    %v491 = vadd.f32 %v380, %v478
    %v492 = vld [vmem:[%s0 + $0x3] sm:$0xff]
    %v493 = vld [vmem:[%s0 + $0xb] sm:$0xff]
    %v494 = vld [vmem:[%s0 + $0x13] sm:$0xff]
    %v495 = vld [vmem:[%s0 + $0x1b] sm:$0xff]
    %v496 = vld [vmem:[%s0 + $0x23] sm:$0xff]
    %v497 = vld [vmem:[%s0 + $0x2b] sm:$0xff]
    %v498 = vld [vmem:[%s0 + $0x33] sm:$0xff]
    %v499 = vld [vmem:[%s0 + $0x3b] sm:$0xff]
    %v500 = vld [vmem:[%s0 + $0x43] sm:$0xff]
    %v501 = vld [vmem:[%s0 + $0x4b] sm:$0xff]
    %v502 = vld [vmem:[%s0 + $0x53] sm:$0xff]
    %v503 = vld [vmem:[%s0 + $0x5b] sm:$0x7]
    %v504 = vpack.c.bf16 %v493, %v492
    %v505 = vpack.c.bf16 %v495, %v494
    %v506 = vpack.c.bf16 %v497, %v496
    %v507 = vpack.c.bf16 %v499, %v498
    %v508 = vpack.c.bf16 %v501, %v500
    %v509 = vpack.c.bf16 %v503, %v502
    %s510 = scalar_lea.vmem [#allocation7], 60
    %v511 = vld [vmem:[%s510] sm:$0xf]
    %v512 = vld [vmem:[%s510 + $0x4] sm:$0xf]
    %v513 = vld [vmem:[%s510 + $0x8] sm:$0xf]
    %v514 = vld [vmem:[%s510 + $0xc] sm:$0xf]
    %v515 = vld [vmem:[%s510 + $0x10] sm:$0xf]
    %v521 = vunpack.c.l.b16 %v511
    %v522 = vunpack.c.l.b16 %v512
    %v523 = vunpack.c.l.b16 %v513
    %v524 = vunpack.c.l.b16 %v514
    %v525 = vunpack.c.l.b16 %v515
    %v526 = vpack.c.b16 %v522, %v521
    %v527 = vpack.c.b16 %v524, %v523
    %v528 = vpack.c.b16 %v525, %v525
    %v532 = vsel %vm208, %v504, 0
    %v535 = vsel %vm208, %v505, 0
    %v538 = vsel %vm208, %v506, 0
    %v541 = vsel %vm208, %v507, 0
    %v544 = vsel %vm208, %v508, 0
    %v547 = vsel %vm208, %v509, 0
    %v550 = vsel %vm227, %v528, 0
    %552 = vmatpush.bf16.msra.mxu0 0
    %553 = vmatpush.bf16.msra.mxu0 0
    %554 = vmatpush.bf16.msra.mxu0 0
    %555 = vmatpush.bf16.msra.mxu0 0
    %556 = vmatpush.bf16.msra.mxu0 0
    %557 = vmatpush.bf16.msra.mxu0 %v550
    %558 = vmatpush.bf16.msra.mxu0 %v527
    %559 = vmatpush.bf16.msra.mxu0 %v526
    %560 = vmatmul.bf16.gmra.mxu0 %v532
    %v561 = vpop.f32.mrf.mxu0
    %v562 = vadd.f32 0.0, %v561
    %v563 = vpop.f32.mrf.mxu0
    %v564 = vadd.f32 0.0, %v563
    %565 = vmatmul.bf16.gmra.mxu0 %v535
    %v566 = vpop.f32.mrf.mxu0
    %v567 = vadd.f32 0.0, %v566
    %v568 = vpop.f32.mrf.mxu0
    %v569 = vadd.f32 0.0, %v568
    %570 = vmatmul.bf16.gmra.mxu0 %v538
    %v571 = vpop.f32.mrf.mxu0
    %v572 = vadd.f32 0.0, %v571
    %v573 = vpop.f32.mrf.mxu0
    %v574 = vadd.f32 0.0, %v573
    %575 = vmatmul.bf16.gmra.mxu0 %v541
    %v576 = vpop.f32.mrf.mxu0
    %v577 = vadd.f32 0.0, %v576
    %v578 = vpop.f32.mrf.mxu0
    %v579 = vadd.f32 0.0, %v578
    %580 = vmatmul.bf16.gmra.mxu0 %v544
    %v581 = vpop.f32.mrf.mxu0
    %v582 = vadd.f32 0.0, %v581
    %v583 = vpop.f32.mrf.mxu0
    %v584 = vadd.f32 0.0, %v583
    %585 = vmatmul.bf16.gmra.mxu0 %v547
    %v586 = vpop.f32.mrf.mxu0
    %v587 = vadd.f32 0.0, %v586
    %v588 = vpop.f32.mrf.mxu0
    %v589 = vadd.f32 0.0, %v588
    %590 = vdwg.mxu0
    %v591 = vadd.f32 %v480, %v562
    %v592 = vadd.f32 %v481, %v564
    %v593 = vadd.f32 %v482, %v567
    %v594 = vadd.f32 %v483, %v569
    %v595 = vadd.f32 %v484, %v572
    %v596 = vadd.f32 %v485, %v574
    %v597 = vadd.f32 %v486, %v577
    %v598 = vadd.f32 %v487, %v579
    %v599 = vadd.f32 %v488, %v582
    %v600 = vadd.f32 %v489, %v584
    %v601 = vadd.f32 %v490, %v587
    %v602 = vadd.f32 %v491, %v589
    %v603 = vld [vmem:[%s0 + $0x4] sm:$0xff]
    %v604 = vld [vmem:[%s0 + $0xc] sm:$0xff]
    %v605 = vld [vmem:[%s0 + $0x14] sm:$0xff]
    %v606 = vld [vmem:[%s0 + $0x1c] sm:$0xff]
    %v607 = vld [vmem:[%s0 + $0x24] sm:$0xff]
    %v608 = vld [vmem:[%s0 + $0x2c] sm:$0xff]
    %v609 = vld [vmem:[%s0 + $0x34] sm:$0xff]
    %v610 = vld [vmem:[%s0 + $0x3c] sm:$0xff]
    %v611 = vld [vmem:[%s0 + $0x44] sm:$0xff]
    %v612 = vld [vmem:[%s0 + $0x4c] sm:$0xff]
    %v613 = vld [vmem:[%s0 + $0x54] sm:$0xff]
    %v614 = vld [vmem:[%s0 + $0x5c] sm:$0x7]
    %v615 = vpack.c.bf16 %v604, %v603
    %v616 = vpack.c.bf16 %v606, %v605
    %v617 = vpack.c.bf16 %v608, %v607
    %v618 = vpack.c.bf16 %v610, %v609
    %v619 = vpack.c.bf16 %v612, %v611
    %v620 = vpack.c.bf16 %v614, %v613
    %s621 = scalar_lea.vmem [#allocation7], 80
    %v622 = vld [vmem:[%s621] sm:$0xf]
    %v623 = vld [vmem:[%s621 + $0x4] sm:$0xf]
    %v624 = vld [vmem:[%s621 + $0x8] sm:$0xf]
    %v625 = vld [vmem:[%s621 + $0xc] sm:$0xf]
    %v626 = vld [vmem:[%s621 + $0x10] sm:$0xf]
    %v632 = vunpack.c.l.b16 %v622
    %v633 = vunpack.c.l.b16 %v623
    %v634 = vunpack.c.l.b16 %v624
    %v635 = vunpack.c.l.b16 %v625
    %v636 = vunpack.c.l.b16 %v626
    %v637 = vpack.c.b16 %v633, %v632
    %v638 = vpack.c.b16 %v635, %v634
    %v639 = vpack.c.b16 %v636, %v636
    %v643 = vsel %vm208, %v615, 0
    %v646 = vsel %vm208, %v616, 0
    %v649 = vsel %vm208, %v617, 0
    %v652 = vsel %vm208, %v618, 0
    %v655 = vsel %vm208, %v619, 0
    %v658 = vsel %vm208, %v620, 0
    %v661 = vsel %vm227, %v639, 0
    %663 = vmatpush.bf16.msra.mxu0 0
    %664 = vmatpush.bf16.msra.mxu0 0
    %665 = vmatpush.bf16.msra.mxu0 0
    %666 = vmatpush.bf16.msra.mxu0 0
    %667 = vmatpush.bf16.msra.mxu0 0
    %668 = vmatpush.bf16.msra.mxu0 %v661
    %669 = vmatpush.bf16.msra.mxu0 %v638
    %670 = vmatpush.bf16.msra.mxu0 %v637
    %671 = vmatmul.bf16.gmra.mxu0 %v643
    %v672 = vpop.f32.mrf.mxu0
    %v673 = vadd.f32 0.0, %v672
    %v674 = vpop.f32.mrf.mxu0
    %v675 = vadd.f32 0.0, %v674
    %676 = vmatmul.bf16.gmra.mxu0 %v646
    %v677 = vpop.f32.mrf.mxu0
    %v678 = vadd.f32 0.0, %v677
    %v679 = vpop.f32.mrf.mxu0
    %v680 = vadd.f32 0.0, %v679
    %681 = vmatmul.bf16.gmra.mxu0 %v649
    %v682 = vpop.f32.mrf.mxu0
    %v683 = vadd.f32 0.0, %v682
    %v684 = vpop.f32.mrf.mxu0
    %v685 = vadd.f32 0.0, %v684
    %686 = vmatmul.bf16.gmra.mxu0 %v652
    %v687 = vpop.f32.mrf.mxu0
    %v688 = vadd.f32 0.0, %v687
    %v689 = vpop.f32.mrf.mxu0
    %v690 = vadd.f32 0.0, %v689
    %691 = vmatmul.bf16.gmra.mxu0 %v655
    %v692 = vpop.f32.mrf.mxu0
    %v693 = vadd.f32 0.0, %v692
    %v694 = vpop.f32.mrf.mxu0
    %v695 = vadd.f32 0.0, %v694
    %696 = vmatmul.bf16.gmra.mxu0 %v658
    %v697 = vpop.f32.mrf.mxu0
    %v698 = vadd.f32 0.0, %v697
    %v699 = vpop.f32.mrf.mxu0
    %v700 = vadd.f32 0.0, %v699
    %701 = vdwg.mxu0
    %v702 = vadd.f32 %v591, %v673
    %v703 = vadd.f32 %v592, %v675
    %v704 = vadd.f32 %v593, %v678
    %v705 = vadd.f32 %v594, %v680
    %v706 = vadd.f32 %v595, %v683
    %v707 = vadd.f32 %v596, %v685
    %v708 = vadd.f32 %v597, %v688
    %v709 = vadd.f32 %v598, %v690
    %v710 = vadd.f32 %v599, %v693
    %v711 = vadd.f32 %v600, %v695
    %v712 = vadd.f32 %v601, %v698
    %v713 = vadd.f32 %v602, %v700
    %v714 = vld [vmem:[%s0 + $0x5] sm:$0xff]
    %v715 = vld [vmem:[%s0 + $0xd] sm:$0xff]
    %v716 = vld [vmem:[%s0 + $0x15] sm:$0xff]
    %v717 = vld [vmem:[%s0 + $0x1d] sm:$0xff]
    %v718 = vld [vmem:[%s0 + $0x25] sm:$0xff]
    %v719 = vld [vmem:[%s0 + $0x2d] sm:$0xff]
    %v720 = vld [vmem:[%s0 + $0x35] sm:$0xff]
    %v721 = vld [vmem:[%s0 + $0x3d] sm:$0xff]
    %v722 = vld [vmem:[%s0 + $0x45] sm:$0xff]
    %v723 = vld [vmem:[%s0 + $0x4d] sm:$0xff]
    %v724 = vld [vmem:[%s0 + $0x55] sm:$0xff]
    %v725 = vld [vmem:[%s0 + $0x5d] sm:$0x7]
    %v726 = vpack.c.bf16 %v715, %v714
    %v727 = vpack.c.bf16 %v717, %v716
    %v728 = vpack.c.bf16 %v719, %v718
    %v729 = vpack.c.bf16 %v721, %v720
    %v730 = vpack.c.bf16 %v723, %v722
    %v731 = vpack.c.bf16 %v725, %v724
    %s732 = scalar_lea.vmem [#allocation7], 100
    %v733 = vld [vmem:[%s732] sm:$0xf]
    %v734 = vld [vmem:[%s732 + $0x4] sm:$0xf]
    %v735 = vld [vmem:[%s732 + $0x8] sm:$0xf]
    %v736 = vld [vmem:[%s732 + $0xc] sm:$0xf]
    %v737 = vld [vmem:[%s732 + $0x10] sm:$0xf]
    %v743 = vunpack.c.l.b16 %v733
    %v744 = vunpack.c.l.b16 %v734
    %v745 = vunpack.c.l.b16 %v735
    %v746 = vunpack.c.l.b16 %v736
    %v747 = vunpack.c.l.b16 %v737
    %v748 = vpack.c.b16 %v744, %v743
    %v749 = vpack.c.b16 %v746, %v745
    %v750 = vpack.c.b16 %v747, %v747
    %v754 = vsel %vm208, %v726, 0
    %v757 = vsel %vm208, %v727, 0
    %v760 = vsel %vm208, %v728, 0
    %v763 = vsel %vm208, %v729, 0
    %v766 = vsel %vm208, %v730, 0
    %v769 = vsel %vm208, %v731, 0
    %v772 = vsel %vm227, %v750, 0
    %774 = vmatpush.bf16.msra.mxu0 0
    %775 = vmatpush.bf16.msra.mxu0 0
    %776 = vmatpush.bf16.msra.mxu0 0
    %777 = vmatpush.bf16.msra.mxu0 0
    %778 = vmatpush.bf16.msra.mxu0 0
    %779 = vmatpush.bf16.msra.mxu0 %v772
    %780 = vmatpush.bf16.msra.mxu0 %v749
    %781 = vmatpush.bf16.msra.mxu0 %v748
    %782 = vmatmul.bf16.gmra.mxu0 %v754
    %v783 = vpop.f32.mrf.mxu0
    %v784 = vadd.f32 0.0, %v783
    %v785 = vpop.f32.mrf.mxu0
    %v786 = vadd.f32 0.0, %v785
    %787 = vmatmul.bf16.gmra.mxu0 %v757
    %v788 = vpop.f32.mrf.mxu0
    %v789 = vadd.f32 0.0, %v788
    %v790 = vpop.f32.mrf.mxu0
    %v791 = vadd.f32 0.0, %v790
    %792 = vmatmul.bf16.gmra.mxu0 %v760
    %v793 = vpop.f32.mrf.mxu0
    %v794 = vadd.f32 0.0, %v793
    %v795 = vpop.f32.mrf.mxu0
    %v796 = vadd.f32 0.0, %v795
    %797 = vmatmul.bf16.gmra.mxu0 %v763
    %v798 = vpop.f32.mrf.mxu0
    %v799 = vadd.f32 0.0, %v798
    %v800 = vpop.f32.mrf.mxu0
    %v801 = vadd.f32 0.0, %v800
    %802 = vmatmul.bf16.gmra.mxu0 %v766
    %v803 = vpop.f32.mrf.mxu0
    %v804 = vadd.f32 0.0, %v803
    %v805 = vpop.f32.mrf.mxu0
    %v806 = vadd.f32 0.0, %v805
    %807 = vmatmul.bf16.gmra.mxu0 %v769
    %v808 = vpop.f32.mrf.mxu0
    %v809 = vadd.f32 0.0, %v808
    %v810 = vpop.f32.mrf.mxu0
    %v811 = vadd.f32 0.0, %v810
    %812 = vdwg.mxu0
    %v813 = vadd.f32 %v702, %v784
    %v814 = vadd.f32 %v703, %v786
    %v815 = vadd.f32 %v704, %v789
    %v816 = vadd.f32 %v705, %v791
    %v817 = vadd.f32 %v706, %v794
    %v818 = vadd.f32 %v707, %v796
    %v819 = vadd.f32 %v708, %v799
    %v820 = vadd.f32 %v709, %v801
    %v821 = vadd.f32 %v710, %v804
    %v822 = vadd.f32 %v711, %v806
    %v823 = vadd.f32 %v712, %v809
    %v824 = vadd.f32 %v713, %v811
    %v825 = vld [vmem:[%s0 + $0x6] sm:$0xff]
    %v826 = vld [vmem:[%s0 + $0xe] sm:$0xff]
    %v827 = vld [vmem:[%s0 + $0x16] sm:$0xff]
    %v828 = vld [vmem:[%s0 + $0x1e] sm:$0xff]
    %v829 = vld [vmem:[%s0 + $0x26] sm:$0xff]
    %v830 = vld [vmem:[%s0 + $0x2e] sm:$0xff]
    %v831 = vld [vmem:[%s0 + $0x36] sm:$0xff]
    %v832 = vld [vmem:[%s0 + $0x3e] sm:$0xff]
    %v833 = vld [vmem:[%s0 + $0x46] sm:$0xff]
    %v834 = vld [vmem:[%s0 + $0x4e] sm:$0xff]
    %v835 = vld [vmem:[%s0 + $0x56] sm:$0xff]
    %v836 = vld [vmem:[%s0 + $0x5e] sm:$0x7]
    %v837 = vpack.c.bf16 %v826, %v825
    %v838 = vpack.c.bf16 %v828, %v827
    %v839 = vpack.c.bf16 %v830, %v829
    %v840 = vpack.c.bf16 %v832, %v831
    %v841 = vpack.c.bf16 %v834, %v833
    %v842 = vpack.c.bf16 %v836, %v835
    %s843 = scalar_lea.vmem [#allocation7], 120
    %v844 = vld [vmem:[%s843] sm:$0xf]
    %v845 = vld [vmem:[%s843 + $0x4] sm:$0xf]
    %v846 = vld [vmem:[%s843 + $0x8] sm:$0xf]
    %v847 = vld [vmem:[%s843 + $0xc] sm:$0xf]
    %v848 = vld [vmem:[%s843 + $0x10] sm:$0xf]
    %v854 = vunpack.c.l.b16 %v844
    %v855 = vunpack.c.l.b16 %v845
    %v856 = vunpack.c.l.b16 %v846
    %v857 = vunpack.c.l.b16 %v847
    %v858 = vunpack.c.l.b16 %v848
    %v859 = vpack.c.b16 %v855, %v854
    %v860 = vpack.c.b16 %v857, %v856
    %v861 = vpack.c.b16 %v858, %v858
    %v865 = vsel %vm208, %v837, 0
    %v868 = vsel %vm208, %v838, 0
    %v871 = vsel %vm208, %v839, 0
    %v874 = vsel %vm208, %v840, 0
    %v877 = vsel %vm208, %v841, 0
    %v880 = vsel %vm208, %v842, 0
    %v883 = vsel %vm227, %v861, 0
    %885 = vmatpush.bf16.msra.mxu0 0
    %886 = vmatpush.bf16.msra.mxu0 0
    %887 = vmatpush.bf16.msra.mxu0 0
    %888 = vmatpush.bf16.msra.mxu0 0
    %889 = vmatpush.bf16.msra.mxu0 0
    %890 = vmatpush.bf16.msra.mxu0 %v883
    %891 = vmatpush.bf16.msra.mxu0 %v860
    %892 = vmatpush.bf16.msra.mxu0 %v859
    %893 = vmatmul.bf16.gmra.mxu0 %v865
    %v894 = vpop.f32.mrf.mxu0
    %v895 = vadd.f32 0.0, %v894
    %v896 = vpop.f32.mrf.mxu0
    %v897 = vadd.f32 0.0, %v896
    %898 = vmatmul.bf16.gmra.mxu0 %v868
    %v899 = vpop.f32.mrf.mxu0
    %v900 = vadd.f32 0.0, %v899
    %v901 = vpop.f32.mrf.mxu0
    %v902 = vadd.f32 0.0, %v901
    %903 = vmatmul.bf16.gmra.mxu0 %v871
    %v904 = vpop.f32.mrf.mxu0
    %v905 = vadd.f32 0.0, %v904
    %v906 = vpop.f32.mrf.mxu0
    %v907 = vadd.f32 0.0, %v906
    %908 = vmatmul.bf16.gmra.mxu0 %v874
    %v909 = vpop.f32.mrf.mxu0
    %v910 = vadd.f32 0.0, %v909
    %v911 = vpop.f32.mrf.mxu0
    %v912 = vadd.f32 0.0, %v911
    %913 = vmatmul.bf16.gmra.mxu0 %v877
    %v914 = vpop.f32.mrf.mxu0
    %v915 = vadd.f32 0.0, %v914
    %v916 = vpop.f32.mrf.mxu0
    %v917 = vadd.f32 0.0, %v916
    %918 = vmatmul.bf16.gmra.mxu0 %v880
    %v919 = vpop.f32.mrf.mxu0
    %v920 = vadd.f32 0.0, %v919
    %v921 = vpop.f32.mrf.mxu0
    %v922 = vadd.f32 0.0, %v921
    %923 = vdwg.mxu0
    %v924 = vadd.f32 %v813, %v895
    %v925 = vadd.f32 %v814, %v897
    %v926 = vadd.f32 %v815, %v900
    %v927 = vadd.f32 %v816, %v902
    %v928 = vadd.f32 %v817, %v905
    %v929 = vadd.f32 %v818, %v907
    %v930 = vadd.f32 %v819, %v910
    %v931 = vadd.f32 %v820, %v912
    %v932 = vadd.f32 %v821, %v915
    %v933 = vadd.f32 %v822, %v917
    %v934 = vadd.f32 %v823, %v920
    %v935 = vadd.f32 %v824, %v922
    %v936 = vld [vmem:[%s0 + $0x7] sm:$0xff]
    %v937 = vld [vmem:[%s0 + $0xf] sm:$0xff]
    %v938 = vld [vmem:[%s0 + $0x17] sm:$0xff]
    %v939 = vld [vmem:[%s0 + $0x1f] sm:$0xff]
    %v940 = vld [vmem:[%s0 + $0x27] sm:$0xff]
    %v941 = vld [vmem:[%s0 + $0x2f] sm:$0xff]
    %v942 = vld [vmem:[%s0 + $0x37] sm:$0xff]
    %v943 = vld [vmem:[%s0 + $0x3f] sm:$0xff]
    %v944 = vld [vmem:[%s0 + $0x47] sm:$0xff]
    %v945 = vld [vmem:[%s0 + $0x4f] sm:$0xff]
    %v946 = vld [vmem:[%s0 + $0x57] sm:$0xff]
    %v947 = vld [vmem:[%s0 + $0x5f] sm:$0x7]
    %v948 = vpack.c.bf16 %v937, %v936
    %v949 = vpack.c.bf16 %v939, %v938
    %v950 = vpack.c.bf16 %v941, %v940
    %v951 = vpack.c.bf16 %v943, %v942
    %v952 = vpack.c.bf16 %v945, %v944
    %v953 = vpack.c.bf16 %v947, %v946
    %s954 = scalar_lea.vmem [#allocation7], 140
    %v955 = vld [vmem:[%s954] sm:$0xf]
    %v956 = vld [vmem:[%s954 + $0x4] sm:$0xf]
    %v957 = vld [vmem:[%s954 + $0x8] sm:$0xf]
    %v958 = vld [vmem:[%s954 + $0xc] sm:$0xf]
    %v959 = vld [vmem:[%s954 + $0x10] sm:$0xf]
    %v965 = vunpack.c.l.b16 %v955
    %v966 = vunpack.c.l.b16 %v956
    %v967 = vunpack.c.l.b16 %v957
    %v968 = vunpack.c.l.b16 %v958
    %v969 = vunpack.c.l.b16 %v959
    %v970 = vpack.c.b16 %v966, %v965
    %v971 = vpack.c.b16 %v968, %v967
    %v972 = vpack.c.b16 %v969, %v969
    %v976 = vsel %vm208, %v948, 0
    %v979 = vsel %vm208, %v949, 0
    %v982 = vsel %vm208, %v950, 0
    %v985 = vsel %vm208, %v951, 0
    %v988 = vsel %vm208, %v952, 0
    %v991 = vsel %vm208, %v953, 0
    %v994 = vsel %vm227, %v972, 0
    %996 = vmatpush.bf16.msra.mxu0 0
    %997 = vmatpush.bf16.msra.mxu0 0
    %998 = vmatpush.bf16.msra.mxu0 0
    %999 = vmatpush.bf16.msra.mxu0 0
    %1000 = vmatpush.bf16.msra.mxu0 0
    %1001 = vmatpush.bf16.msra.mxu0 %v994
    %1002 = vmatpush.bf16.msra.mxu0 %v971
    %1003 = vmatpush.bf16.msra.mxu0 %v970
    %1004 = vmatmul.bf16.gmra.mxu0 %v976
    %v1005 = vpop.f32.mrf.mxu0
    %v1006 = vadd.f32 0.0, %v1005
    %v1007 = vpop.f32.mrf.mxu0
    %v1008 = vadd.f32 0.0, %v1007
    %1009 = vmatmul.bf16.gmra.mxu0 %v979
    %v1010 = vpop.f32.mrf.mxu0
    %v1011 = vadd.f32 0.0, %v1010
    %v1012 = vpop.f32.mrf.mxu0
    %v1013 = vadd.f32 0.0, %v1012
    %1014 = vmatmul.bf16.gmra.mxu0 %v982
    %v1015 = vpop.f32.mrf.mxu0
    %v1016 = vadd.f32 0.0, %v1015
    %v1017 = vpop.f32.mrf.mxu0
    %v1018 = vadd.f32 0.0, %v1017
    %1019 = vmatmul.bf16.gmra.mxu0 %v985
    %v1020 = vpop.f32.mrf.mxu0
    %v1021 = vadd.f32 0.0, %v1020
    %v1022 = vpop.f32.mrf.mxu0
    %v1023 = vadd.f32 0.0, %v1022
    %1024 = vmatmul.bf16.gmra.mxu0 %v988
    %v1025 = vpop.f32.mrf.mxu0
    %v1026 = vadd.f32 0.0, %v1025
    %v1027 = vpop.f32.mrf.mxu0
    %v1028 = vadd.f32 0.0, %v1027
    %1029 = vmatmul.bf16.gmra.mxu0 %v991
    %v1030 = vpop.f32.mrf.mxu0
    %v1031 = vadd.f32 0.0, %v1030
    %v1032 = vpop.f32.mrf.mxu0
    %v1033 = vadd.f32 0.0, %v1032
    %1034 = vdwg.mxu0
    %v1035 = vadd.f32 %v924, %v1006
    %v1036 = vadd.f32 %v925, %v1008
    %v1037 = vadd.f32 %v926, %v1011
    %v1038 = vadd.f32 %v927, %v1013
    %v1039 = vadd.f32 %v928, %v1016
    %v1040 = vadd.f32 %v929, %v1018
    %v1041 = vadd.f32 %v930, %v1021
    %v1042 = vadd.f32 %v931, %v1023
    %v1043 = vadd.f32 %v932, %v1026
    %v1044 = vadd.f32 %v933, %v1028
    %v1045 = vadd.f32 %v934, %v1031
    %v1046 = vadd.f32 %v935, %v1033
    %v1047 = vld [vmem:[%s0 + $0x8] sm:$0xff]
    %v1048 = vld [vmem:[%s0 + $0x10] sm:$0xff]
    %v1049 = vld [vmem:[%s0 + $0x18] sm:$0xff]
    %v1050 = vld [vmem:[%s0 + $0x20] sm:$0xff]
    %v1051 = vld [vmem:[%s0 + $0x28] sm:$0xff]
    %v1052 = vld [vmem:[%s0 + $0x30] sm:$0xff]
    %v1053 = vld [vmem:[%s0 + $0x38] sm:$0xff]
    %v1054 = vld [vmem:[%s0 + $0x40] sm:$0xff]
    %v1055 = vld [vmem:[%s0 + $0x48] sm:$0xff]
    %v1056 = vld [vmem:[%s0 + $0x50] sm:$0xff]
    %v1057 = vld [vmem:[%s0 + $0x58] sm:$0xff]
    %v1058 = vld [vmem:[%s0 + $0x60] sm:$0x7]
    %v1059 = vpack.c.bf16 %v1048, %v1047
    %v1060 = vpack.c.bf16 %v1050, %v1049
    %v1061 = vpack.c.bf16 %v1052, %v1051
    %v1062 = vpack.c.bf16 %v1054, %v1053
    %v1063 = vpack.c.bf16 %v1056, %v1055
    %v1064 = vpack.c.bf16 %v1058, %v1057
    %s1065 = scalar_lea.vmem [#allocation7], 160
    %v1066 = vld [vmem:[%s1065] sm:$0xf]
    %v1067 = vld [vmem:[%s1065 + $0x4] sm:$0xf]
    %v1068 = vld [vmem:[%s1065 + $0x8] sm:$0xf]
    %v1069 = vld [vmem:[%s1065 + $0xc] sm:$0xf]
    %v1070 = vld [vmem:[%s1065 + $0x10] sm:$0xf]
    %v1076 = vunpack.c.l.b16 %v1066
    %v1077 = vunpack.c.l.b16 %v1067
    %v1078 = vunpack.c.l.b16 %v1068
    %v1079 = vunpack.c.l.b16 %v1069
    %v1080 = vunpack.c.l.b16 %v1070
    %v1081 = vpack.c.b16 %v1077, %v1076
    %v1082 = vpack.c.b16 %v1079, %v1078
    %v1083 = vpack.c.b16 %v1080, %v1080
    %v1087 = vsel %vm208, %v1059, 0
    %v1090 = vsel %vm208, %v1060, 0
    %v1093 = vsel %vm208, %v1061, 0
    %v1096 = vsel %vm208, %v1062, 0
    %v1099 = vsel %vm208, %v1063, 0
    %v1102 = vsel %vm208, %v1064, 0
    %v1105 = vsel %vm227, %v1083, 0
    %1107 = vmatpush.bf16.msra.mxu0 0
    %1108 = vmatpush.bf16.msra.mxu0 0
    %1109 = vmatpush.bf16.msra.mxu0 0
    %1110 = vmatpush.bf16.msra.mxu0 0
    %1111 = vmatpush.bf16.msra.mxu0 0
    %1112 = vmatpush.bf16.msra.mxu0 %v1105
    %1113 = vmatpush.bf16.msra.mxu0 %v1082
    %1114 = vmatpush.bf16.msra.mxu0 %v1081
    %1115 = vmatmul.bf16.gmra.mxu0 %v1087
    %v1116 = vpop.f32.mrf.mxu0
    %v1117 = vadd.f32 0.0, %v1116
    %v1118 = vpop.f32.mrf.mxu0
    %v1119 = vadd.f32 0.0, %v1118
    %1120 = vmatmul.bf16.gmra.mxu0 %v1090
    %v1121 = vpop.f32.mrf.mxu0
    %v1122 = vadd.f32 0.0, %v1121
    %v1123 = vpop.f32.mrf.mxu0
    %v1124 = vadd.f32 0.0, %v1123
    %1125 = vmatmul.bf16.gmra.mxu0 %v1093
    %v1126 = vpop.f32.mrf.mxu0
    %v1127 = vadd.f32 0.0, %v1126
    %v1128 = vpop.f32.mrf.mxu0
    %v1129 = vadd.f32 0.0, %v1128
    %1130 = vmatmul.bf16.gmra.mxu0 %v1096
    %v1131 = vpop.f32.mrf.mxu0
    %v1132 = vadd.f32 0.0, %v1131
    %v1133 = vpop.f32.mrf.mxu0
    %v1134 = vadd.f32 0.0, %v1133
    %1135 = vmatmul.bf16.gmra.mxu0 %v1099
    %v1136 = vpop.f32.mrf.mxu0
    %v1137 = vadd.f32 0.0, %v1136
    %v1138 = vpop.f32.mrf.mxu0
    %v1139 = vadd.f32 0.0, %v1138
    %1140 = vmatmul.bf16.gmra.mxu0 %v1102
    %v1141 = vpop.f32.mrf.mxu0
    %v1142 = vadd.f32 0.0, %v1141
    %v1143 = vpop.f32.mrf.mxu0
    %v1144 = vadd.f32 0.0, %v1143
    %1145 = vdwg.mxu0
    %v1146 = vadd.f32 %v1035, %v1117
    %v1147 = vadd.f32 %v1036, %v1119
    %v1148 = vadd.f32 %v1037, %v1122
    %v1149 = vadd.f32 %v1038, %v1124
    %v1150 = vadd.f32 %v1039, %v1127
    %v1151 = vadd.f32 %v1040, %v1129
    %v1152 = vadd.f32 %v1041, %v1132
    %v1153 = vadd.f32 %v1042, %v1134
    %v1154 = vadd.f32 %v1043, %v1137
    %v1155 = vadd.f32 %v1044, %v1139
    %v1156 = vadd.f32 %v1045, %v1142
    %v1157 = vadd.f32 %v1046, %v1144
    %v1158 = vld [vmem:[%s0 + $0x9] sm:$0xff]
    %v1159 = vld [vmem:[%s0 + $0x11] sm:$0xff]
    %v1160 = vld [vmem:[%s0 + $0x19] sm:$0xff]
    %v1161 = vld [vmem:[%s0 + $0x21] sm:$0xff]
    %v1162 = vld [vmem:[%s0 + $0x29] sm:$0xff]
    %v1163 = vld [vmem:[%s0 + $0x31] sm:$0xff]
    %v1164 = vld [vmem:[%s0 + $0x39] sm:$0xff]
    %v1165 = vld [vmem:[%s0 + $0x41] sm:$0xff]
    %v1166 = vld [vmem:[%s0 + $0x49] sm:$0xff]
    %v1167 = vld [vmem:[%s0 + $0x51] sm:$0xff]
    %v1168 = vld [vmem:[%s0 + $0x59] sm:$0xff]
    %v1169 = vld [vmem:[%s0 + $0x61] sm:$0x7]
    %v1170 = vpack.c.bf16 %v1159, %v1158
    %v1171 = vpack.c.bf16 %v1161, %v1160
    %v1172 = vpack.c.bf16 %v1163, %v1162
    %v1173 = vpack.c.bf16 %v1165, %v1164
    %v1174 = vpack.c.bf16 %v1167, %v1166
    %v1175 = vpack.c.bf16 %v1169, %v1168
    %s1176 = scalar_lea.vmem [#allocation7], 180
    %v1177 = vld [vmem:[%s1176] sm:$0xf]
    %v1178 = vld [vmem:[%s1176 + $0x4] sm:$0xf]
    %v1179 = vld [vmem:[%s1176 + $0x8] sm:$0xf]
    %v1180 = vld [vmem:[%s1176 + $0xc] sm:$0xf]
    %v1181 = vld [vmem:[%s1176 + $0x10] sm:$0xf]
    %v1187 = vunpack.c.l.b16 %v1177
    %v1188 = vunpack.c.l.b16 %v1178
    %v1189 = vunpack.c.l.b16 %v1179
    %v1190 = vunpack.c.l.b16 %v1180
    %v1191 = vunpack.c.l.b16 %v1181
    %v1192 = vpack.c.b16 %v1188, %v1187
    %v1193 = vpack.c.b16 %v1190, %v1189
    %v1194 = vpack.c.b16 %v1191, %v1191
    %v1198 = vsel %vm208, %v1170, 0
    %v1201 = vsel %vm208, %v1171, 0
    %v1204 = vsel %vm208, %v1172, 0
    %v1207 = vsel %vm208, %v1173, 0
    %v1210 = vsel %vm208, %v1174, 0
    %v1213 = vsel %vm208, %v1175, 0
    %v1216 = vsel %vm227, %v1194, 0
    %1218 = vmatpush.bf16.msra.mxu0 0
    %1219 = vmatpush.bf16.msra.mxu0 0
    %1220 = vmatpush.bf16.msra.mxu0 0
    %1221 = vmatpush.bf16.msra.mxu0 0
    %1222 = vmatpush.bf16.msra.mxu0 0
    %1223 = vmatpush.bf16.msra.mxu0 %v1216
    %1224 = vmatpush.bf16.msra.mxu0 %v1193
    %1225 = vmatpush.bf16.msra.mxu0 %v1192
    %1226 = vmatmul.bf16.gmra.mxu0 %v1198
    %v1227 = vpop.f32.mrf.mxu0
    %v1228 = vadd.f32 0.0, %v1227
    %v1229 = vpop.f32.mrf.mxu0
    %v1230 = vadd.f32 0.0, %v1229
    %1231 = vmatmul.bf16.gmra.mxu0 %v1201
    %v1232 = vpop.f32.mrf.mxu0
    %v1233 = vadd.f32 0.0, %v1232
    %v1234 = vpop.f32.mrf.mxu0
    %v1235 = vadd.f32 0.0, %v1234
    %1236 = vmatmul.bf16.gmra.mxu0 %v1204
    %v1237 = vpop.f32.mrf.mxu0
    %v1238 = vadd.f32 0.0, %v1237
    %v1239 = vpop.f32.mrf.mxu0
    %v1240 = vadd.f32 0.0, %v1239
    %1241 = vmatmul.bf16.gmra.mxu0 %v1207
    %v1242 = vpop.f32.mrf.mxu0
    %v1243 = vadd.f32 0.0, %v1242
    %v1244 = vpop.f32.mrf.mxu0
    %v1245 = vadd.f32 0.0, %v1244
    %1246 = vmatmul.bf16.gmra.mxu0 %v1210
    %v1247 = vpop.f32.mrf.mxu0
    %v1248 = vadd.f32 0.0, %v1247
    %v1249 = vpop.f32.mrf.mxu0
    %v1250 = vadd.f32 0.0, %v1249
    %1251 = vmatmul.bf16.gmra.mxu0 %v1213
    %v1252 = vpop.f32.mrf.mxu0
    %v1253 = vadd.f32 0.0, %v1252
    %v1254 = vpop.f32.mrf.mxu0
    %v1255 = vadd.f32 0.0, %v1254
    %1256 = vdwg.mxu0
    %v1257 = vadd.f32 %v1146, %v1228
    %v1258 = vadd.f32 %v1147, %v1230
    %v1259 = vadd.f32 %v1148, %v1233
    %v1260 = vadd.f32 %v1149, %v1235
    %v1261 = vadd.f32 %v1150, %v1238
    %v1262 = vadd.f32 %v1151, %v1240
    %v1263 = vadd.f32 %v1152, %v1243
    %v1264 = vadd.f32 %v1153, %v1245
    %v1265 = vadd.f32 %v1154, %v1248
    %v1266 = vadd.f32 %v1155, %v1250
    %v1267 = vadd.f32 %v1156, %v1253
    %v1268 = vadd.f32 %v1157, %v1255
    %v1269 = vmax.f32 %v1257, 0.0
    %v1270 = vmax.f32 %v1258, 0.0
    %v1271 = vmax.f32 %v1259, 0.0
    %v1272 = vmax.f32 %v1260, 0.0
    %v1273 = vmax.f32 %v1261, 0.0
    %v1274 = vmax.f32 %v1262, 0.0
    %v1275 = vmax.f32 %v1263, 0.0
    %v1276 = vmax.f32 %v1264, 0.0
    %v1277 = vmax.f32 %v1265, 0.0
    %v1278 = vmax.f32 %v1266, 0.0
    %v1279 = vmax.f32 %v1267, 0.0
    %v1280 = vmax.f32 %v1268, 0.0
    %vm1293 = vcmask 1046528
    %v1294 = vrot.slane %v1269, 1
    %v1295 = vrot.slane %v1270, 1
    %v1296 = vsel %vm1293, %v1294, %v1295
    %v1297 = vrot.slane %v1271, 1
    %v1298 = vsel %vm1293, %v1295, %v1297
    %v1299 = vrot.slane %v1272, 1
    %v1300 = vsel %vm1293, %v1297, %v1299
    %v1301 = vrot.slane %v1273, 1
    %v1302 = vsel %vm1293, %v1299, %v1301
    %v1303 = vrot.slane %v1274, 1
    %v1304 = vsel %vm1293, %v1301, %v1303
    %v1305 = vrot.slane %v1275, 1
    %v1306 = vsel %vm1293, %v1303, %v1305
    %v1307 = vrot.slane %v1276, 1
    %v1308 = vsel %vm1293, %v1305, %v1307
    %v1309 = vrot.slane %v1277, 1
    %v1310 = vsel %vm1293, %v1307, %v1309
    %v1311 = vrot.slane %v1278, 1
    %v1312 = vsel %vm1293, %v1309, %v1311
    %v1313 = vrot.slane %v1279, 1
    %v1314 = vsel %vm1293, %v1311, %v1313
    %v1315 = vrot.slane %v1280, 1
    %v1316 = vsel %vm1293, %v1313, %v1315
    %v1329 = vmax.f32 %v1269, %v1296
    %v1330 = vmax.f32 %v1270, %v1298
    %v1331 = vmax.f32 %v1271, %v1300
    %v1332 = vmax.f32 %v1272, %v1302
    %v1333 = vmax.f32 %v1273, %v1304
    %v1334 = vmax.f32 %v1274, %v1306
    %v1335 = vmax.f32 %v1275, %v1308
    %v1336 = vmax.f32 %v1276, %v1310
    %v1337 = vmax.f32 %v1277, %v1312
    %v1338 = vmax.f32 %v1278, %v1314
    %v1339 = vmax.f32 %v1279, %v1316
    %v1340 = vmax.f32 %v1280, %v1315
    %vm1341 = vcmask 1045504
    %v1342 = vrot.slane %v1269, 2
    %v1343 = vrot.slane %v1270, 2
    %v1344 = vsel %vm1341, %v1342, %v1343
    %v1345 = vrot.slane %v1271, 2
    %v1346 = vsel %vm1341, %v1343, %v1345
    %v1347 = vrot.slane %v1272, 2
    %v1348 = vsel %vm1341, %v1345, %v1347
    %v1349 = vrot.slane %v1273, 2
    %v1350 = vsel %vm1341, %v1347, %v1349
    %v1351 = vrot.slane %v1274, 2
    %v1352 = vsel %vm1341, %v1349, %v1351
    %v1353 = vrot.slane %v1275, 2
    %v1354 = vsel %vm1341, %v1351, %v1353
    %v1355 = vrot.slane %v1276, 2
    %v1356 = vsel %vm1341, %v1353, %v1355
    %v1357 = vrot.slane %v1277, 2
    %v1358 = vsel %vm1341, %v1355, %v1357
    %v1359 = vrot.slane %v1278, 2
    %v1360 = vsel %vm1341, %v1357, %v1359
    %v1361 = vrot.slane %v1279, 2
    %v1362 = vsel %vm1341, %v1359, %v1361
    %v1363 = vrot.slane %v1280, 2
    %v1364 = vsel %vm1341, %v1361, %v1363
    %v1377 = vmax.f32 %v1329, %v1344
    %v1378 = vmax.f32 %v1330, %v1346
    %v1379 = vmax.f32 %v1331, %v1348
    %v1380 = vmax.f32 %v1332, %v1350
    %v1381 = vmax.f32 %v1333, %v1352
    %v1382 = vmax.f32 %v1334, %v1354
    %v1383 = vmax.f32 %v1335, %v1356
    %v1384 = vmax.f32 %v1336, %v1358
    %v1385 = vmax.f32 %v1337, %v1360
    %v1386 = vmax.f32 %v1338, %v1362
    %v1387 = vmax.f32 %v1339, %v1364
    %v1388 = vmax.f32 %v1340, %v1363
    %v1389 = vpack.c.bf16 %v1378, %v1377
    %v1390 = vpack.c.bf16 %v1380, %v1379
    %v1391 = vpack.c.bf16 %v1382, %v1381
    %v1392 = vpack.c.bf16 %v1384, %v1383
    %v1393 = vpack.c.bf16 %v1386, %v1385
    %v1394 = vpack.c.bf16 %v1388, %v1387
    %vm1395 = vcmask 728064
    %v1397 = vsel %vm1395, %v164, 0
    %v1400 = vsel %vm1395, %v165, 0
    %vm1402 = vcmask 1044480
    %v1403 = vsel %vm227, 4294967295, 65535
    %v1404 = vsel %vm1402, %v1403, 0
    %v1406 = vand.u32 %v1394, %v1404
    %1408 = vmatpush.bf16.msra.mxu0 0
    %1409 = vmatpush.bf16.msra.mxu0 0
    %1410 = vmatpush.bf16.msra.mxu0 %v1406
    %1411 = vmatpush.bf16.msra.mxu0 %v1393
    %1412 = vmatpush.bf16.msra.mxu0 %v1392
    %1413 = vmatpush.bf16.msra.mxu0 %v1391
    %1414 = vmatpush.bf16.msra.mxu0 %v1390
    %1415 = vmatpush.bf16.msra.mxu0 %v1389
    %1416 = vmatmul.bf16.gmra.mxu0 %v1397
    %v1417 = vpop.f32.mrf.mxu0
    %v1418 = vadd.f32 0.0, %v1417
    %v1419 = vpop.f32.mrf.mxu0
    %v1420 = vadd.f32 0.0, %v1419
    %1421 = vmatmul.bf16.gmra.mxu0 %v1400
    %v1422 = vpop.f32.mrf.mxu0
    %v1423 = vadd.f32 0.0, %v1422
    %v1424 = vpop.f32.mrf.mxu0
    %v1425 = vadd.f32 0.0, %v1424
    %1426 = vdwg.mxu0
    %1427 = vst [vmem:[#allocation5] sm:$0xff] %v1418
    %1428 = vst [vmem:[#allocation5 + $0x8] sm:$0xff] %v1420
    %1429 = vst [vmem:[#allocation5 + $0x10] sm:$0xff] %v1423
    %1430 = vst [vmem:[#allocation5 + $0x18] sm:$0x3f] %v1425
    %v1431 = vld [vmem:[#allocation5] sm:$0xff]
    %v1432 = vld [vmem:[#allocation5 + $0x8] sm:$0xff]
    %v1433 = vld [vmem:[#allocation5 + $0x10] sm:$0x7f]
    %v1434 = vpack.c.bf16 %v1432, %v1431
    %v1435 = vpack.c.bf16 %v1433, %v1433
    %v1436 = vld [vmem:[#allocation12] sm:$0xf]
    %v1437 = vld [vmem:[#allocation12 + $0x4] sm:$0xf]
    %v1438 = vld [vmem:[#allocation12 + $0x8] sm:$0xf]
    %v1439 = vld [vmem:[#allocation12 + $0xc] sm:$0xf]
    %v1440 = vld [vmem:[#allocation12 + $0x10] sm:$0xf]
    %v1441 = vld [vmem:[#allocation12 + $0x14] sm:$0xf]
    %v1442 = vld [vmem:[#allocation12 + $0x18] sm:$0xf]
    %v1443 = vld [vmem:[#allocation12 + $0x1c] sm:$0xf]
    %v1444 = vld [vmem:[#allocation12 + $0x20] sm:$0xf]
    %v1445 = vld [vmem:[#allocation12 + $0x24] sm:$0xf]
    %v1446 = vld [vmem:[#allocation12 + $0x28] sm:$0xf]
    %v1447 = vld [vmem:[#allocation12 + $0x2c] sm:$0xf]
    %v1448 = vld [vmem:[#allocation12 + $0x30] sm:$0xf]
    %v1449 = vld [vmem:[#allocation12 + $0x34] sm:$0xf]
    %v1450 = vld [vmem:[#allocation12 + $0x38] sm:$0xf]
    %v1451 = vld [vmem:[#allocation12 + $0x3c] sm:$0xf]
    %v1453 = vperm.slane %v144, 0
    %v1471 = vunpack.c.l.b16 %v1436
    %v1472 = vunpack.c.l.b16 %v1437
    %v1473 = vunpack.c.l.b16 %v1438
    %v1474 = vunpack.c.l.b16 %v1439
    %v1475 = vunpack.c.l.b16 %v1440
    %v1476 = vunpack.c.l.b16 %v1441
    %v1477 = vunpack.c.l.b16 %v1442
    %v1478 = vunpack.c.l.b16 %v1443
    %v1479 = vunpack.c.l.b16 %v1444
    %v1480 = vunpack.c.l.b16 %v1445
    %v1481 = vunpack.c.l.b16 %v1446
    %v1482 = vunpack.c.l.b16 %v1447
    %v1483 = vunpack.c.l.b16 %v1448
    %v1484 = vunpack.c.l.b16 %v1449
    %v1485 = vunpack.c.l.b16 %v1450
    %v1486 = vunpack.c.l.b16 %v1451
    %v1487 = vpack.c.b16 %v1472, %v1471
    %v1488 = vpack.c.b16 %v1474, %v1473
    %v1489 = vpack.c.b16 %v1476, %v1475
    %v1490 = vpack.c.b16 %v1478, %v1477
    %v1491 = vpack.c.b16 %v1480, %v1479
    %v1492 = vpack.c.b16 %v1482, %v1481
    %v1493 = vpack.c.b16 %v1484, %v1483
    %v1494 = vpack.c.b16 %v1486, %v1485
    %1503 = vmatpush.bf16.msra.mxu0 %v1494
    %1504 = vmatpush.bf16.msra.mxu0 %v1493
    %1505 = vmatpush.bf16.msra.mxu0 %v1492
    %1506 = vmatpush.bf16.msra.mxu0 %v1491
    %1507 = vmatpush.bf16.msra.mxu0 %v1490
    %1508 = vmatpush.bf16.msra.mxu0 %v1489
    %1509 = vmatpush.bf16.msra.mxu0 %v1488
    %1510 = vmatpush.bf16.msra.mxu0 %v1487
    %1511 = vmatmul.bf16.gmra.mxu0 %v1434
    %v1512 = vpop.f32.mrf.mxu0
    %v1513 = vadd.f32 %v1453, %v1512
    %v1514 = vpop.f32.mrf.mxu0
    %v1515 = vadd.f32 %v1453, %v1514
    %1516 = vmatmul.bf16.gmra.mxu0 %v1435
    %v1517 = vpop.f32.mrf.mxu0
    %v1518 = vadd.f32 %v1453, %v1517
    %v1519 = vpop.f32.mrf.mxu0
    %1520 = vdwg.mxu0
    %v1521 = vld [vmem:[#allocation5 + $0x1] sm:$0xff]
    %v1522 = vld [vmem:[#allocation5 + $0x9] sm:$0xff]
    %v1523 = vld [vmem:[#allocation5 + $0x11] sm:$0x7f]
    %v1524 = vpack.c.bf16 %v1522, %v1521
    %v1525 = vpack.c.bf16 %v1523, %v1523
    %s1526 = scalar_lea.vmem [#allocation12], 64
    %v1527 = vld [vmem:[%s1526] sm:$0xf]
    %v1528 = vld [vmem:[%s1526 + $0x4] sm:$0xf]
    %v1529 = vld [vmem:[%s1526 + $0x8] sm:$0xf]
    %v1530 = vld [vmem:[%s1526 + $0xc] sm:$0xf]
    %v1531 = vld [vmem:[%s1526 + $0x10] sm:$0xf]
    %v1532 = vld [vmem:[%s1526 + $0x14] sm:$0xf]
    %v1533 = vld [vmem:[%s1526 + $0x18] sm:$0xf]
    %v1534 = vld [vmem:[%s1526 + $0x1c] sm:$0xf]
    %v1535 = vld [vmem:[%s1526 + $0x20] sm:$0xf]
    %v1536 = vld [vmem:[%s1526 + $0x24] sm:$0xf]
    %v1537 = vld [vmem:[%s1526 + $0x28] sm:$0xf]
    %v1538 = vld [vmem:[%s1526 + $0x2c] sm:$0xf]
    %v1539 = vld [vmem:[%s1526 + $0x30] sm:$0xf]
    %v1540 = vld [vmem:[%s1526 + $0x34] sm:$0xf]
    %v1541 = vld [vmem:[%s1526 + $0x38] sm:$0xf]
    %v1542 = vld [vmem:[%s1526 + $0x3c] sm:$0xf]
    %v1559 = vunpack.c.l.b16 %v1527
    %v1560 = vunpack.c.l.b16 %v1528
    %v1561 = vunpack.c.l.b16 %v1529
    %v1562 = vunpack.c.l.b16 %v1530
    %v1563 = vunpack.c.l.b16 %v1531
    %v1564 = vunpack.c.l.b16 %v1532
    %v1565 = vunpack.c.l.b16 %v1533
    %v1566 = vunpack.c.l.b16 %v1534
    %v1567 = vunpack.c.l.b16 %v1535
    %v1568 = vunpack.c.l.b16 %v1536
    %v1569 = vunpack.c.l.b16 %v1537
    %v1570 = vunpack.c.l.b16 %v1538
    %v1571 = vunpack.c.l.b16 %v1539
    %v1572 = vunpack.c.l.b16 %v1540
    %v1573 = vunpack.c.l.b16 %v1541
    %v1574 = vunpack.c.l.b16 %v1542
    %v1575 = vpack.c.b16 %v1560, %v1559
    %v1576 = vpack.c.b16 %v1562, %v1561
    %v1577 = vpack.c.b16 %v1564, %v1563
    %v1578 = vpack.c.b16 %v1566, %v1565
    %v1579 = vpack.c.b16 %v1568, %v1567
    %v1580 = vpack.c.b16 %v1570, %v1569
    %v1581 = vpack.c.b16 %v1572, %v1571
    %v1582 = vpack.c.b16 %v1574, %v1573
    %1591 = vmatpush.bf16.msra.mxu0 %v1582
    %1592 = vmatpush.bf16.msra.mxu0 %v1581
    %1593 = vmatpush.bf16.msra.mxu0 %v1580
    %1594 = vmatpush.bf16.msra.mxu0 %v1579
    %1595 = vmatpush.bf16.msra.mxu0 %v1578
    %1596 = vmatpush.bf16.msra.mxu0 %v1577
    %1597 = vmatpush.bf16.msra.mxu0 %v1576
    %1598 = vmatpush.bf16.msra.mxu0 %v1575
    %1599 = vmatmul.bf16.gmra.mxu0 %v1524
    %v1600 = vpop.f32.mrf.mxu0
    %v1601 = vadd.f32 0.0, %v1600
    %v1602 = vpop.f32.mrf.mxu0
    %v1603 = vadd.f32 0.0, %v1602
    %1604 = vmatmul.bf16.gmra.mxu0 %v1525
    %v1605 = vpop.f32.mrf.mxu0
    %v1606 = vadd.f32 0.0, %v1605
    %v1607 = vpop.f32.mrf.mxu0
    %1608 = vdwg.mxu0
    %v1609 = vadd.f32 %v1513, %v1601
    %v1610 = vadd.f32 %v1515, %v1603
    %v1611 = vadd.f32 %v1518, %v1606
    %v1612 = vld [vmem:[#allocation5 + $0x2] sm:$0xff]
    %v1613 = vld [vmem:[#allocation5 + $0xa] sm:$0xff]
    %v1614 = vld [vmem:[#allocation5 + $0x12] sm:$0x7f]
    %v1615 = vpack.c.bf16 %v1613, %v1612
    %v1616 = vpack.c.bf16 %v1614, %v1614
    %s1617 = scalar_lea.vmem [#allocation12], 128
    %v1618 = vld [vmem:[%s1617] sm:$0xf]
    %v1619 = vld [vmem:[%s1617 + $0x4] sm:$0xf]
    %v1620 = vld [vmem:[%s1617 + $0x8] sm:$0xf]
    %v1621 = vld [vmem:[%s1617 + $0xc] sm:$0xf]
    %v1622 = vld [vmem:[%s1617 + $0x10] sm:$0xf]
    %v1623 = vld [vmem:[%s1617 + $0x14] sm:$0xf]
    %v1624 = vld [vmem:[%s1617 + $0x18] sm:$0xf]
    %v1625 = vld [vmem:[%s1617 + $0x1c] sm:$0xf]
    %v1626 = vld [vmem:[%s1617 + $0x20] sm:$0xf]
    %v1627 = vld [vmem:[%s1617 + $0x24] sm:$0xf]
    %v1628 = vld [vmem:[%s1617 + $0x28] sm:$0xf]
    %v1629 = vld [vmem:[%s1617 + $0x2c] sm:$0xf]
    %v1630 = vld [vmem:[%s1617 + $0x30] sm:$0xf]
    %v1631 = vld [vmem:[%s1617 + $0x34] sm:$0xf]
    %v1632 = vld [vmem:[%s1617 + $0x38] sm:$0xf]
    %v1633 = vld [vmem:[%s1617 + $0x3c] sm:$0xf]
    %v1650 = vunpack.c.l.b16 %v1618
    %v1651 = vunpack.c.l.b16 %v1619
    %v1652 = vunpack.c.l.b16 %v1620
    %v1653 = vunpack.c.l.b16 %v1621
    %v1654 = vunpack.c.l.b16 %v1622
    %v1655 = vunpack.c.l.b16 %v1623
    %v1656 = vunpack.c.l.b16 %v1624
    %v1657 = vunpack.c.l.b16 %v1625
    %v1658 = vunpack.c.l.b16 %v1626
    %v1659 = vunpack.c.l.b16 %v1627
    %v1660 = vunpack.c.l.b16 %v1628
    %v1661 = vunpack.c.l.b16 %v1629
    %v1662 = vunpack.c.l.b16 %v1630
    %v1663 = vunpack.c.l.b16 %v1631
    %v1664 = vunpack.c.l.b16 %v1632
    %v1665 = vunpack.c.l.b16 %v1633
    %v1666 = vpack.c.b16 %v1651, %v1650
    %v1667 = vpack.c.b16 %v1653, %v1652
    %v1668 = vpack.c.b16 %v1655, %v1654
    %v1669 = vpack.c.b16 %v1657, %v1656
    %v1670 = vpack.c.b16 %v1659, %v1658
    %v1671 = vpack.c.b16 %v1661, %v1660
    %v1672 = vpack.c.b16 %v1663, %v1662
    %v1673 = vpack.c.b16 %v1665, %v1664
    %1682 = vmatpush.bf16.msra.mxu0 %v1673
    %1683 = vmatpush.bf16.msra.mxu0 %v1672
    %1684 = vmatpush.bf16.msra.mxu0 %v1671
    %1685 = vmatpush.bf16.msra.mxu0 %v1670
    %1686 = vmatpush.bf16.msra.mxu0 %v1669
    %1687 = vmatpush.bf16.msra.mxu0 %v1668
    %1688 = vmatpush.bf16.msra.mxu0 %v1667
    %1689 = vmatpush.bf16.msra.mxu0 %v1666
    %1690 = vmatmul.bf16.gmra.mxu0 %v1615
    %v1691 = vpop.f32.mrf.mxu0
    %v1692 = vadd.f32 0.0, %v1691
    %v1693 = vpop.f32.mrf.mxu0
    %v1694 = vadd.f32 0.0, %v1693
    %1695 = vmatmul.bf16.gmra.mxu0 %v1616
    %v1696 = vpop.f32.mrf.mxu0
    %v1697 = vadd.f32 0.0, %v1696
    %v1698 = vpop.f32.mrf.mxu0
    %1699 = vdwg.mxu0
    %v1700 = vadd.f32 %v1609, %v1692
    %v1701 = vadd.f32 %v1610, %v1694
    %v1702 = vadd.f32 %v1611, %v1697
    %v1703 = vld [vmem:[#allocation5 + $0x3] sm:$0xff]
    %v1704 = vld [vmem:[#allocation5 + $0xb] sm:$0xff]
    %v1705 = vld [vmem:[#allocation5 + $0x13] sm:$0x7f]
    %v1706 = vpack.c.bf16 %v1704, %v1703
    %v1707 = vpack.c.bf16 %v1705, %v1705
    %s1708 = scalar_lea.vmem [#allocation12], 192
    %v1709 = vld [vmem:[%s1708] sm:$0xf]
    %v1710 = vld [vmem:[%s1708 + $0x4] sm:$0xf]
    %v1711 = vld [vmem:[%s1708 + $0x8] sm:$0xf]
    %v1712 = vld [vmem:[%s1708 + $0xc] sm:$0xf]
    %v1713 = vld [vmem:[%s1708 + $0x10] sm:$0xf]
    %v1714 = vld [vmem:[%s1708 + $0x14] sm:$0xf]
    %v1715 = vld [vmem:[%s1708 + $0x18] sm:$0xf]
    %v1716 = vld [vmem:[%s1708 + $0x1c] sm:$0xf]
    %v1717 = vld [vmem:[%s1708 + $0x20] sm:$0xf]
    %v1718 = vld [vmem:[%s1708 + $0x24] sm:$0xf]
    %v1719 = vld [vmem:[%s1708 + $0x28] sm:$0xf]
    %v1720 = vld [vmem:[%s1708 + $0x2c] sm:$0xf]
    %v1721 = vld [vmem:[%s1708 + $0x30] sm:$0xf]
    %v1722 = vld [vmem:[%s1708 + $0x34] sm:$0xf]
    %v1723 = vld [vmem:[%s1708 + $0x38] sm:$0xf]
    %v1724 = vld [vmem:[%s1708 + $0x3c] sm:$0xf]
    %v1741 = vunpack.c.l.b16 %v1709
    %v1742 = vunpack.c.l.b16 %v1710
    %v1743 = vunpack.c.l.b16 %v1711
    %v1744 = vunpack.c.l.b16 %v1712
    %v1745 = vunpack.c.l.b16 %v1713
    %v1746 = vunpack.c.l.b16 %v1714
    %v1747 = vunpack.c.l.b16 %v1715
    %v1748 = vunpack.c.l.b16 %v1716
    %v1749 = vunpack.c.l.b16 %v1717
    %v1750 = vunpack.c.l.b16 %v1718
    %v1751 = vunpack.c.l.b16 %v1719
    %v1752 = vunpack.c.l.b16 %v1720
    %v1753 = vunpack.c.l.b16 %v1721
    %v1754 = vunpack.c.l.b16 %v1722
    %v1755 = vunpack.c.l.b16 %v1723
    %v1756 = vunpack.c.l.b16 %v1724
    %v1757 = vpack.c.b16 %v1742, %v1741
    %v1758 = vpack.c.b16 %v1744, %v1743
    %v1759 = vpack.c.b16 %v1746, %v1745
    %v1760 = vpack.c.b16 %v1748, %v1747
    %v1761 = vpack.c.b16 %v1750, %v1749
    %v1762 = vpack.c.b16 %v1752, %v1751
    %v1763 = vpack.c.b16 %v1754, %v1753
    %v1764 = vpack.c.b16 %v1756, %v1755
    %1773 = vmatpush.bf16.msra.mxu0 %v1764
    %1774 = vmatpush.bf16.msra.mxu0 %v1763
    %1775 = vmatpush.bf16.msra.mxu0 %v1762
    %1776 = vmatpush.bf16.msra.mxu0 %v1761
    %1777 = vmatpush.bf16.msra.mxu0 %v1760
    %1778 = vmatpush.bf16.msra.mxu0 %v1759
    %1779 = vmatpush.bf16.msra.mxu0 %v1758
    %1780 = vmatpush.bf16.msra.mxu0 %v1757
    %1781 = vmatmul.bf16.gmra.mxu0 %v1706
    %v1782 = vpop.f32.mrf.mxu0
    %v1783 = vadd.f32 0.0, %v1782
    %v1784 = vpop.f32.mrf.mxu0
    %v1785 = vadd.f32 0.0, %v1784
    %1786 = vmatmul.bf16.gmra.mxu0 %v1707
    %v1787 = vpop.f32.mrf.mxu0
    %v1788 = vadd.f32 0.0, %v1787
    %v1789 = vpop.f32.mrf.mxu0
    %1790 = vdwg.mxu0
    %v1791 = vadd.f32 %v1700, %v1783
    %v1792 = vadd.f32 %v1701, %v1785
    %v1793 = vadd.f32 %v1702, %v1788
    %v1794 = vld [vmem:[#allocation5 + $0x4] sm:$0xff]
    %v1795 = vld [vmem:[#allocation5 + $0xc] sm:$0xff]
    %v1796 = vld [vmem:[#allocation5 + $0x14] sm:$0x7f]
    %v1797 = vpack.c.bf16 %v1795, %v1794
    %v1798 = vpack.c.bf16 %v1796, %v1796
    %s1799 = scalar_lea.vmem [#allocation12], 256
    %v1800 = vld [vmem:[%s1799] sm:$0xf]
    %v1801 = vld [vmem:[%s1799 + $0x4] sm:$0xf]
    %v1802 = vld [vmem:[%s1799 + $0x8] sm:$0xf]
    %v1803 = vld [vmem:[%s1799 + $0xc] sm:$0xf]
    %v1804 = vld [vmem:[%s1799 + $0x10] sm:$0xf]
    %v1805 = vld [vmem:[%s1799 + $0x14] sm:$0xf]
    %v1806 = vld [vmem:[%s1799 + $0x18] sm:$0xf]
    %v1807 = vld [vmem:[%s1799 + $0x1c] sm:$0xf]
    %v1808 = vld [vmem:[%s1799 + $0x20] sm:$0xf]
    %v1809 = vld [vmem:[%s1799 + $0x24] sm:$0xf]
    %v1810 = vld [vmem:[%s1799 + $0x28] sm:$0xf]
    %v1811 = vld [vmem:[%s1799 + $0x2c] sm:$0xf]
    %v1812 = vld [vmem:[%s1799 + $0x30] sm:$0xf]
    %v1813 = vld [vmem:[%s1799 + $0x34] sm:$0xf]
    %v1814 = vld [vmem:[%s1799 + $0x38] sm:$0xf]
    %v1815 = vld [vmem:[%s1799 + $0x3c] sm:$0xf]
    %v1832 = vunpack.c.l.b16 %v1800
    %v1833 = vunpack.c.l.b16 %v1801
    %v1834 = vunpack.c.l.b16 %v1802
    %v1835 = vunpack.c.l.b16 %v1803
    %v1836 = vunpack.c.l.b16 %v1804
    %v1837 = vunpack.c.l.b16 %v1805
    %v1838 = vunpack.c.l.b16 %v1806
    %v1839 = vunpack.c.l.b16 %v1807
    %v1840 = vunpack.c.l.b16 %v1808
    %v1841 = vunpack.c.l.b16 %v1809
    %v1842 = vunpack.c.l.b16 %v1810
    %v1843 = vunpack.c.l.b16 %v1811
    %v1844 = vunpack.c.l.b16 %v1812
    %v1845 = vunpack.c.l.b16 %v1813
    %v1846 = vunpack.c.l.b16 %v1814
    %v1847 = vunpack.c.l.b16 %v1815
    %v1848 = vpack.c.b16 %v1833, %v1832
    %v1849 = vpack.c.b16 %v1835, %v1834
    %v1850 = vpack.c.b16 %v1837, %v1836
    %v1851 = vpack.c.b16 %v1839, %v1838
    %v1852 = vpack.c.b16 %v1841, %v1840
    %v1853 = vpack.c.b16 %v1843, %v1842
    %v1854 = vpack.c.b16 %v1845, %v1844
    %v1855 = vpack.c.b16 %v1847, %v1846
    %1864 = vmatpush.bf16.msra.mxu0 %v1855
    %1865 = vmatpush.bf16.msra.mxu0 %v1854
    %1866 = vmatpush.bf16.msra.mxu0 %v1853
    %1867 = vmatpush.bf16.msra.mxu0 %v1852
    %1868 = vmatpush.bf16.msra.mxu0 %v1851
    %1869 = vmatpush.bf16.msra.mxu0 %v1850
    %1870 = vmatpush.bf16.msra.mxu0 %v1849
    %1871 = vmatpush.bf16.msra.mxu0 %v1848
    %1872 = vmatmul.bf16.gmra.mxu0 %v1797
    %v1873 = vpop.f32.mrf.mxu0
    %v1874 = vadd.f32 0.0, %v1873
    %v1875 = vpop.f32.mrf.mxu0
    %v1876 = vadd.f32 0.0, %v1875
    %1877 = vmatmul.bf16.gmra.mxu0 %v1798
    %v1878 = vpop.f32.mrf.mxu0
    %v1879 = vadd.f32 0.0, %v1878
    %v1880 = vpop.f32.mrf.mxu0
    %1881 = vdwg.mxu0
    %v1882 = vadd.f32 %v1791, %v1874
    %v1883 = vadd.f32 %v1792, %v1876
    %v1884 = vadd.f32 %v1793, %v1879
    %v1885 = vld [vmem:[#allocation5 + $0x5] sm:$0xff]
    %v1886 = vld [vmem:[#allocation5 + $0xd] sm:$0xff]
    %v1887 = vld [vmem:[#allocation5 + $0x15] sm:$0x7f]
    %v1888 = vpack.c.bf16 %v1886, %v1885
    %v1889 = vpack.c.bf16 %v1887, %v1887
    %s1890 = scalar_lea.vmem [#allocation12], 320
    %v1891 = vld [vmem:[%s1890] sm:$0xf]
    %v1892 = vld [vmem:[%s1890 + $0x4] sm:$0xf]
    %v1893 = vld [vmem:[%s1890 + $0x8] sm:$0xf]
    %v1894 = vld [vmem:[%s1890 + $0xc] sm:$0xf]
    %v1895 = vld [vmem:[%s1890 + $0x10] sm:$0xf]
    %v1896 = vld [vmem:[%s1890 + $0x14] sm:$0xf]
    %v1897 = vld [vmem:[%s1890 + $0x18] sm:$0xf]
    %v1898 = vld [vmem:[%s1890 + $0x1c] sm:$0xf]
    %v1899 = vld [vmem:[%s1890 + $0x20] sm:$0xf]
    %v1900 = vld [vmem:[%s1890 + $0x24] sm:$0xf]
    %v1901 = vld [vmem:[%s1890 + $0x28] sm:$0xf]
    %v1902 = vld [vmem:[%s1890 + $0x2c] sm:$0xf]
    %v1903 = vld [vmem:[%s1890 + $0x30] sm:$0xf]
    %v1904 = vld [vmem:[%s1890 + $0x34] sm:$0xf]
    %v1905 = vld [vmem:[%s1890 + $0x38] sm:$0xf]
    %v1906 = vld [vmem:[%s1890 + $0x3c] sm:$0xf]
    %v1923 = vunpack.c.l.b16 %v1891
    %v1924 = vunpack.c.l.b16 %v1892
    %v1925 = vunpack.c.l.b16 %v1893
    %v1926 = vunpack.c.l.b16 %v1894
    %v1927 = vunpack.c.l.b16 %v1895
    %v1928 = vunpack.c.l.b16 %v1896
    %v1929 = vunpack.c.l.b16 %v1897
    %v1930 = vunpack.c.l.b16 %v1898
    %v1931 = vunpack.c.l.b16 %v1899
    %v1932 = vunpack.c.l.b16 %v1900
    %v1933 = vunpack.c.l.b16 %v1901
    %v1934 = vunpack.c.l.b16 %v1902
    %v1935 = vunpack.c.l.b16 %v1903
    %v1936 = vunpack.c.l.b16 %v1904
    %v1937 = vunpack.c.l.b16 %v1905
    %v1938 = vunpack.c.l.b16 %v1906
    %v1939 = vpack.c.b16 %v1924, %v1923
    %v1940 = vpack.c.b16 %v1926, %v1925
    %v1941 = vpack.c.b16 %v1928, %v1927
    %v1942 = vpack.c.b16 %v1930, %v1929
    %v1943 = vpack.c.b16 %v1932, %v1931
    %v1944 = vpack.c.b16 %v1934, %v1933
    %v1945 = vpack.c.b16 %v1936, %v1935
    %v1946 = vpack.c.b16 %v1938, %v1937
    %1955 = vmatpush.bf16.msra.mxu0 %v1946
    %1956 = vmatpush.bf16.msra.mxu0 %v1945
    %1957 = vmatpush.bf16.msra.mxu0 %v1944
    %1958 = vmatpush.bf16.msra.mxu0 %v1943
    %1959 = vmatpush.bf16.msra.mxu0 %v1942
    %1960 = vmatpush.bf16.msra.mxu0 %v1941
    %1961 = vmatpush.bf16.msra.mxu0 %v1940
    %1962 = vmatpush.bf16.msra.mxu0 %v1939
    %1963 = vmatmul.bf16.gmra.mxu0 %v1888
    %v1964 = vpop.f32.mrf.mxu0
    %v1965 = vadd.f32 0.0, %v1964
    %v1966 = vpop.f32.mrf.mxu0
    %v1967 = vadd.f32 0.0, %v1966
    %1968 = vmatmul.bf16.gmra.mxu0 %v1889
    %v1969 = vpop.f32.mrf.mxu0
    %v1970 = vadd.f32 0.0, %v1969
    %v1971 = vpop.f32.mrf.mxu0
    %1972 = vdwg.mxu0
    %v1973 = vadd.f32 %v1882, %v1965
    %v1974 = vadd.f32 %v1883, %v1967
    %v1975 = vadd.f32 %v1884, %v1970
    %v1976 = vld [vmem:[#allocation5 + $0x6] sm:$0xff]
    %v1977 = vld [vmem:[#allocation5 + $0xe] sm:$0xff]
    %v1978 = vld [vmem:[#allocation5 + $0x16] sm:$0x7f]
    %v1979 = vpack.c.bf16 %v1977, %v1976
    %v1980 = vpack.c.bf16 %v1978, %v1978
    %s1981 = scalar_lea.vmem [#allocation12], 384
    %v1982 = vld [vmem:[%s1981] sm:$0xf]
    %v1983 = vld [vmem:[%s1981 + $0x4] sm:$0xf]
    %v1984 = vld [vmem:[%s1981 + $0x8] sm:$0xf]
    %v1985 = vld [vmem:[%s1981 + $0xc] sm:$0xf]
    %v1986 = vld [vmem:[%s1981 + $0x10] sm:$0xf]
    %v1987 = vld [vmem:[%s1981 + $0x14] sm:$0xf]
    %v1988 = vld [vmem:[%s1981 + $0x18] sm:$0xf]
    %v1989 = vld [vmem:[%s1981 + $0x1c] sm:$0xf]
    %v1990 = vld [vmem:[%s1981 + $0x20] sm:$0xf]
    %v1991 = vld [vmem:[%s1981 + $0x24] sm:$0xf]
    %v1992 = vld [vmem:[%s1981 + $0x28] sm:$0xf]
    %v1993 = vld [vmem:[%s1981 + $0x2c] sm:$0xf]
    %v1994 = vld [vmem:[%s1981 + $0x30] sm:$0xf]
    %v1995 = vld [vmem:[%s1981 + $0x34] sm:$0xf]
    %v1996 = vld [vmem:[%s1981 + $0x38] sm:$0xf]
    %v1997 = vld [vmem:[%s1981 + $0x3c] sm:$0xf]
    %v2014 = vunpack.c.l.b16 %v1982
    %v2015 = vunpack.c.l.b16 %v1983
    %v2016 = vunpack.c.l.b16 %v1984
    %v2017 = vunpack.c.l.b16 %v1985
    %v2018 = vunpack.c.l.b16 %v1986
    %v2019 = vunpack.c.l.b16 %v1987
    %v2020 = vunpack.c.l.b16 %v1988
    %v2021 = vunpack.c.l.b16 %v1989
    %v2022 = vunpack.c.l.b16 %v1990
    %v2023 = vunpack.c.l.b16 %v1991
    %v2024 = vunpack.c.l.b16 %v1992
    %v2025 = vunpack.c.l.b16 %v1993
    %v2026 = vunpack.c.l.b16 %v1994
    %v2027 = vunpack.c.l.b16 %v1995
    %v2028 = vunpack.c.l.b16 %v1996
    %v2029 = vunpack.c.l.b16 %v1997
    %v2030 = vpack.c.b16 %v2015, %v2014
    %v2031 = vpack.c.b16 %v2017, %v2016
    %v2032 = vpack.c.b16 %v2019, %v2018
    %v2033 = vpack.c.b16 %v2021, %v2020
    %v2034 = vpack.c.b16 %v2023, %v2022
    %v2035 = vpack.c.b16 %v2025, %v2024
    %v2036 = vpack.c.b16 %v2027, %v2026
    %v2037 = vpack.c.b16 %v2029, %v2028
    %2046 = vmatpush.bf16.msra.mxu0 %v2037
    %2047 = vmatpush.bf16.msra.mxu0 %v2036
    %2048 = vmatpush.bf16.msra.mxu0 %v2035
    %2049 = vmatpush.bf16.msra.mxu0 %v2034
    %2050 = vmatpush.bf16.msra.mxu0 %v2033
    %2051 = vmatpush.bf16.msra.mxu0 %v2032
    %2052 = vmatpush.bf16.msra.mxu0 %v2031
    %2053 = vmatpush.bf16.msra.mxu0 %v2030
    %2054 = vmatmul.bf16.gmra.mxu0 %v1979
    %v2055 = vpop.f32.mrf.mxu0
    %v2056 = vadd.f32 0.0, %v2055
    %v2057 = vpop.f32.mrf.mxu0
    %v2058 = vadd.f32 0.0, %v2057
    %2059 = vmatmul.bf16.gmra.mxu0 %v1980
    %v2060 = vpop.f32.mrf.mxu0
    %v2061 = vadd.f32 0.0, %v2060
    %v2062 = vpop.f32.mrf.mxu0
    %2063 = vdwg.mxu0
    %v2064 = vadd.f32 %v1973, %v2056
    %v2065 = vadd.f32 %v1974, %v2058
    %v2066 = vadd.f32 %v1975, %v2061
    %v2067 = vld [vmem:[#allocation5 + $0x7] sm:$0xff]
    %v2068 = vld [vmem:[#allocation5 + $0xf] sm:$0xff]
    %v2069 = vld [vmem:[#allocation5 + $0x17] sm:$0x7f]
    %v2070 = vpack.c.bf16 %v2068, %v2067
    %v2071 = vpack.c.bf16 %v2069, %v2069
    %s2072 = scalar_lea.vmem [#allocation12], 448
    %v2073 = vld [vmem:[%s2072] sm:$0xf]
    %v2074 = vld [vmem:[%s2072 + $0x4] sm:$0xf]
    %v2075 = vld [vmem:[%s2072 + $0x8] sm:$0xf]
    %v2076 = vld [vmem:[%s2072 + $0xc] sm:$0xf]
    %v2077 = vld [vmem:[%s2072 + $0x10] sm:$0xf]
    %v2078 = vld [vmem:[%s2072 + $0x14] sm:$0xf]
    %v2079 = vld [vmem:[%s2072 + $0x18] sm:$0xf]
    %v2080 = vld [vmem:[%s2072 + $0x1c] sm:$0xf]
    %v2081 = vld [vmem:[%s2072 + $0x20] sm:$0xf]
    %v2082 = vld [vmem:[%s2072 + $0x24] sm:$0xf]
    %v2083 = vld [vmem:[%s2072 + $0x28] sm:$0xf]
    %v2084 = vld [vmem:[%s2072 + $0x2c] sm:$0xf]
    %v2085 = vld [vmem:[%s2072 + $0x30] sm:$0xf]
    %v2086 = vld [vmem:[%s2072 + $0x34] sm:$0xf]
    %v2087 = vld [vmem:[%s2072 + $0x38] sm:$0xf]
    %v2088 = vld [vmem:[%s2072 + $0x3c] sm:$0xf]
    %v2105 = vunpack.c.l.b16 %v2073
    %v2106 = vunpack.c.l.b16 %v2074
    %v2107 = vunpack.c.l.b16 %v2075
    %v2108 = vunpack.c.l.b16 %v2076
    %v2109 = vunpack.c.l.b16 %v2077
    %v2110 = vunpack.c.l.b16 %v2078
    %v2111 = vunpack.c.l.b16 %v2079
    %v2112 = vunpack.c.l.b16 %v2080
    %v2113 = vunpack.c.l.b16 %v2081
    %v2114 = vunpack.c.l.b16 %v2082
    %v2115 = vunpack.c.l.b16 %v2083
    %v2116 = vunpack.c.l.b16 %v2084
    %v2117 = vunpack.c.l.b16 %v2085
    %v2118 = vunpack.c.l.b16 %v2086
    %v2119 = vunpack.c.l.b16 %v2087
    %v2120 = vunpack.c.l.b16 %v2088
    %v2121 = vpack.c.b16 %v2106, %v2105
    %v2122 = vpack.c.b16 %v2108, %v2107
    %v2123 = vpack.c.b16 %v2110, %v2109
    %v2124 = vpack.c.b16 %v2112, %v2111
    %v2125 = vpack.c.b16 %v2114, %v2113
    %v2126 = vpack.c.b16 %v2116, %v2115
    %v2127 = vpack.c.b16 %v2118, %v2117
    %v2128 = vpack.c.b16 %v2120, %v2119
    %2137 = vmatpush.bf16.msra.mxu0 %v2128
    %2138 = vmatpush.bf16.msra.mxu0 %v2127
    %2139 = vmatpush.bf16.msra.mxu0 %v2126
    %2140 = vmatpush.bf16.msra.mxu0 %v2125
    %2141 = vmatpush.bf16.msra.mxu0 %v2124
    %2142 = vmatpush.bf16.msra.mxu0 %v2123
    %2143 = vmatpush.bf16.msra.mxu0 %v2122
    %2144 = vmatpush.bf16.msra.mxu0 %v2121
    %2145 = vmatmul.bf16.gmra.mxu0 %v2070
    %v2146 = vpop.f32.mrf.mxu0
    %v2147 = vadd.f32 0.0, %v2146
    %v2148 = vpop.f32.mrf.mxu0
    %v2149 = vadd.f32 0.0, %v2148
    %2150 = vmatmul.bf16.gmra.mxu0 %v2071
    %v2151 = vpop.f32.mrf.mxu0
    %v2152 = vadd.f32 0.0, %v2151
    %v2153 = vpop.f32.mrf.mxu0
    %2154 = vdwg.mxu0
    %v2155 = vadd.f32 %v2064, %v2147
    %v2156 = vadd.f32 %v2065, %v2149
    %v2157 = vadd.f32 %v2066, %v2152
    %v2158 = vmax.f32 %v2155, 0.0
    %v2159 = vmax.f32 %v2156, 0.0
    %v2160 = vmax.f32 %v2157, 0.0
    %v2164 = vrot.slane %v2158, 1
    %v2165 = vrot.slane %v2159, 1
    %v2166 = vsel %vm1293, %v2164, %v2165
    %v2167 = vrot.slane %v2160, 1
    %v2168 = vsel %vm1293, %v2165, %v2167
    %v2172 = vmax.f32 %v2158, %v2166
    %v2173 = vmax.f32 %v2159, %v2168
    %v2174 = vmax.f32 %v2160, %v2167
    %v2175 = vrot.slane %v2158, 2
    %v2176 = vrot.slane %v2159, 2
    %v2177 = vsel %vm1341, %v2175, %v2176
    %v2178 = vrot.slane %v2160, 2
    %v2179 = vsel %vm1341, %v2176, %v2178
    %v2183 = vmax.f32 %v2172, %v2177
    %v2184 = vmax.f32 %v2173, %v2179
    %v2185 = vmax.f32 %v2174, %v2178
    %v2186 = vpack.c.bf16 %v2184, %v2183
    %v2187 = vpack.c.bf16 %v2185, %v2185
    %vm2188 = vcmask 171008
    %v2190 = vsel %vm2188, %v166, 0
    %vm2192 = vcmask 1041408
    %vm2193 = vcmask 1042432
    %v2194 = vsel %vm2192, 4294967295, 65535
    %v2195 = vsel %vm2193, %v2194, 0
    %v2197 = vand.u32 %v2187, %v2195
    %2199 = vmatpush.bf16.msra.mxu0 0
    %2200 = vmatpush.bf16.msra.mxu0 0
    %2201 = vmatpush.bf16.msra.mxu0 0
    %2202 = vmatpush.bf16.msra.mxu0 0
    %2203 = vmatpush.bf16.msra.mxu0 0
    %2204 = vmatpush.bf16.msra.mxu0 0
    %2205 = vmatpush.bf16.msra.mxu0 %v2197
    %2206 = vmatpush.bf16.msra.mxu0 %v2186
    %2207 = vmatmul.bf16.gmra.mxu0 %v2190
    %v2208 = vpop.f32.mrf.mxu0
    %v2209 = vadd.f32 0.0, %v2208
    %v2210 = vpop.f32.mrf.mxu0
    %2211 = vdwg.mxu0
    %2212 = vst [vmem:[#allocation6] sm:$0x7f] %v2209
    %s2213 = scalar_lea.vmem %s0, 104
    %v2214 = vld [vmem:[%s2213] sm:$0xff]
    %v2215 = vld [vmem:[%s2213 + $0x8] sm:$0xff]
    %v2216 = vld [vmem:[%s2213 + $0x10] sm:$0xff]
    %v2217 = vld [vmem:[%s2213 + $0x18] sm:$0xff]
    %v2218 = vld [vmem:[%s2213 + $0x20] sm:$0xff]
    %v2219 = vld [vmem:[%s2213 + $0x28] sm:$0xff]
    %v2220 = vld [vmem:[%s2213 + $0x30] sm:$0xff]
    %v2221 = vld [vmem:[%s2213 + $0x38] sm:$0xff]
    %v2222 = vld [vmem:[%s2213 + $0x40] sm:$0xff]
    %v2223 = vld [vmem:[%s2213 + $0x48] sm:$0xff]
    %v2224 = vld [vmem:[%s2213 + $0x50] sm:$0xff]
    %v2225 = vld [vmem:[%s2213 + $0x58] sm:$0x7]
    %v2226 = vpack.c.bf16 %v2215, %v2214
    %v2227 = vpack.c.bf16 %v2217, %v2216
    %v2228 = vpack.c.bf16 %v2219, %v2218
    %v2229 = vpack.c.bf16 %v2221, %v2220
    %v2230 = vpack.c.bf16 %v2223, %v2222
    %v2231 = vpack.c.bf16 %v2225, %v2224
    %v2232 = vld [vmem:[#allocation7] sm:$0xf]
    %v2233 = vld [vmem:[#allocation7 + $0x4] sm:$0xf]
    %v2234 = vld [vmem:[#allocation7 + $0x8] sm:$0xf]
    %v2235 = vld [vmem:[#allocation7 + $0xc] sm:$0xf]
    %v2236 = vld [vmem:[#allocation7 + $0x10] sm:$0xf]
    %v2242 = vunpack.c.l.b16 %v2232
    %v2243 = vunpack.c.l.b16 %v2233
    %v2244 = vunpack.c.l.b16 %v2234
    %v2245 = vunpack.c.l.b16 %v2235
    %v2246 = vunpack.c.l.b16 %v2236
    %v2247 = vpack.c.b16 %v2243, %v2242
    %v2248 = vpack.c.b16 %v2245, %v2244
    %v2249 = vpack.c.b16 %v2246, %v2246
    %v2253 = vsel %vm208, %v2226, 0
    %v2256 = vsel %vm208, %v2227, 0
    %v2259 = vsel %vm208, %v2228, 0
    %v2262 = vsel %vm208, %v2229, 0
    %v2265 = vsel %vm208, %v2230, 0
    %v2268 = vsel %vm208, %v2231, 0
    %v2271 = vsel %vm227, %v2249, 0
    %2273 = vmatpush.bf16.msra.mxu0 0
    %2274 = vmatpush.bf16.msra.mxu0 0
    %2275 = vmatpush.bf16.msra.mxu0 0
    %2276 = vmatpush.bf16.msra.mxu0 0
    %2277 = vmatpush.bf16.msra.mxu0 0
    %2278 = vmatpush.bf16.msra.mxu0 %v2271
    %2279 = vmatpush.bf16.msra.mxu0 %v2248
    %2280 = vmatpush.bf16.msra.mxu0 %v2247
    %2281 = vmatmul.bf16.gmra.mxu0 %v2253
    %v2282 = vpop.f32.mrf.mxu0
    %v2283 = vadd.f32 %v191, %v2282
    %v2284 = vpop.f32.mrf.mxu0
    %v2285 = vadd.f32 %v191, %v2284
    %2286 = vmatmul.bf16.gmra.mxu0 %v2256
    %v2287 = vpop.f32.mrf.mxu0
    %v2288 = vadd.f32 %v191, %v2287
    %v2289 = vpop.f32.mrf.mxu0
    %v2290 = vadd.f32 %v191, %v2289
    %2291 = vmatmul.bf16.gmra.mxu0 %v2259
    %v2292 = vpop.f32.mrf.mxu0
    %v2293 = vadd.f32 %v191, %v2292
    %v2294 = vpop.f32.mrf.mxu0
    %v2295 = vadd.f32 %v191, %v2294
    %2296 = vmatmul.bf16.gmra.mxu0 %v2262
    %v2297 = vpop.f32.mrf.mxu0
    %v2298 = vadd.f32 %v191, %v2297
    %v2299 = vpop.f32.mrf.mxu0
    %v2300 = vadd.f32 %v191, %v2299
    %2301 = vmatmul.bf16.gmra.mxu0 %v2265
    %v2302 = vpop.f32.mrf.mxu0
    %v2303 = vadd.f32 %v191, %v2302
    %v2304 = vpop.f32.mrf.mxu0
    %v2305 = vadd.f32 %v191, %v2304
    %2306 = vmatmul.bf16.gmra.mxu0 %v2268
    %v2307 = vpop.f32.mrf.mxu0
    %v2308 = vadd.f32 %v191, %v2307
    %v2309 = vpop.f32.mrf.mxu0
    %v2310 = vadd.f32 %v191, %v2309
    %2311 = vdwg.mxu0
    %v2312 = vld [vmem:[%s2213 + $0x1] sm:$0xff]
    %v2313 = vld [vmem:[%s2213 + $0x9] sm:$0xff]
    %v2314 = vld [vmem:[%s2213 + $0x11] sm:$0xff]
    %v2315 = vld [vmem:[%s2213 + $0x19] sm:$0xff]
    %v2316 = vld [vmem:[%s2213 + $0x21] sm:$0xff]
    %v2317 = vld [vmem:[%s2213 + $0x29] sm:$0xff]
    %v2318 = vld [vmem:[%s2213 + $0x31] sm:$0xff]
    %v2319 = vld [vmem:[%s2213 + $0x39] sm:$0xff]
    %v2320 = vld [vmem:[%s2213 + $0x41] sm:$0xff]
    %v2321 = vld [vmem:[%s2213 + $0x49] sm:$0xff]
    %v2322 = vld [vmem:[%s2213 + $0x51] sm:$0xff]
    %v2323 = vld [vmem:[%s2213 + $0x59] sm:$0x7]
    %v2324 = vpack.c.bf16 %v2313, %v2312
    %v2325 = vpack.c.bf16 %v2315, %v2314
    %v2326 = vpack.c.bf16 %v2317, %v2316
    %v2327 = vpack.c.bf16 %v2319, %v2318
    %v2328 = vpack.c.bf16 %v2321, %v2320
    %v2329 = vpack.c.bf16 %v2323, %v2322
    %v2330 = vld [vmem:[%s288] sm:$0xf]
    %v2331 = vld [vmem:[%s288 + $0x4] sm:$0xf]
    %v2332 = vld [vmem:[%s288 + $0x8] sm:$0xf]
    %v2333 = vld [vmem:[%s288 + $0xc] sm:$0xf]
    %v2334 = vld [vmem:[%s288 + $0x10] sm:$0xf]
    %v2340 = vunpack.c.l.b16 %v2330
    %v2341 = vunpack.c.l.b16 %v2331
    %v2342 = vunpack.c.l.b16 %v2332
    %v2343 = vunpack.c.l.b16 %v2333
    %v2344 = vunpack.c.l.b16 %v2334
    %v2345 = vpack.c.b16 %v2341, %v2340
    %v2346 = vpack.c.b16 %v2343, %v2342
    %v2347 = vpack.c.b16 %v2344, %v2344
    %v2351 = vsel %vm208, %v2324, 0
    %v2354 = vsel %vm208, %v2325, 0
    %v2357 = vsel %vm208, %v2326, 0
    %v2360 = vsel %vm208, %v2327, 0
    %v2363 = vsel %vm208, %v2328, 0
    %v2366 = vsel %vm208, %v2329, 0
    %v2369 = vsel %vm227, %v2347, 0
    %2371 = vmatpush.bf16.msra.mxu0 0
    %2372 = vmatpush.bf16.msra.mxu0 0
    %2373 = vmatpush.bf16.msra.mxu0 0
    %2374 = vmatpush.bf16.msra.mxu0 0
    %2375 = vmatpush.bf16.msra.mxu0 0
    %2376 = vmatpush.bf16.msra.mxu0 %v2369
    %2377 = vmatpush.bf16.msra.mxu0 %v2346
    %2378 = vmatpush.bf16.msra.mxu0 %v2345
    %2379 = vmatmul.bf16.gmra.mxu0 %v2351
    %v2380 = vpop.f32.mrf.mxu0
    %v2381 = vadd.f32 0.0, %v2380
    %v2382 = vpop.f32.mrf.mxu0
    %v2383 = vadd.f32 0.0, %v2382
    %2384 = vmatmul.bf16.gmra.mxu0 %v2354
    %v2385 = vpop.f32.mrf.mxu0
    %v2386 = vadd.f32 0.0, %v2385
    %v2387 = vpop.f32.mrf.mxu0
    %v2388 = vadd.f32 0.0, %v2387
    %2389 = vmatmul.bf16.gmra.mxu0 %v2357
    %v2390 = vpop.f32.mrf.mxu0
    %v2391 = vadd.f32 0.0, %v2390
    %v2392 = vpop.f32.mrf.mxu0
    %v2393 = vadd.f32 0.0, %v2392
    %2394 = vmatmul.bf16.gmra.mxu0 %v2360
    %v2395 = vpop.f32.mrf.mxu0
    %v2396 = vadd.f32 0.0, %v2395
    %v2397 = vpop.f32.mrf.mxu0
    %v2398 = vadd.f32 0.0, %v2397
    %2399 = vmatmul.bf16.gmra.mxu0 %v2363
    %v2400 = vpop.f32.mrf.mxu0
    %v2401 = vadd.f32 0.0, %v2400
    %v2402 = vpop.f32.mrf.mxu0
    %v2403 = vadd.f32 0.0, %v2402
    %2404 = vmatmul.bf16.gmra.mxu0 %v2366
    %v2405 = vpop.f32.mrf.mxu0
    %v2406 = vadd.f32 0.0, %v2405
    %v2407 = vpop.f32.mrf.mxu0
    %v2408 = vadd.f32 0.0, %v2407
    %2409 = vdwg.mxu0
    %v2410 = vadd.f32 %v2283, %v2381
    %v2411 = vadd.f32 %v2285, %v2383
    %v2412 = vadd.f32 %v2288, %v2386
    %v2413 = vadd.f32 %v2290, %v2388
    %v2414 = vadd.f32 %v2293, %v2391
    %v2415 = vadd.f32 %v2295, %v2393
    %v2416 = vadd.f32 %v2298, %v2396
    %v2417 = vadd.f32 %v2300, %v2398
    %v2418 = vadd.f32 %v2303, %v2401
    %v2419 = vadd.f32 %v2305, %v2403
    %v2420 = vadd.f32 %v2308, %v2406
    %v2421 = vadd.f32 %v2310, %v2408
    %v2422 = vld [vmem:[%s2213 + $0x2] sm:$0xff]
    %v2423 = vld [vmem:[%s2213 + $0xa] sm:$0xff]
    %v2424 = vld [vmem:[%s2213 + $0x12] sm:$0xff]
    %v2425 = vld [vmem:[%s2213 + $0x1a] sm:$0xff]
    %v2426 = vld [vmem:[%s2213 + $0x22] sm:$0xff]
    %v2427 = vld [vmem:[%s2213 + $0x2a] sm:$0xff]
    %v2428 = vld [vmem:[%s2213 + $0x32] sm:$0xff]
    %v2429 = vld [vmem:[%s2213 + $0x3a] sm:$0xff]
    %v2430 = vld [vmem:[%s2213 + $0x42] sm:$0xff]
    %v2431 = vld [vmem:[%s2213 + $0x4a] sm:$0xff]
    %v2432 = vld [vmem:[%s2213 + $0x52] sm:$0xff]
    %v2433 = vld [vmem:[%s2213 + $0x5a] sm:$0x7]
    %v2434 = vpack.c.bf16 %v2423, %v2422
    %v2435 = vpack.c.bf16 %v2425, %v2424
    %v2436 = vpack.c.bf16 %v2427, %v2426
    %v2437 = vpack.c.bf16 %v2429, %v2428
    %v2438 = vpack.c.bf16 %v2431, %v2430
    %v2439 = vpack.c.bf16 %v2433, %v2432
    %v2440 = vld [vmem:[%s399] sm:$0xf]
    %v2441 = vld [vmem:[%s399 + $0x4] sm:$0xf]
    %v2442 = vld [vmem:[%s399 + $0x8] sm:$0xf]
    %v2443 = vld [vmem:[%s399 + $0xc] sm:$0xf]
    %v2444 = vld [vmem:[%s399 + $0x10] sm:$0xf]
    %v2450 = vunpack.c.l.b16 %v2440
    %v2451 = vunpack.c.l.b16 %v2441
    %v2452 = vunpack.c.l.b16 %v2442
    %v2453 = vunpack.c.l.b16 %v2443
    %v2454 = vunpack.c.l.b16 %v2444
    %v2455 = vpack.c.b16 %v2451, %v2450
    %v2456 = vpack.c.b16 %v2453, %v2452
    %v2457 = vpack.c.b16 %v2454, %v2454
    %v2461 = vsel %vm208, %v2434, 0
    %v2464 = vsel %vm208, %v2435, 0
    %v2467 = vsel %vm208, %v2436, 0
    %v2470 = vsel %vm208, %v2437, 0
    %v2473 = vsel %vm208, %v2438, 0
    %v2476 = vsel %vm208, %v2439, 0
    %v2479 = vsel %vm227, %v2457, 0
    %2481 = vmatpush.bf16.msra.mxu0 0
    %2482 = vmatpush.bf16.msra.mxu0 0
    %2483 = vmatpush.bf16.msra.mxu0 0
    %2484 = vmatpush.bf16.msra.mxu0 0
    %2485 = vmatpush.bf16.msra.mxu0 0
    %2486 = vmatpush.bf16.msra.mxu0 %v2479
    %2487 = vmatpush.bf16.msra.mxu0 %v2456
    %2488 = vmatpush.bf16.msra.mxu0 %v2455
    %2489 = vmatmul.bf16.gmra.mxu0 %v2461
    %v2490 = vpop.f32.mrf.mxu0
    %v2491 = vadd.f32 0.0, %v2490
    %v2492 = vpop.f32.mrf.mxu0
    %v2493 = vadd.f32 0.0, %v2492
    %2494 = vmatmul.bf16.gmra.mxu0 %v2464
    %v2495 = vpop.f32.mrf.mxu0
    %v2496 = vadd.f32 0.0, %v2495
    %v2497 = vpop.f32.mrf.mxu0
    %v2498 = vadd.f32 0.0, %v2497
    %2499 = vmatmul.bf16.gmra.mxu0 %v2467
    %v2500 = vpop.f32.mrf.mxu0
    %v2501 = vadd.f32 0.0, %v2500
    %v2502 = vpop.f32.mrf.mxu0
    %v2503 = vadd.f32 0.0, %v2502
    %2504 = vmatmul.bf16.gmra.mxu0 %v2470
    %v2505 = vpop.f32.mrf.mxu0
    %v2506 = vadd.f32 0.0, %v2505
    %v2507 = vpop.f32.mrf.mxu0
    %v2508 = vadd.f32 0.0, %v2507
    %2509 = vmatmul.bf16.gmra.mxu0 %v2473
    %v2510 = vpop.f32.mrf.mxu0
    %v2511 = vadd.f32 0.0, %v2510
    %v2512 = vpop.f32.mrf.mxu0
    %v2513 = vadd.f32 0.0, %v2512
    %2514 = vmatmul.bf16.gmra.mxu0 %v2476
    %v2515 = vpop.f32.mrf.mxu0
    %v2516 = vadd.f32 0.0, %v2515
    %v2517 = vpop.f32.mrf.mxu0
    %v2518 = vadd.f32 0.0, %v2517
    %2519 = vdwg.mxu0
    %v2520 = vadd.f32 %v2410, %v2491
    %v2521 = vadd.f32 %v2411, %v2493
    %v2522 = vadd.f32 %v2412, %v2496
    %v2523 = vadd.f32 %v2413, %v2498
    %v2524 = vadd.f32 %v2414, %v2501
    %v2525 = vadd.f32 %v2415, %v2503
    %v2526 = vadd.f32 %v2416, %v2506
    %v2527 = vadd.f32 %v2417, %v2508
    %v2528 = vadd.f32 %v2418, %v2511
    %v2529 = vadd.f32 %v2419, %v2513
    %v2530 = vadd.f32 %v2420, %v2516
    %v2531 = vadd.f32 %v2421, %v2518
    %v2532 = vld [vmem:[%s2213 + $0x3] sm:$0xff]
    %v2533 = vld [vmem:[%s2213 + $0xb] sm:$0xff]
    %v2534 = vld [vmem:[%s2213 + $0x13] sm:$0xff]
    %v2535 = vld [vmem:[%s2213 + $0x1b] sm:$0xff]
    %v2536 = vld [vmem:[%s2213 + $0x23] sm:$0xff]
    %v2537 = vld [vmem:[%s2213 + $0x2b] sm:$0xff]
    %v2538 = vld [vmem:[%s2213 + $0x33] sm:$0xff]
    %v2539 = vld [vmem:[%s2213 + $0x3b] sm:$0xff]
    %v2540 = vld [vmem:[%s2213 + $0x43] sm:$0xff]
    %v2541 = vld [vmem:[%s2213 + $0x4b] sm:$0xff]
    %v2542 = vld [vmem:[%s2213 + $0x53] sm:$0xff]
    %v2543 = vld [vmem:[%s2213 + $0x5b] sm:$0x7]
    %v2544 = vpack.c.bf16 %v2533, %v2532
    %v2545 = vpack.c.bf16 %v2535, %v2534
    %v2546 = vpack.c.bf16 %v2537, %v2536
    %v2547 = vpack.c.bf16 %v2539, %v2538
    %v2548 = vpack.c.bf16 %v2541, %v2540
    %v2549 = vpack.c.bf16 %v2543, %v2542
    %v2550 = vld [vmem:[%s510] sm:$0xf]
    %v2551 = vld [vmem:[%s510 + $0x4] sm:$0xf]
    %v2552 = vld [vmem:[%s510 + $0x8] sm:$0xf]
    %v2553 = vld [vmem:[%s510 + $0xc] sm:$0xf]
    %v2554 = vld [vmem:[%s510 + $0x10] sm:$0xf]
    %v2560 = vunpack.c.l.b16 %v2550
    %v2561 = vunpack.c.l.b16 %v2551
    %v2562 = vunpack.c.l.b16 %v2552
    %v2563 = vunpack.c.l.b16 %v2553
    %v2564 = vunpack.c.l.b16 %v2554
    %v2565 = vpack.c.b16 %v2561, %v2560
    %v2566 = vpack.c.b16 %v2563, %v2562
    %v2567 = vpack.c.b16 %v2564, %v2564
    %v2571 = vsel %vm208, %v2544, 0
    %v2574 = vsel %vm208, %v2545, 0
    %v2577 = vsel %vm208, %v2546, 0
    %v2580 = vsel %vm208, %v2547, 0
    %v2583 = vsel %vm208, %v2548, 0
    %v2586 = vsel %vm208, %v2549, 0
    %v2589 = vsel %vm227, %v2567, 0
    %2591 = vmatpush.bf16.msra.mxu0 0
    %2592 = vmatpush.bf16.msra.mxu0 0
    %2593 = vmatpush.bf16.msra.mxu0 0
    %2594 = vmatpush.bf16.msra.mxu0 0
    %2595 = vmatpush.bf16.msra.mxu0 0
    %2596 = vmatpush.bf16.msra.mxu0 %v2589
    %2597 = vmatpush.bf16.msra.mxu0 %v2566
    %2598 = vmatpush.bf16.msra.mxu0 %v2565
    %2599 = vmatmul.bf16.gmra.mxu0 %v2571
    %v2600 = vpop.f32.mrf.mxu0
    %v2601 = vadd.f32 0.0, %v2600
    %v2602 = vpop.f32.mrf.mxu0
    %v2603 = vadd.f32 0.0, %v2602
    %2604 = vmatmul.bf16.gmra.mxu0 %v2574
    %v2605 = vpop.f32.mrf.mxu0
    %v2606 = vadd.f32 0.0, %v2605
    %v2607 = vpop.f32.mrf.mxu0
    %v2608 = vadd.f32 0.0, %v2607
    %2609 = vmatmul.bf16.gmra.mxu0 %v2577
    %v2610 = vpop.f32.mrf.mxu0
    %v2611 = vadd.f32 0.0, %v2610
    %v2612 = vpop.f32.mrf.mxu0
    %v2613 = vadd.f32 0.0, %v2612
    %2614 = vmatmul.bf16.gmra.mxu0 %v2580
    %v2615 = vpop.f32.mrf.mxu0
    %v2616 = vadd.f32 0.0, %v2615
    %v2617 = vpop.f32.mrf.mxu0
    %v2618 = vadd.f32 0.0, %v2617
    %2619 = vmatmul.bf16.gmra.mxu0 %v2583
    %v2620 = vpop.f32.mrf.mxu0
    %v2621 = vadd.f32 0.0, %v2620
    %v2622 = vpop.f32.mrf.mxu0
    %v2623 = vadd.f32 0.0, %v2622
    %2624 = vmatmul.bf16.gmra.mxu0 %v2586
    %v2625 = vpop.f32.mrf.mxu0
    %v2626 = vadd.f32 0.0, %v2625
    %v2627 = vpop.f32.mrf.mxu0
    %v2628 = vadd.f32 0.0, %v2627
    %2629 = vdwg.mxu0
    %v2630 = vadd.f32 %v2520, %v2601
    %v2631 = vadd.f32 %v2521, %v2603
    %v2632 = vadd.f32 %v2522, %v2606
    %v2633 = vadd.f32 %v2523, %v2608
    %v2634 = vadd.f32 %v2524, %v2611
    %v2635 = vadd.f32 %v2525, %v2613
    %v2636 = vadd.f32 %v2526, %v2616
    %v2637 = vadd.f32 %v2527, %v2618
    %v2638 = vadd.f32 %v2528, %v2621
    %v2639 = vadd.f32 %v2529, %v2623
    %v2640 = vadd.f32 %v2530, %v2626
    %v2641 = vadd.f32 %v2531, %v2628
    %v2642 = vld [vmem:[%s2213 + $0x4] sm:$0xff]
    %v2643 = vld [vmem:[%s2213 + $0xc] sm:$0xff]
    %v2644 = vld [vmem:[%s2213 + $0x14] sm:$0xff]
    %v2645 = vld [vmem:[%s2213 + $0x1c] sm:$0xff]
    %v2646 = vld [vmem:[%s2213 + $0x24] sm:$0xff]
    %v2647 = vld [vmem:[%s2213 + $0x2c] sm:$0xff]
    %v2648 = vld [vmem:[%s2213 + $0x34] sm:$0xff]
    %v2649 = vld [vmem:[%s2213 + $0x3c] sm:$0xff]
    %v2650 = vld [vmem:[%s2213 + $0x44] sm:$0xff]
    %v2651 = vld [vmem:[%s2213 + $0x4c] sm:$0xff]
    %v2652 = vld [vmem:[%s2213 + $0x54] sm:$0xff]
    %v2653 = vld [vmem:[%s2213 + $0x5c] sm:$0x7]
    %v2654 = vpack.c.bf16 %v2643, %v2642
    %v2655 = vpack.c.bf16 %v2645, %v2644
    %v2656 = vpack.c.bf16 %v2647, %v2646
    %v2657 = vpack.c.bf16 %v2649, %v2648
    %v2658 = vpack.c.bf16 %v2651, %v2650
    %v2659 = vpack.c.bf16 %v2653, %v2652
    %v2660 = vld [vmem:[%s621] sm:$0xf]
    %v2661 = vld [vmem:[%s621 + $0x4] sm:$0xf]
    %v2662 = vld [vmem:[%s621 + $0x8] sm:$0xf]
    %v2663 = vld [vmem:[%s621 + $0xc] sm:$0xf]
    %v2664 = vld [vmem:[%s621 + $0x10] sm:$0xf]
    %v2670 = vunpack.c.l.b16 %v2660
    %v2671 = vunpack.c.l.b16 %v2661
    %v2672 = vunpack.c.l.b16 %v2662
    %v2673 = vunpack.c.l.b16 %v2663
    %v2674 = vunpack.c.l.b16 %v2664
    %v2675 = vpack.c.b16 %v2671, %v2670
    %v2676 = vpack.c.b16 %v2673, %v2672
    %v2677 = vpack.c.b16 %v2674, %v2674
    %v2681 = vsel %vm208, %v2654, 0
    %v2684 = vsel %vm208, %v2655, 0
    %v2687 = vsel %vm208, %v2656, 0
    %v2690 = vsel %vm208, %v2657, 0
    %v2693 = vsel %vm208, %v2658, 0
    %v2696 = vsel %vm208, %v2659, 0
    %v2699 = vsel %vm227, %v2677, 0
    %2701 = vmatpush.bf16.msra.mxu0 0
    %2702 = vmatpush.bf16.msra.mxu0 0
    %2703 = vmatpush.bf16.msra.mxu0 0
    %2704 = vmatpush.bf16.msra.mxu0 0
    %2705 = vmatpush.bf16.msra.mxu0 0
    %2706 = vmatpush.bf16.msra.mxu0 %v2699
    %2707 = vmatpush.bf16.msra.mxu0 %v2676
    %2708 = vmatpush.bf16.msra.mxu0 %v2675
    %2709 = vmatmul.bf16.gmra.mxu0 %v2681
    %v2710 = vpop.f32.mrf.mxu0
    %v2711 = vadd.f32 0.0, %v2710
    %v2712 = vpop.f32.mrf.mxu0
    %v2713 = vadd.f32 0.0, %v2712
    %2714 = vmatmul.bf16.gmra.mxu0 %v2684
    %v2715 = vpop.f32.mrf.mxu0
    %v2716 = vadd.f32 0.0, %v2715
    %v2717 = vpop.f32.mrf.mxu0
    %v2718 = vadd.f32 0.0, %v2717
    %2719 = vmatmul.bf16.gmra.mxu0 %v2687
    %v2720 = vpop.f32.mrf.mxu0
    %v2721 = vadd.f32 0.0, %v2720
    %v2722 = vpop.f32.mrf.mxu0
    %v2723 = vadd.f32 0.0, %v2722
    %2724 = vmatmul.bf16.gmra.mxu0 %v2690
    %v2725 = vpop.f32.mrf.mxu0
    %v2726 = vadd.f32 0.0, %v2725
    %v2727 = vpop.f32.mrf.mxu0
    %v2728 = vadd.f32 0.0, %v2727
    %2729 = vmatmul.bf16.gmra.mxu0 %v2693
    %v2730 = vpop.f32.mrf.mxu0
    %v2731 = vadd.f32 0.0, %v2730
    %v2732 = vpop.f32.mrf.mxu0
    %v2733 = vadd.f32 0.0, %v2732
    %2734 = vmatmul.bf16.gmra.mxu0 %v2696
    %v2735 = vpop.f32.mrf.mxu0
    %v2736 = vadd.f32 0.0, %v2735
    %v2737 = vpop.f32.mrf.mxu0
    %v2738 = vadd.f32 0.0, %v2737
    %2739 = vdwg.mxu0
    %v2740 = vadd.f32 %v2630, %v2711
    %v2741 = vadd.f32 %v2631, %v2713
    %v2742 = vadd.f32 %v2632, %v2716
    %v2743 = vadd.f32 %v2633, %v2718
    %v2744 = vadd.f32 %v2634, %v2721
    %v2745 = vadd.f32 %v2635, %v2723
    %v2746 = vadd.f32 %v2636, %v2726
    %v2747 = vadd.f32 %v2637, %v2728
    %v2748 = vadd.f32 %v2638, %v2731
    %v2749 = vadd.f32 %v2639, %v2733
    %v2750 = vadd.f32 %v2640, %v2736
    %v2751 = vadd.f32 %v2641, %v2738
    %v2752 = vld [vmem:[%s2213 + $0x5] sm:$0xff]
    %v2753 = vld [vmem:[%s2213 + $0xd] sm:$0xff]
    %v2754 = vld [vmem:[%s2213 + $0x15] sm:$0xff]
    %v2755 = vld [vmem:[%s2213 + $0x1d] sm:$0xff]
    %v2756 = vld [vmem:[%s2213 + $0x25] sm:$0xff]
    %v2757 = vld [vmem:[%s2213 + $0x2d] sm:$0xff]
    %v2758 = vld [vmem:[%s2213 + $0x35] sm:$0xff]
    %v2759 = vld [vmem:[%s2213 + $0x3d] sm:$0xff]
    %v2760 = vld [vmem:[%s2213 + $0x45] sm:$0xff]
    %v2761 = vld [vmem:[%s2213 + $0x4d] sm:$0xff]
    %v2762 = vld [vmem:[%s2213 + $0x55] sm:$0xff]
    %v2763 = vld [vmem:[%s2213 + $0x5d] sm:$0x7]
    %v2764 = vpack.c.bf16 %v2753, %v2752
    %v2765 = vpack.c.bf16 %v2755, %v2754
    %v2766 = vpack.c.bf16 %v2757, %v2756
    %v2767 = vpack.c.bf16 %v2759, %v2758
    %v2768 = vpack.c.bf16 %v2761, %v2760
    %v2769 = vpack.c.bf16 %v2763, %v2762
    %v2770 = vld [vmem:[%s732] sm:$0xf]
    %v2771 = vld [vmem:[%s732 + $0x4] sm:$0xf]
    %v2772 = vld [vmem:[%s732 + $0x8] sm:$0xf]
    %v2773 = vld [vmem:[%s732 + $0xc] sm:$0xf]
    %v2774 = vld [vmem:[%s732 + $0x10] sm:$0xf]
    %v2780 = vunpack.c.l.b16 %v2770
    %v2781 = vunpack.c.l.b16 %v2771
    %v2782 = vunpack.c.l.b16 %v2772
    %v2783 = vunpack.c.l.b16 %v2773
    %v2784 = vunpack.c.l.b16 %v2774
    %v2785 = vpack.c.b16 %v2781, %v2780
    %v2786 = vpack.c.b16 %v2783, %v2782
    %v2787 = vpack.c.b16 %v2784, %v2784
    %v2791 = vsel %vm208, %v2764, 0
    %v2794 = vsel %vm208, %v2765, 0
    %v2797 = vsel %vm208, %v2766, 0
    %v2800 = vsel %vm208, %v2767, 0
    %v2803 = vsel %vm208, %v2768, 0
    %v2806 = vsel %vm208, %v2769, 0
    %v2809 = vsel %vm227, %v2787, 0
    %2811 = vmatpush.bf16.msra.mxu0 0
    %2812 = vmatpush.bf16.msra.mxu0 0
    %2813 = vmatpush.bf16.msra.mxu0 0
    %2814 = vmatpush.bf16.msra.mxu0 0
    %2815 = vmatpush.bf16.msra.mxu0 0
    %2816 = vmatpush.bf16.msra.mxu0 %v2809
    %2817 = vmatpush.bf16.msra.mxu0 %v2786
    %2818 = vmatpush.bf16.msra.mxu0 %v2785
    %2819 = vmatmul.bf16.gmra.mxu0 %v2791
    %v2820 = vpop.f32.mrf.mxu0
    %v2821 = vadd.f32 0.0, %v2820
    %v2822 = vpop.f32.mrf.mxu0
    %v2823 = vadd.f32 0.0, %v2822
    %2824 = vmatmul.bf16.gmra.mxu0 %v2794
    %v2825 = vpop.f32.mrf.mxu0
    %v2826 = vadd.f32 0.0, %v2825
    %v2827 = vpop.f32.mrf.mxu0
    %v2828 = vadd.f32 0.0, %v2827
    %2829 = vmatmul.bf16.gmra.mxu0 %v2797
    %v2830 = vpop.f32.mrf.mxu0
    %v2831 = vadd.f32 0.0, %v2830
    %v2832 = vpop.f32.mrf.mxu0
    %v2833 = vadd.f32 0.0, %v2832
    %2834 = vmatmul.bf16.gmra.mxu0 %v2800
    %v2835 = vpop.f32.mrf.mxu0
    %v2836 = vadd.f32 0.0, %v2835
    %v2837 = vpop.f32.mrf.mxu0
    %v2838 = vadd.f32 0.0, %v2837
    %2839 = vmatmul.bf16.gmra.mxu0 %v2803
    %v2840 = vpop.f32.mrf.mxu0
    %v2841 = vadd.f32 0.0, %v2840
    %v2842 = vpop.f32.mrf.mxu0
    %v2843 = vadd.f32 0.0, %v2842
    %2844 = vmatmul.bf16.gmra.mxu0 %v2806
    %v2845 = vpop.f32.mrf.mxu0
    %v2846 = vadd.f32 0.0, %v2845
    %v2847 = vpop.f32.mrf.mxu0
    %v2848 = vadd.f32 0.0, %v2847
    %2849 = vdwg.mxu0
    %v2850 = vadd.f32 %v2740, %v2821
    %v2851 = vadd.f32 %v2741, %v2823
    %v2852 = vadd.f32 %v2742, %v2826
    %v2853 = vadd.f32 %v2743, %v2828
    %v2854 = vadd.f32 %v2744, %v2831
    %v2855 = vadd.f32 %v2745, %v2833
    %v2856 = vadd.f32 %v2746, %v2836
    %v2857 = vadd.f32 %v2747, %v2838
    %v2858 = vadd.f32 %v2748, %v2841
    %v2859 = vadd.f32 %v2749, %v2843
    %v2860 = vadd.f32 %v2750, %v2846
    %v2861 = vadd.f32 %v2751, %v2848
    %v2862 = vld [vmem:[%s2213 + $0x6] sm:$0xff]
    %v2863 = vld [vmem:[%s2213 + $0xe] sm:$0xff]
    %v2864 = vld [vmem:[%s2213 + $0x16] sm:$0xff]
    %v2865 = vld [vmem:[%s2213 + $0x1e] sm:$0xff]
    %v2866 = vld [vmem:[%s2213 + $0x26] sm:$0xff]
    %v2867 = vld [vmem:[%s2213 + $0x2e] sm:$0xff]
    %v2868 = vld [vmem:[%s2213 + $0x36] sm:$0xff]
    %v2869 = vld [vmem:[%s2213 + $0x3e] sm:$0xff]
    %v2870 = vld [vmem:[%s2213 + $0x46] sm:$0xff]
    %v2871 = vld [vmem:[%s2213 + $0x4e] sm:$0xff]
    %v2872 = vld [vmem:[%s2213 + $0x56] sm:$0xff]
    %v2873 = vld [vmem:[%s2213 + $0x5e] sm:$0x7]
    %v2874 = vpack.c.bf16 %v2863, %v2862
    %v2875 = vpack.c.bf16 %v2865, %v2864
    %v2876 = vpack.c.bf16 %v2867, %v2866
    %v2877 = vpack.c.bf16 %v2869, %v2868
    %v2878 = vpack.c.bf16 %v2871, %v2870
    %v2879 = vpack.c.bf16 %v2873, %v2872
    %v2880 = vld [vmem:[%s843] sm:$0xf]
    %v2881 = vld [vmem:[%s843 + $0x4] sm:$0xf]
    %v2882 = vld [vmem:[%s843 + $0x8] sm:$0xf]
    %v2883 = vld [vmem:[%s843 + $0xc] sm:$0xf]
    %v2884 = vld [vmem:[%s843 + $0x10] sm:$0xf]
    %v2890 = vunpack.c.l.b16 %v2880
    %v2891 = vunpack.c.l.b16 %v2881
    %v2892 = vunpack.c.l.b16 %v2882
    %v2893 = vunpack.c.l.b16 %v2883
    %v2894 = vunpack.c.l.b16 %v2884
    %v2895 = vpack.c.b16 %v2891, %v2890
    %v2896 = vpack.c.b16 %v2893, %v2892
    %v2897 = vpack.c.b16 %v2894, %v2894
    %v2901 = vsel %vm208, %v2874, 0
    %v2904 = vsel %vm208, %v2875, 0
    %v2907 = vsel %vm208, %v2876, 0
    %v2910 = vsel %vm208, %v2877, 0
    %v2913 = vsel %vm208, %v2878, 0
    %v2916 = vsel %vm208, %v2879, 0
    %v2919 = vsel %vm227, %v2897, 0
    %2921 = vmatpush.bf16.msra.mxu0 0
    %2922 = vmatpush.bf16.msra.mxu0 0
    %2923 = vmatpush.bf16.msra.mxu0 0
    %2924 = vmatpush.bf16.msra.mxu0 0
    %2925 = vmatpush.bf16.msra.mxu0 0
    %2926 = vmatpush.bf16.msra.mxu0 %v2919
    %2927 = vmatpush.bf16.msra.mxu0 %v2896
    %2928 = vmatpush.bf16.msra.mxu0 %v2895
    %2929 = vmatmul.bf16.gmra.mxu0 %v2901
    %v2930 = vpop.f32.mrf.mxu0
    %v2931 = vadd.f32 0.0, %v2930
    %v2932 = vpop.f32.mrf.mxu0
    %v2933 = vadd.f32 0.0, %v2932
    %2934 = vmatmul.bf16.gmra.mxu0 %v2904
    %v2935 = vpop.f32.mrf.mxu0
    %v2936 = vadd.f32 0.0, %v2935
    %v2937 = vpop.f32.mrf.mxu0
    %v2938 = vadd.f32 0.0, %v2937
    %2939 = vmatmul.bf16.gmra.mxu0 %v2907
    %v2940 = vpop.f32.mrf.mxu0
    %v2941 = vadd.f32 0.0, %v2940
    %v2942 = vpop.f32.mrf.mxu0
    %v2943 = vadd.f32 0.0, %v2942
    %2944 = vmatmul.bf16.gmra.mxu0 %v2910
    %v2945 = vpop.f32.mrf.mxu0
    %v2946 = vadd.f32 0.0, %v2945
    %v2947 = vpop.f32.mrf.mxu0
    %v2948 = vadd.f32 0.0, %v2947
    %2949 = vmatmul.bf16.gmra.mxu0 %v2913
    %v2950 = vpop.f32.mrf.mxu0
    %v2951 = vadd.f32 0.0, %v2950
    %v2952 = vpop.f32.mrf.mxu0
    %v2953 = vadd.f32 0.0, %v2952
    %2954 = vmatmul.bf16.gmra.mxu0 %v2916
    %v2955 = vpop.f32.mrf.mxu0
    %v2956 = vadd.f32 0.0, %v2955
    %v2957 = vpop.f32.mrf.mxu0
    %v2958 = vadd.f32 0.0, %v2957
    %2959 = vdwg.mxu0
    %v2960 = vadd.f32 %v2850, %v2931
    %v2961 = vadd.f32 %v2851, %v2933
    %v2962 = vadd.f32 %v2852, %v2936
    %v2963 = vadd.f32 %v2853, %v2938
    %v2964 = vadd.f32 %v2854, %v2941
    %v2965 = vadd.f32 %v2855, %v2943
    %v2966 = vadd.f32 %v2856, %v2946
    %v2967 = vadd.f32 %v2857, %v2948
    %v2968 = vadd.f32 %v2858, %v2951
    %v2969 = vadd.f32 %v2859, %v2953
    %v2970 = vadd.f32 %v2860, %v2956
    %v2971 = vadd.f32 %v2861, %v2958
    %v2972 = vld [vmem:[%s2213 + $0x7] sm:$0xff]
    %v2973 = vld [vmem:[%s2213 + $0xf] sm:$0xff]
    %v2974 = vld [vmem:[%s2213 + $0x17] sm:$0xff]
    %v2975 = vld [vmem:[%s2213 + $0x1f] sm:$0xff]
    %v2976 = vld [vmem:[%s2213 + $0x27] sm:$0xff]
    %v2977 = vld [vmem:[%s2213 + $0x2f] sm:$0xff]
    %v2978 = vld [vmem:[%s2213 + $0x37] sm:$0xff]
    %v2979 = vld [vmem:[%s2213 + $0x3f] sm:$0xff]
    %v2980 = vld [vmem:[%s2213 + $0x47] sm:$0xff]
    %v2981 = vld [vmem:[%s2213 + $0x4f] sm:$0xff]
    %v2982 = vld [vmem:[%s2213 + $0x57] sm:$0xff]
    %v2983 = vld [vmem:[%s2213 + $0x5f] sm:$0x7]
    %v2984 = vpack.c.bf16 %v2973, %v2972
    %v2985 = vpack.c.bf16 %v2975, %v2974
    %v2986 = vpack.c.bf16 %v2977, %v2976
    %v2987 = vpack.c.bf16 %v2979, %v2978
    %v2988 = vpack.c.bf16 %v2981, %v2980
    %v2989 = vpack.c.bf16 %v2983, %v2982
    %v2990 = vld [vmem:[%s954] sm:$0xf]
    %v2991 = vld [vmem:[%s954 + $0x4] sm:$0xf]
    %v2992 = vld [vmem:[%s954 + $0x8] sm:$0xf]
    %v2993 = vld [vmem:[%s954 + $0xc] sm:$0xf]
    %v2994 = vld [vmem:[%s954 + $0x10] sm:$0xf]
    %v3000 = vunpack.c.l.b16 %v2990
    %v3001 = vunpack.c.l.b16 %v2991
    %v3002 = vunpack.c.l.b16 %v2992
    %v3003 = vunpack.c.l.b16 %v2993
    %v3004 = vunpack.c.l.b16 %v2994
    %v3005 = vpack.c.b16 %v3001, %v3000
    %v3006 = vpack.c.b16 %v3003, %v3002
    %v3007 = vpack.c.b16 %v3004, %v3004
    %v3011 = vsel %vm208, %v2984, 0
    %v3014 = vsel %vm208, %v2985, 0
    %v3017 = vsel %vm208, %v2986, 0
    %v3020 = vsel %vm208, %v2987, 0
    %v3023 = vsel %vm208, %v2988, 0
    %v3026 = vsel %vm208, %v2989, 0
    %v3029 = vsel %vm227, %v3007, 0
    %3031 = vmatpush.bf16.msra.mxu0 0
    %3032 = vmatpush.bf16.msra.mxu0 0
    %3033 = vmatpush.bf16.msra.mxu0 0
    %3034 = vmatpush.bf16.msra.mxu0 0
    %3035 = vmatpush.bf16.msra.mxu0 0
    %3036 = vmatpush.bf16.msra.mxu0 %v3029
    %3037 = vmatpush.bf16.msra.mxu0 %v3006
    %3038 = vmatpush.bf16.msra.mxu0 %v3005
    %3039 = vmatmul.bf16.gmra.mxu0 %v3011
    %v3040 = vpop.f32.mrf.mxu0
    %v3041 = vadd.f32 0.0, %v3040
    %v3042 = vpop.f32.mrf.mxu0
    %v3043 = vadd.f32 0.0, %v3042
    %3044 = vmatmul.bf16.gmra.mxu0 %v3014
    %v3045 = vpop.f32.mrf.mxu0
    %v3046 = vadd.f32 0.0, %v3045
    %v3047 = vpop.f32.mrf.mxu0
    %v3048 = vadd.f32 0.0, %v3047
    %3049 = vmatmul.bf16.gmra.mxu0 %v3017
    %v3050 = vpop.f32.mrf.mxu0
    %v3051 = vadd.f32 0.0, %v3050
    %v3052 = vpop.f32.mrf.mxu0
    %v3053 = vadd.f32 0.0, %v3052
    %3054 = vmatmul.bf16.gmra.mxu0 %v3020
    %v3055 = vpop.f32.mrf.mxu0
    %v3056 = vadd.f32 0.0, %v3055
    %v3057 = vpop.f32.mrf.mxu0
    %v3058 = vadd.f32 0.0, %v3057
    %3059 = vmatmul.bf16.gmra.mxu0 %v3023
    %v3060 = vpop.f32.mrf.mxu0
    %v3061 = vadd.f32 0.0, %v3060
    %v3062 = vpop.f32.mrf.mxu0
    %v3063 = vadd.f32 0.0, %v3062
    %3064 = vmatmul.bf16.gmra.mxu0 %v3026
    %v3065 = vpop.f32.mrf.mxu0
    %v3066 = vadd.f32 0.0, %v3065
    %v3067 = vpop.f32.mrf.mxu0
    %v3068 = vadd.f32 0.0, %v3067
    %3069 = vdwg.mxu0
    %v3070 = vadd.f32 %v2960, %v3041
    %v3071 = vadd.f32 %v2961, %v3043
    %v3072 = vadd.f32 %v2962, %v3046
    %v3073 = vadd.f32 %v2963, %v3048
    %v3074 = vadd.f32 %v2964, %v3051
    %v3075 = vadd.f32 %v2965, %v3053
    %v3076 = vadd.f32 %v2966, %v3056
    %v3077 = vadd.f32 %v2967, %v3058
    %v3078 = vadd.f32 %v2968, %v3061
    %v3079 = vadd.f32 %v2969, %v3063
    %v3080 = vadd.f32 %v2970, %v3066
    %v3081 = vadd.f32 %v2971, %v3068
    %v3082 = vld [vmem:[%s2213 + $0x8] sm:$0xff]
    %v3083 = vld [vmem:[%s2213 + $0x10] sm:$0xff]
    %v3084 = vld [vmem:[%s2213 + $0x18] sm:$0xff]
    %v3085 = vld [vmem:[%s2213 + $0x20] sm:$0xff]
    %v3086 = vld [vmem:[%s2213 + $0x28] sm:$0xff]
    %v3087 = vld [vmem:[%s2213 + $0x30] sm:$0xff]
    %v3088 = vld [vmem:[%s2213 + $0x38] sm:$0xff]
    %v3089 = vld [vmem:[%s2213 + $0x40] sm:$0xff]
    %v3090 = vld [vmem:[%s2213 + $0x48] sm:$0xff]
    %v3091 = vld [vmem:[%s2213 + $0x50] sm:$0xff]
    %v3092 = vld [vmem:[%s2213 + $0x58] sm:$0xff]
    %v3093 = vld [vmem:[%s2213 + $0x60] sm:$0x7]
    %v3094 = vpack.c.bf16 %v3083, %v3082
    %v3095 = vpack.c.bf16 %v3085, %v3084
    %v3096 = vpack.c.bf16 %v3087, %v3086
    %v3097 = vpack.c.bf16 %v3089, %v3088
    %v3098 = vpack.c.bf16 %v3091, %v3090
    %v3099 = vpack.c.bf16 %v3093, %v3092
    %v3100 = vld [vmem:[%s1065] sm:$0xf]
    %v3101 = vld [vmem:[%s1065 + $0x4] sm:$0xf]
    %v3102 = vld [vmem:[%s1065 + $0x8] sm:$0xf]
    %v3103 = vld [vmem:[%s1065 + $0xc] sm:$0xf]
    %v3104 = vld [vmem:[%s1065 + $0x10] sm:$0xf]
    %v3110 = vunpack.c.l.b16 %v3100
    %v3111 = vunpack.c.l.b16 %v3101
    %v3112 = vunpack.c.l.b16 %v3102
    %v3113 = vunpack.c.l.b16 %v3103
    %v3114 = vunpack.c.l.b16 %v3104
    %v3115 = vpack.c.b16 %v3111, %v3110
    %v3116 = vpack.c.b16 %v3113, %v3112
    %v3117 = vpack.c.b16 %v3114, %v3114
    %v3121 = vsel %vm208, %v3094, 0
    %v3124 = vsel %vm208, %v3095, 0
    %v3127 = vsel %vm208, %v3096, 0
    %v3130 = vsel %vm208, %v3097, 0
    %v3133 = vsel %vm208, %v3098, 0
    %v3136 = vsel %vm208, %v3099, 0
    %v3139 = vsel %vm227, %v3117, 0
    %3141 = vmatpush.bf16.msra.mxu0 0
    %3142 = vmatpush.bf16.msra.mxu0 0
    %3143 = vmatpush.bf16.msra.mxu0 0
    %3144 = vmatpush.bf16.msra.mxu0 0
    %3145 = vmatpush.bf16.msra.mxu0 0
    %3146 = vmatpush.bf16.msra.mxu0 %v3139
    %3147 = vmatpush.bf16.msra.mxu0 %v3116
    %3148 = vmatpush.bf16.msra.mxu0 %v3115
    %3149 = vmatmul.bf16.gmra.mxu0 %v3121
    %v3150 = vpop.f32.mrf.mxu0
    %v3151 = vadd.f32 0.0, %v3150
    %v3152 = vpop.f32.mrf.mxu0
    %v3153 = vadd.f32 0.0, %v3152
    %3154 = vmatmul.bf16.gmra.mxu0 %v3124
    %v3155 = vpop.f32.mrf.mxu0
    %v3156 = vadd.f32 0.0, %v3155
    %v3157 = vpop.f32.mrf.mxu0
    %v3158 = vadd.f32 0.0, %v3157
    %3159 = vmatmul.bf16.gmra.mxu0 %v3127
    %v3160 = vpop.f32.mrf.mxu0
    %v3161 = vadd.f32 0.0, %v3160
    %v3162 = vpop.f32.mrf.mxu0
    %v3163 = vadd.f32 0.0, %v3162
    %3164 = vmatmul.bf16.gmra.mxu0 %v3130
    %v3165 = vpop.f32.mrf.mxu0
    %v3166 = vadd.f32 0.0, %v3165
    %v3167 = vpop.f32.mrf.mxu0
    %v3168 = vadd.f32 0.0, %v3167
    %3169 = vmatmul.bf16.gmra.mxu0 %v3133
    %v3170 = vpop.f32.mrf.mxu0
    %v3171 = vadd.f32 0.0, %v3170
    %v3172 = vpop.f32.mrf.mxu0
    %v3173 = vadd.f32 0.0, %v3172
    %3174 = vmatmul.bf16.gmra.mxu0 %v3136
    %v3175 = vpop.f32.mrf.mxu0
    %v3176 = vadd.f32 0.0, %v3175
    %v3177 = vpop.f32.mrf.mxu0
    %v3178 = vadd.f32 0.0, %v3177
    %3179 = vdwg.mxu0
    %v3180 = vadd.f32 %v3070, %v3151
    %v3181 = vadd.f32 %v3071, %v3153
    %v3182 = vadd.f32 %v3072, %v3156
    %v3183 = vadd.f32 %v3073, %v3158
    %v3184 = vadd.f32 %v3074, %v3161
    %v3185 = vadd.f32 %v3075, %v3163
    %v3186 = vadd.f32 %v3076, %v3166
    %v3187 = vadd.f32 %v3077, %v3168
    %v3188 = vadd.f32 %v3078, %v3171
    %v3189 = vadd.f32 %v3079, %v3173
    %v3190 = vadd.f32 %v3080, %v3176
    %v3191 = vadd.f32 %v3081, %v3178
    %v3192 = vld [vmem:[%s2213 + $0x9] sm:$0xff]
    %v3193 = vld [vmem:[%s2213 + $0x11] sm:$0xff]
    %v3194 = vld [vmem:[%s2213 + $0x19] sm:$0xff]
    %v3195 = vld [vmem:[%s2213 + $0x21] sm:$0xff]
    %v3196 = vld [vmem:[%s2213 + $0x29] sm:$0xff]
    %v3197 = vld [vmem:[%s2213 + $0x31] sm:$0xff]
    %v3198 = vld [vmem:[%s2213 + $0x39] sm:$0xff]
    %v3199 = vld [vmem:[%s2213 + $0x41] sm:$0xff]
    %v3200 = vld [vmem:[%s2213 + $0x49] sm:$0xff]
    %v3201 = vld [vmem:[%s2213 + $0x51] sm:$0xff]
    %v3202 = vld [vmem:[%s2213 + $0x59] sm:$0xff]
    %v3203 = vld [vmem:[%s2213 + $0x61] sm:$0x7]
    %v3204 = vpack.c.bf16 %v3193, %v3192
    %v3205 = vpack.c.bf16 %v3195, %v3194
    %v3206 = vpack.c.bf16 %v3197, %v3196
    %v3207 = vpack.c.bf16 %v3199, %v3198
    %v3208 = vpack.c.bf16 %v3201, %v3200
    %v3209 = vpack.c.bf16 %v3203, %v3202
    %v3210 = vld [vmem:[%s1176] sm:$0xf]
    %v3211 = vld [vmem:[%s1176 + $0x4] sm:$0xf]
    %v3212 = vld [vmem:[%s1176 + $0x8] sm:$0xf]
    %v3213 = vld [vmem:[%s1176 + $0xc] sm:$0xf]
    %v3214 = vld [vmem:[%s1176 + $0x10] sm:$0xf]
    %v3220 = vunpack.c.l.b16 %v3210
    %v3221 = vunpack.c.l.b16 %v3211
    %v3222 = vunpack.c.l.b16 %v3212
    %v3223 = vunpack.c.l.b16 %v3213
    %v3224 = vunpack.c.l.b16 %v3214
    %v3225 = vpack.c.b16 %v3221, %v3220
    %v3226 = vpack.c.b16 %v3223, %v3222
    %v3227 = vpack.c.b16 %v3224, %v3224
    %v3231 = vsel %vm208, %v3204, 0
    %v3234 = vsel %vm208, %v3205, 0
    %v3237 = vsel %vm208, %v3206, 0
    %v3240 = vsel %vm208, %v3207, 0
    %v3243 = vsel %vm208, %v3208, 0
    %v3246 = vsel %vm208, %v3209, 0
    %v3249 = vsel %vm227, %v3227, 0
    %3251 = vmatpush.bf16.msra.mxu0 0
    %3252 = vmatpush.bf16.msra.mxu0 0
    %3253 = vmatpush.bf16.msra.mxu0 0
    %3254 = vmatpush.bf16.msra.mxu0 0
    %3255 = vmatpush.bf16.msra.mxu0 0
    %3256 = vmatpush.bf16.msra.mxu0 %v3249
    %3257 = vmatpush.bf16.msra.mxu0 %v3226
    %3258 = vmatpush.bf16.msra.mxu0 %v3225
    %3259 = vmatmul.bf16.gmra.mxu0 %v3231
    %v3260 = vpop.f32.mrf.mxu0
    %v3261 = vadd.f32 0.0, %v3260
    %v3262 = vpop.f32.mrf.mxu0
    %v3263 = vadd.f32 0.0, %v3262
    %3264 = vmatmul.bf16.gmra.mxu0 %v3234
    %v3265 = vpop.f32.mrf.mxu0
    %v3266 = vadd.f32 0.0, %v3265
    %v3267 = vpop.f32.mrf.mxu0
    %v3268 = vadd.f32 0.0, %v3267
    %3269 = vmatmul.bf16.gmra.mxu0 %v3237
    %v3270 = vpop.f32.mrf.mxu0
    %v3271 = vadd.f32 0.0, %v3270
    %v3272 = vpop.f32.mrf.mxu0
    %v3273 = vadd.f32 0.0, %v3272
    %3274 = vmatmul.bf16.gmra.mxu0 %v3240
    %v3275 = vpop.f32.mrf.mxu0
    %v3276 = vadd.f32 0.0, %v3275
    %v3277 = vpop.f32.mrf.mxu0
    %v3278 = vadd.f32 0.0, %v3277
    %3279 = vmatmul.bf16.gmra.mxu0 %v3243
    %v3280 = vpop.f32.mrf.mxu0
    %v3281 = vadd.f32 0.0, %v3280
    %v3282 = vpop.f32.mrf.mxu0
    %v3283 = vadd.f32 0.0, %v3282
    %3284 = vmatmul.bf16.gmra.mxu0 %v3246
    %v3285 = vpop.f32.mrf.mxu0
    %v3286 = vadd.f32 0.0, %v3285
    %v3287 = vpop.f32.mrf.mxu0
    %v3288 = vadd.f32 0.0, %v3287
    %3289 = vdwg.mxu0
    %v3290 = vadd.f32 %v3180, %v3261
    %v3291 = vadd.f32 %v3181, %v3263
    %v3292 = vadd.f32 %v3182, %v3266
    %v3293 = vadd.f32 %v3183, %v3268
    %v3294 = vadd.f32 %v3184, %v3271
    %v3295 = vadd.f32 %v3185, %v3273
    %v3296 = vadd.f32 %v3186, %v3276
    %v3297 = vadd.f32 %v3187, %v3278
    %v3298 = vadd.f32 %v3188, %v3281
    %v3299 = vadd.f32 %v3189, %v3283
    %v3300 = vadd.f32 %v3190, %v3286
    %v3301 = vadd.f32 %v3191, %v3288
    %v3302 = vmax.f32 %v3290, 0.0
    %v3303 = vmax.f32 %v3291, 0.0
    %v3304 = vmax.f32 %v3292, 0.0
    %v3305 = vmax.f32 %v3293, 0.0
    %v3306 = vmax.f32 %v3294, 0.0
    %v3307 = vmax.f32 %v3295, 0.0
    %v3308 = vmax.f32 %v3296, 0.0
    %v3309 = vmax.f32 %v3297, 0.0
    %v3310 = vmax.f32 %v3298, 0.0
    %v3311 = vmax.f32 %v3299, 0.0
    %v3312 = vmax.f32 %v3300, 0.0
    %v3313 = vmax.f32 %v3301, 0.0
    %v3326 = vrot.slane %v3302, 1
    %v3327 = vrot.slane %v3303, 1
    %v3328 = vsel %vm1293, %v3326, %v3327
    %v3329 = vrot.slane %v3304, 1
    %v3330 = vsel %vm1293, %v3327, %v3329
    %v3331 = vrot.slane %v3305, 1
    %v3332 = vsel %vm1293, %v3329, %v3331
    %v3333 = vrot.slane %v3306, 1
    %v3334 = vsel %vm1293, %v3331, %v3333
    %v3335 = vrot.slane %v3307, 1
    %v3336 = vsel %vm1293, %v3333, %v3335
    %v3337 = vrot.slane %v3308, 1
    %v3338 = vsel %vm1293, %v3335, %v3337
    %v3339 = vrot.slane %v3309, 1
    %v3340 = vsel %vm1293, %v3337, %v3339
    %v3341 = vrot.slane %v3310, 1
    %v3342 = vsel %vm1293, %v3339, %v3341
    %v3343 = vrot.slane %v3311, 1
    %v3344 = vsel %vm1293, %v3341, %v3343
    %v3345 = vrot.slane %v3312, 1
    %v3346 = vsel %vm1293, %v3343, %v3345
    %v3347 = vrot.slane %v3313, 1
    %v3348 = vsel %vm1293, %v3345, %v3347
    %v3361 = vmax.f32 %v3302, %v3328
    %v3362 = vmax.f32 %v3303, %v3330
    %v3363 = vmax.f32 %v3304, %v3332
    %v3364 = vmax.f32 %v3305, %v3334
    %v3365 = vmax.f32 %v3306, %v3336
    %v3366 = vmax.f32 %v3307, %v3338
    %v3367 = vmax.f32 %v3308, %v3340
    %v3368 = vmax.f32 %v3309, %v3342
    %v3369 = vmax.f32 %v3310, %v3344
    %v3370 = vmax.f32 %v3311, %v3346
    %v3371 = vmax.f32 %v3312, %v3348
    %v3372 = vmax.f32 %v3313, %v3347
    %v3373 = vrot.slane %v3302, 2
    %v3374 = vrot.slane %v3303, 2
    %v3375 = vsel %vm1341, %v3373, %v3374
    %v3376 = vrot.slane %v3304, 2
    %v3377 = vsel %vm1341, %v3374, %v3376
    %v3378 = vrot.slane %v3305, 2
    %v3379 = vsel %vm1341, %v3376, %v3378
    %v3380 = vrot.slane %v3306, 2
    %v3381 = vsel %vm1341, %v3378, %v3380
    %v3382 = vrot.slane %v3307, 2
    %v3383 = vsel %vm1341, %v3380, %v3382
    %v3384 = vrot.slane %v3308, 2
    %v3385 = vsel %vm1341, %v3382, %v3384
    %v3386 = vrot.slane %v3309, 2
    %v3387 = vsel %vm1341, %v3384, %v3386
    %v3388 = vrot.slane %v3310, 2
    %v3389 = vsel %vm1341, %v3386, %v3388
    %v3390 = vrot.slane %v3311, 2
    %v3391 = vsel %vm1341, %v3388, %v3390
    %v3392 = vrot.slane %v3312, 2
    %v3393 = vsel %vm1341, %v3390, %v3392
    %v3394 = vrot.slane %v3313, 2
    %v3395 = vsel %vm1341, %v3392, %v3394
    %v3408 = vmax.f32 %v3361, %v3375
    %v3409 = vmax.f32 %v3362, %v3377
    %v3410 = vmax.f32 %v3363, %v3379
    %v3411 = vmax.f32 %v3364, %v3381
    %v3412 = vmax.f32 %v3365, %v3383
    %v3413 = vmax.f32 %v3366, %v3385
    %v3414 = vmax.f32 %v3367, %v3387
    %v3415 = vmax.f32 %v3368, %v3389
    %v3416 = vmax.f32 %v3369, %v3391
    %v3417 = vmax.f32 %v3370, %v3393
    %v3418 = vmax.f32 %v3371, %v3395
    %v3419 = vmax.f32 %v3372, %v3394
    %v3420 = vpack.c.bf16 %v3409, %v3408
    %v3421 = vpack.c.bf16 %v3411, %v3410
    %v3422 = vpack.c.bf16 %v3413, %v3412
    %v3423 = vpack.c.bf16 %v3415, %v3414
    %v3424 = vpack.c.bf16 %v3417, %v3416
    %v3425 = vpack.c.bf16 %v3419, %v3418
    %v3427 = vand.u32 %v3425, %v1404
    %3429 = vmatpush.bf16.msra.mxu0 0
    %3430 = vmatpush.bf16.msra.mxu0 0
    %3431 = vmatpush.bf16.msra.mxu0 %v3427
    %3432 = vmatpush.bf16.msra.mxu0 %v3424
    %3433 = vmatpush.bf16.msra.mxu0 %v3423
    %3434 = vmatpush.bf16.msra.mxu0 %v3422
    %3435 = vmatpush.bf16.msra.mxu0 %v3421
    %3436 = vmatpush.bf16.msra.mxu0 %v3420
    %3437 = vmatmul.bf16.gmra.mxu0 %v1397
    %v3438 = vpop.f32.mrf.mxu0
    %v3439 = vadd.f32 0.0, %v3438
    %v3440 = vpop.f32.mrf.mxu0
    %v3441 = vadd.f32 0.0, %v3440
    %3442 = vmatmul.bf16.gmra.mxu0 %v1400
    %v3443 = vpop.f32.mrf.mxu0
    %v3444 = vadd.f32 0.0, %v3443
    %v3445 = vpop.f32.mrf.mxu0
    %v3446 = vadd.f32 0.0, %v3445
    %3447 = vdwg.mxu0
    %3448 = vst [vmem:[#allocation5] sm:$0xff] %v3439
    %3449 = vst [vmem:[#allocation5 + $0x8] sm:$0xff] %v3441
    %3450 = vst [vmem:[#allocation5 + $0x10] sm:$0xff] %v3444
    %3451 = vst [vmem:[#allocation5 + $0x18] sm:$0x3f] %v3446
    %v3452 = vld [vmem:[#allocation5] sm:$0xff]
    %v3453 = vld [vmem:[#allocation5 + $0x8] sm:$0xff]
    %v3454 = vld [vmem:[#allocation5 + $0x10] sm:$0x7f]
    %v3455 = vpack.c.bf16 %v3453, %v3452
    %v3456 = vpack.c.bf16 %v3454, %v3454
    %v3457 = vld [vmem:[#allocation12] sm:$0xf]
    %v3458 = vld [vmem:[#allocation12 + $0x4] sm:$0xf]
    %v3459 = vld [vmem:[#allocation12 + $0x8] sm:$0xf]
    %v3460 = vld [vmem:[#allocation12 + $0xc] sm:$0xf]
    %v3461 = vld [vmem:[#allocation12 + $0x10] sm:$0xf]
    %v3462 = vld [vmem:[#allocation12 + $0x14] sm:$0xf]
    %v3463 = vld [vmem:[#allocation12 + $0x18] sm:$0xf]
    %v3464 = vld [vmem:[#allocation12 + $0x1c] sm:$0xf]
    %v3465 = vld [vmem:[#allocation12 + $0x20] sm:$0xf]
    %v3466 = vld [vmem:[#allocation12 + $0x24] sm:$0xf]
    %v3467 = vld [vmem:[#allocation12 + $0x28] sm:$0xf]
    %v3468 = vld [vmem:[#allocation12 + $0x2c] sm:$0xf]
    %v3469 = vld [vmem:[#allocation12 + $0x30] sm:$0xf]
    %v3470 = vld [vmem:[#allocation12 + $0x34] sm:$0xf]
    %v3471 = vld [vmem:[#allocation12 + $0x38] sm:$0xf]
    %v3472 = vld [vmem:[#allocation12 + $0x3c] sm:$0xf]
    %v3489 = vunpack.c.l.b16 %v3457
    %v3490 = vunpack.c.l.b16 %v3458
    %v3491 = vunpack.c.l.b16 %v3459
    %v3492 = vunpack.c.l.b16 %v3460
    %v3493 = vunpack.c.l.b16 %v3461
    %v3494 = vunpack.c.l.b16 %v3462
    %v3495 = vunpack.c.l.b16 %v3463
    %v3496 = vunpack.c.l.b16 %v3464
    %v3497 = vunpack.c.l.b16 %v3465
    %v3498 = vunpack.c.l.b16 %v3466
    %v3499 = vunpack.c.l.b16 %v3467
    %v3500 = vunpack.c.l.b16 %v3468
    %v3501 = vunpack.c.l.b16 %v3469
    %v3502 = vunpack.c.l.b16 %v3470
    %v3503 = vunpack.c.l.b16 %v3471
    %v3504 = vunpack.c.l.b16 %v3472
    %v3505 = vpack.c.b16 %v3490, %v3489
    %v3506 = vpack.c.b16 %v3492, %v3491
    %v3507 = vpack.c.b16 %v3494, %v3493
    %v3508 = vpack.c.b16 %v3496, %v3495
    %v3509 = vpack.c.b16 %v3498, %v3497
    %v3510 = vpack.c.b16 %v3500, %v3499
    %v3511 = vpack.c.b16 %v3502, %v3501
    %v3512 = vpack.c.b16 %v3504, %v3503
    %3521 = vmatpush.bf16.msra.mxu0 %v3512
    %3522 = vmatpush.bf16.msra.mxu0 %v3511
    %3523 = vmatpush.bf16.msra.mxu0 %v3510
    %3524 = vmatpush.bf16.msra.mxu0 %v3509
    %3525 = vmatpush.bf16.msra.mxu0 %v3508
    %3526 = vmatpush.bf16.msra.mxu0 %v3507
    %3527 = vmatpush.bf16.msra.mxu0 %v3506
    %3528 = vmatpush.bf16.msra.mxu0 %v3505
    %3529 = vmatmul.bf16.gmra.mxu0 %v3455
    %v3530 = vpop.f32.mrf.mxu0
    %v3531 = vadd.f32 %v1453, %v3530
    %v3532 = vpop.f32.mrf.mxu0
    %v3533 = vadd.f32 %v1453, %v3532
    %3534 = vmatmul.bf16.gmra.mxu0 %v3456
    %v3535 = vpop.f32.mrf.mxu0
    %v3536 = vadd.f32 %v1453, %v3535
    %v3537 = vpop.f32.mrf.mxu0
    %3538 = vdwg.mxu0
    %v3539 = vld [vmem:[#allocation5 + $0x1] sm:$0xff]
    %v3540 = vld [vmem:[#allocation5 + $0x9] sm:$0xff]
    %v3541 = vld [vmem:[#allocation5 + $0x11] sm:$0x7f]
    %v3542 = vpack.c.bf16 %v3540, %v3539
    %v3543 = vpack.c.bf16 %v3541, %v3541
    %v3544 = vld [vmem:[%s1526] sm:$0xf]
    %v3545 = vld [vmem:[%s1526 + $0x4] sm:$0xf]
    %v3546 = vld [vmem:[%s1526 + $0x8] sm:$0xf]
    %v3547 = vld [vmem:[%s1526 + $0xc] sm:$0xf]
    %v3548 = vld [vmem:[%s1526 + $0x10] sm:$0xf]
    %v3549 = vld [vmem:[%s1526 + $0x14] sm:$0xf]
    %v3550 = vld [vmem:[%s1526 + $0x18] sm:$0xf]
    %v3551 = vld [vmem:[%s1526 + $0x1c] sm:$0xf]
    %v3552 = vld [vmem:[%s1526 + $0x20] sm:$0xf]
    %v3553 = vld [vmem:[%s1526 + $0x24] sm:$0xf]
    %v3554 = vld [vmem:[%s1526 + $0x28] sm:$0xf]
    %v3555 = vld [vmem:[%s1526 + $0x2c] sm:$0xf]
    %v3556 = vld [vmem:[%s1526 + $0x30] sm:$0xf]
    %v3557 = vld [vmem:[%s1526 + $0x34] sm:$0xf]
    %v3558 = vld [vmem:[%s1526 + $0x38] sm:$0xf]
    %v3559 = vld [vmem:[%s1526 + $0x3c] sm:$0xf]
    %v3576 = vunpack.c.l.b16 %v3544
    %v3577 = vunpack.c.l.b16 %v3545
    %v3578 = vunpack.c.l.b16 %v3546
    %v3579 = vunpack.c.l.b16 %v3547
    %v3580 = vunpack.c.l.b16 %v3548
    %v3581 = vunpack.c.l.b16 %v3549
    %v3582 = vunpack.c.l.b16 %v3550
    %v3583 = vunpack.c.l.b16 %v3551
    %v3584 = vunpack.c.l.b16 %v3552
    %v3585 = vunpack.c.l.b16 %v3553
    %v3586 = vunpack.c.l.b16 %v3554
    %v3587 = vunpack.c.l.b16 %v3555
    %v3588 = vunpack.c.l.b16 %v3556
    %v3589 = vunpack.c.l.b16 %v3557
    %v3590 = vunpack.c.l.b16 %v3558
    %v3591 = vunpack.c.l.b16 %v3559
    %v3592 = vpack.c.b16 %v3577, %v3576
    %v3593 = vpack.c.b16 %v3579, %v3578
    %v3594 = vpack.c.b16 %v3581, %v3580
    %v3595 = vpack.c.b16 %v3583, %v3582
    %v3596 = vpack.c.b16 %v3585, %v3584
    %v3597 = vpack.c.b16 %v3587, %v3586
    %v3598 = vpack.c.b16 %v3589, %v3588
    %v3599 = vpack.c.b16 %v3591, %v3590
    %3608 = vmatpush.bf16.msra.mxu0 %v3599
    %3609 = vmatpush.bf16.msra.mxu0 %v3598
    %3610 = vmatpush.bf16.msra.mxu0 %v3597
    %3611 = vmatpush.bf16.msra.mxu0 %v3596
    %3612 = vmatpush.bf16.msra.mxu0 %v3595
    %3613 = vmatpush.bf16.msra.mxu0 %v3594
    %3614 = vmatpush.bf16.msra.mxu0 %v3593
    %3615 = vmatpush.bf16.msra.mxu0 %v3592
    %3616 = vmatmul.bf16.gmra.mxu0 %v3542
    %v3617 = vpop.f32.mrf.mxu0
    %v3618 = vadd.f32 0.0, %v3617
    %v3619 = vpop.f32.mrf.mxu0
    %v3620 = vadd.f32 0.0, %v3619
    %3621 = vmatmul.bf16.gmra.mxu0 %v3543
    %v3622 = vpop.f32.mrf.mxu0
    %v3623 = vadd.f32 0.0, %v3622
    %v3624 = vpop.f32.mrf.mxu0
    %3625 = vdwg.mxu0
    %v3626 = vadd.f32 %v3531, %v3618
    %v3627 = vadd.f32 %v3533, %v3620
    %v3628 = vadd.f32 %v3536, %v3623
    %v3629 = vld [vmem:[#allocation5 + $0x2] sm:$0xff]
    %v3630 = vld [vmem:[#allocation5 + $0xa] sm:$0xff]
    %v3631 = vld [vmem:[#allocation5 + $0x12] sm:$0x7f]
    %v3632 = vpack.c.bf16 %v3630, %v3629
    %v3633 = vpack.c.bf16 %v3631, %v3631
    %v3634 = vld [vmem:[%s1617] sm:$0xf]
    %v3635 = vld [vmem:[%s1617 + $0x4] sm:$0xf]
    %v3636 = vld [vmem:[%s1617 + $0x8] sm:$0xf]
    %v3637 = vld [vmem:[%s1617 + $0xc] sm:$0xf]
    %v3638 = vld [vmem:[%s1617 + $0x10] sm:$0xf]
    %v3639 = vld [vmem:[%s1617 + $0x14] sm:$0xf]
    %v3640 = vld [vmem:[%s1617 + $0x18] sm:$0xf]
    %v3641 = vld [vmem:[%s1617 + $0x1c] sm:$0xf]
    %v3642 = vld [vmem:[%s1617 + $0x20] sm:$0xf]
    %v3643 = vld [vmem:[%s1617 + $0x24] sm:$0xf]
    %v3644 = vld [vmem:[%s1617 + $0x28] sm:$0xf]
    %v3645 = vld [vmem:[%s1617 + $0x2c] sm:$0xf]
    %v3646 = vld [vmem:[%s1617 + $0x30] sm:$0xf]
    %v3647 = vld [vmem:[%s1617 + $0x34] sm:$0xf]
    %v3648 = vld [vmem:[%s1617 + $0x38] sm:$0xf]
    %v3649 = vld [vmem:[%s1617 + $0x3c] sm:$0xf]
    %v3666 = vunpack.c.l.b16 %v3634
    %v3667 = vunpack.c.l.b16 %v3635
    %v3668 = vunpack.c.l.b16 %v3636
    %v3669 = vunpack.c.l.b16 %v3637
    %v3670 = vunpack.c.l.b16 %v3638
    %v3671 = vunpack.c.l.b16 %v3639
    %v3672 = vunpack.c.l.b16 %v3640
    %v3673 = vunpack.c.l.b16 %v3641
    %v3674 = vunpack.c.l.b16 %v3642
    %v3675 = vunpack.c.l.b16 %v3643
    %v3676 = vunpack.c.l.b16 %v3644
    %v3677 = vunpack.c.l.b16 %v3645
    %v3678 = vunpack.c.l.b16 %v3646
    %v3679 = vunpack.c.l.b16 %v3647
    %v3680 = vunpack.c.l.b16 %v3648
    %v3681 = vunpack.c.l.b16 %v3649
    %v3682 = vpack.c.b16 %v3667, %v3666
    %v3683 = vpack.c.b16 %v3669, %v3668
    %v3684 = vpack.c.b16 %v3671, %v3670
    %v3685 = vpack.c.b16 %v3673, %v3672
    %v3686 = vpack.c.b16 %v3675, %v3674
    %v3687 = vpack.c.b16 %v3677, %v3676
    %v3688 = vpack.c.b16 %v3679, %v3678
    %v3689 = vpack.c.b16 %v3681, %v3680
    %3698 = vmatpush.bf16.msra.mxu0 %v3689
    %3699 = vmatpush.bf16.msra.mxu0 %v3688
    %3700 = vmatpush.bf16.msra.mxu0 %v3687
    %3701 = vmatpush.bf16.msra.mxu0 %v3686
    %3702 = vmatpush.bf16.msra.mxu0 %v3685
    %3703 = vmatpush.bf16.msra.mxu0 %v3684
    %3704 = vmatpush.bf16.msra.mxu0 %v3683
    %3705 = vmatpush.bf16.msra.mxu0 %v3682
    %3706 = vmatmul.bf16.gmra.mxu0 %v3632
    %v3707 = vpop.f32.mrf.mxu0
    %v3708 = vadd.f32 0.0, %v3707
    %v3709 = vpop.f32.mrf.mxu0
    %v3710 = vadd.f32 0.0, %v3709
    %3711 = vmatmul.bf16.gmra.mxu0 %v3633
    %v3712 = vpop.f32.mrf.mxu0
    %v3713 = vadd.f32 0.0, %v3712
    %v3714 = vpop.f32.mrf.mxu0
    %3715 = vdwg.mxu0
    %v3716 = vadd.f32 %v3626, %v3708
    %v3717 = vadd.f32 %v3627, %v3710
    %v3718 = vadd.f32 %v3628, %v3713
    %v3719 = vld [vmem:[#allocation5 + $0x3] sm:$0xff]
    %v3720 = vld [vmem:[#allocation5 + $0xb] sm:$0xff]
    %v3721 = vld [vmem:[#allocation5 + $0x13] sm:$0x7f]
    %v3722 = vpack.c.bf16 %v3720, %v3719
    %v3723 = vpack.c.bf16 %v3721, %v3721
    %v3724 = vld [vmem:[%s1708] sm:$0xf]
    %v3725 = vld [vmem:[%s1708 + $0x4] sm:$0xf]
    %v3726 = vld [vmem:[%s1708 + $0x8] sm:$0xf]
    %v3727 = vld [vmem:[%s1708 + $0xc] sm:$0xf]
    %v3728 = vld [vmem:[%s1708 + $0x10] sm:$0xf]
    %v3729 = vld [vmem:[%s1708 + $0x14] sm:$0xf]
    %v3730 = vld [vmem:[%s1708 + $0x18] sm:$0xf]
    %v3731 = vld [vmem:[%s1708 + $0x1c] sm:$0xf]
    %v3732 = vld [vmem:[%s1708 + $0x20] sm:$0xf]
    %v3733 = vld [vmem:[%s1708 + $0x24] sm:$0xf]
    %v3734 = vld [vmem:[%s1708 + $0x28] sm:$0xf]
    %v3735 = vld [vmem:[%s1708 + $0x2c] sm:$0xf]
    %v3736 = vld [vmem:[%s1708 + $0x30] sm:$0xf]
    %v3737 = vld [vmem:[%s1708 + $0x34] sm:$0xf]
    %v3738 = vld [vmem:[%s1708 + $0x38] sm:$0xf]
    %v3739 = vld [vmem:[%s1708 + $0x3c] sm:$0xf]
    %v3756 = vunpack.c.l.b16 %v3724
    %v3757 = vunpack.c.l.b16 %v3725
    %v3758 = vunpack.c.l.b16 %v3726
    %v3759 = vunpack.c.l.b16 %v3727
    %v3760 = vunpack.c.l.b16 %v3728
    %v3761 = vunpack.c.l.b16 %v3729
    %v3762 = vunpack.c.l.b16 %v3730
    %v3763 = vunpack.c.l.b16 %v3731
    %v3764 = vunpack.c.l.b16 %v3732
    %v3765 = vunpack.c.l.b16 %v3733
    %v3766 = vunpack.c.l.b16 %v3734
    %v3767 = vunpack.c.l.b16 %v3735
    %v3768 = vunpack.c.l.b16 %v3736
    %v3769 = vunpack.c.l.b16 %v3737
    %v3770 = vunpack.c.l.b16 %v3738
    %v3771 = vunpack.c.l.b16 %v3739
    %v3772 = vpack.c.b16 %v3757, %v3756
    %v3773 = vpack.c.b16 %v3759, %v3758
    %v3774 = vpack.c.b16 %v3761, %v3760
    %v3775 = vpack.c.b16 %v3763, %v3762
    %v3776 = vpack.c.b16 %v3765, %v3764
    %v3777 = vpack.c.b16 %v3767, %v3766
    %v3778 = vpack.c.b16 %v3769, %v3768
    %v3779 = vpack.c.b16 %v3771, %v3770
    %3788 = vmatpush.bf16.msra.mxu0 %v3779
    %3789 = vmatpush.bf16.msra.mxu0 %v3778
    %3790 = vmatpush.bf16.msra.mxu0 %v3777
    %3791 = vmatpush.bf16.msra.mxu0 %v3776
    %3792 = vmatpush.bf16.msra.mxu0 %v3775
    %3793 = vmatpush.bf16.msra.mxu0 %v3774
    %3794 = vmatpush.bf16.msra.mxu0 %v3773
    %3795 = vmatpush.bf16.msra.mxu0 %v3772
    %3796 = vmatmul.bf16.gmra.mxu0 %v3722
    %v3797 = vpop.f32.mrf.mxu0
    %v3798 = vadd.f32 0.0, %v3797
    %v3799 = vpop.f32.mrf.mxu0
    %v3800 = vadd.f32 0.0, %v3799
    %3801 = vmatmul.bf16.gmra.mxu0 %v3723
    %v3802 = vpop.f32.mrf.mxu0
    %v3803 = vadd.f32 0.0, %v3802
    %v3804 = vpop.f32.mrf.mxu0
    %3805 = vdwg.mxu0
    %v3806 = vadd.f32 %v3716, %v3798
    %v3807 = vadd.f32 %v3717, %v3800
    %v3808 = vadd.f32 %v3718, %v3803
    %v3809 = vld [vmem:[#allocation5 + $0x4] sm:$0xff]
    %v3810 = vld [vmem:[#allocation5 + $0xc] sm:$0xff]
    %v3811 = vld [vmem:[#allocation5 + $0x14] sm:$0x7f]
    %v3812 = vpack.c.bf16 %v3810, %v3809
    %v3813 = vpack.c.bf16 %v3811, %v3811
    %v3814 = vld [vmem:[%s1799] sm:$0xf]
    %v3815 = vld [vmem:[%s1799 + $0x4] sm:$0xf]
    %v3816 = vld [vmem:[%s1799 + $0x8] sm:$0xf]
    %v3817 = vld [vmem:[%s1799 + $0xc] sm:$0xf]
    %v3818 = vld [vmem:[%s1799 + $0x10] sm:$0xf]
    %v3819 = vld [vmem:[%s1799 + $0x14] sm:$0xf]
    %v3820 = vld [vmem:[%s1799 + $0x18] sm:$0xf]
    %v3821 = vld [vmem:[%s1799 + $0x1c] sm:$0xf]
    %v3822 = vld [vmem:[%s1799 + $0x20] sm:$0xf]
    %v3823 = vld [vmem:[%s1799 + $0x24] sm:$0xf]
    %v3824 = vld [vmem:[%s1799 + $0x28] sm:$0xf]
    %v3825 = vld [vmem:[%s1799 + $0x2c] sm:$0xf]
    %v3826 = vld [vmem:[%s1799 + $0x30] sm:$0xf]
    %v3827 = vld [vmem:[%s1799 + $0x34] sm:$0xf]
    %v3828 = vld [vmem:[%s1799 + $0x38] sm:$0xf]
    %v3829 = vld [vmem:[%s1799 + $0x3c] sm:$0xf]
    %v3846 = vunpack.c.l.b16 %v3814
    %v3847 = vunpack.c.l.b16 %v3815
    %v3848 = vunpack.c.l.b16 %v3816
    %v3849 = vunpack.c.l.b16 %v3817
    %v3850 = vunpack.c.l.b16 %v3818
    %v3851 = vunpack.c.l.b16 %v3819
    %v3852 = vunpack.c.l.b16 %v3820
    %v3853 = vunpack.c.l.b16 %v3821
    %v3854 = vunpack.c.l.b16 %v3822
    %v3855 = vunpack.c.l.b16 %v3823
    %v3856 = vunpack.c.l.b16 %v3824
    %v3857 = vunpack.c.l.b16 %v3825
    %v3858 = vunpack.c.l.b16 %v3826
    %v3859 = vunpack.c.l.b16 %v3827
    %v3860 = vunpack.c.l.b16 %v3828
    %v3861 = vunpack.c.l.b16 %v3829
    %v3862 = vpack.c.b16 %v3847, %v3846
    %v3863 = vpack.c.b16 %v3849, %v3848
    %v3864 = vpack.c.b16 %v3851, %v3850
    %v3865 = vpack.c.b16 %v3853, %v3852
    %v3866 = vpack.c.b16 %v3855, %v3854
    %v3867 = vpack.c.b16 %v3857, %v3856
    %v3868 = vpack.c.b16 %v3859, %v3858
    %v3869 = vpack.c.b16 %v3861, %v3860
    %3878 = vmatpush.bf16.msra.mxu0 %v3869
    %3879 = vmatpush.bf16.msra.mxu0 %v3868
    %3880 = vmatpush.bf16.msra.mxu0 %v3867
    %3881 = vmatpush.bf16.msra.mxu0 %v3866
    %3882 = vmatpush.bf16.msra.mxu0 %v3865
    %3883 = vmatpush.bf16.msra.mxu0 %v3864
    %3884 = vmatpush.bf16.msra.mxu0 %v3863
    %3885 = vmatpush.bf16.msra.mxu0 %v3862
    %3886 = vmatmul.bf16.gmra.mxu0 %v3812
    %v3887 = vpop.f32.mrf.mxu0
    %v3888 = vadd.f32 0.0, %v3887
    %v3889 = vpop.f32.mrf.mxu0
    %v3890 = vadd.f32 0.0, %v3889
    %3891 = vmatmul.bf16.gmra.mxu0 %v3813
    %v3892 = vpop.f32.mrf.mxu0
    %v3893 = vadd.f32 0.0, %v3892
    %v3894 = vpop.f32.mrf.mxu0
    %3895 = vdwg.mxu0
    %v3896 = vadd.f32 %v3806, %v3888
    %v3897 = vadd.f32 %v3807, %v3890
    %v3898 = vadd.f32 %v3808, %v3893
    %v3899 = vld [vmem:[#allocation5 + $0x5] sm:$0xff]
    %v3900 = vld [vmem:[#allocation5 + $0xd] sm:$0xff]
    %v3901 = vld [vmem:[#allocation5 + $0x15] sm:$0x7f]
    %v3902 = vpack.c.bf16 %v3900, %v3899
    %v3903 = vpack.c.bf16 %v3901, %v3901
    %v3904 = vld [vmem:[%s1890] sm:$0xf]
    %v3905 = vld [vmem:[%s1890 + $0x4] sm:$0xf]
    %v3906 = vld [vmem:[%s1890 + $0x8] sm:$0xf]
    %v3907 = vld [vmem:[%s1890 + $0xc] sm:$0xf]
    %v3908 = vld [vmem:[%s1890 + $0x10] sm:$0xf]
    %v3909 = vld [vmem:[%s1890 + $0x14] sm:$0xf]
    %v3910 = vld [vmem:[%s1890 + $0x18] sm:$0xf]
    %v3911 = vld [vmem:[%s1890 + $0x1c] sm:$0xf]
    %v3912 = vld [vmem:[%s1890 + $0x20] sm:$0xf]
    %v3913 = vld [vmem:[%s1890 + $0x24] sm:$0xf]
    %v3914 = vld [vmem:[%s1890 + $0x28] sm:$0xf]
    %v3915 = vld [vmem:[%s1890 + $0x2c] sm:$0xf]
    %v3916 = vld [vmem:[%s1890 + $0x30] sm:$0xf]
    %v3917 = vld [vmem:[%s1890 + $0x34] sm:$0xf]
    %v3918 = vld [vmem:[%s1890 + $0x38] sm:$0xf]
    %v3919 = vld [vmem:[%s1890 + $0x3c] sm:$0xf]
    %v3936 = vunpack.c.l.b16 %v3904
    %v3937 = vunpack.c.l.b16 %v3905
    %v3938 = vunpack.c.l.b16 %v3906
    %v3939 = vunpack.c.l.b16 %v3907
    %v3940 = vunpack.c.l.b16 %v3908
    %v3941 = vunpack.c.l.b16 %v3909
    %v3942 = vunpack.c.l.b16 %v3910
    %v3943 = vunpack.c.l.b16 %v3911
    %v3944 = vunpack.c.l.b16 %v3912
    %v3945 = vunpack.c.l.b16 %v3913
    %v3946 = vunpack.c.l.b16 %v3914
    %v3947 = vunpack.c.l.b16 %v3915
    %v3948 = vunpack.c.l.b16 %v3916
    %v3949 = vunpack.c.l.b16 %v3917
    %v3950 = vunpack.c.l.b16 %v3918
    %v3951 = vunpack.c.l.b16 %v3919
    %v3952 = vpack.c.b16 %v3937, %v3936
    %v3953 = vpack.c.b16 %v3939, %v3938
    %v3954 = vpack.c.b16 %v3941, %v3940
    %v3955 = vpack.c.b16 %v3943, %v3942
    %v3956 = vpack.c.b16 %v3945, %v3944
    %v3957 = vpack.c.b16 %v3947, %v3946
    %v3958 = vpack.c.b16 %v3949, %v3948
    %v3959 = vpack.c.b16 %v3951, %v3950
    %3968 = vmatpush.bf16.msra.mxu0 %v3959
    %3969 = vmatpush.bf16.msra.mxu0 %v3958
    %3970 = vmatpush.bf16.msra.mxu0 %v3957
    %3971 = vmatpush.bf16.msra.mxu0 %v3956
    %3972 = vmatpush.bf16.msra.mxu0 %v3955
    %3973 = vmatpush.bf16.msra.mxu0 %v3954
    %3974 = vmatpush.bf16.msra.mxu0 %v3953
    %3975 = vmatpush.bf16.msra.mxu0 %v3952
    %3976 = vmatmul.bf16.gmra.mxu0 %v3902
    %v3977 = vpop.f32.mrf.mxu0
    %v3978 = vadd.f32 0.0, %v3977
    %v3979 = vpop.f32.mrf.mxu0
    %v3980 = vadd.f32 0.0, %v3979
    %3981 = vmatmul.bf16.gmra.mxu0 %v3903
    %v3982 = vpop.f32.mrf.mxu0
    %v3983 = vadd.f32 0.0, %v3982
    %v3984 = vpop.f32.mrf.mxu0
    %3985 = vdwg.mxu0
    %v3986 = vadd.f32 %v3896, %v3978
    %v3987 = vadd.f32 %v3897, %v3980
    %v3988 = vadd.f32 %v3898, %v3983
    %v3989 = vld [vmem:[#allocation5 + $0x6] sm:$0xff]
    %v3990 = vld [vmem:[#allocation5 + $0xe] sm:$0xff]
    %v3991 = vld [vmem:[#allocation5 + $0x16] sm:$0x7f]
    %v3992 = vpack.c.bf16 %v3990, %v3989
    %v3993 = vpack.c.bf16 %v3991, %v3991
    %v3994 = vld [vmem:[%s1981] sm:$0xf]
    %v3995 = vld [vmem:[%s1981 + $0x4] sm:$0xf]
    %v3996 = vld [vmem:[%s1981 + $0x8] sm:$0xf]
    %v3997 = vld [vmem:[%s1981 + $0xc] sm:$0xf]
    %v3998 = vld [vmem:[%s1981 + $0x10] sm:$0xf]
    %v3999 = vld [vmem:[%s1981 + $0x14] sm:$0xf]
    %v4000 = vld [vmem:[%s1981 + $0x18] sm:$0xf]
    %v4001 = vld [vmem:[%s1981 + $0x1c] sm:$0xf]
    %v4002 = vld [vmem:[%s1981 + $0x20] sm:$0xf]
    %v4003 = vld [vmem:[%s1981 + $0x24] sm:$0xf]
    %v4004 = vld [vmem:[%s1981 + $0x28] sm:$0xf]
    %v4005 = vld [vmem:[%s1981 + $0x2c] sm:$0xf]
    %v4006 = vld [vmem:[%s1981 + $0x30] sm:$0xf]
    %v4007 = vld [vmem:[%s1981 + $0x34] sm:$0xf]
    %v4008 = vld [vmem:[%s1981 + $0x38] sm:$0xf]
    %v4009 = vld [vmem:[%s1981 + $0x3c] sm:$0xf]
    %v4026 = vunpack.c.l.b16 %v3994
    %v4027 = vunpack.c.l.b16 %v3995
    %v4028 = vunpack.c.l.b16 %v3996
    %v4029 = vunpack.c.l.b16 %v3997
    %v4030 = vunpack.c.l.b16 %v3998
    %v4031 = vunpack.c.l.b16 %v3999
    %v4032 = vunpack.c.l.b16 %v4000
    %v4033 = vunpack.c.l.b16 %v4001
    %v4034 = vunpack.c.l.b16 %v4002
    %v4035 = vunpack.c.l.b16 %v4003
    %v4036 = vunpack.c.l.b16 %v4004
    %v4037 = vunpack.c.l.b16 %v4005
    %v4038 = vunpack.c.l.b16 %v4006
    %v4039 = vunpack.c.l.b16 %v4007
    %v4040 = vunpack.c.l.b16 %v4008
    %v4041 = vunpack.c.l.b16 %v4009
    %v4042 = vpack.c.b16 %v4027, %v4026
    %v4043 = vpack.c.b16 %v4029, %v4028
    %v4044 = vpack.c.b16 %v4031, %v4030
    %v4045 = vpack.c.b16 %v4033, %v4032
    %v4046 = vpack.c.b16 %v4035, %v4034
    %v4047 = vpack.c.b16 %v4037, %v4036
    %v4048 = vpack.c.b16 %v4039, %v4038
    %v4049 = vpack.c.b16 %v4041, %v4040
    %4058 = vmatpush.bf16.msra.mxu0 %v4049
    %4059 = vmatpush.bf16.msra.mxu0 %v4048
    %4060 = vmatpush.bf16.msra.mxu0 %v4047
    %4061 = vmatpush.bf16.msra.mxu0 %v4046
    %4062 = vmatpush.bf16.msra.mxu0 %v4045
    %4063 = vmatpush.bf16.msra.mxu0 %v4044
    %4064 = vmatpush.bf16.msra.mxu0 %v4043
    %4065 = vmatpush.bf16.msra.mxu0 %v4042
    %4066 = vmatmul.bf16.gmra.mxu0 %v3992
    %v4067 = vpop.f32.mrf.mxu0
    %v4068 = vadd.f32 0.0, %v4067
    %v4069 = vpop.f32.mrf.mxu0
    %v4070 = vadd.f32 0.0, %v4069
    %4071 = vmatmul.bf16.gmra.mxu0 %v3993
    %v4072 = vpop.f32.mrf.mxu0
    %v4073 = vadd.f32 0.0, %v4072
    %v4074 = vpop.f32.mrf.mxu0
    %4075 = vdwg.mxu0
    %v4076 = vadd.f32 %v3986, %v4068
    %v4077 = vadd.f32 %v3987, %v4070
    %v4078 = vadd.f32 %v3988, %v4073
    %v4079 = vld [vmem:[#allocation5 + $0x7] sm:$0xff]
    %v4080 = vld [vmem:[#allocation5 + $0xf] sm:$0xff]
    %v4081 = vld [vmem:[#allocation5 + $0x17] sm:$0x7f]
    %v4082 = vpack.c.bf16 %v4080, %v4079
    %v4083 = vpack.c.bf16 %v4081, %v4081
    %v4084 = vld [vmem:[%s2072] sm:$0xf]
    %v4085 = vld [vmem:[%s2072 + $0x4] sm:$0xf]
    %v4086 = vld [vmem:[%s2072 + $0x8] sm:$0xf]
    %v4087 = vld [vmem:[%s2072 + $0xc] sm:$0xf]
    %v4088 = vld [vmem:[%s2072 + $0x10] sm:$0xf]
    %v4089 = vld [vmem:[%s2072 + $0x14] sm:$0xf]
    %v4090 = vld [vmem:[%s2072 + $0x18] sm:$0xf]
    %v4091 = vld [vmem:[%s2072 + $0x1c] sm:$0xf]
    %v4092 = vld [vmem:[%s2072 + $0x20] sm:$0xf]
    %v4093 = vld [vmem:[%s2072 + $0x24] sm:$0xf]
    %v4094 = vld [vmem:[%s2072 + $0x28] sm:$0xf]
    %v4095 = vld [vmem:[%s2072 + $0x2c] sm:$0xf]
    %v4096 = vld [vmem:[%s2072 + $0x30] sm:$0xf]
    %v4097 = vld [vmem:[%s2072 + $0x34] sm:$0xf]
    %v4098 = vld [vmem:[%s2072 + $0x38] sm:$0xf]
    %v4099 = vld [vmem:[%s2072 + $0x3c] sm:$0xf]
    %v4116 = vunpack.c.l.b16 %v4084
    %v4117 = vunpack.c.l.b16 %v4085
    %v4118 = vunpack.c.l.b16 %v4086
    %v4119 = vunpack.c.l.b16 %v4087
    %v4120 = vunpack.c.l.b16 %v4088
    %v4121 = vunpack.c.l.b16 %v4089
    %v4122 = vunpack.c.l.b16 %v4090
    %v4123 = vunpack.c.l.b16 %v4091
    %v4124 = vunpack.c.l.b16 %v4092
    %v4125 = vunpack.c.l.b16 %v4093
    %v4126 = vunpack.c.l.b16 %v4094
    %v4127 = vunpack.c.l.b16 %v4095
    %v4128 = vunpack.c.l.b16 %v4096
    %v4129 = vunpack.c.l.b16 %v4097
    %v4130 = vunpack.c.l.b16 %v4098
    %v4131 = vunpack.c.l.b16 %v4099
    %v4132 = vpack.c.b16 %v4117, %v4116
    %v4133 = vpack.c.b16 %v4119, %v4118
    %v4134 = vpack.c.b16 %v4121, %v4120
    %v4135 = vpack.c.b16 %v4123, %v4122
    %v4136 = vpack.c.b16 %v4125, %v4124
    %v4137 = vpack.c.b16 %v4127, %v4126
    %v4138 = vpack.c.b16 %v4129, %v4128
    %v4139 = vpack.c.b16 %v4131, %v4130
    %4148 = vmatpush.bf16.msra.mxu0 %v4139
    %4149 = vmatpush.bf16.msra.mxu0 %v4138
    %4150 = vmatpush.bf16.msra.mxu0 %v4137
    %4151 = vmatpush.bf16.msra.mxu0 %v4136
    %4152 = vmatpush.bf16.msra.mxu0 %v4135
    %4153 = vmatpush.bf16.msra.mxu0 %v4134
    %4154 = vmatpush.bf16.msra.mxu0 %v4133
    %4155 = vmatpush.bf16.msra.mxu0 %v4132
    %4156 = vmatmul.bf16.gmra.mxu0 %v4082
    %v4157 = vpop.f32.mrf.mxu0
    %v4158 = vadd.f32 0.0, %v4157
    %v4159 = vpop.f32.mrf.mxu0
    %v4160 = vadd.f32 0.0, %v4159
    %4161 = vmatmul.bf16.gmra.mxu0 %v4083
    %v4162 = vpop.f32.mrf.mxu0
    %v4163 = vadd.f32 0.0, %v4162
    %v4164 = vpop.f32.mrf.mxu0
    %4165 = vdwg.mxu0
    %v4166 = vadd.f32 %v4076, %v4158
    %v4167 = vadd.f32 %v4077, %v4160
    %v4168 = vadd.f32 %v4078, %v4163
    %v4169 = vmax.f32 %v4166, 0.0
    %v4170 = vmax.f32 %v4167, 0.0
    %v4171 = vmax.f32 %v4168, 0.0
    %v4175 = vrot.slane %v4169, 1
    %v4176 = vrot.slane %v4170, 1
    %v4177 = vsel %vm1293, %v4175, %v4176
    %v4178 = vrot.slane %v4171, 1
    %v4179 = vsel %vm1293, %v4176, %v4178
    %v4183 = vmax.f32 %v4169, %v4177
    %v4184 = vmax.f32 %v4170, %v4179
    %v4185 = vmax.f32 %v4171, %v4178
    %v4186 = vrot.slane %v4169, 2
    %v4187 = vrot.slane %v4170, 2
    %v4188 = vsel %vm1341, %v4186, %v4187
    %v4189 = vrot.slane %v4171, 2
    %v4190 = vsel %vm1341, %v4187, %v4189
    %v4194 = vmax.f32 %v4183, %v4188
    %v4195 = vmax.f32 %v4184, %v4190
    %v4196 = vmax.f32 %v4185, %v4189
    %v4197 = vpack.c.bf16 %v4195, %v4194
    %v4198 = vpack.c.bf16 %v4196, %v4196
    %v4200 = vand.u32 %v4198, %v2195
    %4202 = vmatpush.bf16.msra.mxu0 0
    %4203 = vmatpush.bf16.msra.mxu0 0
    %4204 = vmatpush.bf16.msra.mxu0 0
    %4205 = vmatpush.bf16.msra.mxu0 0
    %4206 = vmatpush.bf16.msra.mxu0 0
    %4207 = vmatpush.bf16.msra.mxu0 0
    %4208 = vmatpush.bf16.msra.mxu0 %v4200
    %4209 = vmatpush.bf16.msra.mxu0 %v4197
    %4210 = vmatmul.bf16.gmra.mxu0 %v2190
    %v4211 = vpop.f32.mrf.mxu0
    %v4212 = vadd.f32 0.0, %v4211
    %v4213 = vpop.f32.mrf.mxu0
    %4214 = vdwg.mxu0
    %s4215 = scalar_lea.vmem [#allocation6], 8
    %4216 = vst [vmem:[%s4215] sm:$0x7f] %v4212
    %s4217 = smul.u32 4, 7
    %s4218 = smul.u32 %s4217, 16
    %s4219 = smul.u32 %s4218, 8
    %s4220 = sshll.u32 %s4219, 4
    %4221 = dma.done [#allocation4], %s4220
    %s4222 = smul.u32 4, 128
    %s4223 = smul.u32 %s4222, 1
    %s4224 = sshll.u32 %s4223, 4
    %4225 = dma.done %s129, %s4224
    %v4226 = vld [vmem:[#allocation15] sm:$0xff]
    %v4227 = vld [vmem:[#allocation16] sm:$0x1]
    %v4228 = vld [vmem:[#allocation6] sm:$0x7f]
    %v4229 = vld [vmem:[#allocation6 + $0x8] sm:$0x7f]
    %v4230 = vpack.c.bf16 %v4228, %v4228
    %v4231 = vpack.c.bf16 %v4229, %v4229
    %v4232 = vld [vmem:[#allocation2] sm:$0xff]
    %v4233 = vld [vmem:[#allocation2 + $0x8] sm:$0xff]
    %v4234 = vld [vmem:[#allocation2 + $0x10] sm:$0xff]
    %v4235 = vld [vmem:[#allocation2 + $0x18] sm:$0xff]
    %v4236 = vld [vmem:[#allocation2 + $0x20] sm:$0xff]
    %v4237 = vld [vmem:[#allocation2 + $0x28] sm:$0xff]
    %v4238 = vld [vmem:[#allocation2 + $0x30] sm:$0xff]
    %v4239 = vld [vmem:[#allocation2 + $0x38] sm:$0xff]
    %v4240 = vld [vmem:[#allocation2 + $0x40] sm:$0xff]
    %v4241 = vld [vmem:[#allocation2 + $0x48] sm:$0xff]
    %v4242 = vld [vmem:[#allocation2 + $0x50] sm:$0xff]
    %v4243 = vld [vmem:[#allocation2 + $0x58] sm:$0xff]
    %v4244 = vld [vmem:[#allocation2 + $0x60] sm:$0xff]
    %v4245 = vld [vmem:[#allocation2 + $0x68] sm:$0xff]
    %v4246 = vld [vmem:[#allocation2 + $0x70] sm:$0xff]
    %v4247 = vld [vmem:[#allocation2 + $0x78] sm:$0xff]
    %v4248 = vld [vmem:[#allocation2 + $0x80] sm:$0xff]
    %v4249 = vld [vmem:[#allocation2 + $0x88] sm:$0xff]
    %v4250 = vld [vmem:[#allocation2 + $0x90] sm:$0xff]
    %v4251 = vld [vmem:[#allocation2 + $0x98] sm:$0xff]
    %v4252 = vld [vmem:[#allocation2 + $0xa0] sm:$0xff]
    %v4253 = vld [vmem:[#allocation2 + $0xa8] sm:$0xff]
    %v4254 = vld [vmem:[#allocation2 + $0xb0] sm:$0xff]
    %v4255 = vld [vmem:[#allocation2 + $0xb8] sm:$0xff]
    %v4256 = vld [vmem:[#allocation2 + $0xc0] sm:$0xff]
    %v4257 = vld [vmem:[#allocation2 + $0xc8] sm:$0xff]
    %v4258 = vld [vmem:[#allocation2 + $0xd0] sm:$0xff]
    %v4259 = vld [vmem:[#allocation2 + $0xd8] sm:$0xff]
    %v4260 = vld [vmem:[#allocation2 + $0xe0] sm:$0xff]
    %v4261 = vld [vmem:[#allocation2 + $0xe8] sm:$0xff]
    %v4262 = vld [vmem:[#allocation2 + $0xf0] sm:$0xff]
    %v4263 = vld [vmem:[#allocation2 + $0xf8] sm:$0xff]
    %v4264 = vld [vmem:[#allocation2 + $0x100] sm:$0xff]
    %v4265 = vld [vmem:[#allocation2 + $0x108] sm:$0xff]
    %v4266 = vld [vmem:[#allocation2 + $0x110] sm:$0xff]
    %v4267 = vld [vmem:[#allocation2 + $0x118] sm:$0xff]
    %v4268 = vld [vmem:[#allocation2 + $0x120] sm:$0xff]
    %v4269 = vld [vmem:[#allocation2 + $0x128] sm:$0xff]
    %v4270 = vld [vmem:[#allocation2 + $0x130] sm:$0xff]
    %v4271 = vld [vmem:[#allocation2 + $0x138] sm:$0xff]
    %v4272 = vld [vmem:[#allocation2 + $0x140] sm:$0xff]
    %v4273 = vld [vmem:[#allocation2 + $0x148] sm:$0xff]
    %v4274 = vld [vmem:[#allocation2 + $0x150] sm:$0xff]
    %v4275 = vld [vmem:[#allocation2 + $0x158] sm:$0xff]
    %v4276 = vld [vmem:[#allocation2 + $0x160] sm:$0xff]
    %v4277 = vld [vmem:[#allocation2 + $0x168] sm:$0xff]
    %v4278 = vld [vmem:[#allocation2 + $0x170] sm:$0xff]
    %v4279 = vld [vmem:[#allocation2 + $0x178] sm:$0xff]
    %v4280 = vld [vmem:[#allocation2 + $0x180] sm:$0xff]
    %v4281 = vld [vmem:[#allocation2 + $0x188] sm:$0xff]
    %v4282 = vld [vmem:[#allocation2 + $0x190] sm:$0xff]
    %v4283 = vld [vmem:[#allocation2 + $0x198] sm:$0xff]
    %v4284 = vld [vmem:[#allocation2 + $0x1a0] sm:$0xff]
    %v4285 = vld [vmem:[#allocation2 + $0x1a8] sm:$0xff]
    %v4286 = vld [vmem:[#allocation2 + $0x1b0] sm:$0xff]
    %v4287 = vld [vmem:[#allocation2 + $0x1b8] sm:$0xff]
    %v4288 = vld [vmem:[#allocation2 + $0x1c0] sm:$0xff]
    %v4289 = vld [vmem:[#allocation2 + $0x1c8] sm:$0xff]
    %v4290 = vld [vmem:[#allocation2 + $0x1d0] sm:$0xff]
    %v4291 = vld [vmem:[#allocation2 + $0x1d8] sm:$0xff]
    %v4292 = vld [vmem:[#allocation2 + $0x1e0] sm:$0xff]
    %v4293 = vld [vmem:[#allocation2 + $0x1e8] sm:$0xff]
    %v4294 = vld [vmem:[#allocation2 + $0x1f0] sm:$0xff]
    %v4295 = vld [vmem:[#allocation2 + $0x1f8] sm:$0xff]
    %v4297 = vperm.slane %v4226, 0
    %v4298 = vperm.slane %v4226, 1
    %v4299 = vperm.slane %v4226, 2
    %v4300 = vperm.slane %v4226, 3
    %v4301 = vperm.slane %v4226, 4
    %v4302 = vperm.slane %v4226, 5
    %v4303 = vperm.slane %v4226, 6
    %v4304 = vperm.slane %v4226, 7
    %v4315 = vunpack.c.l.b16 %v4230
    %v4316 = vunpack.c.l.b16 %v4231
    %v4317 = vrot.slane %v4316, 7
    %vm4318 = vcmask 1041409
    %v4319 = vsel %vm4318, %v4317, %v4315
    %v4320 = vpack.c.b16 %v4319, %v4319
    %v4386 = vunpack.c.l.b16 %v4232
    %v4387 = vunpack.c.h.b16 %v4232
    %v4388 = vunpack.c.l.b16 %v4233
    %v4389 = vunpack.c.h.b16 %v4233
    %v4390 = vunpack.c.l.b16 %v4234
    %v4391 = vunpack.c.h.b16 %v4234
    %v4392 = vunpack.c.l.b16 %v4235
    %v4393 = vunpack.c.h.b16 %v4235
    %v4394 = vunpack.c.l.b16 %v4236
    %v4395 = vunpack.c.h.b16 %v4236
    %v4396 = vunpack.c.l.b16 %v4237
    %v4397 = vunpack.c.h.b16 %v4237
    %v4398 = vunpack.c.l.b16 %v4238
    %v4399 = vunpack.c.h.b16 %v4238
    %v4400 = vunpack.c.l.b16 %v4239
    %v4401 = vunpack.c.h.b16 %v4239
    %v4402 = vunpack.c.l.b16 %v4240
    %v4403 = vunpack.c.h.b16 %v4240
    %v4404 = vunpack.c.l.b16 %v4241
    %v4405 = vunpack.c.h.b16 %v4241
    %v4406 = vunpack.c.l.b16 %v4242
    %v4407 = vunpack.c.h.b16 %v4242
    %v4408 = vunpack.c.l.b16 %v4243
    %v4409 = vunpack.c.h.b16 %v4243
    %v4410 = vunpack.c.l.b16 %v4244
    %v4411 = vunpack.c.h.b16 %v4244
    %v4412 = vunpack.c.l.b16 %v4245
    %v4413 = vunpack.c.h.b16 %v4245
    %v4414 = vunpack.c.l.b16 %v4246
    %v4415 = vunpack.c.h.b16 %v4246
    %v4416 = vunpack.c.l.b16 %v4247
    %v4417 = vunpack.c.h.b16 %v4247
    %v4418 = vunpack.c.l.b16 %v4248
    %v4419 = vunpack.c.h.b16 %v4248
    %v4420 = vunpack.c.l.b16 %v4249
    %v4421 = vunpack.c.h.b16 %v4249
    %v4422 = vunpack.c.l.b16 %v4250
    %v4423 = vunpack.c.h.b16 %v4250
    %v4424 = vunpack.c.l.b16 %v4251
    %v4425 = vunpack.c.h.b16 %v4251
    %v4426 = vunpack.c.l.b16 %v4252
    %v4427 = vunpack.c.h.b16 %v4252
    %v4428 = vunpack.c.l.b16 %v4253
    %v4429 = vunpack.c.h.b16 %v4253
    %v4430 = vunpack.c.l.b16 %v4254
    %v4431 = vunpack.c.h.b16 %v4254
    %v4432 = vunpack.c.l.b16 %v4255
    %v4433 = vunpack.c.h.b16 %v4255
    %v4434 = vunpack.c.l.b16 %v4256
    %v4435 = vunpack.c.h.b16 %v4256
    %v4436 = vunpack.c.l.b16 %v4257
    %v4437 = vunpack.c.h.b16 %v4257
    %v4438 = vunpack.c.l.b16 %v4258
    %v4439 = vunpack.c.h.b16 %v4258
    %v4440 = vunpack.c.l.b16 %v4259
    %v4441 = vunpack.c.h.b16 %v4259
    %v4442 = vunpack.c.l.b16 %v4260
    %v4443 = vunpack.c.h.b16 %v4260
    %v4444 = vunpack.c.l.b16 %v4261
    %v4445 = vunpack.c.h.b16 %v4261
    %v4446 = vunpack.c.l.b16 %v4262
    %v4447 = vunpack.c.h.b16 %v4262
    %v4448 = vunpack.c.l.b16 %v4263
    %v4449 = vunpack.c.h.b16 %v4263
    %v4450 = vunpack.c.l.b16 %v4264
    %v4451 = vunpack.c.h.b16 %v4264
    %v4452 = vunpack.c.l.b16 %v4265
    %v4453 = vunpack.c.h.b16 %v4265
    %v4454 = vunpack.c.l.b16 %v4266
    %v4455 = vunpack.c.h.b16 %v4266
    %v4456 = vunpack.c.l.b16 %v4267
    %v4457 = vunpack.c.h.b16 %v4267
    %v4458 = vunpack.c.l.b16 %v4268
    %v4459 = vunpack.c.h.b16 %v4268
    %v4460 = vunpack.c.l.b16 %v4269
    %v4461 = vunpack.c.h.b16 %v4269
    %v4462 = vunpack.c.l.b16 %v4270
    %v4463 = vunpack.c.h.b16 %v4270
    %v4464 = vunpack.c.l.b16 %v4271
    %v4465 = vunpack.c.h.b16 %v4271
    %v4466 = vunpack.c.l.b16 %v4272
    %v4467 = vunpack.c.h.b16 %v4272
    %v4468 = vunpack.c.l.b16 %v4273
    %v4469 = vunpack.c.h.b16 %v4273
    %v4470 = vunpack.c.l.b16 %v4274
    %v4471 = vunpack.c.h.b16 %v4274
    %v4472 = vunpack.c.l.b16 %v4275
    %v4473 = vunpack.c.h.b16 %v4275
    %v4474 = vunpack.c.l.b16 %v4276
    %v4475 = vunpack.c.h.b16 %v4276
    %v4476 = vunpack.c.l.b16 %v4277
    %v4477 = vunpack.c.h.b16 %v4277
    %v4478 = vunpack.c.l.b16 %v4278
    %v4479 = vunpack.c.h.b16 %v4278
    %v4480 = vunpack.c.l.b16 %v4279
    %v4481 = vunpack.c.h.b16 %v4279
    %v4482 = vunpack.c.l.b16 %v4280
    %v4483 = vunpack.c.h.b16 %v4280
    %v4484 = vunpack.c.l.b16 %v4281
    %v4485 = vunpack.c.h.b16 %v4281
    %v4486 = vunpack.c.l.b16 %v4282
    %v4487 = vunpack.c.h.b16 %v4282
    %v4488 = vunpack.c.l.b16 %v4283
    %v4489 = vunpack.c.h.b16 %v4283
    %v4490 = vunpack.c.l.b16 %v4284
    %v4491 = vunpack.c.h.b16 %v4284
    %v4492 = vunpack.c.l.b16 %v4285
    %v4493 = vunpack.c.h.b16 %v4285
    %v4494 = vunpack.c.l.b16 %v4286
    %v4495 = vunpack.c.h.b16 %v4286
    %v4496 = vunpack.c.l.b16 %v4287
    %v4497 = vunpack.c.h.b16 %v4287
    %v4498 = vunpack.c.l.b16 %v4288
    %v4499 = vunpack.c.h.b16 %v4288
    %v4500 = vunpack.c.l.b16 %v4289
    %v4501 = vunpack.c.h.b16 %v4289
    %v4502 = vunpack.c.l.b16 %v4290
    %v4503 = vunpack.c.h.b16 %v4290
    %v4504 = vunpack.c.l.b16 %v4291
    %v4505 = vunpack.c.h.b16 %v4291
    %v4506 = vunpack.c.l.b16 %v4292
    %v4507 = vunpack.c.h.b16 %v4292
    %v4508 = vunpack.c.l.b16 %v4293
    %v4509 = vunpack.c.h.b16 %v4293
    %v4510 = vunpack.c.l.b16 %v4294
    %v4511 = vunpack.c.h.b16 %v4294
    %v4512 = vunpack.c.l.b16 %v4295
    %v4513 = vunpack.c.h.b16 %v4295
    %v4514 = vpack.c.b16 %v4394, %v4386
    %v4515 = vpack.c.b16 %v4395, %v4387
    %v4516 = vpack.c.b16 %v4396, %v4388
    %v4517 = vpack.c.b16 %v4397, %v4389
    %v4518 = vpack.c.b16 %v4398, %v4390
    %v4519 = vpack.c.b16 %v4399, %v4391
    %v4520 = vpack.c.b16 %v4400, %v4392
    %v4521 = vpack.c.b16 %v4401, %v4393
    %v4522 = vpack.c.b16 %v4410, %v4402
    %v4523 = vpack.c.b16 %v4411, %v4403
    %v4524 = vpack.c.b16 %v4412, %v4404
    %v4525 = vpack.c.b16 %v4413, %v4405
    %v4526 = vpack.c.b16 %v4414, %v4406
    %v4527 = vpack.c.b16 %v4415, %v4407
    %v4528 = vpack.c.b16 %v4416, %v4408
    %v4529 = vpack.c.b16 %v4417, %v4409
    %v4530 = vpack.c.b16 %v4426, %v4418
    %v4531 = vpack.c.b16 %v4427, %v4419
    %v4532 = vpack.c.b16 %v4428, %v4420
    %v4533 = vpack.c.b16 %v4429, %v4421
    %v4534 = vpack.c.b16 %v4430, %v4422
    %v4535 = vpack.c.b16 %v4431, %v4423
    %v4536 = vpack.c.b16 %v4432, %v4424
    %v4537 = vpack.c.b16 %v4433, %v4425
    %v4538 = vpack.c.b16 %v4442, %v4434
    %v4539 = vpack.c.b16 %v4443, %v4435
    %v4540 = vpack.c.b16 %v4444, %v4436
    %v4541 = vpack.c.b16 %v4445, %v4437
    %v4542 = vpack.c.b16 %v4446, %v4438
    %v4543 = vpack.c.b16 %v4447, %v4439
    %v4544 = vpack.c.b16 %v4448, %v4440
    %v4545 = vpack.c.b16 %v4449, %v4441
    %v4546 = vpack.c.b16 %v4458, %v4450
    %v4547 = vpack.c.b16 %v4459, %v4451
    %v4548 = vpack.c.b16 %v4460, %v4452
    %v4549 = vpack.c.b16 %v4461, %v4453
    %v4550 = vpack.c.b16 %v4462, %v4454
    %v4551 = vpack.c.b16 %v4463, %v4455
    %v4552 = vpack.c.b16 %v4464, %v4456
    %v4553 = vpack.c.b16 %v4465, %v4457
    %v4554 = vpack.c.b16 %v4474, %v4466
    %v4555 = vpack.c.b16 %v4475, %v4467
    %v4556 = vpack.c.b16 %v4476, %v4468
    %v4557 = vpack.c.b16 %v4477, %v4469
    %v4558 = vpack.c.b16 %v4478, %v4470
    %v4559 = vpack.c.b16 %v4479, %v4471
    %v4560 = vpack.c.b16 %v4480, %v4472
    %v4561 = vpack.c.b16 %v4481, %v4473
    %v4562 = vpack.c.b16 %v4490, %v4482
    %v4563 = vpack.c.b16 %v4491, %v4483
    %v4564 = vpack.c.b16 %v4492, %v4484
    %v4565 = vpack.c.b16 %v4493, %v4485
    %v4566 = vpack.c.b16 %v4494, %v4486
    %v4567 = vpack.c.b16 %v4495, %v4487
    %v4568 = vpack.c.b16 %v4496, %v4488
    %v4569 = vpack.c.b16 %v4497, %v4489
    %v4570 = vpack.c.b16 %v4506, %v4498
    %v4571 = vpack.c.b16 %v4507, %v4499
    %v4572 = vpack.c.b16 %v4508, %v4500
    %v4573 = vpack.c.b16 %v4509, %v4501
    %v4574 = vpack.c.b16 %v4510, %v4502
    %v4575 = vpack.c.b16 %v4511, %v4503
    %v4576 = vpack.c.b16 %v4512, %v4504
    %v4577 = vpack.c.b16 %v4513, %v4505
    %4642 = vmatpush.bf16.msra.mxu0 %v4570
    %4643 = vmatpush.bf16.msra.mxu0 %v4562
    %4644 = vmatpush.bf16.msra.mxu0 %v4554
    %4645 = vmatpush.bf16.msra.mxu0 %v4546
    %4646 = vmatpush.bf16.msra.mxu0 %v4538
    %4647 = vmatpush.bf16.msra.mxu0 %v4530
    %4648 = vmatpush.bf16.msra.mxu0 %v4522
    %4649 = vmatpush.bf16.msra.mxu0 %v4514
    %4650 = vmatmul.bf16.gmra.mxu0 %v4320
    %v4651 = vpop.f32.mrf.mxu0
    %v4652 = vadd.f32 %v4297, %v4651
    %v4653 = vpop.f32.mrf.mxu0
    %4654 = vdwg.mxu0
    %4655 = vmatpush.bf16.msra.mxu0 %v4571
    %4656 = vmatpush.bf16.msra.mxu0 %v4563
    %4657 = vmatpush.bf16.msra.mxu0 %v4555
    %4658 = vmatpush.bf16.msra.mxu0 %v4547
    %4659 = vmatpush.bf16.msra.mxu0 %v4539
    %4660 = vmatpush.bf16.msra.mxu0 %v4531
    %4661 = vmatpush.bf16.msra.mxu0 %v4523
    %4662 = vmatpush.bf16.msra.mxu0 %v4515
    %4663 = vmatmul.bf16.gmra.mxu0 %v4320
    %v4664 = vpop.f32.mrf.mxu0
    %v4665 = vadd.f32 %v4298, %v4664
    %v4666 = vpop.f32.mrf.mxu0
    %4667 = vdwg.mxu0
    %4668 = vmatpush.bf16.msra.mxu0 %v4572
    %4669 = vmatpush.bf16.msra.mxu0 %v4564
    %4670 = vmatpush.bf16.msra.mxu0 %v4556
    %4671 = vmatpush.bf16.msra.mxu0 %v4548
    %4672 = vmatpush.bf16.msra.mxu0 %v4540
    %4673 = vmatpush.bf16.msra.mxu0 %v4532
    %4674 = vmatpush.bf16.msra.mxu0 %v4524
    %4675 = vmatpush.bf16.msra.mxu0 %v4516
    %4676 = vmatmul.bf16.gmra.mxu0 %v4320
    %v4677 = vpop.f32.mrf.mxu0
    %v4678 = vadd.f32 %v4299, %v4677
    %v4679 = vpop.f32.mrf.mxu0
    %4680 = vdwg.mxu0
    %4681 = vmatpush.bf16.msra.mxu0 %v4573
    %4682 = vmatpush.bf16.msra.mxu0 %v4565
    %4683 = vmatpush.bf16.msra.mxu0 %v4557
    %4684 = vmatpush.bf16.msra.mxu0 %v4549
    %4685 = vmatpush.bf16.msra.mxu0 %v4541
    %4686 = vmatpush.bf16.msra.mxu0 %v4533
    %4687 = vmatpush.bf16.msra.mxu0 %v4525
    %4688 = vmatpush.bf16.msra.mxu0 %v4517
    %4689 = vmatmul.bf16.gmra.mxu0 %v4320
    %v4690 = vpop.f32.mrf.mxu0
    %v4691 = vadd.f32 %v4300, %v4690
    %v4692 = vpop.f32.mrf.mxu0
    %4693 = vdwg.mxu0
    %4694 = vmatpush.bf16.msra.mxu0 %v4574
    %4695 = vmatpush.bf16.msra.mxu0 %v4566
    %4696 = vmatpush.bf16.msra.mxu0 %v4558
    %4697 = vmatpush.bf16.msra.mxu0 %v4550
    %4698 = vmatpush.bf16.msra.mxu0 %v4542
    %4699 = vmatpush.bf16.msra.mxu0 %v4534
    %4700 = vmatpush.bf16.msra.mxu0 %v4526
    %4701 = vmatpush.bf16.msra.mxu0 %v4518
    %4702 = vmatmul.bf16.gmra.mxu0 %v4320
    %v4703 = vpop.f32.mrf.mxu0
    %v4704 = vadd.f32 %v4301, %v4703
    %v4705 = vpop.f32.mrf.mxu0
    %4706 = vdwg.mxu0
    %4707 = vmatpush.bf16.msra.mxu0 %v4575
    %4708 = vmatpush.bf16.msra.mxu0 %v4567
    %4709 = vmatpush.bf16.msra.mxu0 %v4559
    %4710 = vmatpush.bf16.msra.mxu0 %v4551
    %4711 = vmatpush.bf16.msra.mxu0 %v4543
    %4712 = vmatpush.bf16.msra.mxu0 %v4535
    %4713 = vmatpush.bf16.msra.mxu0 %v4527
    %4714 = vmatpush.bf16.msra.mxu0 %v4519
    %4715 = vmatmul.bf16.gmra.mxu0 %v4320
    %v4716 = vpop.f32.mrf.mxu0
    %v4717 = vadd.f32 %v4302, %v4716
    %v4718 = vpop.f32.mrf.mxu0
    %4719 = vdwg.mxu0
    %4720 = vmatpush.bf16.msra.mxu0 %v4576
    %4721 = vmatpush.bf16.msra.mxu0 %v4568
    %4722 = vmatpush.bf16.msra.mxu0 %v4560
    %4723 = vmatpush.bf16.msra.mxu0 %v4552
    %4724 = vmatpush.bf16.msra.mxu0 %v4544
    %4725 = vmatpush.bf16.msra.mxu0 %v4536
    %4726 = vmatpush.bf16.msra.mxu0 %v4528
    %4727 = vmatpush.bf16.msra.mxu0 %v4520
    %4728 = vmatmul.bf16.gmra.mxu0 %v4320
    %v4729 = vpop.f32.mrf.mxu0
    %v4730 = vadd.f32 %v4303, %v4729
    %v4731 = vpop.f32.mrf.mxu0
    %4732 = vdwg.mxu0
    %4733 = vmatpush.bf16.msra.mxu0 %v4577
    %4734 = vmatpush.bf16.msra.mxu0 %v4569
    %4735 = vmatpush.bf16.msra.mxu0 %v4561
    %4736 = vmatpush.bf16.msra.mxu0 %v4553
    %4737 = vmatpush.bf16.msra.mxu0 %v4545
    %4738 = vmatpush.bf16.msra.mxu0 %v4537
    %4739 = vmatpush.bf16.msra.mxu0 %v4529
    %4740 = vmatpush.bf16.msra.mxu0 %v4521
    %4741 = vmatmul.bf16.gmra.mxu0 %v4320
    %v4742 = vpop.f32.mrf.mxu0
    %v4743 = vadd.f32 %v4304, %v4742
    %v4744 = vpop.f32.mrf.mxu0
    %4745 = vdwg.mxu0
    %s4746 = scalar_lea.vmem [#allocation2], 512
    %v4747 = vld [vmem:[%s4746] sm:$0xff]
    %v4748 = vld [vmem:[%s4746 + $0x8] sm:$0xff]
    %v4749 = vld [vmem:[%s4746 + $0x10] sm:$0xff]
    %v4750 = vld [vmem:[%s4746 + $0x18] sm:$0xff]
    %v4751 = vld [vmem:[%s4746 + $0x20] sm:$0xff]
    %v4752 = vld [vmem:[%s4746 + $0x28] sm:$0xff]
    %v4753 = vld [vmem:[%s4746 + $0x30] sm:$0xff]
    %v4754 = vld [vmem:[%s4746 + $0x38] sm:$0xff]
    %v4755 = vld [vmem:[%s4746 + $0x40] sm:$0xff]
    %v4756 = vld [vmem:[%s4746 + $0x48] sm:$0xff]
    %v4757 = vld [vmem:[%s4746 + $0x50] sm:$0xff]
    %v4758 = vld [vmem:[%s4746 + $0x58] sm:$0xff]
    %v4759 = vld [vmem:[%s4746 + $0x60] sm:$0xff]
    %v4760 = vld [vmem:[%s4746 + $0x68] sm:$0xff]
    %v4761 = vld [vmem:[%s4746 + $0x70] sm:$0xff]
    %v4762 = vld [vmem:[%s4746 + $0x78] sm:$0xff]
    %v4763 = vld [vmem:[%s4746 + $0x80] sm:$0xff]
    %v4764 = vld [vmem:[%s4746 + $0x88] sm:$0xff]
    %v4765 = vld [vmem:[%s4746 + $0x90] sm:$0xff]
    %v4766 = vld [vmem:[%s4746 + $0x98] sm:$0xff]
    %v4767 = vld [vmem:[%s4746 + $0xa0] sm:$0xff]
    %v4768 = vld [vmem:[%s4746 + $0xa8] sm:$0xff]
    %v4769 = vld [vmem:[%s4746 + $0xb0] sm:$0xff]
    %v4770 = vld [vmem:[%s4746 + $0xb8] sm:$0xff]
    %v4771 = vld [vmem:[%s4746 + $0xc0] sm:$0xff]
    %v4772 = vld [vmem:[%s4746 + $0xc8] sm:$0xff]
    %v4773 = vld [vmem:[%s4746 + $0xd0] sm:$0xff]
    %v4774 = vld [vmem:[%s4746 + $0xd8] sm:$0xff]
    %v4775 = vld [vmem:[%s4746 + $0xe0] sm:$0xff]
    %v4776 = vld [vmem:[%s4746 + $0xe8] sm:$0xff]
    %v4777 = vld [vmem:[%s4746 + $0xf0] sm:$0xff]
    %v4778 = vld [vmem:[%s4746 + $0xf8] sm:$0xff]
    %v4779 = vld [vmem:[%s4746 + $0x100] sm:$0xff]
    %v4780 = vld [vmem:[%s4746 + $0x108] sm:$0xff]
    %v4781 = vld [vmem:[%s4746 + $0x110] sm:$0xff]
    %v4782 = vld [vmem:[%s4746 + $0x118] sm:$0xff]
    %v4783 = vld [vmem:[%s4746 + $0x120] sm:$0xff]
    %v4784 = vld [vmem:[%s4746 + $0x128] sm:$0xff]
    %v4785 = vld [vmem:[%s4746 + $0x130] sm:$0xff]
    %v4786 = vld [vmem:[%s4746 + $0x138] sm:$0xff]
    %v4787 = vld [vmem:[%s4746 + $0x140] sm:$0xff]
    %v4788 = vld [vmem:[%s4746 + $0x148] sm:$0xff]
    %v4789 = vld [vmem:[%s4746 + $0x150] sm:$0xff]
    %v4790 = vld [vmem:[%s4746 + $0x158] sm:$0xff]
    %v4791 = vld [vmem:[%s4746 + $0x160] sm:$0xff]
    %v4792 = vld [vmem:[%s4746 + $0x168] sm:$0xff]
    %v4793 = vld [vmem:[%s4746 + $0x170] sm:$0xff]
    %v4794 = vld [vmem:[%s4746 + $0x178] sm:$0xff]
    %v4795 = vld [vmem:[%s4746 + $0x180] sm:$0xff]
    %v4796 = vld [vmem:[%s4746 + $0x188] sm:$0xff]
    %v4797 = vld [vmem:[%s4746 + $0x190] sm:$0xff]
    %v4798 = vld [vmem:[%s4746 + $0x198] sm:$0xff]
    %v4799 = vld [vmem:[%s4746 + $0x1a0] sm:$0xff]
    %v4800 = vld [vmem:[%s4746 + $0x1a8] sm:$0xff]
    %v4801 = vld [vmem:[%s4746 + $0x1b0] sm:$0xff]
    %v4802 = vld [vmem:[%s4746 + $0x1b8] sm:$0xff]
    %v4803 = vld [vmem:[%s4746 + $0x1c0] sm:$0xff]
    %v4804 = vld [vmem:[%s4746 + $0x1c8] sm:$0xff]
    %v4805 = vld [vmem:[%s4746 + $0x1d0] sm:$0xff]
    %v4806 = vld [vmem:[%s4746 + $0x1d8] sm:$0xff]
    %v4807 = vld [vmem:[%s4746 + $0x1e0] sm:$0xff]
    %v4808 = vld [vmem:[%s4746 + $0x1e8] sm:$0xff]
    %v4809 = vld [vmem:[%s4746 + $0x1f0] sm:$0xff]
    %v4810 = vld [vmem:[%s4746 + $0x1f8] sm:$0xff]
    %v4811 = vrot.slane %v4315, 1
    %v4812 = vsel %vm4318, %v4316, %v4811
    %v4813 = vpack.c.b16 %v4812, %v4812
    %v4879 = vunpack.c.l.b16 %v4747
    %v4880 = vunpack.c.h.b16 %v4747
    %v4881 = vunpack.c.l.b16 %v4748
    %v4882 = vunpack.c.h.b16 %v4748
    %v4883 = vunpack.c.l.b16 %v4749
    %v4884 = vunpack.c.h.b16 %v4749
    %v4885 = vunpack.c.l.b16 %v4750
    %v4886 = vunpack.c.h.b16 %v4750
    %v4887 = vunpack.c.l.b16 %v4751
    %v4888 = vunpack.c.h.b16 %v4751
    %v4889 = vunpack.c.l.b16 %v4752
    %v4890 = vunpack.c.h.b16 %v4752
    %v4891 = vunpack.c.l.b16 %v4753
    %v4892 = vunpack.c.h.b16 %v4753
    %v4893 = vunpack.c.l.b16 %v4754
    %v4894 = vunpack.c.h.b16 %v4754
    %v4895 = vunpack.c.l.b16 %v4755
    %v4896 = vunpack.c.h.b16 %v4755
    %v4897 = vunpack.c.l.b16 %v4756
    %v4898 = vunpack.c.h.b16 %v4756
    %v4899 = vunpack.c.l.b16 %v4757
    %v4900 = vunpack.c.h.b16 %v4757
    %v4901 = vunpack.c.l.b16 %v4758
    %v4902 = vunpack.c.h.b16 %v4758
    %v4903 = vunpack.c.l.b16 %v4759
    %v4904 = vunpack.c.h.b16 %v4759
    %v4905 = vunpack.c.l.b16 %v4760
    %v4906 = vunpack.c.h.b16 %v4760
    %v4907 = vunpack.c.l.b16 %v4761
    %v4908 = vunpack.c.h.b16 %v4761
    %v4909 = vunpack.c.l.b16 %v4762
    %v4910 = vunpack.c.h.b16 %v4762
    %v4911 = vunpack.c.l.b16 %v4763
    %v4912 = vunpack.c.h.b16 %v4763
    %v4913 = vunpack.c.l.b16 %v4764
    %v4914 = vunpack.c.h.b16 %v4764
    %v4915 = vunpack.c.l.b16 %v4765
    %v4916 = vunpack.c.h.b16 %v4765
    %v4917 = vunpack.c.l.b16 %v4766
    %v4918 = vunpack.c.h.b16 %v4766
    %v4919 = vunpack.c.l.b16 %v4767
    %v4920 = vunpack.c.h.b16 %v4767
    %v4921 = vunpack.c.l.b16 %v4768
    %v4922 = vunpack.c.h.b16 %v4768
    %v4923 = vunpack.c.l.b16 %v4769
    %v4924 = vunpack.c.h.b16 %v4769
    %v4925 = vunpack.c.l.b16 %v4770
    %v4926 = vunpack.c.h.b16 %v4770
    %v4927 = vunpack.c.l.b16 %v4771
    %v4928 = vunpack.c.h.b16 %v4771
    %v4929 = vunpack.c.l.b16 %v4772
    %v4930 = vunpack.c.h.b16 %v4772
    %v4931 = vunpack.c.l.b16 %v4773
    %v4932 = vunpack.c.h.b16 %v4773
    %v4933 = vunpack.c.l.b16 %v4774
    %v4934 = vunpack.c.h.b16 %v4774
    %v4935 = vunpack.c.l.b16 %v4775
    %v4936 = vunpack.c.h.b16 %v4775
    %v4937 = vunpack.c.l.b16 %v4776
    %v4938 = vunpack.c.h.b16 %v4776
    %v4939 = vunpack.c.l.b16 %v4777
    %v4940 = vunpack.c.h.b16 %v4777
    %v4941 = vunpack.c.l.b16 %v4778
    %v4942 = vunpack.c.h.b16 %v4778
    %v4943 = vunpack.c.l.b16 %v4779
    %v4944 = vunpack.c.h.b16 %v4779
    %v4945 = vunpack.c.l.b16 %v4780
    %v4946 = vunpack.c.h.b16 %v4780
    %v4947 = vunpack.c.l.b16 %v4781
    %v4948 = vunpack.c.h.b16 %v4781
    %v4949 = vunpack.c.l.b16 %v4782
    %v4950 = vunpack.c.h.b16 %v4782
    %v4951 = vunpack.c.l.b16 %v4783
    %v4952 = vunpack.c.h.b16 %v4783
    %v4953 = vunpack.c.l.b16 %v4784
    %v4954 = vunpack.c.h.b16 %v4784
    %v4955 = vunpack.c.l.b16 %v4785
    %v4956 = vunpack.c.h.b16 %v4785
    %v4957 = vunpack.c.l.b16 %v4786
    %v4958 = vunpack.c.h.b16 %v4786
    %v4959 = vunpack.c.l.b16 %v4787
    %v4960 = vunpack.c.h.b16 %v4787
    %v4961 = vunpack.c.l.b16 %v4788
    %v4962 = vunpack.c.h.b16 %v4788
    %v4963 = vunpack.c.l.b16 %v4789
    %v4964 = vunpack.c.h.b16 %v4789
    %v4965 = vunpack.c.l.b16 %v4790
    %v4966 = vunpack.c.h.b16 %v4790
    %v4967 = vunpack.c.l.b16 %v4791
    %v4968 = vunpack.c.h.b16 %v4791
    %v4969 = vunpack.c.l.b16 %v4792
    %v4970 = vunpack.c.h.b16 %v4792
    %v4971 = vunpack.c.l.b16 %v4793
    %v4972 = vunpack.c.h.b16 %v4793
    %v4973 = vunpack.c.l.b16 %v4794
    %v4974 = vunpack.c.h.b16 %v4794
    %v4975 = vunpack.c.l.b16 %v4795
    %v4976 = vunpack.c.h.b16 %v4795
    %v4977 = vunpack.c.l.b16 %v4796
    %v4978 = vunpack.c.h.b16 %v4796
    %v4979 = vunpack.c.l.b16 %v4797
    %v4980 = vunpack.c.h.b16 %v4797
    %v4981 = vunpack.c.l.b16 %v4798
    %v4982 = vunpack.c.h.b16 %v4798
    %v4983 = vunpack.c.l.b16 %v4799
    %v4984 = vunpack.c.h.b16 %v4799
    %v4985 = vunpack.c.l.b16 %v4800
    %v4986 = vunpack.c.h.b16 %v4800
    %v4987 = vunpack.c.l.b16 %v4801
    %v4988 = vunpack.c.h.b16 %v4801
    %v4989 = vunpack.c.l.b16 %v4802
    %v4990 = vunpack.c.h.b16 %v4802
    %v4991 = vunpack.c.l.b16 %v4803
    %v4992 = vunpack.c.h.b16 %v4803
    %v4993 = vunpack.c.l.b16 %v4804
    %v4994 = vunpack.c.h.b16 %v4804
    %v4995 = vunpack.c.l.b16 %v4805
    %v4996 = vunpack.c.h.b16 %v4805
    %v4997 = vunpack.c.l.b16 %v4806
    %v4998 = vunpack.c.h.b16 %v4806
    %v4999 = vunpack.c.l.b16 %v4807
    %v5000 = vunpack.c.h.b16 %v4807
    %v5001 = vunpack.c.l.b16 %v4808
    %v5002 = vunpack.c.h.b16 %v4808
    %v5003 = vunpack.c.l.b16 %v4809
    %v5004 = vunpack.c.h.b16 %v4809
    %v5005 = vunpack.c.l.b16 %v4810
    %v5006 = vunpack.c.h.b16 %v4810
    %v5007 = vpack.c.b16 %v4887, %v4879
    %v5008 = vpack.c.b16 %v4888, %v4880
    %v5009 = vpack.c.b16 %v4889, %v4881
    %v5010 = vpack.c.b16 %v4890, %v4882
    %v5011 = vpack.c.b16 %v4891, %v4883
    %v5012 = vpack.c.b16 %v4892, %v4884
    %v5013 = vpack.c.b16 %v4893, %v4885
    %v5014 = vpack.c.b16 %v4894, %v4886
    %v5015 = vpack.c.b16 %v4903, %v4895
    %v5016 = vpack.c.b16 %v4904, %v4896
    %v5017 = vpack.c.b16 %v4905, %v4897
    %v5018 = vpack.c.b16 %v4906, %v4898
    %v5019 = vpack.c.b16 %v4907, %v4899
    %v5020 = vpack.c.b16 %v4908, %v4900
    %v5021 = vpack.c.b16 %v4909, %v4901
    %v5022 = vpack.c.b16 %v4910, %v4902
    %v5023 = vpack.c.b16 %v4919, %v4911
    %v5024 = vpack.c.b16 %v4920, %v4912
    %v5025 = vpack.c.b16 %v4921, %v4913
    %v5026 = vpack.c.b16 %v4922, %v4914
    %v5027 = vpack.c.b16 %v4923, %v4915
    %v5028 = vpack.c.b16 %v4924, %v4916
    %v5029 = vpack.c.b16 %v4925, %v4917
    %v5030 = vpack.c.b16 %v4926, %v4918
    %v5031 = vpack.c.b16 %v4935, %v4927
    %v5032 = vpack.c.b16 %v4936, %v4928
    %v5033 = vpack.c.b16 %v4937, %v4929
    %v5034 = vpack.c.b16 %v4938, %v4930
    %v5035 = vpack.c.b16 %v4939, %v4931
    %v5036 = vpack.c.b16 %v4940, %v4932
    %v5037 = vpack.c.b16 %v4941, %v4933
    %v5038 = vpack.c.b16 %v4942, %v4934
    %v5039 = vpack.c.b16 %v4951, %v4943
    %v5040 = vpack.c.b16 %v4952, %v4944
    %v5041 = vpack.c.b16 %v4953, %v4945
    %v5042 = vpack.c.b16 %v4954, %v4946
    %v5043 = vpack.c.b16 %v4955, %v4947
    %v5044 = vpack.c.b16 %v4956, %v4948
    %v5045 = vpack.c.b16 %v4957, %v4949
    %v5046 = vpack.c.b16 %v4958, %v4950
    %v5047 = vpack.c.b16 %v4967, %v4959
    %v5048 = vpack.c.b16 %v4968, %v4960
    %v5049 = vpack.c.b16 %v4969, %v4961
    %v5050 = vpack.c.b16 %v4970, %v4962
    %v5051 = vpack.c.b16 %v4971, %v4963
    %v5052 = vpack.c.b16 %v4972, %v4964
    %v5053 = vpack.c.b16 %v4973, %v4965
    %v5054 = vpack.c.b16 %v4974, %v4966
    %v5055 = vpack.c.b16 %v4983, %v4975
    %v5056 = vpack.c.b16 %v4984, %v4976
    %v5057 = vpack.c.b16 %v4985, %v4977
    %v5058 = vpack.c.b16 %v4986, %v4978
    %v5059 = vpack.c.b16 %v4987, %v4979
    %v5060 = vpack.c.b16 %v4988, %v4980
    %v5061 = vpack.c.b16 %v4989, %v4981
    %v5062 = vpack.c.b16 %v4990, %v4982
    %v5063 = vpack.c.b16 %v4999, %v4991
    %v5064 = vpack.c.b16 %v5000, %v4992
    %v5065 = vpack.c.b16 %v5001, %v4993
    %v5066 = vpack.c.b16 %v5002, %v4994
    %v5067 = vpack.c.b16 %v5003, %v4995
    %v5068 = vpack.c.b16 %v5004, %v4996
    %v5069 = vpack.c.b16 %v5005, %v4997
    %v5070 = vpack.c.b16 %v5006, %v4998
    %5135 = vmatpush.bf16.msra.mxu0 %v5063
    %5136 = vmatpush.bf16.msra.mxu0 %v5055
    %5137 = vmatpush.bf16.msra.mxu0 %v5047
    %5138 = vmatpush.bf16.msra.mxu0 %v5039
    %5139 = vmatpush.bf16.msra.mxu0 %v5031
    %5140 = vmatpush.bf16.msra.mxu0 %v5023
    %5141 = vmatpush.bf16.msra.mxu0 %v5015
    %5142 = vmatpush.bf16.msra.mxu0 %v5007
    %5143 = vmatmul.bf16.gmra.mxu0 %v4813
    %v5144 = vpop.f32.mrf.mxu0
    %v5145 = vadd.f32 0.0, %v5144
    %v5146 = vpop.f32.mrf.mxu0
    %5147 = vdwg.mxu0
    %5148 = vmatpush.bf16.msra.mxu0 %v5064
    %5149 = vmatpush.bf16.msra.mxu0 %v5056
    %5150 = vmatpush.bf16.msra.mxu0 %v5048
    %5151 = vmatpush.bf16.msra.mxu0 %v5040
    %5152 = vmatpush.bf16.msra.mxu0 %v5032
    %5153 = vmatpush.bf16.msra.mxu0 %v5024
    %5154 = vmatpush.bf16.msra.mxu0 %v5016
    %5155 = vmatpush.bf16.msra.mxu0 %v5008
    %5156 = vmatmul.bf16.gmra.mxu0 %v4813
    %v5157 = vpop.f32.mrf.mxu0
    %v5158 = vadd.f32 0.0, %v5157
    %v5159 = vpop.f32.mrf.mxu0
    %5160 = vdwg.mxu0
    %5161 = vmatpush.bf16.msra.mxu0 %v5065
    %5162 = vmatpush.bf16.msra.mxu0 %v5057
    %5163 = vmatpush.bf16.msra.mxu0 %v5049
    %5164 = vmatpush.bf16.msra.mxu0 %v5041
    %5165 = vmatpush.bf16.msra.mxu0 %v5033
    %5166 = vmatpush.bf16.msra.mxu0 %v5025
    %5167 = vmatpush.bf16.msra.mxu0 %v5017
    %5168 = vmatpush.bf16.msra.mxu0 %v5009
    %5169 = vmatmul.bf16.gmra.mxu0 %v4813
    %v5170 = vpop.f32.mrf.mxu0
    %v5171 = vadd.f32 0.0, %v5170
    %v5172 = vpop.f32.mrf.mxu0
    %5173 = vdwg.mxu0
    %5174 = vmatpush.bf16.msra.mxu0 %v5066
    %5175 = vmatpush.bf16.msra.mxu0 %v5058
    %5176 = vmatpush.bf16.msra.mxu0 %v5050
    %5177 = vmatpush.bf16.msra.mxu0 %v5042
    %5178 = vmatpush.bf16.msra.mxu0 %v5034
    %5179 = vmatpush.bf16.msra.mxu0 %v5026
    %5180 = vmatpush.bf16.msra.mxu0 %v5018
    %5181 = vmatpush.bf16.msra.mxu0 %v5010
    %5182 = vmatmul.bf16.gmra.mxu0 %v4813
    %v5183 = vpop.f32.mrf.mxu0
    %v5184 = vadd.f32 0.0, %v5183
    %v5185 = vpop.f32.mrf.mxu0
    %5186 = vdwg.mxu0
    %5187 = vmatpush.bf16.msra.mxu0 %v5067
    %5188 = vmatpush.bf16.msra.mxu0 %v5059
    %5189 = vmatpush.bf16.msra.mxu0 %v5051
    %5190 = vmatpush.bf16.msra.mxu0 %v5043
    %5191 = vmatpush.bf16.msra.mxu0 %v5035
    %5192 = vmatpush.bf16.msra.mxu0 %v5027
    %5193 = vmatpush.bf16.msra.mxu0 %v5019
    %5194 = vmatpush.bf16.msra.mxu0 %v5011
    %5195 = vmatmul.bf16.gmra.mxu0 %v4813
    %v5196 = vpop.f32.mrf.mxu0
    %v5197 = vadd.f32 0.0, %v5196
    %v5198 = vpop.f32.mrf.mxu0
    %5199 = vdwg.mxu0
    %5200 = vmatpush.bf16.msra.mxu0 %v5068
    %5201 = vmatpush.bf16.msra.mxu0 %v5060
    %5202 = vmatpush.bf16.msra.mxu0 %v5052
    %5203 = vmatpush.bf16.msra.mxu0 %v5044
    %5204 = vmatpush.bf16.msra.mxu0 %v5036
    %5205 = vmatpush.bf16.msra.mxu0 %v5028
    %5206 = vmatpush.bf16.msra.mxu0 %v5020
    %5207 = vmatpush.bf16.msra.mxu0 %v5012
    %5208 = vmatmul.bf16.gmra.mxu0 %v4813
    %v5209 = vpop.f32.mrf.mxu0
    %v5210 = vadd.f32 0.0, %v5209
    %v5211 = vpop.f32.mrf.mxu0
    %5212 = vdwg.mxu0
    %5213 = vmatpush.bf16.msra.mxu0 %v5069
    %5214 = vmatpush.bf16.msra.mxu0 %v5061
    %5215 = vmatpush.bf16.msra.mxu0 %v5053
    %5216 = vmatpush.bf16.msra.mxu0 %v5045
    %5217 = vmatpush.bf16.msra.mxu0 %v5037
    %5218 = vmatpush.bf16.msra.mxu0 %v5029
    %5219 = vmatpush.bf16.msra.mxu0 %v5021
    %5220 = vmatpush.bf16.msra.mxu0 %v5013
    %5221 = vmatmul.bf16.gmra.mxu0 %v4813
    %v5222 = vpop.f32.mrf.mxu0
    %v5223 = vadd.f32 0.0, %v5222
    %v5224 = vpop.f32.mrf.mxu0
    %5225 = vdwg.mxu0
    %5226 = vmatpush.bf16.msra.mxu0 %v5070
    %5227 = vmatpush.bf16.msra.mxu0 %v5062
    %5228 = vmatpush.bf16.msra.mxu0 %v5054
    %5229 = vmatpush.bf16.msra.mxu0 %v5046
    %5230 = vmatpush.bf16.msra.mxu0 %v5038
    %5231 = vmatpush.bf16.msra.mxu0 %v5030
    %5232 = vmatpush.bf16.msra.mxu0 %v5022
    %5233 = vmatpush.bf16.msra.mxu0 %v5014
    %5234 = vmatmul.bf16.gmra.mxu0 %v4813
    %v5235 = vpop.f32.mrf.mxu0
    %v5236 = vadd.f32 0.0, %v5235
    %v5237 = vpop.f32.mrf.mxu0
    %5238 = vdwg.mxu0
    %v5239 = vadd.f32 %v4652, %v5145
    %v5240 = vadd.f32 %v4665, %v5158
    %v5241 = vadd.f32 %v4678, %v5171
    %v5242 = vadd.f32 %v4691, %v5184
    %v5243 = vadd.f32 %v4704, %v5197
    %v5244 = vadd.f32 %v4717, %v5210
    %v5245 = vadd.f32 %v4730, %v5223
    %v5246 = vadd.f32 %v4743, %v5236
    %s5247 = scalar_lea.vmem [#allocation2], 1024
    %v5248 = vld [vmem:[%s5247] sm:$0xff]
    %v5249 = vld [vmem:[%s5247 + $0x8] sm:$0xff]
    %v5250 = vld [vmem:[%s5247 + $0x10] sm:$0xff]
    %v5251 = vld [vmem:[%s5247 + $0x18] sm:$0xff]
    %v5252 = vld [vmem:[%s5247 + $0x20] sm:$0xff]
    %v5253 = vld [vmem:[%s5247 + $0x28] sm:$0xff]
    %v5254 = vld [vmem:[%s5247 + $0x30] sm:$0xff]
    %v5255 = vld [vmem:[%s5247 + $0x38] sm:$0xff]
    %v5256 = vld [vmem:[%s5247 + $0x40] sm:$0xff]
    %v5257 = vld [vmem:[%s5247 + $0x48] sm:$0xff]
    %v5258 = vld [vmem:[%s5247 + $0x50] sm:$0xff]
    %v5259 = vld [vmem:[%s5247 + $0x58] sm:$0xff]
    %v5260 = vld [vmem:[%s5247 + $0x60] sm:$0xff]
    %v5261 = vld [vmem:[%s5247 + $0x68] sm:$0xff]
    %v5262 = vld [vmem:[%s5247 + $0x70] sm:$0xff]
    %v5263 = vld [vmem:[%s5247 + $0x78] sm:$0xff]
    %v5264 = vld [vmem:[%s5247 + $0x80] sm:$0xff]
    %v5265 = vld [vmem:[%s5247 + $0x88] sm:$0xff]
    %v5266 = vld [vmem:[%s5247 + $0x90] sm:$0xff]
    %v5267 = vld [vmem:[%s5247 + $0x98] sm:$0xff]
    %v5268 = vld [vmem:[%s5247 + $0xa0] sm:$0xff]
    %v5269 = vld [vmem:[%s5247 + $0xa8] sm:$0xff]
    %v5270 = vld [vmem:[%s5247 + $0xb0] sm:$0xff]
    %v5271 = vld [vmem:[%s5247 + $0xb8] sm:$0xff]
    %v5272 = vld [vmem:[%s5247 + $0xc0] sm:$0xff]
    %v5273 = vld [vmem:[%s5247 + $0xc8] sm:$0xff]
    %v5274 = vld [vmem:[%s5247 + $0xd0] sm:$0xff]
    %v5275 = vld [vmem:[%s5247 + $0xd8] sm:$0xff]
    %v5276 = vld [vmem:[%s5247 + $0xe0] sm:$0xff]
    %v5277 = vld [vmem:[%s5247 + $0xe8] sm:$0xff]
    %v5278 = vld [vmem:[%s5247 + $0xf0] sm:$0xff]
    %v5279 = vld [vmem:[%s5247 + $0xf8] sm:$0xff]
    %v5280 = vld [vmem:[%s5247 + $0x100] sm:$0xff]
    %v5281 = vld [vmem:[%s5247 + $0x108] sm:$0xff]
    %v5282 = vld [vmem:[%s5247 + $0x110] sm:$0xff]
    %v5283 = vld [vmem:[%s5247 + $0x118] sm:$0xff]
    %v5284 = vld [vmem:[%s5247 + $0x120] sm:$0xff]
    %v5285 = vld [vmem:[%s5247 + $0x128] sm:$0xff]
    %v5286 = vld [vmem:[%s5247 + $0x130] sm:$0xff]
    %v5287 = vld [vmem:[%s5247 + $0x138] sm:$0xff]
    %v5288 = vld [vmem:[%s5247 + $0x140] sm:$0xff]
    %v5289 = vld [vmem:[%s5247 + $0x148] sm:$0xff]
    %v5290 = vld [vmem:[%s5247 + $0x150] sm:$0xff]
    %v5291 = vld [vmem:[%s5247 + $0x158] sm:$0xff]
    %v5292 = vld [vmem:[%s5247 + $0x160] sm:$0xff]
    %v5293 = vld [vmem:[%s5247 + $0x168] sm:$0xff]
    %v5294 = vld [vmem:[%s5247 + $0x170] sm:$0xff]
    %v5295 = vld [vmem:[%s5247 + $0x178] sm:$0xff]
    %v5296 = vld [vmem:[%s5247 + $0x180] sm:$0xff]
    %v5297 = vld [vmem:[%s5247 + $0x188] sm:$0xff]
    %v5298 = vld [vmem:[%s5247 + $0x190] sm:$0xff]
    %v5299 = vld [vmem:[%s5247 + $0x198] sm:$0xff]
    %v5300 = vld [vmem:[%s5247 + $0x1a0] sm:$0xff]
    %v5301 = vld [vmem:[%s5247 + $0x1a8] sm:$0xff]
    %v5302 = vld [vmem:[%s5247 + $0x1b0] sm:$0xff]
    %v5303 = vld [vmem:[%s5247 + $0x1b8] sm:$0xff]
    %v5304 = vld [vmem:[%s5247 + $0x1c0] sm:$0xff]
    %v5305 = vld [vmem:[%s5247 + $0x1c8] sm:$0xff]
    %v5306 = vld [vmem:[%s5247 + $0x1d0] sm:$0xff]
    %v5307 = vld [vmem:[%s5247 + $0x1d8] sm:$0xff]
    %v5308 = vld [vmem:[%s5247 + $0x1e0] sm:$0xff]
    %v5309 = vld [vmem:[%s5247 + $0x1e8] sm:$0xff]
    %v5310 = vld [vmem:[%s5247 + $0x1f0] sm:$0xff]
    %v5311 = vld [vmem:[%s5247 + $0x1f8] sm:$0xff]
    %v5312 = vrot.slane %v4315, 2
    %v5313 = vrot.slane %v4316, 1
    %v5314 = vsel %vm4318, %v5313, %v5312
    %v5315 = vpack.c.b16 %v5314, %v5314
    %v5381 = vunpack.c.l.b16 %v5248
    %v5382 = vunpack.c.h.b16 %v5248
    %v5383 = vunpack.c.l.b16 %v5249
    %v5384 = vunpack.c.h.b16 %v5249
    %v5385 = vunpack.c.l.b16 %v5250
    %v5386 = vunpack.c.h.b16 %v5250
    %v5387 = vunpack.c.l.b16 %v5251
    %v5388 = vunpack.c.h.b16 %v5251
    %v5389 = vunpack.c.l.b16 %v5252
    %v5390 = vunpack.c.h.b16 %v5252
    %v5391 = vunpack.c.l.b16 %v5253
    %v5392 = vunpack.c.h.b16 %v5253
    %v5393 = vunpack.c.l.b16 %v5254
    %v5394 = vunpack.c.h.b16 %v5254
    %v5395 = vunpack.c.l.b16 %v5255
    %v5396 = vunpack.c.h.b16 %v5255
    %v5397 = vunpack.c.l.b16 %v5256
    %v5398 = vunpack.c.h.b16 %v5256
    %v5399 = vunpack.c.l.b16 %v5257
    %v5400 = vunpack.c.h.b16 %v5257
    %v5401 = vunpack.c.l.b16 %v5258
    %v5402 = vunpack.c.h.b16 %v5258
    %v5403 = vunpack.c.l.b16 %v5259
    %v5404 = vunpack.c.h.b16 %v5259
    %v5405 = vunpack.c.l.b16 %v5260
    %v5406 = vunpack.c.h.b16 %v5260
    %v5407 = vunpack.c.l.b16 %v5261
    %v5408 = vunpack.c.h.b16 %v5261
    %v5409 = vunpack.c.l.b16 %v5262
    %v5410 = vunpack.c.h.b16 %v5262
    %v5411 = vunpack.c.l.b16 %v5263
    %v5412 = vunpack.c.h.b16 %v5263
    %v5413 = vunpack.c.l.b16 %v5264
    %v5414 = vunpack.c.h.b16 %v5264
    %v5415 = vunpack.c.l.b16 %v5265
    %v5416 = vunpack.c.h.b16 %v5265
    %v5417 = vunpack.c.l.b16 %v5266
    %v5418 = vunpack.c.h.b16 %v5266
    %v5419 = vunpack.c.l.b16 %v5267
    %v5420 = vunpack.c.h.b16 %v5267
    %v5421 = vunpack.c.l.b16 %v5268
    %v5422 = vunpack.c.h.b16 %v5268
    %v5423 = vunpack.c.l.b16 %v5269
    %v5424 = vunpack.c.h.b16 %v5269
    %v5425 = vunpack.c.l.b16 %v5270
    %v5426 = vunpack.c.h.b16 %v5270
    %v5427 = vunpack.c.l.b16 %v5271
    %v5428 = vunpack.c.h.b16 %v5271
    %v5429 = vunpack.c.l.b16 %v5272
    %v5430 = vunpack.c.h.b16 %v5272
    %v5431 = vunpack.c.l.b16 %v5273
    %v5432 = vunpack.c.h.b16 %v5273
    %v5433 = vunpack.c.l.b16 %v5274
    %v5434 = vunpack.c.h.b16 %v5274
    %v5435 = vunpack.c.l.b16 %v5275
    %v5436 = vunpack.c.h.b16 %v5275
    %v5437 = vunpack.c.l.b16 %v5276
    %v5438 = vunpack.c.h.b16 %v5276
    %v5439 = vunpack.c.l.b16 %v5277
    %v5440 = vunpack.c.h.b16 %v5277
    %v5441 = vunpack.c.l.b16 %v5278
    %v5442 = vunpack.c.h.b16 %v5278
    %v5443 = vunpack.c.l.b16 %v5279
    %v5444 = vunpack.c.h.b16 %v5279
    %v5445 = vunpack.c.l.b16 %v5280
    %v5446 = vunpack.c.h.b16 %v5280
    %v5447 = vunpack.c.l.b16 %v5281
    %v5448 = vunpack.c.h.b16 %v5281
    %v5449 = vunpack.c.l.b16 %v5282
    %v5450 = vunpack.c.h.b16 %v5282
    %v5451 = vunpack.c.l.b16 %v5283
    %v5452 = vunpack.c.h.b16 %v5283
    %v5453 = vunpack.c.l.b16 %v5284
    %v5454 = vunpack.c.h.b16 %v5284
    %v5455 = vunpack.c.l.b16 %v5285
    %v5456 = vunpack.c.h.b16 %v5285
    %v5457 = vunpack.c.l.b16 %v5286
    %v5458 = vunpack.c.h.b16 %v5286
    %v5459 = vunpack.c.l.b16 %v5287
    %v5460 = vunpack.c.h.b16 %v5287
    %v5461 = vunpack.c.l.b16 %v5288
    %v5462 = vunpack.c.h.b16 %v5288
    %v5463 = vunpack.c.l.b16 %v5289
    %v5464 = vunpack.c.h.b16 %v5289
    %v5465 = vunpack.c.l.b16 %v5290
    %v5466 = vunpack.c.h.b16 %v5290
    %v5467 = vunpack.c.l.b16 %v5291
    %v5468 = vunpack.c.h.b16 %v5291
    %v5469 = vunpack.c.l.b16 %v5292
    %v5470 = vunpack.c.h.b16 %v5292
    %v5471 = vunpack.c.l.b16 %v5293
    %v5472 = vunpack.c.h.b16 %v5293
    %v5473 = vunpack.c.l.b16 %v5294
    %v5474 = vunpack.c.h.b16 %v5294
    %v5475 = vunpack.c.l.b16 %v5295
    %v5476 = vunpack.c.h.b16 %v5295
    %v5477 = vunpack.c.l.b16 %v5296
    %v5478 = vunpack.c.h.b16 %v5296
    %v5479 = vunpack.c.l.b16 %v5297
    %v5480 = vunpack.c.h.b16 %v5297
    %v5481 = vunpack.c.l.b16 %v5298
    %v5482 = vunpack.c.h.b16 %v5298
    %v5483 = vunpack.c.l.b16 %v5299
    %v5484 = vunpack.c.h.b16 %v5299
    %v5485 = vunpack.c.l.b16 %v5300
    %v5486 = vunpack.c.h.b16 %v5300
    %v5487 = vunpack.c.l.b16 %v5301
    %v5488 = vunpack.c.h.b16 %v5301
    %v5489 = vunpack.c.l.b16 %v5302
    %v5490 = vunpack.c.h.b16 %v5302
    %v5491 = vunpack.c.l.b16 %v5303
    %v5492 = vunpack.c.h.b16 %v5303
    %v5493 = vunpack.c.l.b16 %v5304
    %v5494 = vunpack.c.h.b16 %v5304
    %v5495 = vunpack.c.l.b16 %v5305
    %v5496 = vunpack.c.h.b16 %v5305
    %v5497 = vunpack.c.l.b16 %v5306
    %v5498 = vunpack.c.h.b16 %v5306
    %v5499 = vunpack.c.l.b16 %v5307
    %v5500 = vunpack.c.h.b16 %v5307
    %v5501 = vunpack.c.l.b16 %v5308
    %v5502 = vunpack.c.h.b16 %v5308
    %v5503 = vunpack.c.l.b16 %v5309
    %v5504 = vunpack.c.h.b16 %v5309
    %v5505 = vunpack.c.l.b16 %v5310
    %v5506 = vunpack.c.h.b16 %v5310
    %v5507 = vunpack.c.l.b16 %v5311
    %v5508 = vunpack.c.h.b16 %v5311
    %v5509 = vpack.c.b16 %v5389, %v5381
    %v5510 = vpack.c.b16 %v5390, %v5382
    %v5511 = vpack.c.b16 %v5391, %v5383
    %v5512 = vpack.c.b16 %v5392, %v5384
    %v5513 = vpack.c.b16 %v5393, %v5385
    %v5514 = vpack.c.b16 %v5394, %v5386
    %v5515 = vpack.c.b16 %v5395, %v5387
    %v5516 = vpack.c.b16 %v5396, %v5388
    %v5517 = vpack.c.b16 %v5405, %v5397
    %v5518 = vpack.c.b16 %v5406, %v5398
    %v5519 = vpack.c.b16 %v5407, %v5399
    %v5520 = vpack.c.b16 %v5408, %v5400
    %v5521 = vpack.c.b16 %v5409, %v5401
    %v5522 = vpack.c.b16 %v5410, %v5402
    %v5523 = vpack.c.b16 %v5411, %v5403
    %v5524 = vpack.c.b16 %v5412, %v5404
    %v5525 = vpack.c.b16 %v5421, %v5413
    %v5526 = vpack.c.b16 %v5422, %v5414
    %v5527 = vpack.c.b16 %v5423, %v5415
    %v5528 = vpack.c.b16 %v5424, %v5416
    %v5529 = vpack.c.b16 %v5425, %v5417
    %v5530 = vpack.c.b16 %v5426, %v5418
    %v5531 = vpack.c.b16 %v5427, %v5419
    %v5532 = vpack.c.b16 %v5428, %v5420
    %v5533 = vpack.c.b16 %v5437, %v5429
    %v5534 = vpack.c.b16 %v5438, %v5430
    %v5535 = vpack.c.b16 %v5439, %v5431
    %v5536 = vpack.c.b16 %v5440, %v5432
    %v5537 = vpack.c.b16 %v5441, %v5433
    %v5538 = vpack.c.b16 %v5442, %v5434
    %v5539 = vpack.c.b16 %v5443, %v5435
    %v5540 = vpack.c.b16 %v5444, %v5436
    %v5541 = vpack.c.b16 %v5453, %v5445
    %v5542 = vpack.c.b16 %v5454, %v5446
    %v5543 = vpack.c.b16 %v5455, %v5447
    %v5544 = vpack.c.b16 %v5456, %v5448
    %v5545 = vpack.c.b16 %v5457, %v5449
    %v5546 = vpack.c.b16 %v5458, %v5450
    %v5547 = vpack.c.b16 %v5459, %v5451
    %v5548 = vpack.c.b16 %v5460, %v5452
    %v5549 = vpack.c.b16 %v5469, %v5461
    %v5550 = vpack.c.b16 %v5470, %v5462
    %v5551 = vpack.c.b16 %v5471, %v5463
    %v5552 = vpack.c.b16 %v5472, %v5464
    %v5553 = vpack.c.b16 %v5473, %v5465
    %v5554 = vpack.c.b16 %v5474, %v5466
    %v5555 = vpack.c.b16 %v5475, %v5467
    %v5556 = vpack.c.b16 %v5476, %v5468
    %v5557 = vpack.c.b16 %v5485, %v5477
    %v5558 = vpack.c.b16 %v5486, %v5478
    %v5559 = vpack.c.b16 %v5487, %v5479
    %v5560 = vpack.c.b16 %v5488, %v5480
    %v5561 = vpack.c.b16 %v5489, %v5481
    %v5562 = vpack.c.b16 %v5490, %v5482
    %v5563 = vpack.c.b16 %v5491, %v5483
    %v5564 = vpack.c.b16 %v5492, %v5484
    %v5565 = vpack.c.b16 %v5501, %v5493
    %v5566 = vpack.c.b16 %v5502, %v5494
    %v5567 = vpack.c.b16 %v5503, %v5495
    %v5568 = vpack.c.b16 %v5504, %v5496
    %v5569 = vpack.c.b16 %v5505, %v5497
    %v5570 = vpack.c.b16 %v5506, %v5498
    %v5571 = vpack.c.b16 %v5507, %v5499
    %v5572 = vpack.c.b16 %v5508, %v5500
    %5637 = vmatpush.bf16.msra.mxu0 %v5565
    %5638 = vmatpush.bf16.msra.mxu0 %v5557
    %5639 = vmatpush.bf16.msra.mxu0 %v5549
    %5640 = vmatpush.bf16.msra.mxu0 %v5541
    %5641 = vmatpush.bf16.msra.mxu0 %v5533
    %5642 = vmatpush.bf16.msra.mxu0 %v5525
    %5643 = vmatpush.bf16.msra.mxu0 %v5517
    %5644 = vmatpush.bf16.msra.mxu0 %v5509
    %5645 = vmatmul.bf16.gmra.mxu0 %v5315
    %v5646 = vpop.f32.mrf.mxu0
    %v5647 = vadd.f32 0.0, %v5646
    %v5648 = vpop.f32.mrf.mxu0
    %5649 = vdwg.mxu0
    %5650 = vmatpush.bf16.msra.mxu0 %v5566
    %5651 = vmatpush.bf16.msra.mxu0 %v5558
    %5652 = vmatpush.bf16.msra.mxu0 %v5550
    %5653 = vmatpush.bf16.msra.mxu0 %v5542
    %5654 = vmatpush.bf16.msra.mxu0 %v5534
    %5655 = vmatpush.bf16.msra.mxu0 %v5526
    %5656 = vmatpush.bf16.msra.mxu0 %v5518
    %5657 = vmatpush.bf16.msra.mxu0 %v5510
    %5658 = vmatmul.bf16.gmra.mxu0 %v5315
    %v5659 = vpop.f32.mrf.mxu0
    %v5660 = vadd.f32 0.0, %v5659
    %v5661 = vpop.f32.mrf.mxu0
    %5662 = vdwg.mxu0
    %5663 = vmatpush.bf16.msra.mxu0 %v5567
    %5664 = vmatpush.bf16.msra.mxu0 %v5559
    %5665 = vmatpush.bf16.msra.mxu0 %v5551
    %5666 = vmatpush.bf16.msra.mxu0 %v5543
    %5667 = vmatpush.bf16.msra.mxu0 %v5535
    %5668 = vmatpush.bf16.msra.mxu0 %v5527
    %5669 = vmatpush.bf16.msra.mxu0 %v5519
    %5670 = vmatpush.bf16.msra.mxu0 %v5511
    %5671 = vmatmul.bf16.gmra.mxu0 %v5315
    %v5672 = vpop.f32.mrf.mxu0
    %v5673 = vadd.f32 0.0, %v5672
    %v5674 = vpop.f32.mrf.mxu0
    %5675 = vdwg.mxu0
    %5676 = vmatpush.bf16.msra.mxu0 %v5568
    %5677 = vmatpush.bf16.msra.mxu0 %v5560
    %5678 = vmatpush.bf16.msra.mxu0 %v5552
    %5679 = vmatpush.bf16.msra.mxu0 %v5544
    %5680 = vmatpush.bf16.msra.mxu0 %v5536
    %5681 = vmatpush.bf16.msra.mxu0 %v5528
    %5682 = vmatpush.bf16.msra.mxu0 %v5520
    %5683 = vmatpush.bf16.msra.mxu0 %v5512
    %5684 = vmatmul.bf16.gmra.mxu0 %v5315
    %v5685 = vpop.f32.mrf.mxu0
    %v5686 = vadd.f32 0.0, %v5685
    %v5687 = vpop.f32.mrf.mxu0
    %5688 = vdwg.mxu0
    %5689 = vmatpush.bf16.msra.mxu0 %v5569
    %5690 = vmatpush.bf16.msra.mxu0 %v5561
    %5691 = vmatpush.bf16.msra.mxu0 %v5553
    %5692 = vmatpush.bf16.msra.mxu0 %v5545
    %5693 = vmatpush.bf16.msra.mxu0 %v5537
    %5694 = vmatpush.bf16.msra.mxu0 %v5529
    %5695 = vmatpush.bf16.msra.mxu0 %v5521
    %5696 = vmatpush.bf16.msra.mxu0 %v5513
    %5697 = vmatmul.bf16.gmra.mxu0 %v5315
    %v5698 = vpop.f32.mrf.mxu0
    %v5699 = vadd.f32 0.0, %v5698
    %v5700 = vpop.f32.mrf.mxu0
    %5701 = vdwg.mxu0
    %5702 = vmatpush.bf16.msra.mxu0 %v5570
    %5703 = vmatpush.bf16.msra.mxu0 %v5562
    %5704 = vmatpush.bf16.msra.mxu0 %v5554
    %5705 = vmatpush.bf16.msra.mxu0 %v5546
    %5706 = vmatpush.bf16.msra.mxu0 %v5538
    %5707 = vmatpush.bf16.msra.mxu0 %v5530
    %5708 = vmatpush.bf16.msra.mxu0 %v5522
    %5709 = vmatpush.bf16.msra.mxu0 %v5514
    %5710 = vmatmul.bf16.gmra.mxu0 %v5315
    %v5711 = vpop.f32.mrf.mxu0
    %v5712 = vadd.f32 0.0, %v5711
    %v5713 = vpop.f32.mrf.mxu0
    %5714 = vdwg.mxu0
    %5715 = vmatpush.bf16.msra.mxu0 %v5571
    %5716 = vmatpush.bf16.msra.mxu0 %v5563
    %5717 = vmatpush.bf16.msra.mxu0 %v5555
    %5718 = vmatpush.bf16.msra.mxu0 %v5547
    %5719 = vmatpush.bf16.msra.mxu0 %v5539
    %5720 = vmatpush.bf16.msra.mxu0 %v5531
    %5721 = vmatpush.bf16.msra.mxu0 %v5523
    %5722 = vmatpush.bf16.msra.mxu0 %v5515
    %5723 = vmatmul.bf16.gmra.mxu0 %v5315
    %v5724 = vpop.f32.mrf.mxu0
    %v5725 = vadd.f32 0.0, %v5724
    %v5726 = vpop.f32.mrf.mxu0
    %5727 = vdwg.mxu0
    %5728 = vmatpush.bf16.msra.mxu0 %v5572
    %5729 = vmatpush.bf16.msra.mxu0 %v5564
    %5730 = vmatpush.bf16.msra.mxu0 %v5556
    %5731 = vmatpush.bf16.msra.mxu0 %v5548
    %5732 = vmatpush.bf16.msra.mxu0 %v5540
    %5733 = vmatpush.bf16.msra.mxu0 %v5532
    %5734 = vmatpush.bf16.msra.mxu0 %v5524
    %5735 = vmatpush.bf16.msra.mxu0 %v5516
    %5736 = vmatmul.bf16.gmra.mxu0 %v5315
    %v5737 = vpop.f32.mrf.mxu0
    %v5738 = vadd.f32 0.0, %v5737
    %v5739 = vpop.f32.mrf.mxu0
    %5740 = vdwg.mxu0
    %v5741 = vadd.f32 %v5239, %v5647
    %v5742 = vadd.f32 %v5240, %v5660
    %v5743 = vadd.f32 %v5241, %v5673
    %v5744 = vadd.f32 %v5242, %v5686
    %v5745 = vadd.f32 %v5243, %v5699
    %v5746 = vadd.f32 %v5244, %v5712
    %v5747 = vadd.f32 %v5245, %v5725
    %v5748 = vadd.f32 %v5246, %v5738
    %s5749 = scalar_lea.vmem [#allocation2], 1536
    %v5750 = vld [vmem:[%s5749] sm:$0xff]
    %v5751 = vld [vmem:[%s5749 + $0x8] sm:$0xff]
    %v5752 = vld [vmem:[%s5749 + $0x10] sm:$0xff]
    %v5753 = vld [vmem:[%s5749 + $0x18] sm:$0xff]
    %v5754 = vld [vmem:[%s5749 + $0x20] sm:$0xff]
    %v5755 = vld [vmem:[%s5749 + $0x28] sm:$0xff]
    %v5756 = vld [vmem:[%s5749 + $0x30] sm:$0xff]
    %v5757 = vld [vmem:[%s5749 + $0x38] sm:$0xff]
    %v5758 = vld [vmem:[%s5749 + $0x40] sm:$0xff]
    %v5759 = vld [vmem:[%s5749 + $0x48] sm:$0xff]
    %v5760 = vld [vmem:[%s5749 + $0x50] sm:$0xff]
    %v5761 = vld [vmem:[%s5749 + $0x58] sm:$0xff]
    %v5762 = vld [vmem:[%s5749 + $0x60] sm:$0xff]
    %v5763 = vld [vmem:[%s5749 + $0x68] sm:$0xff]
    %v5764 = vld [vmem:[%s5749 + $0x70] sm:$0xff]
    %v5765 = vld [vmem:[%s5749 + $0x78] sm:$0xff]
    %v5766 = vld [vmem:[%s5749 + $0x80] sm:$0xff]
    %v5767 = vld [vmem:[%s5749 + $0x88] sm:$0xff]
    %v5768 = vld [vmem:[%s5749 + $0x90] sm:$0xff]
    %v5769 = vld [vmem:[%s5749 + $0x98] sm:$0xff]
    %v5770 = vld [vmem:[%s5749 + $0xa0] sm:$0xff]
    %v5771 = vld [vmem:[%s5749 + $0xa8] sm:$0xff]
    %v5772 = vld [vmem:[%s5749 + $0xb0] sm:$0xff]
    %v5773 = vld [vmem:[%s5749 + $0xb8] sm:$0xff]
    %v5774 = vld [vmem:[%s5749 + $0xc0] sm:$0xff]
    %v5775 = vld [vmem:[%s5749 + $0xc8] sm:$0xff]
    %v5776 = vld [vmem:[%s5749 + $0xd0] sm:$0xff]
    %v5777 = vld [vmem:[%s5749 + $0xd8] sm:$0xff]
    %v5778 = vld [vmem:[%s5749 + $0xe0] sm:$0xff]
    %v5779 = vld [vmem:[%s5749 + $0xe8] sm:$0xff]
    %v5780 = vld [vmem:[%s5749 + $0xf0] sm:$0xff]
    %v5781 = vld [vmem:[%s5749 + $0xf8] sm:$0xff]
    %v5782 = vld [vmem:[%s5749 + $0x100] sm:$0xff]
    %v5783 = vld [vmem:[%s5749 + $0x108] sm:$0xff]
    %v5784 = vld [vmem:[%s5749 + $0x110] sm:$0xff]
    %v5785 = vld [vmem:[%s5749 + $0x118] sm:$0xff]
    %v5786 = vld [vmem:[%s5749 + $0x120] sm:$0xff]
    %v5787 = vld [vmem:[%s5749 + $0x128] sm:$0xff]
    %v5788 = vld [vmem:[%s5749 + $0x130] sm:$0xff]
    %v5789 = vld [vmem:[%s5749 + $0x138] sm:$0xff]
    %v5790 = vld [vmem:[%s5749 + $0x140] sm:$0xff]
    %v5791 = vld [vmem:[%s5749 + $0x148] sm:$0xff]
    %v5792 = vld [vmem:[%s5749 + $0x150] sm:$0xff]
    %v5793 = vld [vmem:[%s5749 + $0x158] sm:$0xff]
    %v5794 = vld [vmem:[%s5749 + $0x160] sm:$0xff]
    %v5795 = vld [vmem:[%s5749 + $0x168] sm:$0xff]
    %v5796 = vld [vmem:[%s5749 + $0x170] sm:$0xff]
    %v5797 = vld [vmem:[%s5749 + $0x178] sm:$0xff]
    %v5798 = vld [vmem:[%s5749 + $0x180] sm:$0xff]
    %v5799 = vld [vmem:[%s5749 + $0x188] sm:$0xff]
    %v5800 = vld [vmem:[%s5749 + $0x190] sm:$0xff]
    %v5801 = vld [vmem:[%s5749 + $0x198] sm:$0xff]
    %v5802 = vld [vmem:[%s5749 + $0x1a0] sm:$0xff]
    %v5803 = vld [vmem:[%s5749 + $0x1a8] sm:$0xff]
    %v5804 = vld [vmem:[%s5749 + $0x1b0] sm:$0xff]
    %v5805 = vld [vmem:[%s5749 + $0x1b8] sm:$0xff]
    %v5806 = vld [vmem:[%s5749 + $0x1c0] sm:$0xff]
    %v5807 = vld [vmem:[%s5749 + $0x1c8] sm:$0xff]
    %v5808 = vld [vmem:[%s5749 + $0x1d0] sm:$0xff]
    %v5809 = vld [vmem:[%s5749 + $0x1d8] sm:$0xff]
    %v5810 = vld [vmem:[%s5749 + $0x1e0] sm:$0xff]
    %v5811 = vld [vmem:[%s5749 + $0x1e8] sm:$0xff]
    %v5812 = vld [vmem:[%s5749 + $0x1f0] sm:$0xff]
    %v5813 = vld [vmem:[%s5749 + $0x1f8] sm:$0xff]
    %v5814 = vrot.slane %v4315, 3
    %v5815 = vrot.slane %v4316, 2
    %v5816 = vsel %vm4318, %v5815, %v5814
    %v5817 = vpack.c.b16 %v5816, %v5816
    %v5883 = vunpack.c.l.b16 %v5750
    %v5884 = vunpack.c.h.b16 %v5750
    %v5885 = vunpack.c.l.b16 %v5751
    %v5886 = vunpack.c.h.b16 %v5751
    %v5887 = vunpack.c.l.b16 %v5752
    %v5888 = vunpack.c.h.b16 %v5752
    %v5889 = vunpack.c.l.b16 %v5753
    %v5890 = vunpack.c.h.b16 %v5753
    %v5891 = vunpack.c.l.b16 %v5754
    %v5892 = vunpack.c.h.b16 %v5754
    %v5893 = vunpack.c.l.b16 %v5755
    %v5894 = vunpack.c.h.b16 %v5755
    %v5895 = vunpack.c.l.b16 %v5756
    %v5896 = vunpack.c.h.b16 %v5756
    %v5897 = vunpack.c.l.b16 %v5757
    %v5898 = vunpack.c.h.b16 %v5757
    %v5899 = vunpack.c.l.b16 %v5758
    %v5900 = vunpack.c.h.b16 %v5758
    %v5901 = vunpack.c.l.b16 %v5759
    %v5902 = vunpack.c.h.b16 %v5759
    %v5903 = vunpack.c.l.b16 %v5760
    %v5904 = vunpack.c.h.b16 %v5760
    %v5905 = vunpack.c.l.b16 %v5761
    %v5906 = vunpack.c.h.b16 %v5761
    %v5907 = vunpack.c.l.b16 %v5762
    %v5908 = vunpack.c.h.b16 %v5762
    %v5909 = vunpack.c.l.b16 %v5763
    %v5910 = vunpack.c.h.b16 %v5763
    %v5911 = vunpack.c.l.b16 %v5764
    %v5912 = vunpack.c.h.b16 %v5764
    %v5913 = vunpack.c.l.b16 %v5765
    %v5914 = vunpack.c.h.b16 %v5765
    %v5915 = vunpack.c.l.b16 %v5766
    %v5916 = vunpack.c.h.b16 %v5766
    %v5917 = vunpack.c.l.b16 %v5767
    %v5918 = vunpack.c.h.b16 %v5767
    %v5919 = vunpack.c.l.b16 %v5768
    %v5920 = vunpack.c.h.b16 %v5768
    %v5921 = vunpack.c.l.b16 %v5769
    %v5922 = vunpack.c.h.b16 %v5769
    %v5923 = vunpack.c.l.b16 %v5770
    %v5924 = vunpack.c.h.b16 %v5770
    %v5925 = vunpack.c.l.b16 %v5771
    %v5926 = vunpack.c.h.b16 %v5771
    %v5927 = vunpack.c.l.b16 %v5772
    %v5928 = vunpack.c.h.b16 %v5772
    %v5929 = vunpack.c.l.b16 %v5773
    %v5930 = vunpack.c.h.b16 %v5773
    %v5931 = vunpack.c.l.b16 %v5774
    %v5932 = vunpack.c.h.b16 %v5774
    %v5933 = vunpack.c.l.b16 %v5775
    %v5934 = vunpack.c.h.b16 %v5775
    %v5935 = vunpack.c.l.b16 %v5776
    %v5936 = vunpack.c.h.b16 %v5776
    %v5937 = vunpack.c.l.b16 %v5777
    %v5938 = vunpack.c.h.b16 %v5777
    %v5939 = vunpack.c.l.b16 %v5778
    %v5940 = vunpack.c.h.b16 %v5778
    %v5941 = vunpack.c.l.b16 %v5779
    %v5942 = vunpack.c.h.b16 %v5779
    %v5943 = vunpack.c.l.b16 %v5780
    %v5944 = vunpack.c.h.b16 %v5780
    %v5945 = vunpack.c.l.b16 %v5781
    %v5946 = vunpack.c.h.b16 %v5781
    %v5947 = vunpack.c.l.b16 %v5782
    %v5948 = vunpack.c.h.b16 %v5782
    %v5949 = vunpack.c.l.b16 %v5783
    %v5950 = vunpack.c.h.b16 %v5783
    %v5951 = vunpack.c.l.b16 %v5784
    %v5952 = vunpack.c.h.b16 %v5784
    %v5953 = vunpack.c.l.b16 %v5785
    %v5954 = vunpack.c.h.b16 %v5785
    %v5955 = vunpack.c.l.b16 %v5786
    %v5956 = vunpack.c.h.b16 %v5786
    %v5957 = vunpack.c.l.b16 %v5787
    %v5958 = vunpack.c.h.b16 %v5787
    %v5959 = vunpack.c.l.b16 %v5788
    %v5960 = vunpack.c.h.b16 %v5788
    %v5961 = vunpack.c.l.b16 %v5789
    %v5962 = vunpack.c.h.b16 %v5789
    %v5963 = vunpack.c.l.b16 %v5790
    %v5964 = vunpack.c.h.b16 %v5790
    %v5965 = vunpack.c.l.b16 %v5791
    %v5966 = vunpack.c.h.b16 %v5791
    %v5967 = vunpack.c.l.b16 %v5792
    %v5968 = vunpack.c.h.b16 %v5792
    %v5969 = vunpack.c.l.b16 %v5793
    %v5970 = vunpack.c.h.b16 %v5793
    %v5971 = vunpack.c.l.b16 %v5794
    %v5972 = vunpack.c.h.b16 %v5794
    %v5973 = vunpack.c.l.b16 %v5795
    %v5974 = vunpack.c.h.b16 %v5795
    %v5975 = vunpack.c.l.b16 %v5796
    %v5976 = vunpack.c.h.b16 %v5796
    %v5977 = vunpack.c.l.b16 %v5797
    %v5978 = vunpack.c.h.b16 %v5797
    %v5979 = vunpack.c.l.b16 %v5798
    %v5980 = vunpack.c.h.b16 %v5798
    %v5981 = vunpack.c.l.b16 %v5799
    %v5982 = vunpack.c.h.b16 %v5799
    %v5983 = vunpack.c.l.b16 %v5800
    %v5984 = vunpack.c.h.b16 %v5800
    %v5985 = vunpack.c.l.b16 %v5801
    %v5986 = vunpack.c.h.b16 %v5801
    %v5987 = vunpack.c.l.b16 %v5802
    %v5988 = vunpack.c.h.b16 %v5802
    %v5989 = vunpack.c.l.b16 %v5803
    %v5990 = vunpack.c.h.b16 %v5803
    %v5991 = vunpack.c.l.b16 %v5804
    %v5992 = vunpack.c.h.b16 %v5804
    %v5993 = vunpack.c.l.b16 %v5805
    %v5994 = vunpack.c.h.b16 %v5805
    %v5995 = vunpack.c.l.b16 %v5806
    %v5996 = vunpack.c.h.b16 %v5806
    %v5997 = vunpack.c.l.b16 %v5807
    %v5998 = vunpack.c.h.b16 %v5807
    %v5999 = vunpack.c.l.b16 %v5808
    %v6000 = vunpack.c.h.b16 %v5808
    %v6001 = vunpack.c.l.b16 %v5809
    %v6002 = vunpack.c.h.b16 %v5809
    %v6003 = vunpack.c.l.b16 %v5810
    %v6004 = vunpack.c.h.b16 %v5810
    %v6005 = vunpack.c.l.b16 %v5811
    %v6006 = vunpack.c.h.b16 %v5811
    %v6007 = vunpack.c.l.b16 %v5812
    %v6008 = vunpack.c.h.b16 %v5812
    %v6009 = vunpack.c.l.b16 %v5813
    %v6010 = vunpack.c.h.b16 %v5813
    %v6011 = vpack.c.b16 %v5891, %v5883
    %v6012 = vpack.c.b16 %v5892, %v5884
    %v6013 = vpack.c.b16 %v5893, %v5885
    %v6014 = vpack.c.b16 %v5894, %v5886
    %v6015 = vpack.c.b16 %v5895, %v5887
    %v6016 = vpack.c.b16 %v5896, %v5888
    %v6017 = vpack.c.b16 %v5897, %v5889
    %v6018 = vpack.c.b16 %v5898, %v5890
    %v6019 = vpack.c.b16 %v5907, %v5899
    %v6020 = vpack.c.b16 %v5908, %v5900
    %v6021 = vpack.c.b16 %v5909, %v5901
    %v6022 = vpack.c.b16 %v5910, %v5902
    %v6023 = vpack.c.b16 %v5911, %v5903
    %v6024 = vpack.c.b16 %v5912, %v5904
    %v6025 = vpack.c.b16 %v5913, %v5905
    %v6026 = vpack.c.b16 %v5914, %v5906
    %v6027 = vpack.c.b16 %v5923, %v5915
    %v6028 = vpack.c.b16 %v5924, %v5916
    %v6029 = vpack.c.b16 %v5925, %v5917
    %v6030 = vpack.c.b16 %v5926, %v5918
    %v6031 = vpack.c.b16 %v5927, %v5919
    %v6032 = vpack.c.b16 %v5928, %v5920
    %v6033 = vpack.c.b16 %v5929, %v5921
    %v6034 = vpack.c.b16 %v5930, %v5922
    %v6035 = vpack.c.b16 %v5939, %v5931
    %v6036 = vpack.c.b16 %v5940, %v5932
    %v6037 = vpack.c.b16 %v5941, %v5933
    %v6038 = vpack.c.b16 %v5942, %v5934
    %v6039 = vpack.c.b16 %v5943, %v5935
    %v6040 = vpack.c.b16 %v5944, %v5936
    %v6041 = vpack.c.b16 %v5945, %v5937
    %v6042 = vpack.c.b16 %v5946, %v5938
    %v6043 = vpack.c.b16 %v5955, %v5947
    %v6044 = vpack.c.b16 %v5956, %v5948
    %v6045 = vpack.c.b16 %v5957, %v5949
    %v6046 = vpack.c.b16 %v5958, %v5950
    %v6047 = vpack.c.b16 %v5959, %v5951
    %v6048 = vpack.c.b16 %v5960, %v5952
    %v6049 = vpack.c.b16 %v5961, %v5953
    %v6050 = vpack.c.b16 %v5962, %v5954
    %v6051 = vpack.c.b16 %v5971, %v5963
    %v6052 = vpack.c.b16 %v5972, %v5964
    %v6053 = vpack.c.b16 %v5973, %v5965
    %v6054 = vpack.c.b16 %v5974, %v5966
    %v6055 = vpack.c.b16 %v5975, %v5967
    %v6056 = vpack.c.b16 %v5976, %v5968
    %v6057 = vpack.c.b16 %v5977, %v5969
    %v6058 = vpack.c.b16 %v5978, %v5970
    %v6059 = vpack.c.b16 %v5987, %v5979
    %v6060 = vpack.c.b16 %v5988, %v5980
    %v6061 = vpack.c.b16 %v5989, %v5981
    %v6062 = vpack.c.b16 %v5990, %v5982
    %v6063 = vpack.c.b16 %v5991, %v5983
    %v6064 = vpack.c.b16 %v5992, %v5984
    %v6065 = vpack.c.b16 %v5993, %v5985
    %v6066 = vpack.c.b16 %v5994, %v5986
    %v6067 = vpack.c.b16 %v6003, %v5995
    %v6068 = vpack.c.b16 %v6004, %v5996
    %v6069 = vpack.c.b16 %v6005, %v5997
    %v6070 = vpack.c.b16 %v6006, %v5998
    %v6071 = vpack.c.b16 %v6007, %v5999
    %v6072 = vpack.c.b16 %v6008, %v6000
    %v6073 = vpack.c.b16 %v6009, %v6001
    %v6074 = vpack.c.b16 %v6010, %v6002
    %6139 = vmatpush.bf16.msra.mxu0 %v6067
    %6140 = vmatpush.bf16.msra.mxu0 %v6059
    %6141 = vmatpush.bf16.msra.mxu0 %v6051
    %6142 = vmatpush.bf16.msra.mxu0 %v6043
    %6143 = vmatpush.bf16.msra.mxu0 %v6035
    %6144 = vmatpush.bf16.msra.mxu0 %v6027
    %6145 = vmatpush.bf16.msra.mxu0 %v6019
    %6146 = vmatpush.bf16.msra.mxu0 %v6011
    %6147 = vmatmul.bf16.gmra.mxu0 %v5817
    %v6148 = vpop.f32.mrf.mxu0
    %v6149 = vadd.f32 0.0, %v6148
    %v6150 = vpop.f32.mrf.mxu0
    %6151 = vdwg.mxu0
    %6152 = vmatpush.bf16.msra.mxu0 %v6068
    %6153 = vmatpush.bf16.msra.mxu0 %v6060
    %6154 = vmatpush.bf16.msra.mxu0 %v6052
    %6155 = vmatpush.bf16.msra.mxu0 %v6044
    %6156 = vmatpush.bf16.msra.mxu0 %v6036
    %6157 = vmatpush.bf16.msra.mxu0 %v6028
    %6158 = vmatpush.bf16.msra.mxu0 %v6020
    %6159 = vmatpush.bf16.msra.mxu0 %v6012
    %6160 = vmatmul.bf16.gmra.mxu0 %v5817
    %v6161 = vpop.f32.mrf.mxu0
    %v6162 = vadd.f32 0.0, %v6161
    %v6163 = vpop.f32.mrf.mxu0
    %6164 = vdwg.mxu0
    %6165 = vmatpush.bf16.msra.mxu0 %v6069
    %6166 = vmatpush.bf16.msra.mxu0 %v6061
    %6167 = vmatpush.bf16.msra.mxu0 %v6053
    %6168 = vmatpush.bf16.msra.mxu0 %v6045
    %6169 = vmatpush.bf16.msra.mxu0 %v6037
    %6170 = vmatpush.bf16.msra.mxu0 %v6029
    %6171 = vmatpush.bf16.msra.mxu0 %v6021
    %6172 = vmatpush.bf16.msra.mxu0 %v6013
    %6173 = vmatmul.bf16.gmra.mxu0 %v5817
    %v6174 = vpop.f32.mrf.mxu0
    %v6175 = vadd.f32 0.0, %v6174
    %v6176 = vpop.f32.mrf.mxu0
    %6177 = vdwg.mxu0
    %6178 = vmatpush.bf16.msra.mxu0 %v6070
    %6179 = vmatpush.bf16.msra.mxu0 %v6062
    %6180 = vmatpush.bf16.msra.mxu0 %v6054
    %6181 = vmatpush.bf16.msra.mxu0 %v6046
    %6182 = vmatpush.bf16.msra.mxu0 %v6038
    %6183 = vmatpush.bf16.msra.mxu0 %v6030
    %6184 = vmatpush.bf16.msra.mxu0 %v6022
    %6185 = vmatpush.bf16.msra.mxu0 %v6014
    %6186 = vmatmul.bf16.gmra.mxu0 %v5817
    %v6187 = vpop.f32.mrf.mxu0
    %v6188 = vadd.f32 0.0, %v6187
    %v6189 = vpop.f32.mrf.mxu0
    %6190 = vdwg.mxu0
    %6191 = vmatpush.bf16.msra.mxu0 %v6071
    %6192 = vmatpush.bf16.msra.mxu0 %v6063
    %6193 = vmatpush.bf16.msra.mxu0 %v6055
    %6194 = vmatpush.bf16.msra.mxu0 %v6047
    %6195 = vmatpush.bf16.msra.mxu0 %v6039
    %6196 = vmatpush.bf16.msra.mxu0 %v6031
    %6197 = vmatpush.bf16.msra.mxu0 %v6023
    %6198 = vmatpush.bf16.msra.mxu0 %v6015
    %6199 = vmatmul.bf16.gmra.mxu0 %v5817
    %v6200 = vpop.f32.mrf.mxu0
    %v6201 = vadd.f32 0.0, %v6200
    %v6202 = vpop.f32.mrf.mxu0
    %6203 = vdwg.mxu0
    %6204 = vmatpush.bf16.msra.mxu0 %v6072
    %6205 = vmatpush.bf16.msra.mxu0 %v6064
    %6206 = vmatpush.bf16.msra.mxu0 %v6056
    %6207 = vmatpush.bf16.msra.mxu0 %v6048
    %6208 = vmatpush.bf16.msra.mxu0 %v6040
    %6209 = vmatpush.bf16.msra.mxu0 %v6032
    %6210 = vmatpush.bf16.msra.mxu0 %v6024
    %6211 = vmatpush.bf16.msra.mxu0 %v6016
    %6212 = vmatmul.bf16.gmra.mxu0 %v5817
    %v6213 = vpop.f32.mrf.mxu0
    %v6214 = vadd.f32 0.0, %v6213
    %v6215 = vpop.f32.mrf.mxu0
    %6216 = vdwg.mxu0
    %6217 = vmatpush.bf16.msra.mxu0 %v6073
    %6218 = vmatpush.bf16.msra.mxu0 %v6065
    %6219 = vmatpush.bf16.msra.mxu0 %v6057
    %6220 = vmatpush.bf16.msra.mxu0 %v6049
    %6221 = vmatpush.bf16.msra.mxu0 %v6041
    %6222 = vmatpush.bf16.msra.mxu0 %v6033
    %6223 = vmatpush.bf16.msra.mxu0 %v6025
    %6224 = vmatpush.bf16.msra.mxu0 %v6017
    %6225 = vmatmul.bf16.gmra.mxu0 %v5817
    %v6226 = vpop.f32.mrf.mxu0
    %v6227 = vadd.f32 0.0, %v6226
    %v6228 = vpop.f32.mrf.mxu0
    %6229 = vdwg.mxu0
    %6230 = vmatpush.bf16.msra.mxu0 %v6074
    %6231 = vmatpush.bf16.msra.mxu0 %v6066
    %6232 = vmatpush.bf16.msra.mxu0 %v6058
    %6233 = vmatpush.bf16.msra.mxu0 %v6050
    %6234 = vmatpush.bf16.msra.mxu0 %v6042
    %6235 = vmatpush.bf16.msra.mxu0 %v6034
    %6236 = vmatpush.bf16.msra.mxu0 %v6026
    %6237 = vmatpush.bf16.msra.mxu0 %v6018
    %6238 = vmatmul.bf16.gmra.mxu0 %v5817
    %v6239 = vpop.f32.mrf.mxu0
    %v6240 = vadd.f32 0.0, %v6239
    %v6241 = vpop.f32.mrf.mxu0
    %6242 = vdwg.mxu0
    %v6243 = vadd.f32 %v5741, %v6149
    %v6244 = vadd.f32 %v5742, %v6162
    %v6245 = vadd.f32 %v5743, %v6175
    %v6246 = vadd.f32 %v5744, %v6188
    %v6247 = vadd.f32 %v5745, %v6201
    %v6248 = vadd.f32 %v5746, %v6214
    %v6249 = vadd.f32 %v5747, %v6227
    %v6250 = vadd.f32 %v5748, %v6240
    %s6251 = scalar_lea.vmem [#allocation2], 2048
    %v6252 = vld [vmem:[%s6251] sm:$0xff]
    %v6253 = vld [vmem:[%s6251 + $0x8] sm:$0xff]
    %v6254 = vld [vmem:[%s6251 + $0x10] sm:$0xff]
    %v6255 = vld [vmem:[%s6251 + $0x18] sm:$0xff]
    %v6256 = vld [vmem:[%s6251 + $0x20] sm:$0xff]
    %v6257 = vld [vmem:[%s6251 + $0x28] sm:$0xff]
    %v6258 = vld [vmem:[%s6251 + $0x30] sm:$0xff]
    %v6259 = vld [vmem:[%s6251 + $0x38] sm:$0xff]
    %v6260 = vld [vmem:[%s6251 + $0x40] sm:$0xff]
    %v6261 = vld [vmem:[%s6251 + $0x48] sm:$0xff]
    %v6262 = vld [vmem:[%s6251 + $0x50] sm:$0xff]
    %v6263 = vld [vmem:[%s6251 + $0x58] sm:$0xff]
    %v6264 = vld [vmem:[%s6251 + $0x60] sm:$0xff]
    %v6265 = vld [vmem:[%s6251 + $0x68] sm:$0xff]
    %v6266 = vld [vmem:[%s6251 + $0x70] sm:$0xff]
    %v6267 = vld [vmem:[%s6251 + $0x78] sm:$0xff]
    %v6268 = vld [vmem:[%s6251 + $0x80] sm:$0xff]
    %v6269 = vld [vmem:[%s6251 + $0x88] sm:$0xff]
    %v6270 = vld [vmem:[%s6251 + $0x90] sm:$0xff]
    %v6271 = vld [vmem:[%s6251 + $0x98] sm:$0xff]
    %v6272 = vld [vmem:[%s6251 + $0xa0] sm:$0xff]
    %v6273 = vld [vmem:[%s6251 + $0xa8] sm:$0xff]
    %v6274 = vld [vmem:[%s6251 + $0xb0] sm:$0xff]
    %v6275 = vld [vmem:[%s6251 + $0xb8] sm:$0xff]
    %v6276 = vld [vmem:[%s6251 + $0xc0] sm:$0xff]
    %v6277 = vld [vmem:[%s6251 + $0xc8] sm:$0xff]
    %v6278 = vld [vmem:[%s6251 + $0xd0] sm:$0xff]
    %v6279 = vld [vmem:[%s6251 + $0xd8] sm:$0xff]
    %v6280 = vld [vmem:[%s6251 + $0xe0] sm:$0xff]
    %v6281 = vld [vmem:[%s6251 + $0xe8] sm:$0xff]
    %v6282 = vld [vmem:[%s6251 + $0xf0] sm:$0xff]
    %v6283 = vld [vmem:[%s6251 + $0xf8] sm:$0xff]
    %v6284 = vld [vmem:[%s6251 + $0x100] sm:$0xff]
    %v6285 = vld [vmem:[%s6251 + $0x108] sm:$0xff]
    %v6286 = vld [vmem:[%s6251 + $0x110] sm:$0xff]
    %v6287 = vld [vmem:[%s6251 + $0x118] sm:$0xff]
    %v6288 = vld [vmem:[%s6251 + $0x120] sm:$0xff]
    %v6289 = vld [vmem:[%s6251 + $0x128] sm:$0xff]
    %v6290 = vld [vmem:[%s6251 + $0x130] sm:$0xff]
    %v6291 = vld [vmem:[%s6251 + $0x138] sm:$0xff]
    %v6292 = vld [vmem:[%s6251 + $0x140] sm:$0xff]
    %v6293 = vld [vmem:[%s6251 + $0x148] sm:$0xff]
    %v6294 = vld [vmem:[%s6251 + $0x150] sm:$0xff]
    %v6295 = vld [vmem:[%s6251 + $0x158] sm:$0xff]
    %v6296 = vld [vmem:[%s6251 + $0x160] sm:$0xff]
    %v6297 = vld [vmem:[%s6251 + $0x168] sm:$0xff]
    %v6298 = vld [vmem:[%s6251 + $0x170] sm:$0xff]
    %v6299 = vld [vmem:[%s6251 + $0x178] sm:$0xff]
    %v6300 = vld [vmem:[%s6251 + $0x180] sm:$0xff]
    %v6301 = vld [vmem:[%s6251 + $0x188] sm:$0xff]
    %v6302 = vld [vmem:[%s6251 + $0x190] sm:$0xff]
    %v6303 = vld [vmem:[%s6251 + $0x198] sm:$0xff]
    %v6304 = vld [vmem:[%s6251 + $0x1a0] sm:$0xff]
    %v6305 = vld [vmem:[%s6251 + $0x1a8] sm:$0xff]
    %v6306 = vld [vmem:[%s6251 + $0x1b0] sm:$0xff]
    %v6307 = vld [vmem:[%s6251 + $0x1b8] sm:$0xff]
    %v6308 = vld [vmem:[%s6251 + $0x1c0] sm:$0xff]
    %v6309 = vld [vmem:[%s6251 + $0x1c8] sm:$0xff]
    %v6310 = vld [vmem:[%s6251 + $0x1d0] sm:$0xff]
    %v6311 = vld [vmem:[%s6251 + $0x1d8] sm:$0xff]
    %v6312 = vld [vmem:[%s6251 + $0x1e0] sm:$0xff]
    %v6313 = vld [vmem:[%s6251 + $0x1e8] sm:$0xff]
    %v6314 = vld [vmem:[%s6251 + $0x1f0] sm:$0xff]
    %v6315 = vld [vmem:[%s6251 + $0x1f8] sm:$0xff]
    %v6316 = vrot.slane %v4315, 4
    %v6317 = vrot.slane %v4316, 3
    %v6318 = vsel %vm4318, %v6317, %v6316
    %v6319 = vpack.c.b16 %v6318, %v6318
    %v6385 = vunpack.c.l.b16 %v6252
    %v6386 = vunpack.c.h.b16 %v6252
    %v6387 = vunpack.c.l.b16 %v6253
    %v6388 = vunpack.c.h.b16 %v6253
    %v6389 = vunpack.c.l.b16 %v6254
    %v6390 = vunpack.c.h.b16 %v6254
    %v6391 = vunpack.c.l.b16 %v6255
    %v6392 = vunpack.c.h.b16 %v6255
    %v6393 = vunpack.c.l.b16 %v6256
    %v6394 = vunpack.c.h.b16 %v6256
    %v6395 = vunpack.c.l.b16 %v6257
    %v6396 = vunpack.c.h.b16 %v6257
    %v6397 = vunpack.c.l.b16 %v6258
    %v6398 = vunpack.c.h.b16 %v6258
    %v6399 = vunpack.c.l.b16 %v6259
    %v6400 = vunpack.c.h.b16 %v6259
    %v6401 = vunpack.c.l.b16 %v6260
    %v6402 = vunpack.c.h.b16 %v6260
    %v6403 = vunpack.c.l.b16 %v6261
    %v6404 = vunpack.c.h.b16 %v6261
    %v6405 = vunpack.c.l.b16 %v6262
    %v6406 = vunpack.c.h.b16 %v6262
    %v6407 = vunpack.c.l.b16 %v6263
    %v6408 = vunpack.c.h.b16 %v6263
    %v6409 = vunpack.c.l.b16 %v6264
    %v6410 = vunpack.c.h.b16 %v6264
    %v6411 = vunpack.c.l.b16 %v6265
    %v6412 = vunpack.c.h.b16 %v6265
    %v6413 = vunpack.c.l.b16 %v6266
    %v6414 = vunpack.c.h.b16 %v6266
    %v6415 = vunpack.c.l.b16 %v6267
    %v6416 = vunpack.c.h.b16 %v6267
    %v6417 = vunpack.c.l.b16 %v6268
    %v6418 = vunpack.c.h.b16 %v6268
    %v6419 = vunpack.c.l.b16 %v6269
    %v6420 = vunpack.c.h.b16 %v6269
    %v6421 = vunpack.c.l.b16 %v6270
    %v6422 = vunpack.c.h.b16 %v6270
    %v6423 = vunpack.c.l.b16 %v6271
    %v6424 = vunpack.c.h.b16 %v6271
    %v6425 = vunpack.c.l.b16 %v6272
    %v6426 = vunpack.c.h.b16 %v6272
    %v6427 = vunpack.c.l.b16 %v6273
    %v6428 = vunpack.c.h.b16 %v6273
    %v6429 = vunpack.c.l.b16 %v6274
    %v6430 = vunpack.c.h.b16 %v6274
    %v6431 = vunpack.c.l.b16 %v6275
    %v6432 = vunpack.c.h.b16 %v6275
    %v6433 = vunpack.c.l.b16 %v6276
    %v6434 = vunpack.c.h.b16 %v6276
    %v6435 = vunpack.c.l.b16 %v6277
    %v6436 = vunpack.c.h.b16 %v6277
    %v6437 = vunpack.c.l.b16 %v6278
    %v6438 = vunpack.c.h.b16 %v6278
    %v6439 = vunpack.c.l.b16 %v6279
    %v6440 = vunpack.c.h.b16 %v6279
    %v6441 = vunpack.c.l.b16 %v6280
    %v6442 = vunpack.c.h.b16 %v6280
    %v6443 = vunpack.c.l.b16 %v6281
    %v6444 = vunpack.c.h.b16 %v6281
    %v6445 = vunpack.c.l.b16 %v6282
    %v6446 = vunpack.c.h.b16 %v6282
    %v6447 = vunpack.c.l.b16 %v6283
    %v6448 = vunpack.c.h.b16 %v6283
    %v6449 = vunpack.c.l.b16 %v6284
    %v6450 = vunpack.c.h.b16 %v6284
    %v6451 = vunpack.c.l.b16 %v6285
    %v6452 = vunpack.c.h.b16 %v6285
    %v6453 = vunpack.c.l.b16 %v6286
    %v6454 = vunpack.c.h.b16 %v6286
    %v6455 = vunpack.c.l.b16 %v6287
    %v6456 = vunpack.c.h.b16 %v6287
    %v6457 = vunpack.c.l.b16 %v6288
    %v6458 = vunpack.c.h.b16 %v6288
    %v6459 = vunpack.c.l.b16 %v6289
    %v6460 = vunpack.c.h.b16 %v6289
    %v6461 = vunpack.c.l.b16 %v6290
    %v6462 = vunpack.c.h.b16 %v6290
    %v6463 = vunpack.c.l.b16 %v6291
    %v6464 = vunpack.c.h.b16 %v6291
    %v6465 = vunpack.c.l.b16 %v6292
    %v6466 = vunpack.c.h.b16 %v6292
    %v6467 = vunpack.c.l.b16 %v6293
    %v6468 = vunpack.c.h.b16 %v6293
    %v6469 = vunpack.c.l.b16 %v6294
    %v6470 = vunpack.c.h.b16 %v6294
    %v6471 = vunpack.c.l.b16 %v6295
    %v6472 = vunpack.c.h.b16 %v6295
    %v6473 = vunpack.c.l.b16 %v6296
    %v6474 = vunpack.c.h.b16 %v6296
    %v6475 = vunpack.c.l.b16 %v6297
    %v6476 = vunpack.c.h.b16 %v6297
    %v6477 = vunpack.c.l.b16 %v6298
    %v6478 = vunpack.c.h.b16 %v6298
    %v6479 = vunpack.c.l.b16 %v6299
    %v6480 = vunpack.c.h.b16 %v6299
    %v6481 = vunpack.c.l.b16 %v6300
    %v6482 = vunpack.c.h.b16 %v6300
    %v6483 = vunpack.c.l.b16 %v6301
    %v6484 = vunpack.c.h.b16 %v6301
    %v6485 = vunpack.c.l.b16 %v6302
    %v6486 = vunpack.c.h.b16 %v6302
    %v6487 = vunpack.c.l.b16 %v6303
    %v6488 = vunpack.c.h.b16 %v6303
    %v6489 = vunpack.c.l.b16 %v6304
    %v6490 = vunpack.c.h.b16 %v6304
    %v6491 = vunpack.c.l.b16 %v6305
    %v6492 = vunpack.c.h.b16 %v6305
    %v6493 = vunpack.c.l.b16 %v6306
    %v6494 = vunpack.c.h.b16 %v6306
    %v6495 = vunpack.c.l.b16 %v6307
    %v6496 = vunpack.c.h.b16 %v6307
    %v6497 = vunpack.c.l.b16 %v6308
    %v6498 = vunpack.c.h.b16 %v6308
    %v6499 = vunpack.c.l.b16 %v6309
    %v6500 = vunpack.c.h.b16 %v6309
    %v6501 = vunpack.c.l.b16 %v6310
    %v6502 = vunpack.c.h.b16 %v6310
    %v6503 = vunpack.c.l.b16 %v6311
    %v6504 = vunpack.c.h.b16 %v6311
    %v6505 = vunpack.c.l.b16 %v6312
    %v6506 = vunpack.c.h.b16 %v6312
    %v6507 = vunpack.c.l.b16 %v6313
    %v6508 = vunpack.c.h.b16 %v6313
    %v6509 = vunpack.c.l.b16 %v6314
    %v6510 = vunpack.c.h.b16 %v6314
    %v6511 = vunpack.c.l.b16 %v6315
    %v6512 = vunpack.c.h.b16 %v6315
    %v6513 = vpack.c.b16 %v6393, %v6385
    %v6514 = vpack.c.b16 %v6394, %v6386
    %v6515 = vpack.c.b16 %v6395, %v6387
    %v6516 = vpack.c.b16 %v6396, %v6388
    %v6517 = vpack.c.b16 %v6397, %v6389
    %v6518 = vpack.c.b16 %v6398, %v6390
    %v6519 = vpack.c.b16 %v6399, %v6391
    %v6520 = vpack.c.b16 %v6400, %v6392
    %v6521 = vpack.c.b16 %v6409, %v6401
    %v6522 = vpack.c.b16 %v6410, %v6402
    %v6523 = vpack.c.b16 %v6411, %v6403
    %v6524 = vpack.c.b16 %v6412, %v6404
    %v6525 = vpack.c.b16 %v6413, %v6405
    %v6526 = vpack.c.b16 %v6414, %v6406
    %v6527 = vpack.c.b16 %v6415, %v6407
    %v6528 = vpack.c.b16 %v6416, %v6408
    %v6529 = vpack.c.b16 %v6425, %v6417
    %v6530 = vpack.c.b16 %v6426, %v6418
    %v6531 = vpack.c.b16 %v6427, %v6419
    %v6532 = vpack.c.b16 %v6428, %v6420
    %v6533 = vpack.c.b16 %v6429, %v6421
    %v6534 = vpack.c.b16 %v6430, %v6422
    %v6535 = vpack.c.b16 %v6431, %v6423
    %v6536 = vpack.c.b16 %v6432, %v6424
    %v6537 = vpack.c.b16 %v6441, %v6433
    %v6538 = vpack.c.b16 %v6442, %v6434
    %v6539 = vpack.c.b16 %v6443, %v6435
    %v6540 = vpack.c.b16 %v6444, %v6436
    %v6541 = vpack.c.b16 %v6445, %v6437
    %v6542 = vpack.c.b16 %v6446, %v6438
    %v6543 = vpack.c.b16 %v6447, %v6439
    %v6544 = vpack.c.b16 %v6448, %v6440
    %v6545 = vpack.c.b16 %v6457, %v6449
    %v6546 = vpack.c.b16 %v6458, %v6450
    %v6547 = vpack.c.b16 %v6459, %v6451
    %v6548 = vpack.c.b16 %v6460, %v6452
    %v6549 = vpack.c.b16 %v6461, %v6453
    %v6550 = vpack.c.b16 %v6462, %v6454
    %v6551 = vpack.c.b16 %v6463, %v6455
    %v6552 = vpack.c.b16 %v6464, %v6456
    %v6553 = vpack.c.b16 %v6473, %v6465
    %v6554 = vpack.c.b16 %v6474, %v6466
    %v6555 = vpack.c.b16 %v6475, %v6467
    %v6556 = vpack.c.b16 %v6476, %v6468
    %v6557 = vpack.c.b16 %v6477, %v6469
    %v6558 = vpack.c.b16 %v6478, %v6470
    %v6559 = vpack.c.b16 %v6479, %v6471
    %v6560 = vpack.c.b16 %v6480, %v6472
    %v6561 = vpack.c.b16 %v6489, %v6481
    %v6562 = vpack.c.b16 %v6490, %v6482
    %v6563 = vpack.c.b16 %v6491, %v6483
    %v6564 = vpack.c.b16 %v6492, %v6484
    %v6565 = vpack.c.b16 %v6493, %v6485
    %v6566 = vpack.c.b16 %v6494, %v6486
    %v6567 = vpack.c.b16 %v6495, %v6487
    %v6568 = vpack.c.b16 %v6496, %v6488
    %v6569 = vpack.c.b16 %v6505, %v6497
    %v6570 = vpack.c.b16 %v6506, %v6498
    %v6571 = vpack.c.b16 %v6507, %v6499
    %v6572 = vpack.c.b16 %v6508, %v6500
    %v6573 = vpack.c.b16 %v6509, %v6501
    %v6574 = vpack.c.b16 %v6510, %v6502
    %v6575 = vpack.c.b16 %v6511, %v6503
    %v6576 = vpack.c.b16 %v6512, %v6504
    %6641 = vmatpush.bf16.msra.mxu0 %v6569
    %6642 = vmatpush.bf16.msra.mxu0 %v6561
    %6643 = vmatpush.bf16.msra.mxu0 %v6553
    %6644 = vmatpush.bf16.msra.mxu0 %v6545
    %6645 = vmatpush.bf16.msra.mxu0 %v6537
    %6646 = vmatpush.bf16.msra.mxu0 %v6529
    %6647 = vmatpush.bf16.msra.mxu0 %v6521
    %6648 = vmatpush.bf16.msra.mxu0 %v6513
    %6649 = vmatmul.bf16.gmra.mxu0 %v6319
    %v6650 = vpop.f32.mrf.mxu0
    %v6651 = vadd.f32 0.0, %v6650
    %v6652 = vpop.f32.mrf.mxu0
    %6653 = vdwg.mxu0
    %6654 = vmatpush.bf16.msra.mxu0 %v6570
    %6655 = vmatpush.bf16.msra.mxu0 %v6562
    %6656 = vmatpush.bf16.msra.mxu0 %v6554
    %6657 = vmatpush.bf16.msra.mxu0 %v6546
    %6658 = vmatpush.bf16.msra.mxu0 %v6538
    %6659 = vmatpush.bf16.msra.mxu0 %v6530
    %6660 = vmatpush.bf16.msra.mxu0 %v6522
    %6661 = vmatpush.bf16.msra.mxu0 %v6514
    %6662 = vmatmul.bf16.gmra.mxu0 %v6319
    %v6663 = vpop.f32.mrf.mxu0
    %v6664 = vadd.f32 0.0, %v6663
    %v6665 = vpop.f32.mrf.mxu0
    %6666 = vdwg.mxu0
    %6667 = vmatpush.bf16.msra.mxu0 %v6571
    %6668 = vmatpush.bf16.msra.mxu0 %v6563
    %6669 = vmatpush.bf16.msra.mxu0 %v6555
    %6670 = vmatpush.bf16.msra.mxu0 %v6547
    %6671 = vmatpush.bf16.msra.mxu0 %v6539
    %6672 = vmatpush.bf16.msra.mxu0 %v6531
    %6673 = vmatpush.bf16.msra.mxu0 %v6523
    %6674 = vmatpush.bf16.msra.mxu0 %v6515
    %6675 = vmatmul.bf16.gmra.mxu0 %v6319
    %v6676 = vpop.f32.mrf.mxu0
    %v6677 = vadd.f32 0.0, %v6676
    %v6678 = vpop.f32.mrf.mxu0
    %6679 = vdwg.mxu0
    %6680 = vmatpush.bf16.msra.mxu0 %v6572
    %6681 = vmatpush.bf16.msra.mxu0 %v6564
    %6682 = vmatpush.bf16.msra.mxu0 %v6556
    %6683 = vmatpush.bf16.msra.mxu0 %v6548
    %6684 = vmatpush.bf16.msra.mxu0 %v6540
    %6685 = vmatpush.bf16.msra.mxu0 %v6532
    %6686 = vmatpush.bf16.msra.mxu0 %v6524
    %6687 = vmatpush.bf16.msra.mxu0 %v6516
    %6688 = vmatmul.bf16.gmra.mxu0 %v6319
    %v6689 = vpop.f32.mrf.mxu0
    %v6690 = vadd.f32 0.0, %v6689
    %v6691 = vpop.f32.mrf.mxu0
    %6692 = vdwg.mxu0
    %6693 = vmatpush.bf16.msra.mxu0 %v6573
    %6694 = vmatpush.bf16.msra.mxu0 %v6565
    %6695 = vmatpush.bf16.msra.mxu0 %v6557
    %6696 = vmatpush.bf16.msra.mxu0 %v6549
    %6697 = vmatpush.bf16.msra.mxu0 %v6541
    %6698 = vmatpush.bf16.msra.mxu0 %v6533
    %6699 = vmatpush.bf16.msra.mxu0 %v6525
    %6700 = vmatpush.bf16.msra.mxu0 %v6517
    %6701 = vmatmul.bf16.gmra.mxu0 %v6319
    %v6702 = vpop.f32.mrf.mxu0
    %v6703 = vadd.f32 0.0, %v6702
    %v6704 = vpop.f32.mrf.mxu0
    %6705 = vdwg.mxu0
    %6706 = vmatpush.bf16.msra.mxu0 %v6574
    %6707 = vmatpush.bf16.msra.mxu0 %v6566
    %6708 = vmatpush.bf16.msra.mxu0 %v6558
    %6709 = vmatpush.bf16.msra.mxu0 %v6550
    %6710 = vmatpush.bf16.msra.mxu0 %v6542
    %6711 = vmatpush.bf16.msra.mxu0 %v6534
    %6712 = vmatpush.bf16.msra.mxu0 %v6526
    %6713 = vmatpush.bf16.msra.mxu0 %v6518
    %6714 = vmatmul.bf16.gmra.mxu0 %v6319
    %v6715 = vpop.f32.mrf.mxu0
    %v6716 = vadd.f32 0.0, %v6715
    %v6717 = vpop.f32.mrf.mxu0
    %6718 = vdwg.mxu0
    %6719 = vmatpush.bf16.msra.mxu0 %v6575
    %6720 = vmatpush.bf16.msra.mxu0 %v6567
    %6721 = vmatpush.bf16.msra.mxu0 %v6559
    %6722 = vmatpush.bf16.msra.mxu0 %v6551
    %6723 = vmatpush.bf16.msra.mxu0 %v6543
    %6724 = vmatpush.bf16.msra.mxu0 %v6535
    %6725 = vmatpush.bf16.msra.mxu0 %v6527
    %6726 = vmatpush.bf16.msra.mxu0 %v6519
    %6727 = vmatmul.bf16.gmra.mxu0 %v6319
    %v6728 = vpop.f32.mrf.mxu0
    %v6729 = vadd.f32 0.0, %v6728
    %v6730 = vpop.f32.mrf.mxu0
    %6731 = vdwg.mxu0
    %6732 = vmatpush.bf16.msra.mxu0 %v6576
    %6733 = vmatpush.bf16.msra.mxu0 %v6568
    %6734 = vmatpush.bf16.msra.mxu0 %v6560
    %6735 = vmatpush.bf16.msra.mxu0 %v6552
    %6736 = vmatpush.bf16.msra.mxu0 %v6544
    %6737 = vmatpush.bf16.msra.mxu0 %v6536
    %6738 = vmatpush.bf16.msra.mxu0 %v6528
    %6739 = vmatpush.bf16.msra.mxu0 %v6520
    %6740 = vmatmul.bf16.gmra.mxu0 %v6319
    %v6741 = vpop.f32.mrf.mxu0
    %v6742 = vadd.f32 0.0, %v6741
    %v6743 = vpop.f32.mrf.mxu0
    %6744 = vdwg.mxu0
    %v6745 = vadd.f32 %v6243, %v6651
    %v6746 = vadd.f32 %v6244, %v6664
    %v6747 = vadd.f32 %v6245, %v6677
    %v6748 = vadd.f32 %v6246, %v6690
    %v6749 = vadd.f32 %v6247, %v6703
    %v6750 = vadd.f32 %v6248, %v6716
    %v6751 = vadd.f32 %v6249, %v6729
    %v6752 = vadd.f32 %v6250, %v6742
    %s6753 = scalar_lea.vmem [#allocation2], 2560
    %v6754 = vld [vmem:[%s6753] sm:$0xff]
    %v6755 = vld [vmem:[%s6753 + $0x8] sm:$0xff]
    %v6756 = vld [vmem:[%s6753 + $0x10] sm:$0xff]
    %v6757 = vld [vmem:[%s6753 + $0x18] sm:$0xff]
    %v6758 = vld [vmem:[%s6753 + $0x20] sm:$0xff]
    %v6759 = vld [vmem:[%s6753 + $0x28] sm:$0xff]
    %v6760 = vld [vmem:[%s6753 + $0x30] sm:$0xff]
    %v6761 = vld [vmem:[%s6753 + $0x38] sm:$0xff]
    %v6762 = vld [vmem:[%s6753 + $0x40] sm:$0xff]
    %v6763 = vld [vmem:[%s6753 + $0x48] sm:$0xff]
    %v6764 = vld [vmem:[%s6753 + $0x50] sm:$0xff]
    %v6765 = vld [vmem:[%s6753 + $0x58] sm:$0xff]
    %v6766 = vld [vmem:[%s6753 + $0x60] sm:$0xff]
    %v6767 = vld [vmem:[%s6753 + $0x68] sm:$0xff]
    %v6768 = vld [vmem:[%s6753 + $0x70] sm:$0xff]
    %v6769 = vld [vmem:[%s6753 + $0x78] sm:$0xff]
    %v6770 = vld [vmem:[%s6753 + $0x80] sm:$0xff]
    %v6771 = vld [vmem:[%s6753 + $0x88] sm:$0xff]
    %v6772 = vld [vmem:[%s6753 + $0x90] sm:$0xff]
    %v6773 = vld [vmem:[%s6753 + $0x98] sm:$0xff]
    %v6774 = vld [vmem:[%s6753 + $0xa0] sm:$0xff]
    %v6775 = vld [vmem:[%s6753 + $0xa8] sm:$0xff]
    %v6776 = vld [vmem:[%s6753 + $0xb0] sm:$0xff]
    %v6777 = vld [vmem:[%s6753 + $0xb8] sm:$0xff]
    %v6778 = vld [vmem:[%s6753 + $0xc0] sm:$0xff]
    %v6779 = vld [vmem:[%s6753 + $0xc8] sm:$0xff]
    %v6780 = vld [vmem:[%s6753 + $0xd0] sm:$0xff]
    %v6781 = vld [vmem:[%s6753 + $0xd8] sm:$0xff]
    %v6782 = vld [vmem:[%s6753 + $0xe0] sm:$0xff]
    %v6783 = vld [vmem:[%s6753 + $0xe8] sm:$0xff]
    %v6784 = vld [vmem:[%s6753 + $0xf0] sm:$0xff]
    %v6785 = vld [vmem:[%s6753 + $0xf8] sm:$0xff]
    %v6786 = vld [vmem:[%s6753 + $0x100] sm:$0xff]
    %v6787 = vld [vmem:[%s6753 + $0x108] sm:$0xff]
    %v6788 = vld [vmem:[%s6753 + $0x110] sm:$0xff]
    %v6789 = vld [vmem:[%s6753 + $0x118] sm:$0xff]
    %v6790 = vld [vmem:[%s6753 + $0x120] sm:$0xff]
    %v6791 = vld [vmem:[%s6753 + $0x128] sm:$0xff]
    %v6792 = vld [vmem:[%s6753 + $0x130] sm:$0xff]
    %v6793 = vld [vmem:[%s6753 + $0x138] sm:$0xff]
    %v6794 = vld [vmem:[%s6753 + $0x140] sm:$0xff]
    %v6795 = vld [vmem:[%s6753 + $0x148] sm:$0xff]
    %v6796 = vld [vmem:[%s6753 + $0x150] sm:$0xff]
    %v6797 = vld [vmem:[%s6753 + $0x158] sm:$0xff]
    %v6798 = vld [vmem:[%s6753 + $0x160] sm:$0xff]
    %v6799 = vld [vmem:[%s6753 + $0x168] sm:$0xff]
    %v6800 = vld [vmem:[%s6753 + $0x170] sm:$0xff]
    %v6801 = vld [vmem:[%s6753 + $0x178] sm:$0xff]
    %v6802 = vld [vmem:[%s6753 + $0x180] sm:$0xff]
    %v6803 = vld [vmem:[%s6753 + $0x188] sm:$0xff]
    %v6804 = vld [vmem:[%s6753 + $0x190] sm:$0xff]
    %v6805 = vld [vmem:[%s6753 + $0x198] sm:$0xff]
    %v6806 = vld [vmem:[%s6753 + $0x1a0] sm:$0xff]
    %v6807 = vld [vmem:[%s6753 + $0x1a8] sm:$0xff]
    %v6808 = vld [vmem:[%s6753 + $0x1b0] sm:$0xff]
    %v6809 = vld [vmem:[%s6753 + $0x1b8] sm:$0xff]
    %v6810 = vld [vmem:[%s6753 + $0x1c0] sm:$0xff]
    %v6811 = vld [vmem:[%s6753 + $0x1c8] sm:$0xff]
    %v6812 = vld [vmem:[%s6753 + $0x1d0] sm:$0xff]
    %v6813 = vld [vmem:[%s6753 + $0x1d8] sm:$0xff]
    %v6814 = vld [vmem:[%s6753 + $0x1e0] sm:$0xff]
    %v6815 = vld [vmem:[%s6753 + $0x1e8] sm:$0xff]
    %v6816 = vld [vmem:[%s6753 + $0x1f0] sm:$0xff]
    %v6817 = vld [vmem:[%s6753 + $0x1f8] sm:$0xff]
    %v6818 = vrot.slane %v4315, 5
    %v6819 = vrot.slane %v4316, 4
    %v6820 = vsel %vm4318, %v6819, %v6818
    %v6821 = vpack.c.b16 %v6820, %v6820
    %v6887 = vunpack.c.l.b16 %v6754
    %v6888 = vunpack.c.h.b16 %v6754
    %v6889 = vunpack.c.l.b16 %v6755
    %v6890 = vunpack.c.h.b16 %v6755
    %v6891 = vunpack.c.l.b16 %v6756
    %v6892 = vunpack.c.h.b16 %v6756
    %v6893 = vunpack.c.l.b16 %v6757
    %v6894 = vunpack.c.h.b16 %v6757
    %v6895 = vunpack.c.l.b16 %v6758
    %v6896 = vunpack.c.h.b16 %v6758
    %v6897 = vunpack.c.l.b16 %v6759
    %v6898 = vunpack.c.h.b16 %v6759
    %v6899 = vunpack.c.l.b16 %v6760
    %v6900 = vunpack.c.h.b16 %v6760
    %v6901 = vunpack.c.l.b16 %v6761
    %v6902 = vunpack.c.h.b16 %v6761
    %v6903 = vunpack.c.l.b16 %v6762
    %v6904 = vunpack.c.h.b16 %v6762
    %v6905 = vunpack.c.l.b16 %v6763
    %v6906 = vunpack.c.h.b16 %v6763
    %v6907 = vunpack.c.l.b16 %v6764
    %v6908 = vunpack.c.h.b16 %v6764
    %v6909 = vunpack.c.l.b16 %v6765
    %v6910 = vunpack.c.h.b16 %v6765
    %v6911 = vunpack.c.l.b16 %v6766
    %v6912 = vunpack.c.h.b16 %v6766
    %v6913 = vunpack.c.l.b16 %v6767
    %v6914 = vunpack.c.h.b16 %v6767
    %v6915 = vunpack.c.l.b16 %v6768
    %v6916 = vunpack.c.h.b16 %v6768
    %v6917 = vunpack.c.l.b16 %v6769
    %v6918 = vunpack.c.h.b16 %v6769
    %v6919 = vunpack.c.l.b16 %v6770
    %v6920 = vunpack.c.h.b16 %v6770
    %v6921 = vunpack.c.l.b16 %v6771
    %v6922 = vunpack.c.h.b16 %v6771
    %v6923 = vunpack.c.l.b16 %v6772
    %v6924 = vunpack.c.h.b16 %v6772
    %v6925 = vunpack.c.l.b16 %v6773
    %v6926 = vunpack.c.h.b16 %v6773
    %v6927 = vunpack.c.l.b16 %v6774
    %v6928 = vunpack.c.h.b16 %v6774
    %v6929 = vunpack.c.l.b16 %v6775
    %v6930 = vunpack.c.h.b16 %v6775
    %v6931 = vunpack.c.l.b16 %v6776
    %v6932 = vunpack.c.h.b16 %v6776
    %v6933 = vunpack.c.l.b16 %v6777
    %v6934 = vunpack.c.h.b16 %v6777
    %v6935 = vunpack.c.l.b16 %v6778
    %v6936 = vunpack.c.h.b16 %v6778
    %v6937 = vunpack.c.l.b16 %v6779
    %v6938 = vunpack.c.h.b16 %v6779
    %v6939 = vunpack.c.l.b16 %v6780
    %v6940 = vunpack.c.h.b16 %v6780
    %v6941 = vunpack.c.l.b16 %v6781
    %v6942 = vunpack.c.h.b16 %v6781
    %v6943 = vunpack.c.l.b16 %v6782
    %v6944 = vunpack.c.h.b16 %v6782
    %v6945 = vunpack.c.l.b16 %v6783
    %v6946 = vunpack.c.h.b16 %v6783
    %v6947 = vunpack.c.l.b16 %v6784
    %v6948 = vunpack.c.h.b16 %v6784
    %v6949 = vunpack.c.l.b16 %v6785
    %v6950 = vunpack.c.h.b16 %v6785
    %v6951 = vunpack.c.l.b16 %v6786
    %v6952 = vunpack.c.h.b16 %v6786
    %v6953 = vunpack.c.l.b16 %v6787
    %v6954 = vunpack.c.h.b16 %v6787
    %v6955 = vunpack.c.l.b16 %v6788
    %v6956 = vunpack.c.h.b16 %v6788
    %v6957 = vunpack.c.l.b16 %v6789
    %v6958 = vunpack.c.h.b16 %v6789
    %v6959 = vunpack.c.l.b16 %v6790
    %v6960 = vunpack.c.h.b16 %v6790
    %v6961 = vunpack.c.l.b16 %v6791
    %v6962 = vunpack.c.h.b16 %v6791
    %v6963 = vunpack.c.l.b16 %v6792
    %v6964 = vunpack.c.h.b16 %v6792
    %v6965 = vunpack.c.l.b16 %v6793
    %v6966 = vunpack.c.h.b16 %v6793
    %v6967 = vunpack.c.l.b16 %v6794
    %v6968 = vunpack.c.h.b16 %v6794
    %v6969 = vunpack.c.l.b16 %v6795
    %v6970 = vunpack.c.h.b16 %v6795
    %v6971 = vunpack.c.l.b16 %v6796
    %v6972 = vunpack.c.h.b16 %v6796
    %v6973 = vunpack.c.l.b16 %v6797
    %v6974 = vunpack.c.h.b16 %v6797
    %v6975 = vunpack.c.l.b16 %v6798
    %v6976 = vunpack.c.h.b16 %v6798
    %v6977 = vunpack.c.l.b16 %v6799
    %v6978 = vunpack.c.h.b16 %v6799
    %v6979 = vunpack.c.l.b16 %v6800
    %v6980 = vunpack.c.h.b16 %v6800
    %v6981 = vunpack.c.l.b16 %v6801
    %v6982 = vunpack.c.h.b16 %v6801
    %v6983 = vunpack.c.l.b16 %v6802
    %v6984 = vunpack.c.h.b16 %v6802
    %v6985 = vunpack.c.l.b16 %v6803
    %v6986 = vunpack.c.h.b16 %v6803
    %v6987 = vunpack.c.l.b16 %v6804
    %v6988 = vunpack.c.h.b16 %v6804
    %v6989 = vunpack.c.l.b16 %v6805
    %v6990 = vunpack.c.h.b16 %v6805
    %v6991 = vunpack.c.l.b16 %v6806
    %v6992 = vunpack.c.h.b16 %v6806
    %v6993 = vunpack.c.l.b16 %v6807
    %v6994 = vunpack.c.h.b16 %v6807
    %v6995 = vunpack.c.l.b16 %v6808
    %v6996 = vunpack.c.h.b16 %v6808
    %v6997 = vunpack.c.l.b16 %v6809
    %v6998 = vunpack.c.h.b16 %v6809
    %v6999 = vunpack.c.l.b16 %v6810
    %v7000 = vunpack.c.h.b16 %v6810
    %v7001 = vunpack.c.l.b16 %v6811
    %v7002 = vunpack.c.h.b16 %v6811
    %v7003 = vunpack.c.l.b16 %v6812
    %v7004 = vunpack.c.h.b16 %v6812
    %v7005 = vunpack.c.l.b16 %v6813
    %v7006 = vunpack.c.h.b16 %v6813
    %v7007 = vunpack.c.l.b16 %v6814
    %v7008 = vunpack.c.h.b16 %v6814
    %v7009 = vunpack.c.l.b16 %v6815
    %v7010 = vunpack.c.h.b16 %v6815
    %v7011 = vunpack.c.l.b16 %v6816
    %v7012 = vunpack.c.h.b16 %v6816
    %v7013 = vunpack.c.l.b16 %v6817
    %v7014 = vunpack.c.h.b16 %v6817
    %v7015 = vpack.c.b16 %v6895, %v6887
    %v7016 = vpack.c.b16 %v6896, %v6888
    %v7017 = vpack.c.b16 %v6897, %v6889
    %v7018 = vpack.c.b16 %v6898, %v6890
    %v7019 = vpack.c.b16 %v6899, %v6891
    %v7020 = vpack.c.b16 %v6900, %v6892
    %v7021 = vpack.c.b16 %v6901, %v6893
    %v7022 = vpack.c.b16 %v6902, %v6894
    %v7023 = vpack.c.b16 %v6911, %v6903
    %v7024 = vpack.c.b16 %v6912, %v6904
    %v7025 = vpack.c.b16 %v6913, %v6905
    %v7026 = vpack.c.b16 %v6914, %v6906
    %v7027 = vpack.c.b16 %v6915, %v6907
    %v7028 = vpack.c.b16 %v6916, %v6908
    %v7029 = vpack.c.b16 %v6917, %v6909
    %v7030 = vpack.c.b16 %v6918, %v6910
    %v7031 = vpack.c.b16 %v6927, %v6919
    %v7032 = vpack.c.b16 %v6928, %v6920
    %v7033 = vpack.c.b16 %v6929, %v6921
    %v7034 = vpack.c.b16 %v6930, %v6922
    %v7035 = vpack.c.b16 %v6931, %v6923
    %v7036 = vpack.c.b16 %v6932, %v6924
    %v7037 = vpack.c.b16 %v6933, %v6925
    %v7038 = vpack.c.b16 %v6934, %v6926
    %v7039 = vpack.c.b16 %v6943, %v6935
    %v7040 = vpack.c.b16 %v6944, %v6936
    %v7041 = vpack.c.b16 %v6945, %v6937
    %v7042 = vpack.c.b16 %v6946, %v6938
    %v7043 = vpack.c.b16 %v6947, %v6939
    %v7044 = vpack.c.b16 %v6948, %v6940
    %v7045 = vpack.c.b16 %v6949, %v6941
    %v7046 = vpack.c.b16 %v6950, %v6942
    %v7047 = vpack.c.b16 %v6959, %v6951
    %v7048 = vpack.c.b16 %v6960, %v6952
    %v7049 = vpack.c.b16 %v6961, %v6953
    %v7050 = vpack.c.b16 %v6962, %v6954
    %v7051 = vpack.c.b16 %v6963, %v6955
    %v7052 = vpack.c.b16 %v6964, %v6956
    %v7053 = vpack.c.b16 %v6965, %v6957
    %v7054 = vpack.c.b16 %v6966, %v6958
    %v7055 = vpack.c.b16 %v6975, %v6967
    %v7056 = vpack.c.b16 %v6976, %v6968
    %v7057 = vpack.c.b16 %v6977, %v6969
    %v7058 = vpack.c.b16 %v6978, %v6970
    %v7059 = vpack.c.b16 %v6979, %v6971
    %v7060 = vpack.c.b16 %v6980, %v6972
    %v7061 = vpack.c.b16 %v6981, %v6973
    %v7062 = vpack.c.b16 %v6982, %v6974
    %v7063 = vpack.c.b16 %v6991, %v6983
    %v7064 = vpack.c.b16 %v6992, %v6984
    %v7065 = vpack.c.b16 %v6993, %v6985
    %v7066 = vpack.c.b16 %v6994, %v6986
    %v7067 = vpack.c.b16 %v6995, %v6987
    %v7068 = vpack.c.b16 %v6996, %v6988
    %v7069 = vpack.c.b16 %v6997, %v6989
    %v7070 = vpack.c.b16 %v6998, %v6990
    %v7071 = vpack.c.b16 %v7007, %v6999
    %v7072 = vpack.c.b16 %v7008, %v7000
    %v7073 = vpack.c.b16 %v7009, %v7001
    %v7074 = vpack.c.b16 %v7010, %v7002
    %v7075 = vpack.c.b16 %v7011, %v7003
    %v7076 = vpack.c.b16 %v7012, %v7004
    %v7077 = vpack.c.b16 %v7013, %v7005
    %v7078 = vpack.c.b16 %v7014, %v7006
    %7143 = vmatpush.bf16.msra.mxu0 %v7071
    %7144 = vmatpush.bf16.msra.mxu0 %v7063
    %7145 = vmatpush.bf16.msra.mxu0 %v7055
    %7146 = vmatpush.bf16.msra.mxu0 %v7047
    %7147 = vmatpush.bf16.msra.mxu0 %v7039
    %7148 = vmatpush.bf16.msra.mxu0 %v7031
    %7149 = vmatpush.bf16.msra.mxu0 %v7023
    %7150 = vmatpush.bf16.msra.mxu0 %v7015
    %7151 = vmatmul.bf16.gmra.mxu0 %v6821
    %v7152 = vpop.f32.mrf.mxu0
    %v7153 = vadd.f32 0.0, %v7152
    %v7154 = vpop.f32.mrf.mxu0
    %7155 = vdwg.mxu0
    %7156 = vmatpush.bf16.msra.mxu0 %v7072
    %7157 = vmatpush.bf16.msra.mxu0 %v7064
    %7158 = vmatpush.bf16.msra.mxu0 %v7056
    %7159 = vmatpush.bf16.msra.mxu0 %v7048
    %7160 = vmatpush.bf16.msra.mxu0 %v7040
    %7161 = vmatpush.bf16.msra.mxu0 %v7032
    %7162 = vmatpush.bf16.msra.mxu0 %v7024
    %7163 = vmatpush.bf16.msra.mxu0 %v7016
    %7164 = vmatmul.bf16.gmra.mxu0 %v6821
    %v7165 = vpop.f32.mrf.mxu0
    %v7166 = vadd.f32 0.0, %v7165
    %v7167 = vpop.f32.mrf.mxu0
    %7168 = vdwg.mxu0
    %7169 = vmatpush.bf16.msra.mxu0 %v7073
    %7170 = vmatpush.bf16.msra.mxu0 %v7065
    %7171 = vmatpush.bf16.msra.mxu0 %v7057
    %7172 = vmatpush.bf16.msra.mxu0 %v7049
    %7173 = vmatpush.bf16.msra.mxu0 %v7041
    %7174 = vmatpush.bf16.msra.mxu0 %v7033
    %7175 = vmatpush.bf16.msra.mxu0 %v7025
    %7176 = vmatpush.bf16.msra.mxu0 %v7017
    %7177 = vmatmul.bf16.gmra.mxu0 %v6821
    %v7178 = vpop.f32.mrf.mxu0
    %v7179 = vadd.f32 0.0, %v7178
    %v7180 = vpop.f32.mrf.mxu0
    %7181 = vdwg.mxu0
    %7182 = vmatpush.bf16.msra.mxu0 %v7074
    %7183 = vmatpush.bf16.msra.mxu0 %v7066
    %7184 = vmatpush.bf16.msra.mxu0 %v7058
    %7185 = vmatpush.bf16.msra.mxu0 %v7050
    %7186 = vmatpush.bf16.msra.mxu0 %v7042
    %7187 = vmatpush.bf16.msra.mxu0 %v7034
    %7188 = vmatpush.bf16.msra.mxu0 %v7026
    %7189 = vmatpush.bf16.msra.mxu0 %v7018
    %7190 = vmatmul.bf16.gmra.mxu0 %v6821
    %v7191 = vpop.f32.mrf.mxu0
    %v7192 = vadd.f32 0.0, %v7191
    %v7193 = vpop.f32.mrf.mxu0
    %7194 = vdwg.mxu0
    %7195 = vmatpush.bf16.msra.mxu0 %v7075
    %7196 = vmatpush.bf16.msra.mxu0 %v7067
    %7197 = vmatpush.bf16.msra.mxu0 %v7059
    %7198 = vmatpush.bf16.msra.mxu0 %v7051
    %7199 = vmatpush.bf16.msra.mxu0 %v7043
    %7200 = vmatpush.bf16.msra.mxu0 %v7035
    %7201 = vmatpush.bf16.msra.mxu0 %v7027
    %7202 = vmatpush.bf16.msra.mxu0 %v7019
    %7203 = vmatmul.bf16.gmra.mxu0 %v6821
    %v7204 = vpop.f32.mrf.mxu0
    %v7205 = vadd.f32 0.0, %v7204
    %v7206 = vpop.f32.mrf.mxu0
    %7207 = vdwg.mxu0
    %7208 = vmatpush.bf16.msra.mxu0 %v7076
    %7209 = vmatpush.bf16.msra.mxu0 %v7068
    %7210 = vmatpush.bf16.msra.mxu0 %v7060
    %7211 = vmatpush.bf16.msra.mxu0 %v7052
    %7212 = vmatpush.bf16.msra.mxu0 %v7044
    %7213 = vmatpush.bf16.msra.mxu0 %v7036
    %7214 = vmatpush.bf16.msra.mxu0 %v7028
    %7215 = vmatpush.bf16.msra.mxu0 %v7020
    %7216 = vmatmul.bf16.gmra.mxu0 %v6821
    %v7217 = vpop.f32.mrf.mxu0
    %v7218 = vadd.f32 0.0, %v7217
    %v7219 = vpop.f32.mrf.mxu0
    %7220 = vdwg.mxu0
    %7221 = vmatpush.bf16.msra.mxu0 %v7077
    %7222 = vmatpush.bf16.msra.mxu0 %v7069
    %7223 = vmatpush.bf16.msra.mxu0 %v7061
    %7224 = vmatpush.bf16.msra.mxu0 %v7053
    %7225 = vmatpush.bf16.msra.mxu0 %v7045
    %7226 = vmatpush.bf16.msra.mxu0 %v7037
    %7227 = vmatpush.bf16.msra.mxu0 %v7029
    %7228 = vmatpush.bf16.msra.mxu0 %v7021
    %7229 = vmatmul.bf16.gmra.mxu0 %v6821
    %v7230 = vpop.f32.mrf.mxu0
    %v7231 = vadd.f32 0.0, %v7230
    %v7232 = vpop.f32.mrf.mxu0
    %7233 = vdwg.mxu0
    %7234 = vmatpush.bf16.msra.mxu0 %v7078
    %7235 = vmatpush.bf16.msra.mxu0 %v7070
    %7236 = vmatpush.bf16.msra.mxu0 %v7062
    %7237 = vmatpush.bf16.msra.mxu0 %v7054
    %7238 = vmatpush.bf16.msra.mxu0 %v7046
    %7239 = vmatpush.bf16.msra.mxu0 %v7038
    %7240 = vmatpush.bf16.msra.mxu0 %v7030
    %7241 = vmatpush.bf16.msra.mxu0 %v7022
    %7242 = vmatmul.bf16.gmra.mxu0 %v6821
    %v7243 = vpop.f32.mrf.mxu0
    %v7244 = vadd.f32 0.0, %v7243
    %v7245 = vpop.f32.mrf.mxu0
    %7246 = vdwg.mxu0
    %v7247 = vadd.f32 %v6745, %v7153
    %v7248 = vadd.f32 %v6746, %v7166
    %v7249 = vadd.f32 %v6747, %v7179
    %v7250 = vadd.f32 %v6748, %v7192
    %v7251 = vadd.f32 %v6749, %v7205
    %v7252 = vadd.f32 %v6750, %v7218
    %v7253 = vadd.f32 %v6751, %v7231
    %v7254 = vadd.f32 %v6752, %v7244
    %s7255 = scalar_lea.vmem [#allocation2], 3072
    %v7256 = vld [vmem:[%s7255] sm:$0xff]
    %v7257 = vld [vmem:[%s7255 + $0x8] sm:$0xff]
    %v7258 = vld [vmem:[%s7255 + $0x10] sm:$0xff]
    %v7259 = vld [vmem:[%s7255 + $0x18] sm:$0xff]
    %v7260 = vld [vmem:[%s7255 + $0x20] sm:$0xff]
    %v7261 = vld [vmem:[%s7255 + $0x28] sm:$0xff]
    %v7262 = vld [vmem:[%s7255 + $0x30] sm:$0xff]
    %v7263 = vld [vmem:[%s7255 + $0x38] sm:$0xff]
    %v7264 = vld [vmem:[%s7255 + $0x40] sm:$0xff]
    %v7265 = vld [vmem:[%s7255 + $0x48] sm:$0xff]
    %v7266 = vld [vmem:[%s7255 + $0x50] sm:$0xff]
    %v7267 = vld [vmem:[%s7255 + $0x58] sm:$0xff]
    %v7268 = vld [vmem:[%s7255 + $0x60] sm:$0xff]
    %v7269 = vld [vmem:[%s7255 + $0x68] sm:$0xff]
    %v7270 = vld [vmem:[%s7255 + $0x70] sm:$0xff]
    %v7271 = vld [vmem:[%s7255 + $0x78] sm:$0xff]
    %v7272 = vld [vmem:[%s7255 + $0x80] sm:$0xff]
    %v7273 = vld [vmem:[%s7255 + $0x88] sm:$0xff]
    %v7274 = vld [vmem:[%s7255 + $0x90] sm:$0xff]
    %v7275 = vld [vmem:[%s7255 + $0x98] sm:$0xff]
    %v7276 = vld [vmem:[%s7255 + $0xa0] sm:$0xff]
    %v7277 = vld [vmem:[%s7255 + $0xa8] sm:$0xff]
    %v7278 = vld [vmem:[%s7255 + $0xb0] sm:$0xff]
    %v7279 = vld [vmem:[%s7255 + $0xb8] sm:$0xff]
    %v7280 = vld [vmem:[%s7255 + $0xc0] sm:$0xff]
    %v7281 = vld [vmem:[%s7255 + $0xc8] sm:$0xff]
    %v7282 = vld [vmem:[%s7255 + $0xd0] sm:$0xff]
    %v7283 = vld [vmem:[%s7255 + $0xd8] sm:$0xff]
    %v7284 = vld [vmem:[%s7255 + $0xe0] sm:$0xff]
    %v7285 = vld [vmem:[%s7255 + $0xe8] sm:$0xff]
    %v7286 = vld [vmem:[%s7255 + $0xf0] sm:$0xff]
    %v7287 = vld [vmem:[%s7255 + $0xf8] sm:$0xff]
    %v7288 = vld [vmem:[%s7255 + $0x100] sm:$0xff]
    %v7289 = vld [vmem:[%s7255 + $0x108] sm:$0xff]
    %v7290 = vld [vmem:[%s7255 + $0x110] sm:$0xff]
    %v7291 = vld [vmem:[%s7255 + $0x118] sm:$0xff]
    %v7292 = vld [vmem:[%s7255 + $0x120] sm:$0xff]
    %v7293 = vld [vmem:[%s7255 + $0x128] sm:$0xff]
    %v7294 = vld [vmem:[%s7255 + $0x130] sm:$0xff]
    %v7295 = vld [vmem:[%s7255 + $0x138] sm:$0xff]
    %v7296 = vld [vmem:[%s7255 + $0x140] sm:$0xff]
    %v7297 = vld [vmem:[%s7255 + $0x148] sm:$0xff]
    %v7298 = vld [vmem:[%s7255 + $0x150] sm:$0xff]
    %v7299 = vld [vmem:[%s7255 + $0x158] sm:$0xff]
    %v7300 = vld [vmem:[%s7255 + $0x160] sm:$0xff]
    %v7301 = vld [vmem:[%s7255 + $0x168] sm:$0xff]
    %v7302 = vld [vmem:[%s7255 + $0x170] sm:$0xff]
    %v7303 = vld [vmem:[%s7255 + $0x178] sm:$0xff]
    %v7304 = vld [vmem:[%s7255 + $0x180] sm:$0xff]
    %v7305 = vld [vmem:[%s7255 + $0x188] sm:$0xff]
    %v7306 = vld [vmem:[%s7255 + $0x190] sm:$0xff]
    %v7307 = vld [vmem:[%s7255 + $0x198] sm:$0xff]
    %v7308 = vld [vmem:[%s7255 + $0x1a0] sm:$0xff]
    %v7309 = vld [vmem:[%s7255 + $0x1a8] sm:$0xff]
    %v7310 = vld [vmem:[%s7255 + $0x1b0] sm:$0xff]
    %v7311 = vld [vmem:[%s7255 + $0x1b8] sm:$0xff]
    %v7312 = vld [vmem:[%s7255 + $0x1c0] sm:$0xff]
    %v7313 = vld [vmem:[%s7255 + $0x1c8] sm:$0xff]
    %v7314 = vld [vmem:[%s7255 + $0x1d0] sm:$0xff]
    %v7315 = vld [vmem:[%s7255 + $0x1d8] sm:$0xff]
    %v7316 = vld [vmem:[%s7255 + $0x1e0] sm:$0xff]
    %v7317 = vld [vmem:[%s7255 + $0x1e8] sm:$0xff]
    %v7318 = vld [vmem:[%s7255 + $0x1f0] sm:$0xff]
    %v7319 = vld [vmem:[%s7255 + $0x1f8] sm:$0xff]
    %v7320 = vrot.slane %v4315, 6
    %v7321 = vrot.slane %v4316, 5
    %v7322 = vsel %vm4318, %v7321, %v7320
    %v7323 = vpack.c.b16 %v7322, %v7322
    %v7389 = vunpack.c.l.b16 %v7256
    %v7390 = vunpack.c.h.b16 %v7256
    %v7391 = vunpack.c.l.b16 %v7257
    %v7392 = vunpack.c.h.b16 %v7257
    %v7393 = vunpack.c.l.b16 %v7258
    %v7394 = vunpack.c.h.b16 %v7258
    %v7395 = vunpack.c.l.b16 %v7259
    %v7396 = vunpack.c.h.b16 %v7259
    %v7397 = vunpack.c.l.b16 %v7260
    %v7398 = vunpack.c.h.b16 %v7260
    %v7399 = vunpack.c.l.b16 %v7261
    %v7400 = vunpack.c.h.b16 %v7261
    %v7401 = vunpack.c.l.b16 %v7262
    %v7402 = vunpack.c.h.b16 %v7262
    %v7403 = vunpack.c.l.b16 %v7263
    %v7404 = vunpack.c.h.b16 %v7263
    %v7405 = vunpack.c.l.b16 %v7264
    %v7406 = vunpack.c.h.b16 %v7264
    %v7407 = vunpack.c.l.b16 %v7265
    %v7408 = vunpack.c.h.b16 %v7265
    %v7409 = vunpack.c.l.b16 %v7266
    %v7410 = vunpack.c.h.b16 %v7266
    %v7411 = vunpack.c.l.b16 %v7267
    %v7412 = vunpack.c.h.b16 %v7267
    %v7413 = vunpack.c.l.b16 %v7268
    %v7414 = vunpack.c.h.b16 %v7268
    %v7415 = vunpack.c.l.b16 %v7269
    %v7416 = vunpack.c.h.b16 %v7269
    %v7417 = vunpack.c.l.b16 %v7270
    %v7418 = vunpack.c.h.b16 %v7270
    %v7419 = vunpack.c.l.b16 %v7271
    %v7420 = vunpack.c.h.b16 %v7271
    %v7421 = vunpack.c.l.b16 %v7272
    %v7422 = vunpack.c.h.b16 %v7272
    %v7423 = vunpack.c.l.b16 %v7273
    %v7424 = vunpack.c.h.b16 %v7273
    %v7425 = vunpack.c.l.b16 %v7274
    %v7426 = vunpack.c.h.b16 %v7274
    %v7427 = vunpack.c.l.b16 %v7275
    %v7428 = vunpack.c.h.b16 %v7275
    %v7429 = vunpack.c.l.b16 %v7276
    %v7430 = vunpack.c.h.b16 %v7276
    %v7431 = vunpack.c.l.b16 %v7277
    %v7432 = vunpack.c.h.b16 %v7277
    %v7433 = vunpack.c.l.b16 %v7278
    %v7434 = vunpack.c.h.b16 %v7278
    %v7435 = vunpack.c.l.b16 %v7279
    %v7436 = vunpack.c.h.b16 %v7279
    %v7437 = vunpack.c.l.b16 %v7280
    %v7438 = vunpack.c.h.b16 %v7280
    %v7439 = vunpack.c.l.b16 %v7281
    %v7440 = vunpack.c.h.b16 %v7281
    %v7441 = vunpack.c.l.b16 %v7282
    %v7442 = vunpack.c.h.b16 %v7282
    %v7443 = vunpack.c.l.b16 %v7283
    %v7444 = vunpack.c.h.b16 %v7283
    %v7445 = vunpack.c.l.b16 %v7284
    %v7446 = vunpack.c.h.b16 %v7284
    %v7447 = vunpack.c.l.b16 %v7285
    %v7448 = vunpack.c.h.b16 %v7285
    %v7449 = vunpack.c.l.b16 %v7286
    %v7450 = vunpack.c.h.b16 %v7286
    %v7451 = vunpack.c.l.b16 %v7287
    %v7452 = vunpack.c.h.b16 %v7287
    %v7453 = vunpack.c.l.b16 %v7288
    %v7454 = vunpack.c.h.b16 %v7288
    %v7455 = vunpack.c.l.b16 %v7289
    %v7456 = vunpack.c.h.b16 %v7289
    %v7457 = vunpack.c.l.b16 %v7290
    %v7458 = vunpack.c.h.b16 %v7290
    %v7459 = vunpack.c.l.b16 %v7291
    %v7460 = vunpack.c.h.b16 %v7291
    %v7461 = vunpack.c.l.b16 %v7292
    %v7462 = vunpack.c.h.b16 %v7292
    %v7463 = vunpack.c.l.b16 %v7293
    %v7464 = vunpack.c.h.b16 %v7293
    %v7465 = vunpack.c.l.b16 %v7294
    %v7466 = vunpack.c.h.b16 %v7294
    %v7467 = vunpack.c.l.b16 %v7295
    %v7468 = vunpack.c.h.b16 %v7295
    %v7469 = vunpack.c.l.b16 %v7296
    %v7470 = vunpack.c.h.b16 %v7296
    %v7471 = vunpack.c.l.b16 %v7297
    %v7472 = vunpack.c.h.b16 %v7297
    %v7473 = vunpack.c.l.b16 %v7298
    %v7474 = vunpack.c.h.b16 %v7298
    %v7475 = vunpack.c.l.b16 %v7299
    %v7476 = vunpack.c.h.b16 %v7299
    %v7477 = vunpack.c.l.b16 %v7300
    %v7478 = vunpack.c.h.b16 %v7300
    %v7479 = vunpack.c.l.b16 %v7301
    %v7480 = vunpack.c.h.b16 %v7301
    %v7481 = vunpack.c.l.b16 %v7302
    %v7482 = vunpack.c.h.b16 %v7302
    %v7483 = vunpack.c.l.b16 %v7303
    %v7484 = vunpack.c.h.b16 %v7303
    %v7485 = vunpack.c.l.b16 %v7304
    %v7486 = vunpack.c.h.b16 %v7304
    %v7487 = vunpack.c.l.b16 %v7305
    %v7488 = vunpack.c.h.b16 %v7305
    %v7489 = vunpack.c.l.b16 %v7306
    %v7490 = vunpack.c.h.b16 %v7306
    %v7491 = vunpack.c.l.b16 %v7307
    %v7492 = vunpack.c.h.b16 %v7307
    %v7493 = vunpack.c.l.b16 %v7308
    %v7494 = vunpack.c.h.b16 %v7308
    %v7495 = vunpack.c.l.b16 %v7309
    %v7496 = vunpack.c.h.b16 %v7309
    %v7497 = vunpack.c.l.b16 %v7310
    %v7498 = vunpack.c.h.b16 %v7310
    %v7499 = vunpack.c.l.b16 %v7311
    %v7500 = vunpack.c.h.b16 %v7311
    %v7501 = vunpack.c.l.b16 %v7312
    %v7502 = vunpack.c.h.b16 %v7312
    %v7503 = vunpack.c.l.b16 %v7313
    %v7504 = vunpack.c.h.b16 %v7313
    %v7505 = vunpack.c.l.b16 %v7314
    %v7506 = vunpack.c.h.b16 %v7314
    %v7507 = vunpack.c.l.b16 %v7315
    %v7508 = vunpack.c.h.b16 %v7315
    %v7509 = vunpack.c.l.b16 %v7316
    %v7510 = vunpack.c.h.b16 %v7316
    %v7511 = vunpack.c.l.b16 %v7317
    %v7512 = vunpack.c.h.b16 %v7317
    %v7513 = vunpack.c.l.b16 %v7318
    %v7514 = vunpack.c.h.b16 %v7318
    %v7515 = vunpack.c.l.b16 %v7319
    %v7516 = vunpack.c.h.b16 %v7319
    %v7517 = vpack.c.b16 %v7397, %v7389
    %v7518 = vpack.c.b16 %v7398, %v7390
    %v7519 = vpack.c.b16 %v7399, %v7391
    %v7520 = vpack.c.b16 %v7400, %v7392
    %v7521 = vpack.c.b16 %v7401, %v7393
    %v7522 = vpack.c.b16 %v7402, %v7394
    %v7523 = vpack.c.b16 %v7403, %v7395
    %v7524 = vpack.c.b16 %v7404, %v7396
    %v7525 = vpack.c.b16 %v7413, %v7405
    %v7526 = vpack.c.b16 %v7414, %v7406
    %v7527 = vpack.c.b16 %v7415, %v7407
    %v7528 = vpack.c.b16 %v7416, %v7408
    %v7529 = vpack.c.b16 %v7417, %v7409
    %v7530 = vpack.c.b16 %v7418, %v7410
    %v7531 = vpack.c.b16 %v7419, %v7411
    %v7532 = vpack.c.b16 %v7420, %v7412
    %v7533 = vpack.c.b16 %v7429, %v7421
    %v7534 = vpack.c.b16 %v7430, %v7422
    %v7535 = vpack.c.b16 %v7431, %v7423
    %v7536 = vpack.c.b16 %v7432, %v7424
    %v7537 = vpack.c.b16 %v7433, %v7425
    %v7538 = vpack.c.b16 %v7434, %v7426
    %v7539 = vpack.c.b16 %v7435, %v7427
    %v7540 = vpack.c.b16 %v7436, %v7428
    %v7541 = vpack.c.b16 %v7445, %v7437
    %v7542 = vpack.c.b16 %v7446, %v7438
    %v7543 = vpack.c.b16 %v7447, %v7439
    %v7544 = vpack.c.b16 %v7448, %v7440
    %v7545 = vpack.c.b16 %v7449, %v7441
    %v7546 = vpack.c.b16 %v7450, %v7442
    %v7547 = vpack.c.b16 %v7451, %v7443
    %v7548 = vpack.c.b16 %v7452, %v7444
    %v7549 = vpack.c.b16 %v7461, %v7453
    %v7550 = vpack.c.b16 %v7462, %v7454
    %v7551 = vpack.c.b16 %v7463, %v7455
    %v7552 = vpack.c.b16 %v7464, %v7456
    %v7553 = vpack.c.b16 %v7465, %v7457
    %v7554 = vpack.c.b16 %v7466, %v7458
    %v7555 = vpack.c.b16 %v7467, %v7459
    %v7556 = vpack.c.b16 %v7468, %v7460
    %v7557 = vpack.c.b16 %v7477, %v7469
    %v7558 = vpack.c.b16 %v7478, %v7470
    %v7559 = vpack.c.b16 %v7479, %v7471
    %v7560 = vpack.c.b16 %v7480, %v7472
    %v7561 = vpack.c.b16 %v7481, %v7473
    %v7562 = vpack.c.b16 %v7482, %v7474
    %v7563 = vpack.c.b16 %v7483, %v7475
    %v7564 = vpack.c.b16 %v7484, %v7476
    %v7565 = vpack.c.b16 %v7493, %v7485
    %v7566 = vpack.c.b16 %v7494, %v7486
    %v7567 = vpack.c.b16 %v7495, %v7487
    %v7568 = vpack.c.b16 %v7496, %v7488
    %v7569 = vpack.c.b16 %v7497, %v7489
    %v7570 = vpack.c.b16 %v7498, %v7490
    %v7571 = vpack.c.b16 %v7499, %v7491
    %v7572 = vpack.c.b16 %v7500, %v7492
    %v7573 = vpack.c.b16 %v7509, %v7501
    %v7574 = vpack.c.b16 %v7510, %v7502
    %v7575 = vpack.c.b16 %v7511, %v7503
    %v7576 = vpack.c.b16 %v7512, %v7504
    %v7577 = vpack.c.b16 %v7513, %v7505
    %v7578 = vpack.c.b16 %v7514, %v7506
    %v7579 = vpack.c.b16 %v7515, %v7507
    %v7580 = vpack.c.b16 %v7516, %v7508
    %7645 = vmatpush.bf16.msra.mxu0 %v7573
    %7646 = vmatpush.bf16.msra.mxu0 %v7565
    %7647 = vmatpush.bf16.msra.mxu0 %v7557
    %7648 = vmatpush.bf16.msra.mxu0 %v7549
    %7649 = vmatpush.bf16.msra.mxu0 %v7541
    %7650 = vmatpush.bf16.msra.mxu0 %v7533
    %7651 = vmatpush.bf16.msra.mxu0 %v7525
    %7652 = vmatpush.bf16.msra.mxu0 %v7517
    %7653 = vmatmul.bf16.gmra.mxu0 %v7323
    %v7654 = vpop.f32.mrf.mxu0
    %v7655 = vadd.f32 0.0, %v7654
    %v7656 = vpop.f32.mrf.mxu0
    %7657 = vdwg.mxu0
    %7658 = vmatpush.bf16.msra.mxu0 %v7574
    %7659 = vmatpush.bf16.msra.mxu0 %v7566
    %7660 = vmatpush.bf16.msra.mxu0 %v7558
    %7661 = vmatpush.bf16.msra.mxu0 %v7550
    %7662 = vmatpush.bf16.msra.mxu0 %v7542
    %7663 = vmatpush.bf16.msra.mxu0 %v7534
    %7664 = vmatpush.bf16.msra.mxu0 %v7526
    %7665 = vmatpush.bf16.msra.mxu0 %v7518
    %7666 = vmatmul.bf16.gmra.mxu0 %v7323
    %v7667 = vpop.f32.mrf.mxu0
    %v7668 = vadd.f32 0.0, %v7667
    %v7669 = vpop.f32.mrf.mxu0
    %7670 = vdwg.mxu0
    %7671 = vmatpush.bf16.msra.mxu0 %v7575
    %7672 = vmatpush.bf16.msra.mxu0 %v7567
    %7673 = vmatpush.bf16.msra.mxu0 %v7559
    %7674 = vmatpush.bf16.msra.mxu0 %v7551
    %7675 = vmatpush.bf16.msra.mxu0 %v7543
    %7676 = vmatpush.bf16.msra.mxu0 %v7535
    %7677 = vmatpush.bf16.msra.mxu0 %v7527
    %7678 = vmatpush.bf16.msra.mxu0 %v7519
    %7679 = vmatmul.bf16.gmra.mxu0 %v7323
    %v7680 = vpop.f32.mrf.mxu0
    %v7681 = vadd.f32 0.0, %v7680
    %v7682 = vpop.f32.mrf.mxu0
    %7683 = vdwg.mxu0
    %7684 = vmatpush.bf16.msra.mxu0 %v7576
    %7685 = vmatpush.bf16.msra.mxu0 %v7568
    %7686 = vmatpush.bf16.msra.mxu0 %v7560
    %7687 = vmatpush.bf16.msra.mxu0 %v7552
    %7688 = vmatpush.bf16.msra.mxu0 %v7544
    %7689 = vmatpush.bf16.msra.mxu0 %v7536
    %7690 = vmatpush.bf16.msra.mxu0 %v7528
    %7691 = vmatpush.bf16.msra.mxu0 %v7520
    %7692 = vmatmul.bf16.gmra.mxu0 %v7323
    %v7693 = vpop.f32.mrf.mxu0
    %v7694 = vadd.f32 0.0, %v7693
    %v7695 = vpop.f32.mrf.mxu0
    %7696 = vdwg.mxu0
    %7697 = vmatpush.bf16.msra.mxu0 %v7577
    %7698 = vmatpush.bf16.msra.mxu0 %v7569
    %7699 = vmatpush.bf16.msra.mxu0 %v7561
    %7700 = vmatpush.bf16.msra.mxu0 %v7553
    %7701 = vmatpush.bf16.msra.mxu0 %v7545
    %7702 = vmatpush.bf16.msra.mxu0 %v7537
    %7703 = vmatpush.bf16.msra.mxu0 %v7529
    %7704 = vmatpush.bf16.msra.mxu0 %v7521
    %7705 = vmatmul.bf16.gmra.mxu0 %v7323
    %v7706 = vpop.f32.mrf.mxu0
    %v7707 = vadd.f32 0.0, %v7706
    %v7708 = vpop.f32.mrf.mxu0
    %7709 = vdwg.mxu0
    %7710 = vmatpush.bf16.msra.mxu0 %v7578
    %7711 = vmatpush.bf16.msra.mxu0 %v7570
    %7712 = vmatpush.bf16.msra.mxu0 %v7562
    %7713 = vmatpush.bf16.msra.mxu0 %v7554
    %7714 = vmatpush.bf16.msra.mxu0 %v7546
    %7715 = vmatpush.bf16.msra.mxu0 %v7538
    %7716 = vmatpush.bf16.msra.mxu0 %v7530
    %7717 = vmatpush.bf16.msra.mxu0 %v7522
    %7718 = vmatmul.bf16.gmra.mxu0 %v7323
    %v7719 = vpop.f32.mrf.mxu0
    %v7720 = vadd.f32 0.0, %v7719
    %v7721 = vpop.f32.mrf.mxu0
    %7722 = vdwg.mxu0
    %7723 = vmatpush.bf16.msra.mxu0 %v7579
    %7724 = vmatpush.bf16.msra.mxu0 %v7571
    %7725 = vmatpush.bf16.msra.mxu0 %v7563
    %7726 = vmatpush.bf16.msra.mxu0 %v7555
    %7727 = vmatpush.bf16.msra.mxu0 %v7547
    %7728 = vmatpush.bf16.msra.mxu0 %v7539
    %7729 = vmatpush.bf16.msra.mxu0 %v7531
    %7730 = vmatpush.bf16.msra.mxu0 %v7523
    %7731 = vmatmul.bf16.gmra.mxu0 %v7323
    %v7732 = vpop.f32.mrf.mxu0
    %v7733 = vadd.f32 0.0, %v7732
    %v7734 = vpop.f32.mrf.mxu0
    %7735 = vdwg.mxu0
    %7736 = vmatpush.bf16.msra.mxu0 %v7580
    %7737 = vmatpush.bf16.msra.mxu0 %v7572
    %7738 = vmatpush.bf16.msra.mxu0 %v7564
    %7739 = vmatpush.bf16.msra.mxu0 %v7556
    %7740 = vmatpush.bf16.msra.mxu0 %v7548
    %7741 = vmatpush.bf16.msra.mxu0 %v7540
    %7742 = vmatpush.bf16.msra.mxu0 %v7532
    %7743 = vmatpush.bf16.msra.mxu0 %v7524
    %7744 = vmatmul.bf16.gmra.mxu0 %v7323
    %v7745 = vpop.f32.mrf.mxu0
    %v7746 = vadd.f32 0.0, %v7745
    %v7747 = vpop.f32.mrf.mxu0
    %7748 = vdwg.mxu0
    %v7749 = vadd.f32 %v7247, %v7655
    %v7750 = vadd.f32 %v7248, %v7668
    %v7751 = vadd.f32 %v7249, %v7681
    %v7752 = vadd.f32 %v7250, %v7694
    %v7753 = vadd.f32 %v7251, %v7707
    %v7754 = vadd.f32 %v7252, %v7720
    %v7755 = vadd.f32 %v7253, %v7733
    %v7756 = vadd.f32 %v7254, %v7746
    %v7757 = vmax.f32 %v7749, 0.0
    %v7758 = vmax.f32 %v7750, 0.0
    %v7759 = vmax.f32 %v7751, 0.0
    %v7760 = vmax.f32 %v7752, 0.0
    %v7761 = vmax.f32 %v7753, 0.0
    %v7762 = vmax.f32 %v7754, 0.0
    %v7763 = vmax.f32 %v7755, 0.0
    %v7764 = vmax.f32 %v7756, 0.0
    %v7765 = vpack.c.bf16 %v7757, %v7757
    %v7766 = vpack.c.bf16 %v7758, %v7758
    %v7767 = vpack.c.bf16 %v7759, %v7759
    %v7768 = vpack.c.bf16 %v7760, %v7760
    %v7769 = vpack.c.bf16 %v7761, %v7761
    %v7770 = vpack.c.bf16 %v7762, %v7762
    %v7771 = vpack.c.bf16 %v7763, %v7763
    %v7772 = vpack.c.bf16 %v7764, %v7764
    %v7773 = vld [vmem:[#allocation3] sm:$0xf]
    %v7774 = vld [vmem:[#allocation3 + $0x4] sm:$0xf]
    %v7775 = vld [vmem:[#allocation3 + $0x8] sm:$0xf]
    %v7776 = vld [vmem:[#allocation3 + $0xc] sm:$0xf]
    %v7777 = vld [vmem:[#allocation3 + $0x10] sm:$0xf]
    %v7778 = vld [vmem:[#allocation3 + $0x14] sm:$0xf]
    %v7779 = vld [vmem:[#allocation3 + $0x18] sm:$0xf]
    %v7780 = vld [vmem:[#allocation3 + $0x1c] sm:$0xf]
    %v7781 = vld [vmem:[#allocation3 + $0x20] sm:$0xf]
    %v7782 = vld [vmem:[#allocation3 + $0x24] sm:$0xf]
    %v7783 = vld [vmem:[#allocation3 + $0x28] sm:$0xf]
    %v7784 = vld [vmem:[#allocation3 + $0x2c] sm:$0xf]
    %v7785 = vld [vmem:[#allocation3 + $0x30] sm:$0xf]
    %v7786 = vld [vmem:[#allocation3 + $0x34] sm:$0xf]
    %v7787 = vld [vmem:[#allocation3 + $0x38] sm:$0xf]
    %v7788 = vld [vmem:[#allocation3 + $0x3c] sm:$0xf]
    %v7789 = vld [vmem:[#allocation3 + $0x40] sm:$0xf]
    %v7790 = vld [vmem:[#allocation3 + $0x44] sm:$0xf]
    %v7791 = vld [vmem:[#allocation3 + $0x48] sm:$0xf]
    %v7792 = vld [vmem:[#allocation3 + $0x4c] sm:$0xf]
    %v7793 = vld [vmem:[#allocation3 + $0x50] sm:$0xf]
    %v7794 = vld [vmem:[#allocation3 + $0x54] sm:$0xf]
    %v7795 = vld [vmem:[#allocation3 + $0x58] sm:$0xf]
    %v7796 = vld [vmem:[#allocation3 + $0x5c] sm:$0xf]
    %v7797 = vld [vmem:[#allocation3 + $0x60] sm:$0xf]
    %v7798 = vld [vmem:[#allocation3 + $0x64] sm:$0xf]
    %v7799 = vld [vmem:[#allocation3 + $0x68] sm:$0xf]
    %v7800 = vld [vmem:[#allocation3 + $0x6c] sm:$0xf]
    %v7801 = vld [vmem:[#allocation3 + $0x70] sm:$0xf]
    %v7802 = vld [vmem:[#allocation3 + $0x74] sm:$0xf]
    %v7803 = vld [vmem:[#allocation3 + $0x78] sm:$0xf]
    %v7804 = vld [vmem:[#allocation3 + $0x7c] sm:$0xf]
    %v7805 = vld [vmem:[#allocation3 + $0x80] sm:$0xf]
    %v7806 = vld [vmem:[#allocation3 + $0x84] sm:$0xf]
    %v7807 = vld [vmem:[#allocation3 + $0x88] sm:$0xf]
    %v7808 = vld [vmem:[#allocation3 + $0x8c] sm:$0xf]
    %v7809 = vld [vmem:[#allocation3 + $0x90] sm:$0xf]
    %v7810 = vld [vmem:[#allocation3 + $0x94] sm:$0xf]
    %v7811 = vld [vmem:[#allocation3 + $0x98] sm:$0xf]
    %v7812 = vld [vmem:[#allocation3 + $0x9c] sm:$0xf]
    %v7813 = vld [vmem:[#allocation3 + $0xa0] sm:$0xf]
    %v7814 = vld [vmem:[#allocation3 + $0xa4] sm:$0xf]
    %v7815 = vld [vmem:[#allocation3 + $0xa8] sm:$0xf]
    %v7816 = vld [vmem:[#allocation3 + $0xac] sm:$0xf]
    %v7817 = vld [vmem:[#allocation3 + $0xb0] sm:$0xf]
    %v7818 = vld [vmem:[#allocation3 + $0xb4] sm:$0xf]
    %v7819 = vld [vmem:[#allocation3 + $0xb8] sm:$0xf]
    %v7820 = vld [vmem:[#allocation3 + $0xbc] sm:$0xf]
    %v7821 = vld [vmem:[#allocation3 + $0xc0] sm:$0xf]
    %v7822 = vld [vmem:[#allocation3 + $0xc4] sm:$0xf]
    %v7823 = vld [vmem:[#allocation3 + $0xc8] sm:$0xf]
    %v7824 = vld [vmem:[#allocation3 + $0xcc] sm:$0xf]
    %v7825 = vld [vmem:[#allocation3 + $0xd0] sm:$0xf]
    %v7826 = vld [vmem:[#allocation3 + $0xd4] sm:$0xf]
    %v7827 = vld [vmem:[#allocation3 + $0xd8] sm:$0xf]
    %v7828 = vld [vmem:[#allocation3 + $0xdc] sm:$0xf]
    %v7829 = vld [vmem:[#allocation3 + $0xe0] sm:$0xf]
    %v7830 = vld [vmem:[#allocation3 + $0xe4] sm:$0xf]
    %v7831 = vld [vmem:[#allocation3 + $0xe8] sm:$0xf]
    %v7832 = vld [vmem:[#allocation3 + $0xec] sm:$0xf]
    %v7833 = vld [vmem:[#allocation3 + $0xf0] sm:$0xf]
    %v7834 = vld [vmem:[#allocation3 + $0xf4] sm:$0xf]
    %v7835 = vld [vmem:[#allocation3 + $0xf8] sm:$0xf]
    %v7836 = vld [vmem:[#allocation3 + $0xfc] sm:$0xf]
    %v7837 = vld [vmem:[#allocation3 + $0x100] sm:$0xf]
    %v7838 = vld [vmem:[#allocation3 + $0x104] sm:$0xf]
    %v7839 = vld [vmem:[#allocation3 + $0x108] sm:$0xf]
    %v7840 = vld [vmem:[#allocation3 + $0x10c] sm:$0xf]
    %v7841 = vld [vmem:[#allocation3 + $0x110] sm:$0xf]
    %v7842 = vld [vmem:[#allocation3 + $0x114] sm:$0xf]
    %v7843 = vld [vmem:[#allocation3 + $0x118] sm:$0xf]
    %v7844 = vld [vmem:[#allocation3 + $0x11c] sm:$0xf]
    %v7845 = vld [vmem:[#allocation3 + $0x120] sm:$0xf]
    %v7846 = vld [vmem:[#allocation3 + $0x124] sm:$0xf]
    %v7847 = vld [vmem:[#allocation3 + $0x128] sm:$0xf]
    %v7848 = vld [vmem:[#allocation3 + $0x12c] sm:$0xf]
    %v7849 = vld [vmem:[#allocation3 + $0x130] sm:$0xf]
    %v7850 = vld [vmem:[#allocation3 + $0x134] sm:$0xf]
    %v7851 = vld [vmem:[#allocation3 + $0x138] sm:$0xf]
    %v7852 = vld [vmem:[#allocation3 + $0x13c] sm:$0xf]
    %v7853 = vld [vmem:[#allocation3 + $0x140] sm:$0xf]
    %v7854 = vld [vmem:[#allocation3 + $0x144] sm:$0xf]
    %v7855 = vld [vmem:[#allocation3 + $0x148] sm:$0xf]
    %v7856 = vld [vmem:[#allocation3 + $0x14c] sm:$0xf]
    %v7857 = vld [vmem:[#allocation3 + $0x150] sm:$0xf]
    %v7858 = vld [vmem:[#allocation3 + $0x154] sm:$0xf]
    %v7859 = vld [vmem:[#allocation3 + $0x158] sm:$0xf]
    %v7860 = vld [vmem:[#allocation3 + $0x15c] sm:$0xf]
    %v7861 = vld [vmem:[#allocation3 + $0x160] sm:$0xf]
    %v7862 = vld [vmem:[#allocation3 + $0x164] sm:$0xf]
    %v7863 = vld [vmem:[#allocation3 + $0x168] sm:$0xf]
    %v7864 = vld [vmem:[#allocation3 + $0x16c] sm:$0xf]
    %v7865 = vld [vmem:[#allocation3 + $0x170] sm:$0xf]
    %v7866 = vld [vmem:[#allocation3 + $0x174] sm:$0xf]
    %v7867 = vld [vmem:[#allocation3 + $0x178] sm:$0xf]
    %v7868 = vld [vmem:[#allocation3 + $0x17c] sm:$0xf]
    %v7869 = vld [vmem:[#allocation3 + $0x180] sm:$0xf]
    %v7870 = vld [vmem:[#allocation3 + $0x184] sm:$0xf]
    %v7871 = vld [vmem:[#allocation3 + $0x188] sm:$0xf]
    %v7872 = vld [vmem:[#allocation3 + $0x18c] sm:$0xf]
    %v7873 = vld [vmem:[#allocation3 + $0x190] sm:$0xf]
    %v7874 = vld [vmem:[#allocation3 + $0x194] sm:$0xf]
    %v7875 = vld [vmem:[#allocation3 + $0x198] sm:$0xf]
    %v7876 = vld [vmem:[#allocation3 + $0x19c] sm:$0xf]
    %v7877 = vld [vmem:[#allocation3 + $0x1a0] sm:$0xf]
    %v7878 = vld [vmem:[#allocation3 + $0x1a4] sm:$0xf]
    %v7879 = vld [vmem:[#allocation3 + $0x1a8] sm:$0xf]
    %v7880 = vld [vmem:[#allocation3 + $0x1ac] sm:$0xf]
    %v7881 = vld [vmem:[#allocation3 + $0x1b0] sm:$0xf]
    %v7882 = vld [vmem:[#allocation3 + $0x1b4] sm:$0xf]
    %v7883 = vld [vmem:[#allocation3 + $0x1b8] sm:$0xf]
    %v7884 = vld [vmem:[#allocation3 + $0x1bc] sm:$0xf]
    %v7885 = vld [vmem:[#allocation3 + $0x1c0] sm:$0xf]
    %v7886 = vld [vmem:[#allocation3 + $0x1c4] sm:$0xf]
    %v7887 = vld [vmem:[#allocation3 + $0x1c8] sm:$0xf]
    %v7888 = vld [vmem:[#allocation3 + $0x1cc] sm:$0xf]
    %v7889 = vld [vmem:[#allocation3 + $0x1d0] sm:$0xf]
    %v7890 = vld [vmem:[#allocation3 + $0x1d4] sm:$0xf]
    %v7891 = vld [vmem:[#allocation3 + $0x1d8] sm:$0xf]
    %v7892 = vld [vmem:[#allocation3 + $0x1dc] sm:$0xf]
    %v7893 = vld [vmem:[#allocation3 + $0x1e0] sm:$0xf]
    %v7894 = vld [vmem:[#allocation3 + $0x1e4] sm:$0xf]
    %v7895 = vld [vmem:[#allocation3 + $0x1e8] sm:$0xf]
    %v7896 = vld [vmem:[#allocation3 + $0x1ec] sm:$0xf]
    %v7897 = vld [vmem:[#allocation3 + $0x1f0] sm:$0xf]
    %v7898 = vld [vmem:[#allocation3 + $0x1f4] sm:$0xf]
    %v7899 = vld [vmem:[#allocation3 + $0x1f8] sm:$0xf]
    %v7900 = vld [vmem:[#allocation3 + $0x1fc] sm:$0xf]
    %v7902 = vperm.slane %v4227, 0
    %v8032 = vunpack.c.l.b16 %v7773
    %v8033 = vunpack.c.l.b16 %v7774
    %v8034 = vunpack.c.l.b16 %v7775
    %v8035 = vunpack.c.l.b16 %v7776
    %v8036 = vunpack.c.l.b16 %v7777
    %v8037 = vunpack.c.l.b16 %v7778
    %v8038 = vunpack.c.l.b16 %v7779
    %v8039 = vunpack.c.l.b16 %v7780
    %v8040 = vunpack.c.l.b16 %v7781
    %v8041 = vunpack.c.l.b16 %v7782
    %v8042 = vunpack.c.l.b16 %v7783
    %v8043 = vunpack.c.l.b16 %v7784
    %v8044 = vunpack.c.l.b16 %v7785
    %v8045 = vunpack.c.l.b16 %v7786
    %v8046 = vunpack.c.l.b16 %v7787
    %v8047 = vunpack.c.l.b16 %v7788
    %v8048 = vunpack.c.l.b16 %v7789
    %v8049 = vunpack.c.l.b16 %v7790
    %v8050 = vunpack.c.l.b16 %v7791
    %v8051 = vunpack.c.l.b16 %v7792
    %v8052 = vunpack.c.l.b16 %v7793
    %v8053 = vunpack.c.l.b16 %v7794
    %v8054 = vunpack.c.l.b16 %v7795
    %v8055 = vunpack.c.l.b16 %v7796
    %v8056 = vunpack.c.l.b16 %v7797
    %v8057 = vunpack.c.l.b16 %v7798
    %v8058 = vunpack.c.l.b16 %v7799
    %v8059 = vunpack.c.l.b16 %v7800
    %v8060 = vunpack.c.l.b16 %v7801
    %v8061 = vunpack.c.l.b16 %v7802
    %v8062 = vunpack.c.l.b16 %v7803
    %v8063 = vunpack.c.l.b16 %v7804
    %v8064 = vunpack.c.l.b16 %v7805
    %v8065 = vunpack.c.l.b16 %v7806
    %v8066 = vunpack.c.l.b16 %v7807
    %v8067 = vunpack.c.l.b16 %v7808
    %v8068 = vunpack.c.l.b16 %v7809
    %v8069 = vunpack.c.l.b16 %v7810
    %v8070 = vunpack.c.l.b16 %v7811
    %v8071 = vunpack.c.l.b16 %v7812
    %v8072 = vunpack.c.l.b16 %v7813
    %v8073 = vunpack.c.l.b16 %v7814
    %v8074 = vunpack.c.l.b16 %v7815
    %v8075 = vunpack.c.l.b16 %v7816
    %v8076 = vunpack.c.l.b16 %v7817
    %v8077 = vunpack.c.l.b16 %v7818
    %v8078 = vunpack.c.l.b16 %v7819
    %v8079 = vunpack.c.l.b16 %v7820
    %v8080 = vunpack.c.l.b16 %v7821
    %v8081 = vunpack.c.l.b16 %v7822
    %v8082 = vunpack.c.l.b16 %v7823
    %v8083 = vunpack.c.l.b16 %v7824
    %v8084 = vunpack.c.l.b16 %v7825
    %v8085 = vunpack.c.l.b16 %v7826
    %v8086 = vunpack.c.l.b16 %v7827
    %v8087 = vunpack.c.l.b16 %v7828
    %v8088 = vunpack.c.l.b16 %v7829
    %v8089 = vunpack.c.l.b16 %v7830
    %v8090 = vunpack.c.l.b16 %v7831
    %v8091 = vunpack.c.l.b16 %v7832
    %v8092 = vunpack.c.l.b16 %v7833
    %v8093 = vunpack.c.l.b16 %v7834
    %v8094 = vunpack.c.l.b16 %v7835
    %v8095 = vunpack.c.l.b16 %v7836
    %v8096 = vunpack.c.l.b16 %v7837
    %v8097 = vunpack.c.l.b16 %v7838
    %v8098 = vunpack.c.l.b16 %v7839
    %v8099 = vunpack.c.l.b16 %v7840
    %v8100 = vunpack.c.l.b16 %v7841
    %v8101 = vunpack.c.l.b16 %v7842
    %v8102 = vunpack.c.l.b16 %v7843
    %v8103 = vunpack.c.l.b16 %v7844
    %v8104 = vunpack.c.l.b16 %v7845
    %v8105 = vunpack.c.l.b16 %v7846
    %v8106 = vunpack.c.l.b16 %v7847
    %v8107 = vunpack.c.l.b16 %v7848
    %v8108 = vunpack.c.l.b16 %v7849
    %v8109 = vunpack.c.l.b16 %v7850
    %v8110 = vunpack.c.l.b16 %v7851
    %v8111 = vunpack.c.l.b16 %v7852
    %v8112 = vunpack.c.l.b16 %v7853
    %v8113 = vunpack.c.l.b16 %v7854
    %v8114 = vunpack.c.l.b16 %v7855
    %v8115 = vunpack.c.l.b16 %v7856
    %v8116 = vunpack.c.l.b16 %v7857
    %v8117 = vunpack.c.l.b16 %v7858
    %v8118 = vunpack.c.l.b16 %v7859
    %v8119 = vunpack.c.l.b16 %v7860
    %v8120 = vunpack.c.l.b16 %v7861
    %v8121 = vunpack.c.l.b16 %v7862
    %v8122 = vunpack.c.l.b16 %v7863
    %v8123 = vunpack.c.l.b16 %v7864
    %v8124 = vunpack.c.l.b16 %v7865
    %v8125 = vunpack.c.l.b16 %v7866
    %v8126 = vunpack.c.l.b16 %v7867
    %v8127 = vunpack.c.l.b16 %v7868
    %v8128 = vunpack.c.l.b16 %v7869
    %v8129 = vunpack.c.l.b16 %v7870
    %v8130 = vunpack.c.l.b16 %v7871
    %v8131 = vunpack.c.l.b16 %v7872
    %v8132 = vunpack.c.l.b16 %v7873
    %v8133 = vunpack.c.l.b16 %v7874
    %v8134 = vunpack.c.l.b16 %v7875
    %v8135 = vunpack.c.l.b16 %v7876
    %v8136 = vunpack.c.l.b16 %v7877
    %v8137 = vunpack.c.l.b16 %v7878
    %v8138 = vunpack.c.l.b16 %v7879
    %v8139 = vunpack.c.l.b16 %v7880
    %v8140 = vunpack.c.l.b16 %v7881
    %v8141 = vunpack.c.l.b16 %v7882
    %v8142 = vunpack.c.l.b16 %v7883
    %v8143 = vunpack.c.l.b16 %v7884
    %v8144 = vunpack.c.l.b16 %v7885
    %v8145 = vunpack.c.l.b16 %v7886
    %v8146 = vunpack.c.l.b16 %v7887
    %v8147 = vunpack.c.l.b16 %v7888
    %v8148 = vunpack.c.l.b16 %v7889
    %v8149 = vunpack.c.l.b16 %v7890
    %v8150 = vunpack.c.l.b16 %v7891
    %v8151 = vunpack.c.l.b16 %v7892
    %v8152 = vunpack.c.l.b16 %v7893
    %v8153 = vunpack.c.l.b16 %v7894
    %v8154 = vunpack.c.l.b16 %v7895
    %v8155 = vunpack.c.l.b16 %v7896
    %v8156 = vunpack.c.l.b16 %v7897
    %v8157 = vunpack.c.l.b16 %v7898
    %v8158 = vunpack.c.l.b16 %v7899
    %v8159 = vunpack.c.l.b16 %v7900
    %v8160 = vpack.c.b16 %v8033, %v8032
    %v8161 = vpack.c.b16 %v8035, %v8034
    %v8162 = vpack.c.b16 %v8037, %v8036
    %v8163 = vpack.c.b16 %v8039, %v8038
    %v8164 = vpack.c.b16 %v8041, %v8040
    %v8165 = vpack.c.b16 %v8043, %v8042
    %v8166 = vpack.c.b16 %v8045, %v8044
    %v8167 = vpack.c.b16 %v8047, %v8046
    %v8168 = vpack.c.b16 %v8049, %v8048
    %v8169 = vpack.c.b16 %v8051, %v8050
    %v8170 = vpack.c.b16 %v8053, %v8052
    %v8171 = vpack.c.b16 %v8055, %v8054
    %v8172 = vpack.c.b16 %v8057, %v8056
    %v8173 = vpack.c.b16 %v8059, %v8058
    %v8174 = vpack.c.b16 %v8061, %v8060
    %v8175 = vpack.c.b16 %v8063, %v8062
    %v8176 = vpack.c.b16 %v8065, %v8064
    %v8177 = vpack.c.b16 %v8067, %v8066
    %v8178 = vpack.c.b16 %v8069, %v8068
    %v8179 = vpack.c.b16 %v8071, %v8070
    %v8180 = vpack.c.b16 %v8073, %v8072
    %v8181 = vpack.c.b16 %v8075, %v8074
    %v8182 = vpack.c.b16 %v8077, %v8076
    %v8183 = vpack.c.b16 %v8079, %v8078
    %v8184 = vpack.c.b16 %v8081, %v8080
    %v8185 = vpack.c.b16 %v8083, %v8082
    %v8186 = vpack.c.b16 %v8085, %v8084
    %v8187 = vpack.c.b16 %v8087, %v8086
    %v8188 = vpack.c.b16 %v8089, %v8088
    %v8189 = vpack.c.b16 %v8091, %v8090
    %v8190 = vpack.c.b16 %v8093, %v8092
    %v8191 = vpack.c.b16 %v8095, %v8094
    %v8192 = vpack.c.b16 %v8097, %v8096
    %v8193 = vpack.c.b16 %v8099, %v8098
    %v8194 = vpack.c.b16 %v8101, %v8100
    %v8195 = vpack.c.b16 %v8103, %v8102
    %v8196 = vpack.c.b16 %v8105, %v8104
    %v8197 = vpack.c.b16 %v8107, %v8106
    %v8198 = vpack.c.b16 %v8109, %v8108
    %v8199 = vpack.c.b16 %v8111, %v8110
    %v8200 = vpack.c.b16 %v8113, %v8112
    %v8201 = vpack.c.b16 %v8115, %v8114
    %v8202 = vpack.c.b16 %v8117, %v8116
    %v8203 = vpack.c.b16 %v8119, %v8118
    %v8204 = vpack.c.b16 %v8121, %v8120
    %v8205 = vpack.c.b16 %v8123, %v8122
    %v8206 = vpack.c.b16 %v8125, %v8124
    %v8207 = vpack.c.b16 %v8127, %v8126
    %v8208 = vpack.c.b16 %v8129, %v8128
    %v8209 = vpack.c.b16 %v8131, %v8130
    %v8210 = vpack.c.b16 %v8133, %v8132
    %v8211 = vpack.c.b16 %v8135, %v8134
    %v8212 = vpack.c.b16 %v8137, %v8136
    %v8213 = vpack.c.b16 %v8139, %v8138
    %v8214 = vpack.c.b16 %v8141, %v8140
    %v8215 = vpack.c.b16 %v8143, %v8142
    %v8216 = vpack.c.b16 %v8145, %v8144
    %v8217 = vpack.c.b16 %v8147, %v8146
    %v8218 = vpack.c.b16 %v8149, %v8148
    %v8219 = vpack.c.b16 %v8151, %v8150
    %v8220 = vpack.c.b16 %v8153, %v8152
    %v8221 = vpack.c.b16 %v8155, %v8154
    %v8222 = vpack.c.b16 %v8157, %v8156
    %v8223 = vpack.c.b16 %v8159, %v8158
    %8288 = vmatpush.bf16.msra.mxu0 %v8167
    %8289 = vmatpush.bf16.msra.mxu0 %v8166
    %8290 = vmatpush.bf16.msra.mxu0 %v8165
    %8291 = vmatpush.bf16.msra.mxu0 %v8164
    %8292 = vmatpush.bf16.msra.mxu0 %v8163
    %8293 = vmatpush.bf16.msra.mxu0 %v8162
    %8294 = vmatpush.bf16.msra.mxu0 %v8161
    %8295 = vmatpush.bf16.msra.mxu0 %v8160
    %8296 = vmatmul.bf16.gmra.mxu0 %v7765
    %v8297 = vpop.f32.mrf.mxu0
    %v8298 = vadd.f32 %v7902, %v8297
    %v8299 = vpop.f32.mrf.mxu0
    %8300 = vdwg.mxu0
    %8301 = vmatpush.bf16.msra.mxu0 %v8175
    %8302 = vmatpush.bf16.msra.mxu0 %v8174
    %8303 = vmatpush.bf16.msra.mxu0 %v8173
    %8304 = vmatpush.bf16.msra.mxu0 %v8172
    %8305 = vmatpush.bf16.msra.mxu0 %v8171
    %8306 = vmatpush.bf16.msra.mxu0 %v8170
    %8307 = vmatpush.bf16.msra.mxu0 %v8169
    %8308 = vmatpush.bf16.msra.mxu0 %v8168
    %8309 = vmatmul.bf16.gmra.mxu0 %v7766
    %v8310 = vpop.f32.mrf.mxu0
    %v8311 = vadd.f32 %v8298, %v8310
    %v8312 = vpop.f32.mrf.mxu0
    %8313 = vdwg.mxu0
    %8314 = vmatpush.bf16.msra.mxu0 %v8183
    %8315 = vmatpush.bf16.msra.mxu0 %v8182
    %8316 = vmatpush.bf16.msra.mxu0 %v8181
    %8317 = vmatpush.bf16.msra.mxu0 %v8180
    %8318 = vmatpush.bf16.msra.mxu0 %v8179
    %8319 = vmatpush.bf16.msra.mxu0 %v8178
    %8320 = vmatpush.bf16.msra.mxu0 %v8177
    %8321 = vmatpush.bf16.msra.mxu0 %v8176
    %8322 = vmatmul.bf16.gmra.mxu0 %v7767
    %v8323 = vpop.f32.mrf.mxu0
    %v8324 = vadd.f32 %v8311, %v8323
    %v8325 = vpop.f32.mrf.mxu0
    %8326 = vdwg.mxu0
    %8327 = vmatpush.bf16.msra.mxu0 %v8191
    %8328 = vmatpush.bf16.msra.mxu0 %v8190
    %8329 = vmatpush.bf16.msra.mxu0 %v8189
    %8330 = vmatpush.bf16.msra.mxu0 %v8188
    %8331 = vmatpush.bf16.msra.mxu0 %v8187
    %8332 = vmatpush.bf16.msra.mxu0 %v8186
    %8333 = vmatpush.bf16.msra.mxu0 %v8185
    %8334 = vmatpush.bf16.msra.mxu0 %v8184
    %8335 = vmatmul.bf16.gmra.mxu0 %v7768
    %v8336 = vpop.f32.mrf.mxu0
    %v8337 = vadd.f32 %v8324, %v8336
    %v8338 = vpop.f32.mrf.mxu0
    %8339 = vdwg.mxu0
    %8340 = vmatpush.bf16.msra.mxu0 %v8199
    %8341 = vmatpush.bf16.msra.mxu0 %v8198
    %8342 = vmatpush.bf16.msra.mxu0 %v8197
    %8343 = vmatpush.bf16.msra.mxu0 %v8196
    %8344 = vmatpush.bf16.msra.mxu0 %v8195
    %8345 = vmatpush.bf16.msra.mxu0 %v8194
    %8346 = vmatpush.bf16.msra.mxu0 %v8193
    %8347 = vmatpush.bf16.msra.mxu0 %v8192
    %8348 = vmatmul.bf16.gmra.mxu0 %v7769
    %v8349 = vpop.f32.mrf.mxu0
    %v8350 = vadd.f32 %v8337, %v8349
    %v8351 = vpop.f32.mrf.mxu0
    %8352 = vdwg.mxu0
    %8353 = vmatpush.bf16.msra.mxu0 %v8207
    %8354 = vmatpush.bf16.msra.mxu0 %v8206
    %8355 = vmatpush.bf16.msra.mxu0 %v8205
    %8356 = vmatpush.bf16.msra.mxu0 %v8204
    %8357 = vmatpush.bf16.msra.mxu0 %v8203
    %8358 = vmatpush.bf16.msra.mxu0 %v8202
    %8359 = vmatpush.bf16.msra.mxu0 %v8201
    %8360 = vmatpush.bf16.msra.mxu0 %v8200
    %8361 = vmatmul.bf16.gmra.mxu0 %v7770
    %v8362 = vpop.f32.mrf.mxu0
    %v8363 = vadd.f32 %v8350, %v8362
    %v8364 = vpop.f32.mrf.mxu0
    %8365 = vdwg.mxu0
    %8366 = vmatpush.bf16.msra.mxu0 %v8215
    %8367 = vmatpush.bf16.msra.mxu0 %v8214
    %8368 = vmatpush.bf16.msra.mxu0 %v8213
    %8369 = vmatpush.bf16.msra.mxu0 %v8212
    %8370 = vmatpush.bf16.msra.mxu0 %v8211
    %8371 = vmatpush.bf16.msra.mxu0 %v8210
    %8372 = vmatpush.bf16.msra.mxu0 %v8209
    %8373 = vmatpush.bf16.msra.mxu0 %v8208
    %8374 = vmatmul.bf16.gmra.mxu0 %v7771
    %v8375 = vpop.f32.mrf.mxu0
    %v8376 = vadd.f32 %v8363, %v8375
    %v8377 = vpop.f32.mrf.mxu0
    %8378 = vdwg.mxu0
    %8379 = vmatpush.bf16.msra.mxu0 %v8223
    %8380 = vmatpush.bf16.msra.mxu0 %v8222
    %8381 = vmatpush.bf16.msra.mxu0 %v8221
    %8382 = vmatpush.bf16.msra.mxu0 %v8220
    %8383 = vmatpush.bf16.msra.mxu0 %v8219
    %8384 = vmatpush.bf16.msra.mxu0 %v8218
    %8385 = vmatpush.bf16.msra.mxu0 %v8217
    %8386 = vmatpush.bf16.msra.mxu0 %v8216
    %8387 = vmatmul.bf16.gmra.mxu0 %v7772
    %v8388 = vpop.f32.mrf.mxu0
    %v8389 = vadd.f32 %v8376, %v8388
    %v8390 = vpop.f32.mrf.mxu0
    %8391 = vdwg.mxu0
    %v8392 = vmax.f32 %v8389, 0.0
    %vm8393 = vcmp.lt.s32.totalorder %v146, 10
    %v8394 = vsel %vm8393, %v8392, -inf
    %v8395 = vsel %vm2192, %v8394, -inf
    %8396 = vmax.xlane.f32.xlu0 %v8395
    %v8397 = vpop.xlane.xlu0 %8396
    %v8398 = vsub.f32 %v8394, %v8397
    %v8399 = vmul.f32 %v8398, 1.442695
    %v8400 = vpow.pop %v8399
    %v8401 = vsel %vm2192, %v8400, 0.0
    %8402 = vadd.xlane.f32.xlu0 %v8401
    %v8403 = vpop.xlane.xlu0 %8402
    %v8404 = vlog2.pop %v8403
    %v8405 = vmul.f32 %v8404, 0.6931472
    %v8406 = vsub.f32 %v8398, %v8405
    %8407 = vst [vmem:[#allocation18] sm:$0x3] %v8406
    // Predicated region
    $region62: #{simplenet_forward.1} parent=1 // pred_check
      _
    $region63: #{simplenet_forward.1} parent=1 // pred_check_branch
      %8409 = sbr.rel (0) target = $region65
    $region64: #{simplenet_forward.1} parent=1 // pred_region
      %8411 = vsyncadd [#allocation9], 0
      %s8413 = sshll.u32 [#allocation18], 4
      %s8414 = int_to_ptr.vmem [resolvable:$true] %s8413
      %s8415 = sshll.u32 %s9, 4
      %s8416 = int_to_ptr.hbm [resolvable:$true] %s8415
      %8418 = dma.vmem_to_hbm [thread:$0]  %s8414, 32, %s8416, [#allocation9]
    $region65: #{simplenet_forward.1} parent=1 // pred_fallthru
      _
    // Predicated region
    $region66: #{simplenet_forward.1} parent=1 // pred_check
      _
    $region67: #{simplenet_forward.1} parent=1 // pred_check_branch
      %8420 = sbr.rel (0) target = $region69
    $region68: #{simplenet_forward.1} parent=1 // pred_region
      %8422 = dma.done [#allocation9], 32
    $region69: #{simplenet_forward.1} parent=1 // pred_fallthru
      _
    %8423 = vsyncpa [#allocation8], 1
    %8424 = vsyncpa [#allocation11], 1
    %8425 = vsyncpa [#allocation14], 1
    %8426 = vsyncpa [#allocation17], 1
    %8427 = vsyncpa [#allocation9], 1
  %8428 = vsyncmov [#allocation4]
  %s8429 = vpop.sfrf %8428
  %p8430 = scmp.eq.s32.totalorder %s8429, 0
  %p8431 = pneg %p8430
  %8433 = shalt.err (%p8431)
  %s8434 = scalar_lea.sflag [#allocation4], 1
  %8435 = vsyncmov %s8434
  %s8436 = vpop.sfrf %8435
  %p8437 = scmp.eq.s32.totalorder %s8436, 0
  %p8438 = pneg %p8437
  %8440 = shalt.err (%p8438)

</llo_original>
